<compile_context>
chip_gen: v7x
topology: tpu7x:2x2x1
jax: 0.10.0
libtpu: 0.0.40
codegen_flags: <defaults>
</compile_context>

<pallas_src>
import jax
import jax.numpy as jnp
from jax.experimental import pallas as pl
from jax.experimental.pallas import tpu as pltpu


# ----------------------------------------------------------------------------
# Kernel 1: fused conv1 + ReLU + conv2 (im2col) + ReLU + 2x2 maxpool
# ----------------------------------------------------------------------------
def _conv_pool_kernel(x_ref, w1_ref, b1_ref, w2_ref, b2_ref, o_ref,
                      xb_sc, y1_sc, patch_sc, pool_sc):
    # x_ref : [NB, 28, 28, 1]      w1_ref : [3, 3, 32]        b1_ref: [1, 32]
    # w2_ref: [288, 64] bf16       b2_ref : [1, 64]
    # o_ref : [NB, 12, 6, 128] bf16
    # xb_sc : [NB, 28, 28, 32] f32   y1_sc: [NB, 26, 26, 32] f32
    # patch_sc: [NB*576, 288] bf16   pool_sc: [NB, 12, 24, 64] f32
    nb = xb_sc.shape[0]
    m = nb * 576

    # ---- broadcast the single input channel to 32 lanes ONCE ----------------
    xb_sc[...] = jnp.broadcast_to(x_ref[...], xb_sc.shape)

    # ---- conv1: 9 shifted VPU FMAs, value-accumulated, one fused store ------
    acc = None
    for kh in range(3):
        for kw in range(3):
            tap = xb_sc[:, kh:kh + 26, kw:kw + 26, :] * w1_ref[kh, kw:kw + 1, :]
            acc = tap if acc is None else acc + tap
    y1_sc[...] = jnp.maximum(acc + b1_ref[...], 0.0)          # bias + ReLU

    # ---- conv2: build bf16 im2col patches (shifts paid once), one matmul ----
    for kh in range(3):
        for kw in range(3):
            t = kh * 3 + kw
            slab = y1_sc[:, kh:kh + 24, kw:kw + 24, :].reshape(m, 32)
            patch_sc[:, t * 32:(t + 1) * 32] = slab.astype(jnp.bfloat16)

    y2 = jnp.dot(patch_sc[...], w2_ref[...],                  # [M,288]@[288,64]
                 preferred_element_type=jnp.float32)
    y2 = jnp.maximum(y2 + b2_ref[...], 0.0)                   # bias + ReLU

    # ---- fused 2x2 maxpool -> lane-dense [NB, 12, 6, 128] bf16 output -------
    # rows of y2 are (b*576 + h*24 + w); split of the row dim keeps the
    # 24-sublane groups intact (layout preserving).
    y2 = y2.reshape(nb, 12, 2, 24, 64)
    pool_sc[...] = jnp.maximum(y2[:, :, 0], y2[:, :, 1])      # h-pair max
    # w-pair max via strided loads; interleave (w=2j | w=2j+1) into 128 lanes,
    # which matches the contiguous NHWC (h, w, c) flatten to 9216.
    t0 = pool_sc[:, :, pl.ds(0, 6, 4), :]
    t1 = pool_sc[:, :, pl.ds(1, 6, 4), :]
    t2 = pool_sc[:, :, pl.ds(2, 6, 4), :]
    t3 = pool_sc[:, :, pl.ds(3, 6, 4), :]
    out = jnp.concatenate([jnp.maximum(t0, t1), jnp.maximum(t2, t3)], axis=-1)
    o_ref[...] = out.astype(o_ref.dtype)


def conv_pool(x, w1, b1, w2, b2):
    bsz = x.shape[0]
    # Block several images per grid step (amortize ~0.35us/step overhead and
    # grow the MXU M dim), but keep >= 2 steps so the "parallel" axis can still
    # split across v7x's two TensorCores.
    img_blk = max(1, min(8, bsz // 2))
    while bsz % img_blk:
        img_blk -= 1
    nsteps = bsz // img_blk
    # Scratch is ~0.5 MB/img; well under every generation's scoped-VMEM default
    # (incl. v7x's 32 MiB), so no vmem_limit_bytes override is needed.
    out = pl.pallas_call(
        _conv_pool_kernel,
        out_shape=jax.ShapeDtypeStruct((bsz, 12, 6, 128), jnp.bfloat16),
        grid=(nsteps,),
        in_specs=[
            pl.BlockSpec((img_blk, 28, 28, 1), lambda b: (b, 0, 0, 0)),
            pl.BlockSpec((3, 3, 32), lambda b: (0, 0, 0)),
            pl.BlockSpec((1, 32), lambda b: (0, 0)),
            pl.BlockSpec((288, 64), lambda b: (0, 0)),
            pl.BlockSpec((1, 64), lambda b: (0, 0)),
        ],
        out_specs=pl.BlockSpec((img_blk, 12, 6, 128), lambda b: (b, 0, 0, 0)),
        scratch_shapes=[
            pltpu.VMEM((img_blk, 28, 28, 32), jnp.float32),    # broadcast input
            pltpu.VMEM((img_blk, 26, 26, 32), jnp.float32),    # conv1 output
            pltpu.VMEM((img_blk * 576, 288), jnp.bfloat16),    # im2col patches
            pltpu.VMEM((img_blk, 12, 24, 64), jnp.float32),    # h-pooled conv2
        ],
        compiler_params=pltpu.CompilerParams(
            dimension_semantics=("parallel",)),
    )(x, w1, b1, w2, b2)
    # Free HBM reshape; 128-lane-dense contiguous layout == NHWC (h,w,c) flatten.
    return out.reshape(bsz, 9216)


# ----------------------------------------------------------------------------
# Kernel 2: fc1 + ReLU + fc2 + log_softmax, K-tiled so fc1_w DMA is pipelined
# ----------------------------------------------------------------------------
def _mlp_head_kernel(x_ref, w1_ref, b1_ref, w2_ref, b2_ref, o_ref, acc_sc):
    k = pl.program_id(0)
    part = jnp.dot(x_ref[...], w1_ref[...],                    # bf16 in, f32 acc
                   preferred_element_type=jnp.float32)

    @pl.when(k == 0)
    def _():
        acc_sc[...] = part

    @pl.when(k != 0)
    def _():
        acc_sc[...] += part

    @pl.when(k == pl.num_programs(0) - 1)
    def _():
        h = jnp.maximum(acc_sc[...] + b1_ref[...], 0.0)
        logits = jnp.dot(h, w2_ref[...],
                         preferred_element_type=jnp.float32) + b2_ref[...]
        mx = jnp.max(logits, axis=-1, keepdims=True)
        s = logits - mx
        lse = jnp.log(jnp.sum(jnp.exp(s), axis=-1, keepdims=True))
        o_ref[...] = s - lse


def mlp_head(x, w1, b1, w2, b2, *, k_tile=2304):
    bsz, kdim = x.shape
    assert kdim % k_tile == 0
    nk = kdim // k_tile
    nout = w2.shape[1]
    return pl.pallas_call(
        _mlp_head_kernel,
        out_shape=jax.ShapeDtypeStruct((bsz, nout), jnp.float32),
        grid=(nk,),
        in_specs=[
            pl.BlockSpec((bsz, k_tile), lambda k: (0, k)),
            pl.BlockSpec((k_tile, 128), lambda k: (k, 0)),
            pl.BlockSpec((1, 128), lambda k: (0, 0)),
            pl.BlockSpec((128, nout), lambda k: (0, 0)),
            pl.BlockSpec((1, nout), lambda k: (0, 0)),
        ],
        out_specs=pl.BlockSpec((bsz, nout), lambda k: (0, 0)),
        scratch_shapes=[pltpu.VMEM((bsz, 128), jnp.float32)],
        compiler_params=pltpu.CompilerParams(
            dimension_semantics=("arbitrary",)),
    )(x, w1, b1, w2, b2)


# ----------------------------------------------------------------------------
# Parameters (PyTorch-default-style uniform init) and forward.
# ----------------------------------------------------------------------------
def init_params(key):
    ks = jax.random.split(key, 8)

    def uinit(k, shape, fan_in):
        bound = 1.0 / float(fan_in) ** 0.5
        return jax.random.uniform(k, shape, jnp.float32, -bound, bound)

    conv1_w = uinit(ks[0], (32, 1, 3, 3), 1 * 9)       # PyTorch OIHW
    conv1_b = uinit(ks[1], (1, 32), 1 * 9)
    conv2_w = uinit(ks[2], (64, 32, 3, 3), 32 * 9)
    conv2_b = uinit(ks[3], (1, 64), 32 * 9)
    fc1_w = uinit(ks[4], (128, 9216), 9216)            # PyTorch [out, in(c,h,w)]
    fc1_b = uinit(ks[5], (1, 128), 9216)
    fc2_w = uinit(ks[6], (10, 128), 128)
    fc2_b = uinit(ks[7], (1, 10), 128)

    # conv1: OIHW [32,1,3,3] -> [kh, kw, oc] (Cin squeezed, used on the VPU)
    w1 = jnp.transpose(conv1_w[:, 0], (1, 2, 0))
    # conv2: OIHW -> im2col [(kh,kw,cin), cout] = [288, 64], bf16 MXU operand
    w2 = jnp.transpose(conv2_w, (2, 3, 1, 0)).reshape(288, 64).astype(jnp.bfloat16)
    # fc1: permute features from torch NCHW-flatten (c,h,w) order to the
    # NHWC-flatten (h,w,c) order kernel 1 emits; store bf16 (dominant HBM bytes).
    w_fc1 = fc1_w.reshape(128, 64, 12, 12)             # [out, c, h, w]
    w_fc1 = jnp.transpose(w_fc1, (2, 3, 1, 0))         # [h, w, c, out]
    w_fc1 = w_fc1.reshape(9216, 128).astype(jnp.bfloat16)
    w_fc2 = fc2_w.T                                    # [128, 10]

    return {
        "w1": w1, "b1": conv1_b,
        "w2": w2, "b2": conv2_b,
        "fc1_w": w_fc1, "fc1_b": fc1_b,
        "fc2_w": w_fc2, "fc2_b": fc2_b,
    }


def net_forward(x_nchw, p):
    x = jnp.transpose(x_nchw, (0, 2, 3, 1))                       # NCHW -> NHWC
    flat = conv_pool(x, p["w1"], p["b1"], p["w2"], p["b2"])       # [B,9216] bf16
    # TODO(synk): dropout1 / dropout2 are identity here (inference mode).
    return mlp_head(flat, p["fc1_w"], p["fc1_b"], p["fc2_w"], p["fc2_b"])


def ref_forward(x_nchw, p):
    """Pure-JAX reference with the same precision points (bf16 conv2 / fc1)."""
    x = jnp.transpose(x_nchw, (0, 2, 3, 1))
    y = jax.lax.conv_general_dilated(x, p["w1"][:, :, None, :], (1, 1), "VALID",
                                     dimension_numbers=("NHWC", "HWIO", "NHWC"))
    y = jax.nn.relu(y + p["b1"])
    w2_hwio = p["w2"].reshape(3, 3, 32, 64)                       # bf16
    y = jax.lax.conv_general_dilated(y.astype(jnp.bfloat16), w2_hwio, (1, 1),
                                     "VALID",
                                     dimension_numbers=("NHWC", "HWIO", "NHWC"),
                                     preferred_element_type=jnp.float32)
    y = jax.nn.relu(y + p["b2"])
    bsz, h, w, c = y.shape
    y = y.reshape(bsz, h // 2, 2, w // 2, 2, c).max(axis=(2, 4))
    flat = y.astype(jnp.bfloat16).reshape(bsz, -1)                # NHWC flatten
    h1 = jnp.dot(flat, p["fc1_w"],
                 preferred_element_type=jnp.float32) + p["fc1_b"]
    h1 = jax.nn.relu(h1)
    logits = h1 @ p["fc2_w"] + p["fc2_b"]
    return jax.nn.log_softmax(logits, axis=-1)


if __name__ == "__main__":
    key = jax.random.PRNGKey(0)
    pkey, xkey = jax.random.split(key)
    params = init_params(pkey)
    # PyTorch-style NCHW MNIST-shaped input so fc1's 9216 features line up.
    x = jax.random.normal(xkey, (2, 1, 28, 28), jnp.float32)

    out = jax.jit(net_forward)(x, params)
    out = jax.block_until_ready(out)

    ref = ref_forward(x, params)
    assert out.shape == (2, 10)
    # Tolerance covers the deliberate bf16 conv2 / pooled-activation / fc1_w
    # storage (the reference uses the same precision points).
    if not jnp.allclose(out, ref, atol=2e-2, rtol=2e-2):
        raise AssertionError("Pallas output mismatch vs JAX reference")
    print("KERNEL_OK")
</pallas_src>

<mosaic_0001>
module attributes {stable_mosaic.version = 11 : i64} {
  func.func @_conv_pool_kernel(%arg0: i32, %arg1: memref<1x28x28x1xf32, #tpu.memory_space<vmem>>, %arg2: memref<3x3x32xf32, #tpu.memory_space<vmem>>, %arg3: memref<1x32xf32, #tpu.memory_space<vmem>>, %arg4: memref<288x64xbf16, #tpu.memory_space<vmem>>, %arg5: memref<1x64xf32, #tpu.memory_space<vmem>>, %arg6: memref<1x12x6x128xbf16, #tpu.memory_space<vmem>>, %arg7: memref<1x28x28x32xf32, #tpu.memory_space<vmem>>, %arg8: memref<1x26x26x32xf32, #tpu.memory_space<vmem>>, %arg9: memref<576x288xbf16, #tpu.memory_space<vmem>>, %arg10: memref<1x12x24x64xf32, #tpu.memory_space<vmem>>) attributes {dimension_semantics = [#tpu.dimension_semantics<parallel>], iteration_bounds = array<i64: 2>, scalar_prefetch = 0 : i64, scratch_operands = 4 : i64, tpu.core_type = #tpu.core_type<tc>, window_params = [{transform_indices = @transform_0, window_bounds = array<i64: 1, 28, 28, 1>}, {pipeline_mode = #tpu.pipeline_mode<synchronous>, transform_indices = @transform_1, window_bounds = array<i64: 3, 3, 32>}, {pipeline_mode = #tpu.pipeline_mode<synchronous>, transform_indices = @transform_2, window_bounds = array<i64: 1, 32>}, {pipeline_mode = #tpu.pipeline_mode<synchronous>, transform_indices = @transform_3, window_bounds = array<i64: 288, 64>}, {pipeline_mode = #tpu.pipeline_mode<synchronous>, transform_indices = @transform_4, window_bounds = array<i64: 1, 64>}, {transform_indices = @transform_5, window_bounds = array<i64: 1, 12, 6, 128>}]} {
    %c0 = arith.constant 0 : index
    %c0_0 = arith.constant 0 : index
    %c0_1 = arith.constant 0 : index
    %c0_2 = arith.constant 0 : index
    %0 = vector.load %arg1[%c0, %c0_0, %c0_1, %c0_2] : memref<1x28x28x1xf32, #tpu.memory_space<vmem>>, vector<1x28x28x1xf32>
    %1 = vector.shape_cast %0 : vector<1x28x28x1xf32> to vector<1x28x28x1xf32>
    %2 = vector.broadcast %1 : vector<1x28x28x1xf32> to vector<1x28x28x32xf32>
    %c0_3 = arith.constant 0 : index
    %c0_4 = arith.constant 0 : index
    %c0_5 = arith.constant 0 : index
    %c0_6 = arith.constant 0 : index
    %3 = vector.load %arg7[%c0_3, %c0_4, %c0_5, %c0_6] : memref<1x28x28x32xf32, #tpu.memory_space<vmem>>, vector<1x28x28x32xf32>
    tpu.vector_store %arg7[%c0_3, %c0_4, %c0_5, %c0_6], %2 {strides = array<i32>} : memref<1x28x28x32xf32, #tpu.memory_space<vmem>>, vector<1x28x28x32xf32>,
    %c0_7 = arith.constant 0 : index
    %c0_8 = arith.constant 0 : index
    %c0_9 = arith.constant 0 : index
    %c0_10 = arith.constant 0 : index
    %4 = vector.load %arg7[%c0_7, %c0_8, %c0_9, %c0_10] : memref<1x28x28x32xf32, #tpu.memory_space<vmem>>, vector<1x26x26x32xf32>
    %c0_11 = arith.constant 0 : index
    %c0_12 = arith.constant 0 : index
    %c0_13 = arith.constant 0 : index
    %5 = vector.load %arg2[%c0_11, %c0_12, %c0_13] : memref<3x3x32xf32, #tpu.memory_space<vmem>>, vector<1x1x32xf32>
    %6 = vector.shape_cast %5 : vector<1x1x32xf32> to vector<1x32xf32>
    %7 = vector.shape_cast %6 : vector<1x32xf32> to vector<1x1x1x32xf32>
    %8 = vector.broadcast %7 : vector<1x1x1x32xf32> to vector<1x26x26x32xf32>
    %9 = arith.mulf %4, %8 : vector<1x26x26x32xf32>
    %c0_14 = arith.constant 0 : index
    %c0_15 = arith.constant 0 : index
    %c1 = arith.constant 1 : index
    %c0_16 = arith.constant 0 : index
    %10 = vector.load %arg7[%c0_14, %c0_15, %c1, %c0_16] : memref<1x28x28x32xf32, #tpu.memory_space<vmem>>, vector<1x26x26x32xf32>
    %c0_17 = arith.constant 0 : index
    %c1_18 = arith.constant 1 : index
    %c0_19 = arith.constant 0 : index
    %11 = vector.load %arg2[%c0_17, %c1_18, %c0_19] : memref<3x3x32xf32, #tpu.memory_space<vmem>>, vector<1x1x32xf32>
    %12 = vector.shape_cast %11 : vector<1x1x32xf32> to vector<1x32xf32>
    %13 = vector.shape_cast %12 : vector<1x32xf32> to vector<1x1x1x32xf32>
    %14 = vector.broadcast %13 : vector<1x1x1x32xf32> to vector<1x26x26x32xf32>
    %15 = arith.mulf %10, %14 : vector<1x26x26x32xf32>
    %16 = arith.addf %9, %15 : vector<1x26x26x32xf32>
    %c0_20 = arith.constant 0 : index
    %c0_21 = arith.constant 0 : index
    %c2 = arith.constant 2 : index
    %c0_22 = arith.constant 0 : index
    %17 = vector.load %arg7[%c0_20, %c0_21, %c2, %c0_22] : memref<1x28x28x32xf32, #tpu.memory_space<vmem>>, vector<1x26x26x32xf32>
    %c0_23 = arith.constant 0 : index
    %c2_24 = arith.constant 2 : index
    %c0_25 = arith.constant 0 : index
    %18 = vector.load %arg2[%c0_23, %c2_24, %c0_25] : memref<3x3x32xf32, #tpu.memory_space<vmem>>, vector<1x1x32xf32>
    %19 = vector.shape_cast %18 : vector<1x1x32xf32> to vector<1x32xf32>
    %20 = vector.shape_cast %19 : vector<1x32xf32> to vector<1x1x1x32xf32>
    %21 = vector.broadcast %20 : vector<1x1x1x32xf32> to vector<1x26x26x32xf32>
    %22 = arith.mulf %17, %21 : vector<1x26x26x32xf32>
    %23 = arith.addf %16, %22 : vector<1x26x26x32xf32>
    %c0_26 = arith.constant 0 : index
    %c1_27 = arith.constant 1 : index
    %c0_28 = arith.constant 0 : index
    %c0_29 = arith.constant 0 : index
    %24 = vector.load %arg7[%c0_26, %c1_27, %c0_28, %c0_29] : memref<1x28x28x32xf32, #tpu.memory_space<vmem>>, vector<1x26x26x32xf32>
    %c1_30 = arith.constant 1 : index
    %c0_31 = arith.constant 0 : index
    %c0_32 = arith.constant 0 : index
    %25 = vector.load %arg2[%c1_30, %c0_31, %c0_32] : memref<3x3x32xf32, #tpu.memory_space<vmem>>, vector<1x1x32xf32>
    %26 = vector.shape_cast %25 : vector<1x1x32xf32> to vector<1x32xf32>
    %27 = vector.shape_cast %26 : vector<1x32xf32> to vector<1x1x1x32xf32>
    %28 = vector.broadcast %27 : vector<1x1x1x32xf32> to vector<1x26x26x32xf32>
    %29 = arith.mulf %24, %28 : vector<1x26x26x32xf32>
    %30 = arith.addf %23, %29 : vector<1x26x26x32xf32>
    %c0_33 = arith.constant 0 : index
    %c1_34 = arith.constant 1 : index
    %c1_35 = arith.constant 1 : index
    %c0_36 = arith.constant 0 : index
    %31 = vector.load %arg7[%c0_33, %c1_34, %c1_35, %c0_36] : memref<1x28x28x32xf32, #tpu.memory_space<vmem>>, vector<1x26x26x32xf32>
    %c1_37 = arith.constant 1 : index
    %c1_38 = arith.constant 1 : index
    %c0_39 = arith.constant 0 : index
    %32 = vector.load %arg2[%c1_37, %c1_38, %c0_39] : memref<3x3x32xf32, #tpu.memory_space<vmem>>, vector<1x1x32xf32>
    %33 = vector.shape_cast %32 : vector<1x1x32xf32> to vector<1x32xf32>
    %34 = vector.shape_cast %33 : vector<1x32xf32> to vector<1x1x1x32xf32>
    %35 = vector.broadcast %34 : vector<1x1x1x32xf32> to vector<1x26x26x32xf32>
    %36 = arith.mulf %31, %35 : vector<1x26x26x32xf32>
    %37 = arith.addf %30, %36 : vector<1x26x26x32xf32>
    %c0_40 = arith.constant 0 : index
    %c1_41 = arith.constant 1 : index
    %c2_42 = arith.constant 2 : index
    %c0_43 = arith.constant 0 : index
    %38 = vector.load %arg7[%c0_40, %c1_41, %c2_42, %c0_43] : memref<1x28x28x32xf32, #tpu.memory_space<vmem>>, vector<1x26x26x32xf32>
    %c1_44 = arith.constant 1 : index
    %c2_45 = arith.constant 2 : index
    %c0_46 = arith.constant 0 : index
    %39 = vector.load %arg2[%c1_44, %c2_45, %c0_46] : memref<3x3x32xf32, #tpu.memory_space<vmem>>, vector<1x1x32xf32>
    %40 = vector.shape_cast %39 : vector<1x1x32xf32> to vector<1x32xf32>
    %41 = vector.shape_cast %40 : vector<1x32xf32> to vector<1x1x1x32xf32>
    %42 = vector.broadcast %41 : vector<1x1x1x32xf32> to vector<1x26x26x32xf32>
    %43 = arith.mulf %38, %42 : vector<1x26x26x32xf32>
    %44 = arith.addf %37, %43 : vector<1x26x26x32xf32>
    %c0_47 = arith.constant 0 : index
    %c2_48 = arith.constant 2 : index
    %c0_49 = arith.constant 0 : index
    %c0_50 = arith.constant 0 : index
    %45 = vector.load %arg7[%c0_47, %c2_48, %c0_49, %c0_50] : memref<1x28x28x32xf32, #tpu.memory_space<vmem>>, vector<1x26x26x32xf32>
    %c2_51 = arith.constant 2 : index
    %c0_52 = arith.constant 0 : index
    %c0_53 = arith.constant 0 : index
    %46 = vector.load %arg2[%c2_51, %c0_52, %c0_53] : memref<3x3x32xf32, #tpu.memory_space<vmem>>, vector<1x1x32xf32>
    %47 = vector.shape_cast %46 : vector<1x1x32xf32> to vector<1x32xf32>
    %48 = vector.shape_cast %47 : vector<1x32xf32> to vector<1x1x1x32xf32>
    %49 = vector.broadcast %48 : vector<1x1x1x32xf32> to vector<1x26x26x32xf32>
    %50 = arith.mulf %45, %49 : vector<1x26x26x32xf32>
    %51 = arith.addf %44, %50 : vector<1x26x26x32xf32>
    %c0_54 = arith.constant 0 : index
    %c2_55 = arith.constant 2 : index
    %c1_56 = arith.constant 1 : index
    %c0_57 = arith.constant 0 : index
    %52 = vector.load %arg7[%c0_54, %c2_55, %c1_56, %c0_57] : memref<1x28x28x32xf32, #tpu.memory_space<vmem>>, vector<1x26x26x32xf32>
    %c2_58 = arith.constant 2 : index
    %c1_59 = arith.constant 1 : index
    %c0_60 = arith.constant 0 : index
    %53 = vector.load %arg2[%c2_58, %c1_59, %c0_60] : memref<3x3x32xf32, #tpu.memory_space<vmem>>, vector<1x1x32xf32>
    %54 = vector.shape_cast %53 : vector<1x1x32xf32> to vector<1x32xf32>
    %55 = vector.shape_cast %54 : vector<1x32xf32> to vector<1x1x1x32xf32>
    %56 = vector.broadcast %55 : vector<1x1x1x32xf32> to vector<1x26x26x32xf32>
    %57 = arith.mulf %52, %56 : vector<1x26x26x32xf32>
    %58 = arith.addf %51, %57 : vector<1x26x26x32xf32>
    %c0_61 = arith.constant 0 : index
    %c2_62 = arith.constant 2 : index
    %c2_63 = arith.constant 2 : index
    %c0_64 = arith.constant 0 : index
    %59 = vector.load %arg7[%c0_61, %c2_62, %c2_63, %c0_64] : memref<1x28x28x32xf32, #tpu.memory_space<vmem>>, vector<1x26x26x32xf32>
    %c2_65 = arith.constant 2 : index
    %c2_66 = arith.constant 2 : index
    %c0_67 = arith.constant 0 : index
    %60 = vector.load %arg2[%c2_65, %c2_66, %c0_67] : memref<3x3x32xf32, #tpu.memory_space<vmem>>, vector<1x1x32xf32>
    %61 = vector.shape_cast %60 : vector<1x1x32xf32> to vector<1x32xf32>
    %62 = vector.shape_cast %61 : vector<1x32xf32> to vector<1x1x1x32xf32>
    %63 = vector.broadcast %62 : vector<1x1x1x32xf32> to vector<1x26x26x32xf32>
    %64 = arith.mulf %59, %63 : vector<1x26x26x32xf32>
    %65 = arith.addf %58, %64 : vector<1x26x26x32xf32>
    %c0_68 = arith.constant 0 : index
    %c0_69 = arith.constant 0 : index
    %66 = vector.load %arg3[%c0_68, %c0_69] : memref<1x32xf32, #tpu.memory_space<vmem>>, vector<1x32xf32>
    %67 = vector.shape_cast %66 : vector<1x32xf32> to vector<1x1x1x32xf32>
    %68 = vector.broadcast %67 : vector<1x1x1x32xf32> to vector<1x26x26x32xf32>
    %69 = arith.addf %65, %68 : vector<1x26x26x32xf32>
    %cst = arith.constant 0.000000e+00 : f32
    %70 = vector.broadcast %cst : f32 to vector<1x26x26x32xf32>
    %71 = arith.maximumf %69, %70 : vector<1x26x26x32xf32>
    %c0_70 = arith.constant 0 : index
    %c0_71 = arith.constant 0 : index
    %c0_72 = arith.constant 0 : index
    %c0_73 = arith.constant 0 : index
    %72 = vector.load %arg8[%c0_70, %c0_71, %c0_72, %c0_73] : memref<1x26x26x32xf32, #tpu.memory_space<vmem>>, vector<1x26x26x32xf32>
    tpu.vector_store %arg8[%c0_70, %c0_71, %c0_72, %c0_73], %71 {strides = array<i32>} : memref<1x26x26x32xf32, #tpu.memory_space<vmem>>, vector<1x26x26x32xf32>,
    %c0_74 = arith.constant 0 : index
    %c0_75 = arith.constant 0 : index
    %c0_76 = arith.constant 0 : index
    %c0_77 = arith.constant 0 : index
    %73 = vector.load %arg8[%c0_74, %c0_75, %c0_76, %c0_77] : memref<1x26x26x32xf32, #tpu.memory_space<vmem>>, vector<1x24x24x32xf32>
    %74 = vector.shape_cast %73 : vector<1x24x24x32xf32> to vector<576x32xf32>
    %75 = arith.truncf %74 : vector<576x32xf32> to vector<576x32xbf16>
    %c0_78 = arith.constant 0 : index
    %c0_79 = arith.constant 0 : index
    %76 = vector.load %arg9[%c0_78, %c0_79] : memref<576x288xbf16, #tpu.memory_space<vmem>>, vector<576x32xbf16>
    tpu.vector_store %arg9[%c0_78, %c0_79], %75 {strides = array<i32>} : memref<576x288xbf16, #tpu.memory_space<vmem>>, vector<576x32xbf16>,
    %c0_80 = arith.constant 0 : index
    %c0_81 = arith.constant 0 : index
    %c1_82 = arith.constant 1 : index
    %c0_83 = arith.constant 0 : index
    %77 = vector.load %arg8[%c0_80, %c0_81, %c1_82, %c0_83] : memref<1x26x26x32xf32, #tpu.memory_space<vmem>>, vector<1x24x24x32xf32>
    %78 = vector.shape_cast %77 : vector<1x24x24x32xf32> to vector<576x32xf32>
    %79 = arith.truncf %78 : vector<576x32xf32> to vector<576x32xbf16>
    %c0_84 = arith.constant 0 : index
    %c32 = arith.constant 32 : index
    %80 = vector.load %arg9[%c0_84, %c32] : memref<576x288xbf16, #tpu.memory_space<vmem>>, vector<576x32xbf16>
    tpu.vector_store %arg9[%c0_84, %c32], %79 {strides = array<i32>} : memref<576x288xbf16, #tpu.memory_space<vmem>>, vector<576x32xbf16>,
    %c0_85 = arith.constant 0 : index
    %c0_86 = arith.constant 0 : index
    %c2_87 = arith.constant 2 : index
    %c0_88 = arith.constant 0 : index
    %81 = vector.load %arg8[%c0_85, %c0_86, %c2_87, %c0_88] : memref<1x26x26x32xf32, #tpu.memory_space<vmem>>, vector<1x24x24x32xf32>
    %82 = vector.shape_cast %81 : vector<1x24x24x32xf32> to vector<576x32xf32>
    %83 = arith.truncf %82 : vector<576x32xf32> to vector<576x32xbf16>
    %c0_89 = arith.constant 0 : index
    %c64 = arith.constant 64 : index
    %84 = vector.load %arg9[%c0_89, %c64] : memref<576x288xbf16, #tpu.memory_space<vmem>>, vector<576x32xbf16>
    tpu.vector_store %arg9[%c0_89, %c64], %83 {strides = array<i32>} : memref<576x288xbf16, #tpu.memory_space<vmem>>, vector<576x32xbf16>,
    %c0_90 = arith.constant 0 : index
    %c1_91 = arith.constant 1 : index
    %c0_92 = arith.constant 0 : index
    %c0_93 = arith.constant 0 : index
    %85 = vector.load %arg8[%c0_90, %c1_91, %c0_92, %c0_93] : memref<1x26x26x32xf32, #tpu.memory_space<vmem>>, vector<1x24x24x32xf32>
    %86 = vector.shape_cast %85 : vector<1x24x24x32xf32> to vector<576x32xf32>
    %87 = arith.truncf %86 : vector<576x32xf32> to vector<576x32xbf16>
    %c0_94 = arith.constant 0 : index
    %c96 = arith.constant 96 : index
    %88 = vector.load %arg9[%c0_94, %c96] : memref<576x288xbf16, #tpu.memory_space<vmem>>, vector<576x32xbf16>
    tpu.vector_store %arg9[%c0_94, %c96], %87 {strides = array<i32>} : memref<576x288xbf16, #tpu.memory_space<vmem>>, vector<576x32xbf16>,
    %c0_95 = arith.constant 0 : index
    %c1_96 = arith.constant 1 : index
    %c1_97 = arith.constant 1 : index
    %c0_98 = arith.constant 0 : index
    %89 = vector.load %arg8[%c0_95, %c1_96, %c1_97, %c0_98] : memref<1x26x26x32xf32, #tpu.memory_space<vmem>>, vector<1x24x24x32xf32>
    %90 = vector.shape_cast %89 : vector<1x24x24x32xf32> to vector<576x32xf32>
    %91 = arith.truncf %90 : vector<576x32xf32> to vector<576x32xbf16>
    %c0_99 = arith.constant 0 : index
    %c128 = arith.constant 128 : index
    %92 = vector.load %arg9[%c0_99, %c128] : memref<576x288xbf16, #tpu.memory_space<vmem>>, vector<576x32xbf16>
    tpu.vector_store %arg9[%c0_99, %c128], %91 {strides = array<i32>} : memref<576x288xbf16, #tpu.memory_space<vmem>>, vector<576x32xbf16>,
    %c0_100 = arith.constant 0 : index
    %c1_101 = arith.constant 1 : index
    %c2_102 = arith.constant 2 : index
    %c0_103 = arith.constant 0 : index
    %93 = vector.load %arg8[%c0_100, %c1_101, %c2_102, %c0_103] : memref<1x26x26x32xf32, #tpu.memory_space<vmem>>, vector<1x24x24x32xf32>
    %94 = vector.shape_cast %93 : vector<1x24x24x32xf32> to vector<576x32xf32>
    %95 = arith.truncf %94 : vector<576x32xf32> to vector<576x32xbf16>
    %c0_104 = arith.constant 0 : index
    %c160 = arith.constant 160 : index
    %96 = vector.load %arg9[%c0_104, %c160] : memref<576x288xbf16, #tpu.memory_space<vmem>>, vector<576x32xbf16>
    tpu.vector_store %arg9[%c0_104, %c160], %95 {strides = array<i32>} : memref<576x288xbf16, #tpu.memory_space<vmem>>, vector<576x32xbf16>,
    %c0_105 = arith.constant 0 : index
    %c2_106 = arith.constant 2 : index
    %c0_107 = arith.constant 0 : index
    %c0_108 = arith.constant 0 : index
    %97 = vector.load %arg8[%c0_105, %c2_106, %c0_107, %c0_108] : memref<1x26x26x32xf32, #tpu.memory_space<vmem>>, vector<1x24x24x32xf32>
    %98 = vector.shape_cast %97 : vector<1x24x24x32xf32> to vector<576x32xf32>
    %99 = arith.truncf %98 : vector<576x32xf32> to vector<576x32xbf16>
    %c0_109 = arith.constant 0 : index
    %c192 = arith.constant 192 : index
    %100 = vector.load %arg9[%c0_109, %c192] : memref<576x288xbf16, #tpu.memory_space<vmem>>, vector<576x32xbf16>
    tpu.vector_store %arg9[%c0_109, %c192], %99 {strides = array<i32>} : memref<576x288xbf16, #tpu.memory_space<vmem>>, vector<576x32xbf16>,
    %c0_110 = arith.constant 0 : index
    %c2_111 = arith.constant 2 : index
    %c1_112 = arith.constant 1 : index
    %c0_113 = arith.constant 0 : index
    %101 = vector.load %arg8[%c0_110, %c2_111, %c1_112, %c0_113] : memref<1x26x26x32xf32, #tpu.memory_space<vmem>>, vector<1x24x24x32xf32>
    %102 = vector.shape_cast %101 : vector<1x24x24x32xf32> to vector<576x32xf32>
    %103 = arith.truncf %102 : vector<576x32xf32> to vector<576x32xbf16>
    %c0_114 = arith.constant 0 : index
    %c224 = arith.constant 224 : index
    %104 = vector.load %arg9[%c0_114, %c224] : memref<576x288xbf16, #tpu.memory_space<vmem>>, vector<576x32xbf16>
    tpu.vector_store %arg9[%c0_114, %c224], %103 {strides = array<i32>} : memref<576x288xbf16, #tpu.memory_space<vmem>>, vector<576x32xbf16>,
    %c0_115 = arith.constant 0 : index
    %c2_116 = arith.constant 2 : index
    %c2_117 = arith.constant 2 : index
    %c0_118 = arith.constant 0 : index
    %105 = vector.load %arg8[%c0_115, %c2_116, %c2_117, %c0_118] : memref<1x26x26x32xf32, #tpu.memory_space<vmem>>, vector<1x24x24x32xf32>
    %106 = vector.shape_cast %105 : vector<1x24x24x32xf32> to vector<576x32xf32>
    %107 = arith.truncf %106 : vector<576x32xf32> to vector<576x32xbf16>
    %c0_119 = arith.constant 0 : index
    %c256 = arith.constant 256 : index
    %108 = vector.load %arg9[%c0_119, %c256] : memref<576x288xbf16, #tpu.memory_space<vmem>>, vector<576x32xbf16>
    tpu.vector_store %arg9[%c0_119, %c256], %107 {strides = array<i32>} : memref<576x288xbf16, #tpu.memory_space<vmem>>, vector<576x32xbf16>,
    %c0_120 = arith.constant 0 : index
    %c0_121 = arith.constant 0 : index
    %109 = vector.load %arg9[%c0_120, %c0_121] : memref<576x288xbf16, #tpu.memory_space<vmem>>, vector<576x288xbf16>
    %c0_122 = arith.constant 0 : index
    %c0_123 = arith.constant 0 : index
    %110 = vector.load %arg4[%c0_122, %c0_123] : memref<288x64xbf16, #tpu.memory_space<vmem>>, vector<288x64xbf16>
    %cst_124 = arith.constant dense<0.000000e+00> : vector<576x64xf32>
    %111 = tpu.matmul %109, %110, %cst_124 {dimension_numbers = #tpu.dot_dimension_numbers<[1], [0], [0], [1], [0, 0, 1, 1], [], []>} : vector<576x288xbf16>, vector<288x64xbf16>, vector<576x64xf32> -> vector<576x64xf32>
    %c0_125 = arith.constant 0 : index
    %c0_126 = arith.constant 0 : index
    %112 = vector.load %arg5[%c0_125, %c0_126] : memref<1x64xf32, #tpu.memory_space<vmem>>, vector<1x64xf32>
    %113 = vector.broadcast %112 : vector<1x64xf32> to vector<576x64xf32>
    %114 = arith.addf %111, %113 : vector<576x64xf32>
    %cst_127 = arith.constant 0.000000e+00 : f32
    %115 = vector.broadcast %cst_127 : f32 to vector<576x64xf32>
    %116 = arith.maximumf %114, %115 : vector<576x64xf32>
    %117 = vector.shape_cast %116 : vector<576x64xf32> to vector<1x12x2x24x64xf32>
    %118 = vector.extract_strided_slice %117 {offsets = [0, 0, 0, 0, 0], sizes = [1, 12, 1, 24, 64], strides = [1, 1, 1, 1, 1]} : vector<1x12x2x24x64xf32> to vector<1x12x1x24x64xf32>
    %119 = vector.shape_cast %118 : vector<1x12x1x24x64xf32> to vector<1x12x24x64xf32>
    %120 = vector.extract_strided_slice %117 {offsets = [0, 0, 1, 0, 0], sizes = [1, 12, 1, 24, 64], strides = [1, 1, 1, 1, 1]} : vector<1x12x2x24x64xf32> to vector<1x12x1x24x64xf32>
    %121 = vector.shape_cast %120 : vector<1x12x1x24x64xf32> to vector<1x12x24x64xf32>
    %122 = arith.maximumf %119, %121 : vector<1x12x24x64xf32>
    %c0_128 = arith.constant 0 : index
    %c0_129 = arith.constant 0 : index
    %c0_130 = arith.constant 0 : index
    %c0_131 = arith.constant 0 : index
    %123 = vector.load %arg10[%c0_128, %c0_129, %c0_130, %c0_131] : memref<1x12x24x64xf32, #tpu.memory_space<vmem>>, vector<1x12x24x64xf32>
    tpu.vector_store %arg10[%c0_128, %c0_129, %c0_130, %c0_131], %122 {strides = array<i32>} : memref<1x12x24x64xf32, #tpu.memory_space<vmem>>, vector<1x12x24x64xf32>,
    %c0_132 = arith.constant 0 : index
    %c0_133 = arith.constant 0 : index
    %c0_134 = arith.constant 0 : index
    %c0_135 = arith.constant 0 : index
    %124 = tpu.strided_load %arg10[%c0_132, %c0_133, %c0_134, %c0_135] {strides = array<i32: 1, 1, 4, 1>} : memref<1x12x24x64xf32, #tpu.memory_space<vmem>>, vector<1x12x6x64xf32>
    %c0_136 = arith.constant 0 : index
    %c0_137 = arith.constant 0 : index
    %c1_138 = arith.constant 1 : index
    %c0_139 = arith.constant 0 : index
    %125 = tpu.strided_load %arg10[%c0_136, %c0_137, %c1_138, %c0_139] {strides = array<i32: 1, 1, 4, 1>} : memref<1x12x24x64xf32, #tpu.memory_space<vmem>>, vector<1x12x6x64xf32>
    %c0_140 = arith.constant 0 : index
    %c0_141 = arith.constant 0 : index
    %c2_142 = arith.constant 2 : index
    %c0_143 = arith.constant 0 : index
    %126 = tpu.strided_load %arg10[%c0_140, %c0_141, %c2_142, %c0_143] {strides = array<i32: 1, 1, 4, 1>} : memref<1x12x24x64xf32, #tpu.memory_space<vmem>>, vector<1x12x6x64xf32>
    %c0_144 = arith.constant 0 : index
    %c0_145 = arith.constant 0 : index
    %c3 = arith.constant 3 : index
    %c0_146 = arith.constant 0 : index
    %127 = tpu.strided_load %arg10[%c0_144, %c0_145, %c3, %c0_146] {strides = array<i32: 1, 1, 4, 1>} : memref<1x12x24x64xf32, #tpu.memory_space<vmem>>, vector<1x12x6x64xf32>
    %128 = arith.maximumf %124, %125 : vector<1x12x6x64xf32>
    %129 = arith.maximumf %126, %127 : vector<1x12x6x64xf32>
    %130 = tpu.concatenate %128, %129 in 3 : vector<1x12x6x64xf32>, vector<1x12x6x64xf32> -> vector<1x12x6x128xf32>
    %131 = arith.truncf %130 : vector<1x12x6x128xf32> to vector<1x12x6x128xbf16>
    %c0_147 = arith.constant 0 : index
    %c0_148 = arith.constant 0 : index
    %c0_149 = arith.constant 0 : index
    %c0_150 = arith.constant 0 : index
    %132 = vector.load %arg6[%c0_147, %c0_148, %c0_149, %c0_150] : memref<1x12x6x128xbf16, #tpu.memory_space<vmem>>, vector<1x12x6x128xbf16>
    tpu.vector_store %arg6[%c0_147, %c0_148, %c0_149, %c0_150], %131 {strides = array<i32>} : memref<1x12x6x128xbf16, #tpu.memory_space<vmem>>, vector<1x12x6x128xbf16>,
    return
  }
  func.func @transform_0(%arg0: i32) -> (i32, i32, i32, i32) {
    %c0_i32 = arith.constant 0 : i32
    %c0_i32_0 = arith.constant 0 : i32
    %c0_i32_1 = arith.constant 0 : i32
    %c0_i32_2 = arith.constant 0 : i32
    return %arg0, %c0_i32, %c0_i32_0, %c0_i32_1 : i32, i32, i32, i32
  }
  func.func @transform_1(%arg0: i32) -> (i32, i32, i32) {
    %c0_i32 = arith.constant 0 : i32
    %c0_i32_0 = arith.constant 0 : i32
    %c0_i32_1 = arith.constant 0 : i32
    %c0_i32_2 = arith.constant 0 : i32
    return %c0_i32, %c0_i32_0, %c0_i32_1 : i32, i32, i32
  }
  func.func @transform_2(%arg0: i32) -> (i32, i32) {
    %c0_i32 = arith.constant 0 : i32
    %c0_i32_0 = arith.constant 0 : i32
    %c0_i32_1 = arith.constant 0 : i32
    return %c0_i32, %c0_i32_0 : i32, i32
  }
  func.func @transform_3(%arg0: i32) -> (i32, i32) {
    %c0_i32 = arith.constant 0 : i32
    %c0_i32_0 = arith.constant 0 : i32
    %c0_i32_1 = arith.constant 0 : i32
    return %c0_i32, %c0_i32_0 : i32, i32
  }
  func.func @transform_4(%arg0: i32) -> (i32, i32) {
    %c0_i32 = arith.constant 0 : i32
    %c0_i32_0 = arith.constant 0 : i32
    %c0_i32_1 = arith.constant 0 : i32
    return %c0_i32, %c0_i32_0 : i32, i32
  }
  func.func @transform_5(%arg0: i32) -> (i32, i32, i32, i32) {
    %c0_i32 = arith.constant 0 : i32
    %c0_i32_0 = arith.constant 0 : i32
    %c0_i32_1 = arith.constant 0 : i32
    %c0_i32_2 = arith.constant 0 : i32
    return %arg0, %c0_i32, %c0_i32_0, %c0_i32_1 : i32, i32, i32, i32
  }
}

module attributes {stable_mosaic.version = 11 : i64} {
  func.func @_mlp_head_kernel(%arg0: i32, %arg1: memref<2x2304xbf16, #tpu.memory_space<vmem>>, %arg2: memref<2304x128xbf16, #tpu.memory_space<vmem>>, %arg3: memref<1x128xf32, #tpu.memory_space<vmem>>, %arg4: memref<128x10xf32, #tpu.memory_space<vmem>>, %arg5: memref<1x10xf32, #tpu.memory_space<vmem>>, %arg6: memref<2x10xf32, #tpu.memory_space<vmem>>, %arg7: memref<2x128xf32, #tpu.memory_space<vmem>>) attributes {dimension_semantics = [#tpu.dimension_semantics<arbitrary>], iteration_bounds = array<i64: 4>, scalar_prefetch = 0 : i64, scratch_operands = 1 : i64, tpu.core_type = #tpu.core_type<tc>, window_params = [{transform_indices = @transform_0, window_bounds = array<i64: 2, 2304>}, {transform_indices = @transform_1, window_bounds = array<i64: 2304, 128>}, {pipeline_mode = #tpu.pipeline_mode<synchronous>, transform_indices = @transform_2, window_bounds = array<i64: 1, 128>}, {pipeline_mode = #tpu.pipeline_mode<synchronous>, transform_indices = @transform_3, window_bounds = array<i64: 128, 10>}, {pipeline_mode = #tpu.pipeline_mode<synchronous>, transform_indices = @transform_4, window_bounds = array<i64: 1, 10>}, {pipeline_mode = #tpu.pipeline_mode<synchronous>, transform_indices = @transform_5, window_bounds = array<i64: 2, 10>}]} {
    %c0 = arith.constant 0 : index
    %c0_0 = arith.constant 0 : index
    %0 = vector.load %arg1[%c0, %c0_0] : memref<2x2304xbf16, #tpu.memory_space<vmem>>, vector<2x2304xbf16>
    %c0_1 = arith.constant 0 : index
    %c0_2 = arith.constant 0 : index
    %1 = vector.load %arg2[%c0_1, %c0_2] : memref<2304x128xbf16, #tpu.memory_space<vmem>>, vector<2304x128xbf16>
    %cst = arith.constant dense<0.000000e+00> : vector<2x128xf32>
    %2 = tpu.matmul %0, %1, %cst {dimension_numbers = #tpu.dot_dimension_numbers<[1], [0], [0], [1], [0, 0, 1, 1], [], []>} : vector<2x2304xbf16>, vector<2304x128xbf16>, vector<2x128xf32> -> vector<2x128xf32>
    %c0_i32 = arith.constant 0 : i32
    %3 = arith.cmpi eq, %arg0, %c0_i32 : i32
    %4 = arith.extui %3 : i1 to i32
    %c0_i32_3 = arith.constant 0 : i32
    %5 = arith.cmpi ne, %4, %c0_i32_3 : i32
    scf.if %5 {
      %c0_7 = arith.constant 0 : index
      %c0_8 = arith.constant 0 : index
      %12 = vector.load %arg7[%c0_7, %c0_8] : memref<2x128xf32, #tpu.memory_space<vmem>>, vector<2x128xf32>
      tpu.vector_store %arg7[%c0_7, %c0_8], %2 {strides = array<i32>} : memref<2x128xf32, #tpu.memory_space<vmem>>, vector<2x128xf32>,
    } else {
    }
    %c0_i32_4 = arith.constant 0 : i32
    %6 = arith.cmpi ne, %arg0, %c0_i32_4 : i32
    %7 = arith.extui %6 : i1 to i32
    %c0_i32_5 = arith.constant 0 : i32
    %8 = arith.cmpi ne, %7, %c0_i32_5 : i32
    scf.if %8 {
      %c0_7 = arith.constant 0 : index
      %c0_8 = arith.constant 0 : index
      %12 = vector.load %arg7[%c0_7, %c0_8] : memref<2x128xf32, #tpu.memory_space<vmem>>, vector<2x128xf32>
      %13 = arith.addf %12, %2 : vector<2x128xf32>
      %c0_9 = arith.constant 0 : index
      %c0_10 = arith.constant 0 : index
      %14 = vector.load %arg7[%c0_9, %c0_10] : memref<2x128xf32, #tpu.memory_space<vmem>>, vector<2x128xf32>
      tpu.vector_store %arg7[%c0_9, %c0_10], %13 {strides = array<i32>} : memref<2x128xf32, #tpu.memory_space<vmem>>, vector<2x128xf32>,
    } else {
    }
    %c3_i32 = arith.constant 3 : i32
    %9 = arith.cmpi eq, %arg0, %c3_i32 : i32
    %10 = arith.extui %9 : i1 to i32
    %c0_i32_6 = arith.constant 0 : i32
    %11 = arith.cmpi ne, %10, %c0_i32_6 : i32
    scf.if %11 {
      %c0_7 = arith.constant 0 : index
      %c0_8 = arith.constant 0 : index
      %12 = vector.load %arg7[%c0_7, %c0_8] : memref<2x128xf32, #tpu.memory_space<vmem>>, vector<2x128xf32>
      %c0_9 = arith.constant 0 : index
      %c0_10 = arith.constant 0 : index
      %13 = vector.load %arg3[%c0_9, %c0_10] : memref<1x128xf32, #tpu.memory_space<vmem>>, vector<1x128xf32>
      %14 = vector.broadcast %13 : vector<1x128xf32> to vector<2x128xf32>
      %15 = arith.addf %12, %14 : vector<2x128xf32>
      %cst_11 = arith.constant 0.000000e+00 : f32
      %16 = vector.broadcast %cst_11 : f32 to vector<2x128xf32>
      %17 = arith.maximumf %15, %16 : vector<2x128xf32>
      %c0_12 = arith.constant 0 : index
      %c0_13 = arith.constant 0 : index
      %18 = vector.load %arg4[%c0_12, %c0_13] : memref<128x10xf32, #tpu.memory_space<vmem>>, vector<128x10xf32>
      %cst_14 = arith.constant dense<0.000000e+00> : vector<2x10xf32>
      %19 = tpu.matmul %17, %18, %cst_14 {dimension_numbers = #tpu.dot_dimension_numbers<[1], [0], [0], [1], [0, 0, 1, 1], [], []>} : vector<2x128xf32>, vector<128x10xf32>, vector<2x10xf32> -> vector<2x10xf32>
      %c0_15 = arith.constant 0 : index
      %c0_16 = arith.constant 0 : index
      %20 = vector.load %arg5[%c0_15, %c0_16] : memref<1x10xf32, #tpu.memory_space<vmem>>, vector<1x10xf32>
      %21 = vector.broadcast %20 : vector<1x10xf32> to vector<2x10xf32>
      %22 = arith.addf %19, %21 : vector<2x10xf32>
      %cst_17 = arith.constant dense<0xFF800000> : vector<2xf32>
      %23 = vector.multi_reduction <maximumf>, %22, %cst_17 [1] : vector<2x10xf32> to vector<2xf32>
      %24 = vector.shape_cast %23 : vector<2xf32> to vector<2x1xf32>
      %25 = vector.broadcast %24 : vector<2x1xf32> to vector<2x10xf32>
      %26 = arith.subf %22, %25 : vector<2x10xf32>
      %27 = math.exp %26 : vector<2x10xf32>
      %cst_18 = arith.constant dense<0.000000e+00> : vector<2xf32>
      %28 = vector.multi_reduction <add>, %27, %cst_18 [1] : vector<2x10xf32> to vector<2xf32>
      %29 = vector.shape_cast %28 : vector<2xf32> to vector<2x1xf32>
      %30 = math.log %29 : vector<2x1xf32>
      %31 = vector.broadcast %30 : vector<2x1xf32> to vector<2x10xf32>
      %32 = arith.subf %26, %31 : vector<2x10xf32>
      %c0_19 = arith.constant 0 : index
      %c0_20 = arith.constant 0 : index
      %33 = vector.load %arg6[%c0_19, %c0_20] : memref<2x10xf32, #tpu.memory_space<vmem>>, vector<2x10xf32>
      tpu.vector_store %arg6[%c0_19, %c0_20], %32 {strides = array<i32>} : memref<2x10xf32, #tpu.memory_space<vmem>>, vector<2x10xf32>,
    } else {
    }
    return
  }
  func.func @transform_0(%arg0: i32) -> (i32, i32) {
    %c0_i32 = arith.constant 0 : i32
    %c0_i32_0 = arith.constant 0 : i32
    return %c0_i32, %arg0 : i32, i32
  }
  func.func @transform_1(%arg0: i32) -> (i32, i32) {
    %c0_i32 = arith.constant 0 : i32
    %c0_i32_0 = arith.constant 0 : i32
    return %arg0, %c0_i32 : i32, i32
  }
  func.func @transform_2(%arg0: i32) -> (i32, i32) {
    %c0_i32 = arith.constant 0 : i32
    %c0_i32_0 = arith.constant 0 : i32
    %c0_i32_1 = arith.constant 0 : i32
    return %c0_i32, %c0_i32_0 : i32, i32
  }
  func.func @transform_3(%arg0: i32) -> (i32, i32) {
    %c0_i32 = arith.constant 0 : i32
    %c0_i32_0 = arith.constant 0 : i32
    %c0_i32_1 = arith.constant 0 : i32
    return %c0_i32, %c0_i32_0 : i32, i32
  }
  func.func @transform_4(%arg0: i32) -> (i32, i32) {
    %c0_i32 = arith.constant 0 : i32
    %c0_i32_0 = arith.constant 0 : i32
    %c0_i32_1 = arith.constant 0 : i32
    return %c0_i32, %c0_i32_0 : i32, i32
  }
  func.func @transform_5(%arg0: i32) -> (i32, i32) {
    %c0_i32 = arith.constant 0 : i32
    %c0_i32_0 = arith.constant 0 : i32
    %c0_i32_1 = arith.constant 0 : i32
    return %c0_i32, %c0_i32_0 : i32, i32
  }
}

</mosaic_0001>

<llo_original>
// kernel: net_forward.3
$region0: #{net_forward.3}
  #allocation0 [shape = 'u32[]', space=smem, size = 0x4, offset = 0x4, fixed_abs, tag = 'smem constant byte address 0x4 - core index']
  #allocation1 [shape = 'u32[144,128]{1,0:T(1,128)}', space=vmem, size = 0x12000, scoped, tag = 'internal scratch']
  #allocation2 [shape = 'f32[2,128]{1,0:T(2,128)}', space=vmem, size = 0x400, scoped, tag = 'scratch operand']
  %s0 = inlined_call_operand.vmem [shape: bf16[2,9216], index: 0, kind: input, shape index: {}]
  %s1 = inlined_call_operand.hbm [shape: bf16[9216,128], index: 1, kind: input, shape index: {}]
  %s2 = inlined_call_operand.hbm [shape: f32[1,128], index: 2, kind: input, shape index: {}]
  %s3 = inlined_call_operand.vmem [shape: f32[128,10], index: 3, kind: input, shape index: {}]
  %s4 = inlined_call_operand.hbm [shape: f32[1,10], index: 4, kind: input, shape index: {}]
  %s5 = inlined_call_operand.hbm [shape: f32[2,10], index: 5, kind: output, shape index: {}]
  %s6 = sld [smem:[#allocation0]]
  $region77: #{net_forward.3} parent=0
    _
  %s8 = ssub.s32 1, %s6
  %s9 = scalar_select 0, %s8, %s6
  $region1: #{net_forward.3} parent=0
    #allocation3 [shape = 'u8[1179648]{0}', space=vmem, size = 0x120000, scoped, tag = 'input window, operand 1']
    #allocation4 [shape = 's32[2]{0}', space=sflag, size = 0x8, scoped, tag = 'scoped memory for net_forward.3']
    #allocation5 [shape = 's32[2]{0}', space=sflag, size = 0x8, scoped, tag = 'scoped memory for net_forward.3']
    #allocation6 [shape = 'u8[512]{0}', space=vmem, size = 0x400, scoped, tag = 'input window, operand 2, single buffered']
    #allocation7 [shape = 's32[1]{0}', space=sflag, size = 0x4, scoped, tag = 'scoped memory for net_forward.3']
    #allocation8 [shape = 'u8[512]{0}', space=vmem, size = 0x400, scoped, tag = 'input window, operand 4, single buffered']
    #allocation9 [shape = 'u8[1024]{0}', space=vmem, size = 0x400, scoped, tag = 'output window, operand 0, single buffered']
    %10 = vsyncpa [#allocation4], 0
    %s11 = scalar_lea.sflag [#allocation4], 1
    %12 = vsyncpa %s11, 0
    %13 = vsyncpa [#allocation7], 0
    %14 = vsyncpa [#allocation5], 0
    loop: start=0, step=1, limit=6
    $region2: #{net_forward.3} parent=1 // loop_pre_header
      _
    $region3: #{net_forward.3} parent=1 // loop_header
      %s16 = sphi 0, %s20
      %p17 = scmp.ge.s32.totalorder %s16, 6
      %s26 = sphi 0, %s28
      %s29 = sphi 0, %s26
      %s30 = sphi 0, %s29
      %s46 = sphi 0, %s30
      %s52 = sphi 0, %s54
      %s55 = sphi 0, %s52
      %s56 = sphi 0, %s55
      %s72 = sphi 0, %s56
      %s76 = sphi 0, %s76
      %s78 = sphi 0, %s76
      %s79 = sphi 0, %s78
      %s93 = sphi 0, %s79
      %s97 = sphi 0, %s97
      %s99 = sphi 0, %s97
      %s100 = sphi 0, %s99
      %s114 = sphi 0, %s100
      %s118 = sphi 0, %s118
      %s120 = sphi 0, %s118
      %s121 = sphi 0, %s120
      %s135 = sphi 0, %s121
      %s139 = sphi 0, %s139
      %s141 = sphi 0, %s139
      %s142 = sphi 0, %s141
      %s156 = sphi 0, %s142
    $region4: #{net_forward.3} parent=1 // loop_header_branch
      %19 = sbr.rel (%p17) target = $region8
    $region5: #{net_forward.3} parent=1 // loop_body
      %s21 = ssub.s32 %s16, 1
      %s22 = ssub.s32 %s16, 2
      %s23 = sadd.s32 %s16, 1
      %s24 = ssub.s32 %s16, %s23
      %p25 = scmp.eq.s32.totalorder %s24, 0
      %s27 = sadd.s32 %s26, 1
      %s28 = scalar_select %p25, %s26, %s27
      %p31 = pneg %p25
      %p32 = scmp.eq.s32.totalorder %s16, 3
      %p33 = por %p31, %p32
      %p34 = scmp.ne.s32.totalorder %s26, %s29
      %p35 = scmp.eq.s32.totalorder %s16, 0
      %p36 = por %p34, %p35
      %p37 = scmp.ne.s32.totalorder %s26, %s29
      %p38 = scmp.eq.s32.totalorder %s21, 3
      %p39 = por %p37, %p38
      %p40 = scmp.ne.s32.totalorder %s29, %s30
      %p41 = scmp.eq.s32.totalorder %s21, 0
      %p42 = por %p40, %p41
      %p43 = scmp.ne.s32.totalorder %s29, %s30
      %p44 = scmp.eq.s32.totalorder %s22, 3
      %p45 = por %p43, %p44
      %p47 = scmp.ne.s32.totalorder %s30, %s46
      %p48 = scmp.eq.s32.totalorder %s22, 0
      %p49 = por %p47, %p48
      %s50 = ssub.s32 %s16, %s23
      %p51 = scmp.eq.s32.totalorder %s50, 0
      %s53 = sadd.s32 %s52, 1
      %s54 = scalar_select %p51, %s52, %s53
      %p57 = pneg %p51
      %p58 = scmp.eq.s32.totalorder %s16, 3
      %p59 = por %p57, %p58
      %p60 = scmp.ne.s32.totalorder %s52, %s55
      %p61 = scmp.eq.s32.totalorder %s16, 0
      %p62 = por %p60, %p61
      %p63 = scmp.ne.s32.totalorder %s52, %s55
      %p64 = scmp.eq.s32.totalorder %s21, 3
      %p65 = por %p63, %p64
      %p66 = scmp.ne.s32.totalorder %s55, %s56
      %p67 = scmp.eq.s32.totalorder %s21, 0
      %p68 = por %p66, %p67
      %p69 = scmp.ne.s32.totalorder %s55, %s56
      %p70 = scmp.eq.s32.totalorder %s22, 3
      %p71 = por %p69, %p70
      %p73 = scmp.ne.s32.totalorder %s56, %s72
      %p74 = scmp.eq.s32.totalorder %s22, 0
      %p75 = por %p73, %p74
      %s77 = sadd.s32 %s76, 1
      %p80 = scmp.eq.s32.totalorder %s16, 3
      %p81 = scmp.ne.s32.totalorder %s76, %s78
      %p82 = scmp.eq.s32.totalorder %s16, 0
      %p83 = por %p81, %p82
      %p84 = scmp.ne.s32.totalorder %s76, %s78
      %p85 = scmp.eq.s32.totalorder %s21, 3
      %p86 = por %p84, %p85
      %p87 = scmp.ne.s32.totalorder %s78, %s79
      %p88 = scmp.eq.s32.totalorder %s21, 0
      %p89 = por %p87, %p88
      %p90 = scmp.ne.s32.totalorder %s78, %s79
      %p91 = scmp.eq.s32.totalorder %s22, 3
      %p92 = por %p90, %p91
      %p94 = scmp.ne.s32.totalorder %s79, %s93
      %p95 = scmp.eq.s32.totalorder %s22, 0
      %p96 = por %p94, %p95
      %s98 = sadd.s32 %s97, 1
      %p101 = scmp.eq.s32.totalorder %s16, 3
      %p102 = scmp.ne.s32.totalorder %s97, %s99
      %p103 = scmp.eq.s32.totalorder %s16, 0
      %p104 = por %p102, %p103
      %p105 = scmp.ne.s32.totalorder %s97, %s99
      %p106 = scmp.eq.s32.totalorder %s21, 3
      %p107 = por %p105, %p106
      %p108 = scmp.ne.s32.totalorder %s99, %s100
      %p109 = scmp.eq.s32.totalorder %s21, 0
      %p110 = por %p108, %p109
      %p111 = scmp.ne.s32.totalorder %s99, %s100
      %p112 = scmp.eq.s32.totalorder %s22, 3
      %p113 = por %p111, %p112
      %p115 = scmp.ne.s32.totalorder %s100, %s114
      %p116 = scmp.eq.s32.totalorder %s22, 0
      %p117 = por %p115, %p116
      %s119 = sadd.s32 %s118, 1
      %p122 = scmp.eq.s32.totalorder %s16, 3
      %p123 = scmp.ne.s32.totalorder %s118, %s120
      %p124 = scmp.eq.s32.totalorder %s16, 0
      %p125 = por %p123, %p124
      %p126 = scmp.ne.s32.totalorder %s118, %s120
      %p127 = scmp.eq.s32.totalorder %s21, 3
      %p128 = por %p126, %p127
      %p129 = scmp.ne.s32.totalorder %s120, %s121
      %p130 = scmp.eq.s32.totalorder %s21, 0
      %p131 = por %p129, %p130
      %p132 = scmp.ne.s32.totalorder %s120, %s121
      %p133 = scmp.eq.s32.totalorder %s22, 3
      %p134 = por %p132, %p133
      %p136 = scmp.ne.s32.totalorder %s121, %s135
      %p137 = scmp.eq.s32.totalorder %s22, 0
      %p138 = por %p136, %p137
      %s140 = sadd.s32 %s139, 1
      %p143 = scmp.eq.s32.totalorder %s16, 3
      %p144 = scmp.ne.s32.totalorder %s139, %s141
      %p145 = scmp.eq.s32.totalorder %s16, 0
      %p146 = por %p144, %p145
      %p147 = scmp.ne.s32.totalorder %s139, %s141
      %p148 = scmp.eq.s32.totalorder %s21, 3
      %p149 = por %p147, %p148
      %p150 = scmp.ne.s32.totalorder %s141, %s142
      %p151 = scmp.eq.s32.totalorder %s21, 0
      %p152 = por %p150, %p151
      %p153 = scmp.ne.s32.totalorder %s141, %s142
      %p154 = scmp.eq.s32.totalorder %s22, 3
      %p155 = por %p153, %p154
      %p157 = scmp.ne.s32.totalorder %s142, %s156
      %p158 = scmp.eq.s32.totalorder %s22, 0
      %p159 = por %p157, %p158
      %p160 = scmp.le.s32.totalorder 1, %s16
      %p161 = scmp.lt.s32.totalorder %s16, 5
      %p162 = pnand %p160, %p161
      %p163 = pneg %p162
      // Predicated region
      $region9: #{net_forward.3} parent=5 // pred_check
        _
      $region10: #{net_forward.3} parent=5 // pred_check_branch
        %165 = sbr.rel (%p162) target = $region12
      $region11: #{net_forward.3} parent=5 // pred_region
        %s166 = ssub.s32 %s16, 1
        // Predicated region
        $region13: #{net_forward.3} parent=11 // pred_check
          %p167 = pneg %p89
        $region14: #{net_forward.3} parent=11 // pred_check_branch
          %169 = sbr.rel (%p167) target = $region16
        $region15: #{net_forward.3} parent=11 // pred_region
          %s171 = ssub.s32 16, 16
          %172 = vsyncadd [#allocation7], %s171
          %s174 = sshll.u32 [#allocation6], 4
          %s175 = int_to_ptr.vmem [resolvable:$true] %s174
          %177 = dma.hbm_to_vmem [thread:$0]  %s2, 16, %s175, [#allocation7]
        $region16: #{net_forward.3} parent=11 // pred_fallthru
          _
        // Predicated region
        $region17: #{net_forward.3} parent=11 // pred_check
          %p178 = pneg %p110
        $region18: #{net_forward.3} parent=11 // pred_check_branch
          %180 = sbr.rel (%p178) target = $region20
        $region19: #{net_forward.3} parent=11 // pred_region
          _
        $region20: #{net_forward.3} parent=11 // pred_fallthru
          _
        // Predicated region
        $region21: #{net_forward.3} parent=11 // pred_check
          %p181 = pneg %p131
        $region22: #{net_forward.3} parent=11 // pred_check_branch
          %183 = sbr.rel (%p181) target = $region24
        $region23: #{net_forward.3} parent=11 // pred_region
          %s185 = ssub.s32 16, 16
          %186 = vsyncadd [#allocation7], %s185
          %s188 = sshll.u32 [#allocation8], 4
          %s189 = int_to_ptr.vmem [resolvable:$true] %s188
          %191 = dma.hbm_to_vmem [thread:$0]  %s4, 16, %s189, [#allocation7]
        $region24: #{net_forward.3} parent=11 // pred_fallthru
          _
      $region12: #{net_forward.3} parent=5 // pred_fallthru
        _
      %p192 = scmp.lt.s32.totalorder %s16, 4
      // Predicated region
      $region25: #{net_forward.3} parent=5 // pred_check
        %p193 = pneg %p192
      $region26: #{net_forward.3} parent=5 // pred_check_branch
        %195 = sbr.rel (%p193) target = $region28
      $region27: #{net_forward.3} parent=5 // pred_region
        // Predicated region
        $region29: #{net_forward.3} parent=27 // pred_check
          %p196 = pneg %p36
        $region30: #{net_forward.3} parent=27 // pred_check_branch
          %198 = sbr.rel (%p196) target = $region32
        $region31: #{net_forward.3} parent=27 // pred_region
          %s199 = smul.u32 18, %s16
          %p200 = scmp.lt.s32.totalorder %s199, 71
          %s201 = scalar_select %p200, %s199, 71
          %s202 = scalar_lea.vmem %s0, %s201
          %s203 = smul.u32 18, %s16
        $region32: #{net_forward.3} parent=27 // pred_fallthru
          _
        // Predicated region
        $region33: #{net_forward.3} parent=27 // pred_check
          %p204 = pneg %p62
        $region34: #{net_forward.3} parent=27 // pred_check_branch
          %206 = sbr.rel (%p204) target = $region36
        $region35: #{net_forward.3} parent=27 // pred_region
          %s207 = sand.u32 %s52, 1
          %s208 = scalar_lea.sflag [#allocation4], %s207
          %s209 = sand.u32 %s52, 1
          %s210 = smul.addr %s209, 1152
          %s211 = scalar_lea.vmem [#allocation3], %s210
          %s212 = smul.u32 288, %s16
          %s214 = ssub.s32 18432, 18432
          %215 = vsyncadd %s208, %s214
          %s216 = smul.addr %s212, 64
          %s217 = scalar_lea.hbm %s1, %s216
          %s218 = sshll.u32 %s211, 4
          %s219 = int_to_ptr.vmem [resolvable:$true] %s218
          %224 = dma.hbm_to_vmem [thread:$0]  %s217, 18432, %s219, %s208, 64, 64, 4
        $region36: #{net_forward.3} parent=27 // pred_fallthru
          _
      $region28: #{net_forward.3} parent=5 // pred_fallthru
        _
      %p225 = scmp.le.s32.totalorder 1, %s16
      %p226 = scmp.lt.s32.totalorder %s16, 5
      %p227 = pnand %p225, %p226
      %p228 = pneg %p227
      // Predicated region
      $region37: #{net_forward.3} parent=5 // pred_check
        _
      $region38: #{net_forward.3} parent=5 // pred_check_branch
        %230 = sbr.rel (%p227) target = $region40
      $region39: #{net_forward.3} parent=5 // pred_region
        %s231 = ssub.s32 %s16, 1
        %s232 = sand.u32 %s55, 1
        %s233 = scalar_lea.sflag [#allocation4], %s232
        %s234 = sand.u32 %s55, 1
        %s235 = smul.addr %s234, 1152
        %s236 = scalar_lea.vmem [#allocation3], %s235
        // Predicated region
        $region41: #{net_forward.3} parent=39 // pred_check
          %p237 = pneg %p68
        $region42: #{net_forward.3} parent=39 // pred_check_branch
          %239 = sbr.rel (%p237) target = $region44
        $region43: #{net_forward.3} parent=39 // pred_region
          %240 = dma.done %s233, 18432
        $region44: #{net_forward.3} parent=39 // pred_fallthru
          _
        // Predicated region
        $region45: #{net_forward.3} parent=39 // pred_check
          %p241 = pneg %p89
        $region46: #{net_forward.3} parent=39 // pred_check_branch
          %243 = sbr.rel (%p241) target = $region48
        $region47: #{net_forward.3} parent=39 // pred_region
          %244 = dma.done [#allocation7], 16
        $region48: #{net_forward.3} parent=39 // pred_fallthru
          _
        // Predicated region
        $region49: #{net_forward.3} parent=39 // pred_check
          %p245 = pneg %p131
        $region50: #{net_forward.3} parent=39 // pred_check_branch
          %247 = sbr.rel (%p245) target = $region52
        $region51: #{net_forward.3} parent=39 // pred_region
          %248 = dma.done [#allocation7], 16
        $region52: #{net_forward.3} parent=39 // pred_fallthru
          _
        %s249 = smul.u32 18, %s21
        %p250 = scmp.lt.s32.totalorder %s249, 71
        %s251 = scalar_select %p250, %s249, 71
        %s252 = scalar_lea.vmem %s0, %s251
        %p253 = pneg %p42
        %p254 = pneg %p39
        %s255 = sand.u32 %s55, 1
        %s256 = scalar_lea.sflag [#allocation4], %s255
        %s257 = sand.u32 %s55, 1
        %s258 = smul.addr %s257, 1152
        %s259 = scalar_lea.vmem [#allocation3], %s258
        %p260 = pneg %p68
        %p261 = pneg %p65
        %p262 = pneg %p89
        %p263 = pneg %p86
        %p264 = pneg %p110
        %p265 = pneg %p107
        %p266 = pneg %p131
        %p267 = pneg %p128
        %p268 = pneg %p152
        %p269 = pneg %p149
        %s270 = smul.u32 18, %s21
        %p271 = scmp.lt.s32.totalorder %s270, 71
        %s272 = scalar_select %p271, %s270, 71
        %s273 = scalar_lea.vmem %s0, %s272
        %s274 = smul.u32 18, %s21
        %s275 = smul.u32 288, %s21
        %v277 = vld [vmem:[%s273] sm:$0xff]
        %v278 = vld [vmem:[%s273 + $0x8] sm:$0xff]
        %v279 = vld [vmem:[%s273 + $0x10] sm:$0x3]
        %v280 = vld [vmem:[%s236] sm:$0xf]
        %v281 = vld [vmem:[%s236 + $0x4] sm:$0xf]
        %v282 = vld [vmem:[%s236 + $0x8] sm:$0xf]
        %v283 = vld [vmem:[%s236 + $0xc] sm:$0xf]
        %v284 = vld [vmem:[%s236 + $0x10] sm:$0xf]
        %v285 = vld [vmem:[%s236 + $0x14] sm:$0xf]
        %v286 = vld [vmem:[%s236 + $0x18] sm:$0xf]
        %v287 = vld [vmem:[%s236 + $0x1c] sm:$0xf]
        %v288 = vld [vmem:[%s236 + $0x20] sm:$0xf]
        %v289 = vld [vmem:[%s236 + $0x24] sm:$0xf]
        %v290 = vld [vmem:[%s236 + $0x28] sm:$0xf]
        %v291 = vld [vmem:[%s236 + $0x2c] sm:$0xf]
        %v292 = vld [vmem:[%s236 + $0x30] sm:$0xf]
        %v293 = vld [vmem:[%s236 + $0x34] sm:$0xf]
        %v294 = vld [vmem:[%s236 + $0x38] sm:$0xf]
        %v295 = vld [vmem:[%s236 + $0x3c] sm:$0xf]
        %v296 = vld [vmem:[%s236 + $0x40] sm:$0xf]
        %v297 = vld [vmem:[%s236 + $0x44] sm:$0xf]
        %v298 = vld [vmem:[%s236 + $0x48] sm:$0xf]
        %v299 = vld [vmem:[%s236 + $0x4c] sm:$0xf]
        %v300 = vld [vmem:[%s236 + $0x50] sm:$0xf]
        %v301 = vld [vmem:[%s236 + $0x54] sm:$0xf]
        %v302 = vld [vmem:[%s236 + $0x58] sm:$0xf]
        %v303 = vld [vmem:[%s236 + $0x5c] sm:$0xf]
        %v304 = vld [vmem:[%s236 + $0x60] sm:$0xf]
        %v305 = vld [vmem:[%s236 + $0x64] sm:$0xf]
        %v306 = vld [vmem:[%s236 + $0x68] sm:$0xf]
        %v307 = vld [vmem:[%s236 + $0x6c] sm:$0xf]
        %v308 = vld [vmem:[%s236 + $0x70] sm:$0xf]
        %v309 = vld [vmem:[%s236 + $0x74] sm:$0xf]
        %v310 = vld [vmem:[%s236 + $0x78] sm:$0xf]
        %v311 = vld [vmem:[%s236 + $0x7c] sm:$0xf]
        %v312 = vld [vmem:[%s236 + $0x80] sm:$0xf]
        %v313 = vld [vmem:[%s236 + $0x84] sm:$0xf]
        %v314 = vld [vmem:[%s236 + $0x88] sm:$0xf]
        %v315 = vld [vmem:[%s236 + $0x8c] sm:$0xf]
        %v316 = vld [vmem:[%s236 + $0x90] sm:$0xf]
        %v317 = vld [vmem:[%s236 + $0x94] sm:$0xf]
        %v318 = vld [vmem:[%s236 + $0x98] sm:$0xf]
        %v319 = vld [vmem:[%s236 + $0x9c] sm:$0xf]
        %v320 = vld [vmem:[%s236 + $0xa0] sm:$0xf]
        %v321 = vld [vmem:[%s236 + $0xa4] sm:$0xf]
        %v322 = vld [vmem:[%s236 + $0xa8] sm:$0xf]
        %v323 = vld [vmem:[%s236 + $0xac] sm:$0xf]
        %v324 = vld [vmem:[%s236 + $0xb0] sm:$0xf]
        %v325 = vld [vmem:[%s236 + $0xb4] sm:$0xf]
        %v326 = vld [vmem:[%s236 + $0xb8] sm:$0xf]
        %v327 = vld [vmem:[%s236 + $0xbc] sm:$0xf]
        %v328 = vld [vmem:[%s236 + $0xc0] sm:$0xf]
        %v329 = vld [vmem:[%s236 + $0xc4] sm:$0xf]
        %v330 = vld [vmem:[%s236 + $0xc8] sm:$0xf]
        %v331 = vld [vmem:[%s236 + $0xcc] sm:$0xf]
        %v332 = vld [vmem:[%s236 + $0xd0] sm:$0xf]
        %v333 = vld [vmem:[%s236 + $0xd4] sm:$0xf]
        %v334 = vld [vmem:[%s236 + $0xd8] sm:$0xf]
        %v335 = vld [vmem:[%s236 + $0xdc] sm:$0xf]
        %v336 = vld [vmem:[%s236 + $0xe0] sm:$0xf]
        %v337 = vld [vmem:[%s236 + $0xe4] sm:$0xf]
        %v338 = vld [vmem:[%s236 + $0xe8] sm:$0xf]
        %v339 = vld [vmem:[%s236 + $0xec] sm:$0xf]
        %v340 = vld [vmem:[%s236 + $0xf0] sm:$0xf]
        %v341 = vld [vmem:[%s236 + $0xf4] sm:$0xf]
        %v342 = vld [vmem:[%s236 + $0xf8] sm:$0xf]
        %v343 = vld [vmem:[%s236 + $0xfc] sm:$0xf]
        %v344 = vld [vmem:[%s236 + $0x100] sm:$0xf]
        %v345 = vld [vmem:[%s236 + $0x104] sm:$0xf]
        %v346 = vld [vmem:[%s236 + $0x108] sm:$0xf]
        %v347 = vld [vmem:[%s236 + $0x10c] sm:$0xf]
        %v348 = vld [vmem:[%s236 + $0x110] sm:$0xf]
        %v349 = vld [vmem:[%s236 + $0x114] sm:$0xf]
        %v350 = vld [vmem:[%s236 + $0x118] sm:$0xf]
        %v351 = vld [vmem:[%s236 + $0x11c] sm:$0xf]
        %v352 = vld [vmem:[%s236 + $0x120] sm:$0xf]
        %v353 = vld [vmem:[%s236 + $0x124] sm:$0xf]
        %v354 = vld [vmem:[%s236 + $0x128] sm:$0xf]
        %v355 = vld [vmem:[%s236 + $0x12c] sm:$0xf]
        %v356 = vld [vmem:[%s236 + $0x130] sm:$0xf]
        %v357 = vld [vmem:[%s236 + $0x134] sm:$0xf]
        %v358 = vld [vmem:[%s236 + $0x138] sm:$0xf]
        %v359 = vld [vmem:[%s236 + $0x13c] sm:$0xf]
        %v360 = vld [vmem:[%s236 + $0x140] sm:$0xf]
        %v361 = vld [vmem:[%s236 + $0x144] sm:$0xf]
        %v362 = vld [vmem:[%s236 + $0x148] sm:$0xf]
        %v363 = vld [vmem:[%s236 + $0x14c] sm:$0xf]
        %v364 = vld [vmem:[%s236 + $0x150] sm:$0xf]
        %v365 = vld [vmem:[%s236 + $0x154] sm:$0xf]
        %v366 = vld [vmem:[%s236 + $0x158] sm:$0xf]
        %v367 = vld [vmem:[%s236 + $0x15c] sm:$0xf]
        %v368 = vld [vmem:[%s236 + $0x160] sm:$0xf]
        %v369 = vld [vmem:[%s236 + $0x164] sm:$0xf]
        %v370 = vld [vmem:[%s236 + $0x168] sm:$0xf]
        %v371 = vld [vmem:[%s236 + $0x16c] sm:$0xf]
        %v372 = vld [vmem:[%s236 + $0x170] sm:$0xf]
        %v373 = vld [vmem:[%s236 + $0x174] sm:$0xf]
        %v374 = vld [vmem:[%s236 + $0x178] sm:$0xf]
        %v375 = vld [vmem:[%s236 + $0x17c] sm:$0xf]
        %v376 = vld [vmem:[%s236 + $0x180] sm:$0xf]
        %v377 = vld [vmem:[%s236 + $0x184] sm:$0xf]
        %v378 = vld [vmem:[%s236 + $0x188] sm:$0xf]
        %v379 = vld [vmem:[%s236 + $0x18c] sm:$0xf]
        %v380 = vld [vmem:[%s236 + $0x190] sm:$0xf]
        %v381 = vld [vmem:[%s236 + $0x194] sm:$0xf]
        %v382 = vld [vmem:[%s236 + $0x198] sm:$0xf]
        %v383 = vld [vmem:[%s236 + $0x19c] sm:$0xf]
        %v384 = vld [vmem:[%s236 + $0x1a0] sm:$0xf]
        %v385 = vld [vmem:[%s236 + $0x1a4] sm:$0xf]
        %v386 = vld [vmem:[%s236 + $0x1a8] sm:$0xf]
        %v387 = vld [vmem:[%s236 + $0x1ac] sm:$0xf]
        %v388 = vld [vmem:[%s236 + $0x1b0] sm:$0xf]
        %v389 = vld [vmem:[%s236 + $0x1b4] sm:$0xf]
        %v390 = vld [vmem:[%s236 + $0x1b8] sm:$0xf]
        %v391 = vld [vmem:[%s236 + $0x1bc] sm:$0xf]
        %v392 = vld [vmem:[%s236 + $0x1c0] sm:$0xf]
        %v393 = vld [vmem:[%s236 + $0x1c4] sm:$0xf]
        %v394 = vld [vmem:[%s236 + $0x1c8] sm:$0xf]
        %v395 = vld [vmem:[%s236 + $0x1cc] sm:$0xf]
        %v396 = vld [vmem:[%s236 + $0x1d0] sm:$0xf]
        %v397 = vld [vmem:[%s236 + $0x1d4] sm:$0xf]
        %v398 = vld [vmem:[%s236 + $0x1d8] sm:$0xf]
        %v399 = vld [vmem:[%s236 + $0x1dc] sm:$0xf]
        %v400 = vld [vmem:[%s236 + $0x1e0] sm:$0xf]
        %v401 = vld [vmem:[%s236 + $0x1e4] sm:$0xf]
        %v402 = vld [vmem:[%s236 + $0x1e8] sm:$0xf]
        %v403 = vld [vmem:[%s236 + $0x1ec] sm:$0xf]
        %v404 = vld [vmem:[%s236 + $0x1f0] sm:$0xf]
        %v405 = vld [vmem:[%s236 + $0x1f4] sm:$0xf]
        %v406 = vld [vmem:[%s236 + $0x1f8] sm:$0xf]
        %v407 = vld [vmem:[%s236 + $0x1fc] sm:$0xf]
        %v408 = vld [vmem:[%s236 + $0x200] sm:$0xf]
        %v409 = vld [vmem:[%s236 + $0x204] sm:$0xf]
        %v410 = vld [vmem:[%s236 + $0x208] sm:$0xf]
        %v411 = vld [vmem:[%s236 + $0x20c] sm:$0xf]
        %v412 = vld [vmem:[%s236 + $0x210] sm:$0xf]
        %v413 = vld [vmem:[%s236 + $0x214] sm:$0xf]
        %v414 = vld [vmem:[%s236 + $0x218] sm:$0xf]
        %v415 = vld [vmem:[%s236 + $0x21c] sm:$0xf]
        %v416 = vld [vmem:[%s236 + $0x220] sm:$0xf]
        %v417 = vld [vmem:[%s236 + $0x224] sm:$0xf]
        %v418 = vld [vmem:[%s236 + $0x228] sm:$0xf]
        %v419 = vld [vmem:[%s236 + $0x22c] sm:$0xf]
        %v420 = vld [vmem:[%s236 + $0x230] sm:$0xf]
        %v421 = vld [vmem:[%s236 + $0x234] sm:$0xf]
        %v422 = vld [vmem:[%s236 + $0x238] sm:$0xf]
        %v423 = vld [vmem:[%s236 + $0x23c] sm:$0xf]
        %v424 = vld [vmem:[%s236 + $0x240] sm:$0xf]
        %v425 = vld [vmem:[%s236 + $0x244] sm:$0xf]
        %v426 = vld [vmem:[%s236 + $0x248] sm:$0xf]
        %v427 = vld [vmem:[%s236 + $0x24c] sm:$0xf]
        %v428 = vld [vmem:[%s236 + $0x250] sm:$0xf]
        %v429 = vld [vmem:[%s236 + $0x254] sm:$0xf]
        %v430 = vld [vmem:[%s236 + $0x258] sm:$0xf]
        %v431 = vld [vmem:[%s236 + $0x25c] sm:$0xf]
        %v432 = vld [vmem:[%s236 + $0x260] sm:$0xf]
        %v433 = vld [vmem:[%s236 + $0x264] sm:$0xf]
        %v434 = vld [vmem:[%s236 + $0x268] sm:$0xf]
        %v435 = vld [vmem:[%s236 + $0x26c] sm:$0xf]
        %v436 = vld [vmem:[%s236 + $0x270] sm:$0xf]
        %v437 = vld [vmem:[%s236 + $0x274] sm:$0xf]
        %v438 = vld [vmem:[%s236 + $0x278] sm:$0xf]
        %v439 = vld [vmem:[%s236 + $0x27c] sm:$0xf]
        %v440 = vld [vmem:[%s236 + $0x280] sm:$0xf]
        %v441 = vld [vmem:[%s236 + $0x284] sm:$0xf]
        %v442 = vld [vmem:[%s236 + $0x288] sm:$0xf]
        %v443 = vld [vmem:[%s236 + $0x28c] sm:$0xf]
        %v444 = vld [vmem:[%s236 + $0x290] sm:$0xf]
        %v445 = vld [vmem:[%s236 + $0x294] sm:$0xf]
        %v446 = vld [vmem:[%s236 + $0x298] sm:$0xf]
        %v447 = vld [vmem:[%s236 + $0x29c] sm:$0xf]
        %v448 = vld [vmem:[%s236 + $0x2a0] sm:$0xf]
        %v449 = vld [vmem:[%s236 + $0x2a4] sm:$0xf]
        %v450 = vld [vmem:[%s236 + $0x2a8] sm:$0xf]
        %v451 = vld [vmem:[%s236 + $0x2ac] sm:$0xf]
        %v452 = vld [vmem:[%s236 + $0x2b0] sm:$0xf]
        %v453 = vld [vmem:[%s236 + $0x2b4] sm:$0xf]
        %v454 = vld [vmem:[%s236 + $0x2b8] sm:$0xf]
        %v455 = vld [vmem:[%s236 + $0x2bc] sm:$0xf]
        %v456 = vld [vmem:[%s236 + $0x2c0] sm:$0xf]
        %v457 = vld [vmem:[%s236 + $0x2c4] sm:$0xf]
        %v458 = vld [vmem:[%s236 + $0x2c8] sm:$0xf]
        %v459 = vld [vmem:[%s236 + $0x2cc] sm:$0xf]
        %v460 = vld [vmem:[%s236 + $0x2d0] sm:$0xf]
        %v461 = vld [vmem:[%s236 + $0x2d4] sm:$0xf]
        %v462 = vld [vmem:[%s236 + $0x2d8] sm:$0xf]
        %v463 = vld [vmem:[%s236 + $0x2dc] sm:$0xf]
        %v464 = vld [vmem:[%s236 + $0x2e0] sm:$0xf]
        %v465 = vld [vmem:[%s236 + $0x2e4] sm:$0xf]
        %v466 = vld [vmem:[%s236 + $0x2e8] sm:$0xf]
        %v467 = vld [vmem:[%s236 + $0x2ec] sm:$0xf]
        %v468 = vld [vmem:[%s236 + $0x2f0] sm:$0xf]
        %v469 = vld [vmem:[%s236 + $0x2f4] sm:$0xf]
        %v470 = vld [vmem:[%s236 + $0x2f8] sm:$0xf]
        %v471 = vld [vmem:[%s236 + $0x2fc] sm:$0xf]
        %v472 = vld [vmem:[%s236 + $0x300] sm:$0xf]
        %v473 = vld [vmem:[%s236 + $0x304] sm:$0xf]
        %v474 = vld [vmem:[%s236 + $0x308] sm:$0xf]
        %v475 = vld [vmem:[%s236 + $0x30c] sm:$0xf]
        %v476 = vld [vmem:[%s236 + $0x310] sm:$0xf]
        %v477 = vld [vmem:[%s236 + $0x314] sm:$0xf]
        %v478 = vld [vmem:[%s236 + $0x318] sm:$0xf]
        %v479 = vld [vmem:[%s236 + $0x31c] sm:$0xf]
        %v480 = vld [vmem:[%s236 + $0x320] sm:$0xf]
        %v481 = vld [vmem:[%s236 + $0x324] sm:$0xf]
        %v482 = vld [vmem:[%s236 + $0x328] sm:$0xf]
        %v483 = vld [vmem:[%s236 + $0x32c] sm:$0xf]
        %v484 = vld [vmem:[%s236 + $0x330] sm:$0xf]
        %v485 = vld [vmem:[%s236 + $0x334] sm:$0xf]
        %v486 = vld [vmem:[%s236 + $0x338] sm:$0xf]
        %v487 = vld [vmem:[%s236 + $0x33c] sm:$0xf]
        %v488 = vld [vmem:[%s236 + $0x340] sm:$0xf]
        %v489 = vld [vmem:[%s236 + $0x344] sm:$0xf]
        %v490 = vld [vmem:[%s236 + $0x348] sm:$0xf]
        %v491 = vld [vmem:[%s236 + $0x34c] sm:$0xf]
        %v492 = vld [vmem:[%s236 + $0x350] sm:$0xf]
        %v493 = vld [vmem:[%s236 + $0x354] sm:$0xf]
        %v494 = vld [vmem:[%s236 + $0x358] sm:$0xf]
        %v495 = vld [vmem:[%s236 + $0x35c] sm:$0xf]
        %v496 = vld [vmem:[%s236 + $0x360] sm:$0xf]
        %v497 = vld [vmem:[%s236 + $0x364] sm:$0xf]
        %v498 = vld [vmem:[%s236 + $0x368] sm:$0xf]
        %v499 = vld [vmem:[%s236 + $0x36c] sm:$0xf]
        %v500 = vld [vmem:[%s236 + $0x370] sm:$0xf]
        %v501 = vld [vmem:[%s236 + $0x374] sm:$0xf]
        %v502 = vld [vmem:[%s236 + $0x378] sm:$0xf]
        %v503 = vld [vmem:[%s236 + $0x37c] sm:$0xf]
        %v504 = vld [vmem:[%s236 + $0x380] sm:$0xf]
        %v505 = vld [vmem:[%s236 + $0x384] sm:$0xf]
        %v506 = vld [vmem:[%s236 + $0x388] sm:$0xf]
        %v507 = vld [vmem:[%s236 + $0x38c] sm:$0xf]
        %v508 = vld [vmem:[%s236 + $0x390] sm:$0xf]
        %v509 = vld [vmem:[%s236 + $0x394] sm:$0xf]
        %v510 = vld [vmem:[%s236 + $0x398] sm:$0xf]
        %v511 = vld [vmem:[%s236 + $0x39c] sm:$0xf]
        %v512 = vld [vmem:[%s236 + $0x3a0] sm:$0xf]
        %v513 = vld [vmem:[%s236 + $0x3a4] sm:$0xf]
        %v514 = vld [vmem:[%s236 + $0x3a8] sm:$0xf]
        %v515 = vld [vmem:[%s236 + $0x3ac] sm:$0xf]
        %v516 = vld [vmem:[%s236 + $0x3b0] sm:$0xf]
        %v517 = vld [vmem:[%s236 + $0x3b4] sm:$0xf]
        %v518 = vld [vmem:[%s236 + $0x3b8] sm:$0xf]
        %v519 = vld [vmem:[%s236 + $0x3bc] sm:$0xf]
        %v520 = vld [vmem:[%s236 + $0x3c0] sm:$0xf]
        %v521 = vld [vmem:[%s236 + $0x3c4] sm:$0xf]
        %v522 = vld [vmem:[%s236 + $0x3c8] sm:$0xf]
        %v523 = vld [vmem:[%s236 + $0x3cc] sm:$0xf]
        %v524 = vld [vmem:[%s236 + $0x3d0] sm:$0xf]
        %v525 = vld [vmem:[%s236 + $0x3d4] sm:$0xf]
        %v526 = vld [vmem:[%s236 + $0x3d8] sm:$0xf]
        %v527 = vld [vmem:[%s236 + $0x3dc] sm:$0xf]
        %v528 = vld [vmem:[%s236 + $0x3e0] sm:$0xf]
        %v529 = vld [vmem:[%s236 + $0x3e4] sm:$0xf]
        %v530 = vld [vmem:[%s236 + $0x3e8] sm:$0xf]
        %v531 = vld [vmem:[%s236 + $0x3ec] sm:$0xf]
        %v532 = vld [vmem:[%s236 + $0x3f0] sm:$0xf]
        %v533 = vld [vmem:[%s236 + $0x3f4] sm:$0xf]
        %v534 = vld [vmem:[%s236 + $0x3f8] sm:$0xf]
        %v535 = vld [vmem:[%s236 + $0x3fc] sm:$0xf]
        %v536 = vld [vmem:[%s236 + $0x400] sm:$0xf]
        %v537 = vld [vmem:[%s236 + $0x404] sm:$0xf]
        %v538 = vld [vmem:[%s236 + $0x408] sm:$0xf]
        %v539 = vld [vmem:[%s236 + $0x40c] sm:$0xf]
        %v540 = vld [vmem:[%s236 + $0x410] sm:$0xf]
        %v541 = vld [vmem:[%s236 + $0x414] sm:$0xf]
        %v542 = vld [vmem:[%s236 + $0x418] sm:$0xf]
        %v543 = vld [vmem:[%s236 + $0x41c] sm:$0xf]
        %v544 = vld [vmem:[%s236 + $0x420] sm:$0xf]
        %v545 = vld [vmem:[%s236 + $0x424] sm:$0xf]
        %v546 = vld [vmem:[%s236 + $0x428] sm:$0xf]
        %v547 = vld [vmem:[%s236 + $0x42c] sm:$0xf]
        %v548 = vld [vmem:[%s236 + $0x430] sm:$0xf]
        %v549 = vld [vmem:[%s236 + $0x434] sm:$0xf]
        %v550 = vld [vmem:[%s236 + $0x438] sm:$0xf]
        %v551 = vld [vmem:[%s236 + $0x43c] sm:$0xf]
        %v552 = vld [vmem:[%s236 + $0x440] sm:$0xf]
        %v553 = vld [vmem:[%s236 + $0x444] sm:$0xf]
        %v554 = vld [vmem:[%s236 + $0x448] sm:$0xf]
        %v555 = vld [vmem:[%s236 + $0x44c] sm:$0xf]
        %v556 = vld [vmem:[%s236 + $0x450] sm:$0xf]
        %v557 = vld [vmem:[%s236 + $0x454] sm:$0xf]
        %v558 = vld [vmem:[%s236 + $0x458] sm:$0xf]
        %v559 = vld [vmem:[%s236 + $0x45c] sm:$0xf]
        %v560 = vld [vmem:[%s236 + $0x460] sm:$0xf]
        %v561 = vld [vmem:[%s236 + $0x464] sm:$0xf]
        %v562 = vld [vmem:[%s236 + $0x468] sm:$0xf]
        %v563 = vld [vmem:[%s236 + $0x46c] sm:$0xf]
        %v564 = vld [vmem:[%s236 + $0x470] sm:$0xf]
        %v565 = vld [vmem:[%s236 + $0x474] sm:$0xf]
        %v566 = vld [vmem:[%s236 + $0x478] sm:$0xf]
        %v567 = vld [vmem:[%s236 + $0x47c] sm:$0xf]
        %v571 = vcombine.high %v277, %v277
        %v573 = vunpack.c.l.s4 1966171168
        %v574 = vunpack.c.0.s8 %v573
        %v575 = vlaneseq
        %v576 = vshrl.u32 %v575, 7
        %v577 = vsub.s32 %v574, %v576
        %v578 = vrot.slane %v277, %v577
        %v580 = vunpack.c.l.s4 1966171168
        %v581 = vunpack.c.0.s8 %v580
        %v582 = vlaneseq
        %v583 = vshrl.u32 %v582, 7
        %v584 = vsub.s32 %v581, %v583
        %v585 = vrot.slane %v571, %v584
        %v586 = vcombine.high %v578, %v578
        %v587 = vcombine.high %v585, %v585
        %v589 = vunpack.c.l.s4 1966171168
        %v590 = vunpack.c.0.s8 %v589
        %v591 = vlaneseq
        %v592 = vshrl.u32 %v591, 7
        %v593 = vsub.s32 %v590, %v592
        %v594 = vrot.slane %v578, %v593
        %v596 = vunpack.c.l.s4 1966171168
        %v597 = vunpack.c.0.s8 %v596
        %v598 = vlaneseq
        %v599 = vshrl.u32 %v598, 7
        %v600 = vsub.s32 %v597, %v599
        %v601 = vrot.slane %v585, %v600
        %v603 = vunpack.c.l.s4 1966171168
        %v604 = vunpack.c.0.s8 %v603
        %v605 = vlaneseq
        %v606 = vshrl.u32 %v605, 7
        %v607 = vsub.s32 %v604, %v606
        %v608 = vrot.slane %v586, %v607
        %v610 = vunpack.c.l.s4 1966171168
        %v611 = vunpack.c.0.s8 %v610
        %v612 = vlaneseq
        %v613 = vshrl.u32 %v612, 7
        %v614 = vsub.s32 %v611, %v613
        %v615 = vrot.slane %v587, %v614
        %v616 = vcombine.high %v594, %v594
        %v617 = vcombine.high %v601, %v601
        %v618 = vcombine.high %v608, %v608
        %v619 = vcombine.high %v615, %v615
        %v620 = vcombine.high %v278, %v278
        %v622 = vunpack.c.l.s4 1966171168
        %v623 = vunpack.c.0.s8 %v622
        %v624 = vlaneseq
        %v625 = vshrl.u32 %v624, 7
        %v626 = vsub.s32 %v623, %v625
        %v627 = vrot.slane %v278, %v626
        %v629 = vunpack.c.l.s4 1966171168
        %v630 = vunpack.c.0.s8 %v629
        %v631 = vlaneseq
        %v632 = vshrl.u32 %v631, 7
        %v633 = vsub.s32 %v630, %v632
        %v634 = vrot.slane %v620, %v633
        %v635 = vcombine.high %v627, %v627
        %v636 = vcombine.high %v634, %v634
        %v638 = vunpack.c.l.s4 1966171168
        %v639 = vunpack.c.0.s8 %v638
        %v640 = vlaneseq
        %v641 = vshrl.u32 %v640, 7
        %v642 = vsub.s32 %v639, %v641
        %v643 = vrot.slane %v627, %v642
        %v645 = vunpack.c.l.s4 1966171168
        %v646 = vunpack.c.0.s8 %v645
        %v647 = vlaneseq
        %v648 = vshrl.u32 %v647, 7
        %v649 = vsub.s32 %v646, %v648
        %v650 = vrot.slane %v634, %v649
        %v652 = vunpack.c.l.s4 1966171168
        %v653 = vunpack.c.0.s8 %v652
        %v654 = vlaneseq
        %v655 = vshrl.u32 %v654, 7
        %v656 = vsub.s32 %v653, %v655
        %v657 = vrot.slane %v635, %v656
        %v659 = vunpack.c.l.s4 1966171168
        %v660 = vunpack.c.0.s8 %v659
        %v661 = vlaneseq
        %v662 = vshrl.u32 %v661, 7
        %v663 = vsub.s32 %v660, %v662
        %v664 = vrot.slane %v636, %v663
        %v665 = vcombine.high %v643, %v643
        %v666 = vcombine.high %v650, %v650
        %v667 = vcombine.high %v657, %v657
        %v668 = vcombine.high %v664, %v664
        %v670 = vunpack.c.l.s4 1966171168
        %v671 = vunpack.c.0.s8 %v670
        %v672 = vlaneseq
        %v673 = vshrl.u32 %v672, 7
        %v674 = vsub.s32 %v671, %v673
        %v675 = vrot.slane %v279, %v674
        %v676 = vcombine.high %v675, %v675
        %v678 = vunpack.c.l.s4 1966171168
        %v679 = vunpack.c.0.s8 %v678
        %v680 = vlaneseq
        %v681 = vshrl.u32 %v680, 7
        %v682 = vsub.s32 %v679, %v681
        %v683 = vrot.slane %v675, %v682
        %v685 = vunpack.c.l.s4 1966171168
        %v686 = vunpack.c.0.s8 %v685
        %v687 = vlaneseq
        %v688 = vshrl.u32 %v687, 7
        %v689 = vsub.s32 %v686, %v688
        %v690 = vrot.slane %v676, %v689
        %v997 = vunpack.c.l.b16 %v280
        %v998 = vunpack.c.l.b16 %v281
        %v999 = vunpack.c.l.b16 %v282
        %v1000 = vunpack.c.l.b16 %v283
        %v1001 = vunpack.c.l.b16 %v284
        %v1002 = vunpack.c.l.b16 %v285
        %v1003 = vunpack.c.l.b16 %v286
        %v1004 = vunpack.c.l.b16 %v287
        %v1005 = vunpack.c.l.b16 %v288
        %v1006 = vunpack.c.l.b16 %v289
        %v1007 = vunpack.c.l.b16 %v290
        %v1008 = vunpack.c.l.b16 %v291
        %v1009 = vunpack.c.l.b16 %v292
        %v1010 = vunpack.c.l.b16 %v293
        %v1011 = vunpack.c.l.b16 %v294
        %v1012 = vunpack.c.l.b16 %v295
        %v1013 = vunpack.c.l.b16 %v296
        %v1014 = vunpack.c.l.b16 %v297
        %v1015 = vunpack.c.l.b16 %v298
        %v1016 = vunpack.c.l.b16 %v299
        %v1017 = vunpack.c.l.b16 %v300
        %v1018 = vunpack.c.l.b16 %v301
        %v1019 = vunpack.c.l.b16 %v302
        %v1020 = vunpack.c.l.b16 %v303
        %v1021 = vunpack.c.l.b16 %v304
        %v1022 = vunpack.c.l.b16 %v305
        %v1023 = vunpack.c.l.b16 %v306
        %v1024 = vunpack.c.l.b16 %v307
        %v1025 = vunpack.c.l.b16 %v308
        %v1026 = vunpack.c.l.b16 %v309
        %v1027 = vunpack.c.l.b16 %v310
        %v1028 = vunpack.c.l.b16 %v311
        %v1029 = vunpack.c.l.b16 %v312
        %v1030 = vunpack.c.l.b16 %v313
        %v1031 = vunpack.c.l.b16 %v314
        %v1032 = vunpack.c.l.b16 %v315
        %v1033 = vunpack.c.l.b16 %v316
        %v1034 = vunpack.c.l.b16 %v317
        %v1035 = vunpack.c.l.b16 %v318
        %v1036 = vunpack.c.l.b16 %v319
        %v1037 = vunpack.c.l.b16 %v320
        %v1038 = vunpack.c.l.b16 %v321
        %v1039 = vunpack.c.l.b16 %v322
        %v1040 = vunpack.c.l.b16 %v323
        %v1041 = vunpack.c.l.b16 %v324
        %v1042 = vunpack.c.l.b16 %v325
        %v1043 = vunpack.c.l.b16 %v326
        %v1044 = vunpack.c.l.b16 %v327
        %v1045 = vunpack.c.l.b16 %v328
        %v1046 = vunpack.c.l.b16 %v329
        %v1047 = vunpack.c.l.b16 %v330
        %v1048 = vunpack.c.l.b16 %v331
        %v1049 = vunpack.c.l.b16 %v332
        %v1050 = vunpack.c.l.b16 %v333
        %v1051 = vunpack.c.l.b16 %v334
        %v1052 = vunpack.c.l.b16 %v335
        %v1053 = vunpack.c.l.b16 %v336
        %v1054 = vunpack.c.l.b16 %v337
        %v1055 = vunpack.c.l.b16 %v338
        %v1056 = vunpack.c.l.b16 %v339
        %v1057 = vunpack.c.l.b16 %v340
        %v1058 = vunpack.c.l.b16 %v341
        %v1059 = vunpack.c.l.b16 %v342
        %v1060 = vunpack.c.l.b16 %v343
        %v1061 = vunpack.c.l.b16 %v344
        %v1062 = vunpack.c.l.b16 %v345
        %v1063 = vunpack.c.l.b16 %v346
        %v1064 = vunpack.c.l.b16 %v347
        %v1065 = vunpack.c.l.b16 %v348
        %v1066 = vunpack.c.l.b16 %v349
        %v1067 = vunpack.c.l.b16 %v350
        %v1068 = vunpack.c.l.b16 %v351
        %v1069 = vunpack.c.l.b16 %v352
        %v1070 = vunpack.c.l.b16 %v353
        %v1071 = vunpack.c.l.b16 %v354
        %v1072 = vunpack.c.l.b16 %v355
        %v1073 = vunpack.c.l.b16 %v356
        %v1074 = vunpack.c.l.b16 %v357
        %v1075 = vunpack.c.l.b16 %v358
        %v1076 = vunpack.c.l.b16 %v359
        %v1077 = vunpack.c.l.b16 %v360
        %v1078 = vunpack.c.l.b16 %v361
        %v1079 = vunpack.c.l.b16 %v362
        %v1080 = vunpack.c.l.b16 %v363
        %v1081 = vunpack.c.l.b16 %v364
        %v1082 = vunpack.c.l.b16 %v365
        %v1083 = vunpack.c.l.b16 %v366
        %v1084 = vunpack.c.l.b16 %v367
        %v1085 = vunpack.c.l.b16 %v368
        %v1086 = vunpack.c.l.b16 %v369
        %v1087 = vunpack.c.l.b16 %v370
        %v1088 = vunpack.c.l.b16 %v371
        %v1089 = vunpack.c.l.b16 %v372
        %v1090 = vunpack.c.l.b16 %v373
        %v1091 = vunpack.c.l.b16 %v374
        %v1092 = vunpack.c.l.b16 %v375
        %v1093 = vunpack.c.l.b16 %v376
        %v1094 = vunpack.c.l.b16 %v377
        %v1095 = vunpack.c.l.b16 %v378
        %v1096 = vunpack.c.l.b16 %v379
        %v1097 = vunpack.c.l.b16 %v380
        %v1098 = vunpack.c.l.b16 %v381
        %v1099 = vunpack.c.l.b16 %v382
        %v1100 = vunpack.c.l.b16 %v383
        %v1101 = vunpack.c.l.b16 %v384
        %v1102 = vunpack.c.l.b16 %v385
        %v1103 = vunpack.c.l.b16 %v386
        %v1104 = vunpack.c.l.b16 %v387
        %v1105 = vunpack.c.l.b16 %v388
        %v1106 = vunpack.c.l.b16 %v389
        %v1107 = vunpack.c.l.b16 %v390
        %v1108 = vunpack.c.l.b16 %v391
        %v1109 = vunpack.c.l.b16 %v392
        %v1110 = vunpack.c.l.b16 %v393
        %v1111 = vunpack.c.l.b16 %v394
        %v1112 = vunpack.c.l.b16 %v395
        %v1113 = vunpack.c.l.b16 %v396
        %v1114 = vunpack.c.l.b16 %v397
        %v1115 = vunpack.c.l.b16 %v398
        %v1116 = vunpack.c.l.b16 %v399
        %v1117 = vunpack.c.l.b16 %v400
        %v1118 = vunpack.c.l.b16 %v401
        %v1119 = vunpack.c.l.b16 %v402
        %v1120 = vunpack.c.l.b16 %v403
        %v1121 = vunpack.c.l.b16 %v404
        %v1122 = vunpack.c.l.b16 %v405
        %v1123 = vunpack.c.l.b16 %v406
        %v1124 = vunpack.c.l.b16 %v407
        %v1125 = vunpack.c.l.b16 %v408
        %v1126 = vunpack.c.l.b16 %v409
        %v1127 = vunpack.c.l.b16 %v410
        %v1128 = vunpack.c.l.b16 %v411
        %v1129 = vunpack.c.l.b16 %v412
        %v1130 = vunpack.c.l.b16 %v413
        %v1131 = vunpack.c.l.b16 %v414
        %v1132 = vunpack.c.l.b16 %v415
        %v1133 = vunpack.c.l.b16 %v416
        %v1134 = vunpack.c.l.b16 %v417
        %v1135 = vunpack.c.l.b16 %v418
        %v1136 = vunpack.c.l.b16 %v419
        %v1137 = vunpack.c.l.b16 %v420
        %v1138 = vunpack.c.l.b16 %v421
        %v1139 = vunpack.c.l.b16 %v422
        %v1140 = vunpack.c.l.b16 %v423
        %v1141 = vunpack.c.l.b16 %v424
        %v1142 = vunpack.c.l.b16 %v425
        %v1143 = vunpack.c.l.b16 %v426
        %v1144 = vunpack.c.l.b16 %v427
        %v1145 = vunpack.c.l.b16 %v428
        %v1146 = vunpack.c.l.b16 %v429
        %v1147 = vunpack.c.l.b16 %v430
        %v1148 = vunpack.c.l.b16 %v431
        %v1149 = vunpack.c.l.b16 %v432
        %v1150 = vunpack.c.l.b16 %v433
        %v1151 = vunpack.c.l.b16 %v434
        %v1152 = vunpack.c.l.b16 %v435
        %v1153 = vunpack.c.l.b16 %v436
        %v1154 = vunpack.c.l.b16 %v437
        %v1155 = vunpack.c.l.b16 %v438
        %v1156 = vunpack.c.l.b16 %v439
        %v1157 = vunpack.c.l.b16 %v440
        %v1158 = vunpack.c.l.b16 %v441
        %v1159 = vunpack.c.l.b16 %v442
        %v1160 = vunpack.c.l.b16 %v443
        %v1161 = vunpack.c.l.b16 %v444
        %v1162 = vunpack.c.l.b16 %v445
        %v1163 = vunpack.c.l.b16 %v446
        %v1164 = vunpack.c.l.b16 %v447
        %v1165 = vunpack.c.l.b16 %v448
        %v1166 = vunpack.c.l.b16 %v449
        %v1167 = vunpack.c.l.b16 %v450
        %v1168 = vunpack.c.l.b16 %v451
        %v1169 = vunpack.c.l.b16 %v452
        %v1170 = vunpack.c.l.b16 %v453
        %v1171 = vunpack.c.l.b16 %v454
        %v1172 = vunpack.c.l.b16 %v455
        %v1173 = vunpack.c.l.b16 %v456
        %v1174 = vunpack.c.l.b16 %v457
        %v1175 = vunpack.c.l.b16 %v458
        %v1176 = vunpack.c.l.b16 %v459
        %v1177 = vunpack.c.l.b16 %v460
        %v1178 = vunpack.c.l.b16 %v461
        %v1179 = vunpack.c.l.b16 %v462
        %v1180 = vunpack.c.l.b16 %v463
        %v1181 = vunpack.c.l.b16 %v464
        %v1182 = vunpack.c.l.b16 %v465
        %v1183 = vunpack.c.l.b16 %v466
        %v1184 = vunpack.c.l.b16 %v467
        %v1185 = vunpack.c.l.b16 %v468
        %v1186 = vunpack.c.l.b16 %v469
        %v1187 = vunpack.c.l.b16 %v470
        %v1188 = vunpack.c.l.b16 %v471
        %v1189 = vunpack.c.l.b16 %v472
        %v1190 = vunpack.c.l.b16 %v473
        %v1191 = vunpack.c.l.b16 %v474
        %v1192 = vunpack.c.l.b16 %v475
        %v1193 = vunpack.c.l.b16 %v476
        %v1194 = vunpack.c.l.b16 %v477
        %v1195 = vunpack.c.l.b16 %v478
        %v1196 = vunpack.c.l.b16 %v479
        %v1197 = vunpack.c.l.b16 %v480
        %v1198 = vunpack.c.l.b16 %v481
        %v1199 = vunpack.c.l.b16 %v482
        %v1200 = vunpack.c.l.b16 %v483
        %v1201 = vunpack.c.l.b16 %v484
        %v1202 = vunpack.c.l.b16 %v485
        %v1203 = vunpack.c.l.b16 %v486
        %v1204 = vunpack.c.l.b16 %v487
        %v1205 = vunpack.c.l.b16 %v488
        %v1206 = vunpack.c.l.b16 %v489
        %v1207 = vunpack.c.l.b16 %v490
        %v1208 = vunpack.c.l.b16 %v491
        %v1209 = vunpack.c.l.b16 %v492
        %v1210 = vunpack.c.l.b16 %v493
        %v1211 = vunpack.c.l.b16 %v494
        %v1212 = vunpack.c.l.b16 %v495
        %v1213 = vunpack.c.l.b16 %v496
        %v1214 = vunpack.c.l.b16 %v497
        %v1215 = vunpack.c.l.b16 %v498
        %v1216 = vunpack.c.l.b16 %v499
        %v1217 = vunpack.c.l.b16 %v500
        %v1218 = vunpack.c.l.b16 %v501
        %v1219 = vunpack.c.l.b16 %v502
        %v1220 = vunpack.c.l.b16 %v503
        %v1221 = vunpack.c.l.b16 %v504
        %v1222 = vunpack.c.l.b16 %v505
        %v1223 = vunpack.c.l.b16 %v506
        %v1224 = vunpack.c.l.b16 %v507
        %v1225 = vunpack.c.l.b16 %v508
        %v1226 = vunpack.c.l.b16 %v509
        %v1227 = vunpack.c.l.b16 %v510
        %v1228 = vunpack.c.l.b16 %v511
        %v1229 = vunpack.c.l.b16 %v512
        %v1230 = vunpack.c.l.b16 %v513
        %v1231 = vunpack.c.l.b16 %v514
        %v1232 = vunpack.c.l.b16 %v515
        %v1233 = vunpack.c.l.b16 %v516
        %v1234 = vunpack.c.l.b16 %v517
        %v1235 = vunpack.c.l.b16 %v518
        %v1236 = vunpack.c.l.b16 %v519
        %v1237 = vunpack.c.l.b16 %v520
        %v1238 = vunpack.c.l.b16 %v521
        %v1239 = vunpack.c.l.b16 %v522
        %v1240 = vunpack.c.l.b16 %v523
        %v1241 = vunpack.c.l.b16 %v524
        %v1242 = vunpack.c.l.b16 %v525
        %v1243 = vunpack.c.l.b16 %v526
        %v1244 = vunpack.c.l.b16 %v527
        %v1245 = vunpack.c.l.b16 %v528
        %v1246 = vunpack.c.l.b16 %v529
        %v1247 = vunpack.c.l.b16 %v530
        %v1248 = vunpack.c.l.b16 %v531
        %v1249 = vunpack.c.l.b16 %v532
        %v1250 = vunpack.c.l.b16 %v533
        %v1251 = vunpack.c.l.b16 %v534
        %v1252 = vunpack.c.l.b16 %v535
        %v1253 = vunpack.c.l.b16 %v536
        %v1254 = vunpack.c.l.b16 %v537
        %v1255 = vunpack.c.l.b16 %v538
        %v1256 = vunpack.c.l.b16 %v539
        %v1257 = vunpack.c.l.b16 %v540
        %v1258 = vunpack.c.l.b16 %v541
        %v1259 = vunpack.c.l.b16 %v542
        %v1260 = vunpack.c.l.b16 %v543
        %v1261 = vunpack.c.l.b16 %v544
        %v1262 = vunpack.c.l.b16 %v545
        %v1263 = vunpack.c.l.b16 %v546
        %v1264 = vunpack.c.l.b16 %v547
        %v1265 = vunpack.c.l.b16 %v548
        %v1266 = vunpack.c.l.b16 %v549
        %v1267 = vunpack.c.l.b16 %v550
        %v1268 = vunpack.c.l.b16 %v551
        %v1269 = vunpack.c.l.b16 %v552
        %v1270 = vunpack.c.l.b16 %v553
        %v1271 = vunpack.c.l.b16 %v554
        %v1272 = vunpack.c.l.b16 %v555
        %v1273 = vunpack.c.l.b16 %v556
        %v1274 = vunpack.c.l.b16 %v557
        %v1275 = vunpack.c.l.b16 %v558
        %v1276 = vunpack.c.l.b16 %v559
        %v1277 = vunpack.c.l.b16 %v560
        %v1278 = vunpack.c.l.b16 %v561
        %v1279 = vunpack.c.l.b16 %v562
        %v1280 = vunpack.c.l.b16 %v563
        %v1281 = vunpack.c.l.b16 %v564
        %v1282 = vunpack.c.l.b16 %v565
        %v1283 = vunpack.c.l.b16 %v566
        %v1284 = vunpack.c.l.b16 %v567
        %v1285 = vpack.c.b16 %v998, %v997
        %v1286 = vpack.c.b16 %v1000, %v999
        %v1287 = vpack.c.b16 %v1002, %v1001
        %v1288 = vpack.c.b16 %v1004, %v1003
        %v1289 = vpack.c.b16 %v1006, %v1005
        %v1290 = vpack.c.b16 %v1008, %v1007
        %v1291 = vpack.c.b16 %v1010, %v1009
        %v1292 = vpack.c.b16 %v1012, %v1011
        %v1293 = vpack.c.b16 %v1014, %v1013
        %v1294 = vpack.c.b16 %v1016, %v1015
        %v1295 = vpack.c.b16 %v1018, %v1017
        %v1296 = vpack.c.b16 %v1020, %v1019
        %v1297 = vpack.c.b16 %v1022, %v1021
        %v1298 = vpack.c.b16 %v1024, %v1023
        %v1299 = vpack.c.b16 %v1026, %v1025
        %v1300 = vpack.c.b16 %v1028, %v1027
        %v1301 = vpack.c.b16 %v1030, %v1029
        %v1302 = vpack.c.b16 %v1032, %v1031
        %v1303 = vpack.c.b16 %v1034, %v1033
        %v1304 = vpack.c.b16 %v1036, %v1035
        %v1305 = vpack.c.b16 %v1038, %v1037
        %v1306 = vpack.c.b16 %v1040, %v1039
        %v1307 = vpack.c.b16 %v1042, %v1041
        %v1308 = vpack.c.b16 %v1044, %v1043
        %v1309 = vpack.c.b16 %v1046, %v1045
        %v1310 = vpack.c.b16 %v1048, %v1047
        %v1311 = vpack.c.b16 %v1050, %v1049
        %v1312 = vpack.c.b16 %v1052, %v1051
        %v1313 = vpack.c.b16 %v1054, %v1053
        %v1314 = vpack.c.b16 %v1056, %v1055
        %v1315 = vpack.c.b16 %v1058, %v1057
        %v1316 = vpack.c.b16 %v1060, %v1059
        %v1317 = vpack.c.b16 %v1062, %v1061
        %v1318 = vpack.c.b16 %v1064, %v1063
        %v1319 = vpack.c.b16 %v1066, %v1065
        %v1320 = vpack.c.b16 %v1068, %v1067
        %v1321 = vpack.c.b16 %v1070, %v1069
        %v1322 = vpack.c.b16 %v1072, %v1071
        %v1323 = vpack.c.b16 %v1074, %v1073
        %v1324 = vpack.c.b16 %v1076, %v1075
        %v1325 = vpack.c.b16 %v1078, %v1077
        %v1326 = vpack.c.b16 %v1080, %v1079
        %v1327 = vpack.c.b16 %v1082, %v1081
        %v1328 = vpack.c.b16 %v1084, %v1083
        %v1329 = vpack.c.b16 %v1086, %v1085
        %v1330 = vpack.c.b16 %v1088, %v1087
        %v1331 = vpack.c.b16 %v1090, %v1089
        %v1332 = vpack.c.b16 %v1092, %v1091
        %v1333 = vpack.c.b16 %v1094, %v1093
        %v1334 = vpack.c.b16 %v1096, %v1095
        %v1335 = vpack.c.b16 %v1098, %v1097
        %v1336 = vpack.c.b16 %v1100, %v1099
        %v1337 = vpack.c.b16 %v1102, %v1101
        %v1338 = vpack.c.b16 %v1104, %v1103
        %v1339 = vpack.c.b16 %v1106, %v1105
        %v1340 = vpack.c.b16 %v1108, %v1107
        %v1341 = vpack.c.b16 %v1110, %v1109
        %v1342 = vpack.c.b16 %v1112, %v1111
        %v1343 = vpack.c.b16 %v1114, %v1113
        %v1344 = vpack.c.b16 %v1116, %v1115
        %v1345 = vpack.c.b16 %v1118, %v1117
        %v1346 = vpack.c.b16 %v1120, %v1119
        %v1347 = vpack.c.b16 %v1122, %v1121
        %v1348 = vpack.c.b16 %v1124, %v1123
        %v1349 = vpack.c.b16 %v1126, %v1125
        %v1350 = vpack.c.b16 %v1128, %v1127
        %v1351 = vpack.c.b16 %v1130, %v1129
        %v1352 = vpack.c.b16 %v1132, %v1131
        %v1353 = vpack.c.b16 %v1134, %v1133
        %v1354 = vpack.c.b16 %v1136, %v1135
        %v1355 = vpack.c.b16 %v1138, %v1137
        %v1356 = vpack.c.b16 %v1140, %v1139
        %v1357 = vpack.c.b16 %v1142, %v1141
        %v1358 = vpack.c.b16 %v1144, %v1143
        %v1359 = vpack.c.b16 %v1146, %v1145
        %v1360 = vpack.c.b16 %v1148, %v1147
        %v1361 = vpack.c.b16 %v1150, %v1149
        %v1362 = vpack.c.b16 %v1152, %v1151
        %v1363 = vpack.c.b16 %v1154, %v1153
        %v1364 = vpack.c.b16 %v1156, %v1155
        %v1365 = vpack.c.b16 %v1158, %v1157
        %v1366 = vpack.c.b16 %v1160, %v1159
        %v1367 = vpack.c.b16 %v1162, %v1161
        %v1368 = vpack.c.b16 %v1164, %v1163
        %v1369 = vpack.c.b16 %v1166, %v1165
        %v1370 = vpack.c.b16 %v1168, %v1167
        %v1371 = vpack.c.b16 %v1170, %v1169
        %v1372 = vpack.c.b16 %v1172, %v1171
        %v1373 = vpack.c.b16 %v1174, %v1173
        %v1374 = vpack.c.b16 %v1176, %v1175
        %v1375 = vpack.c.b16 %v1178, %v1177
        %v1376 = vpack.c.b16 %v1180, %v1179
        %v1377 = vpack.c.b16 %v1182, %v1181
        %v1378 = vpack.c.b16 %v1184, %v1183
        %v1379 = vpack.c.b16 %v1186, %v1185
        %v1380 = vpack.c.b16 %v1188, %v1187
        %v1381 = vpack.c.b16 %v1190, %v1189
        %v1382 = vpack.c.b16 %v1192, %v1191
        %v1383 = vpack.c.b16 %v1194, %v1193
        %v1384 = vpack.c.b16 %v1196, %v1195
        %v1385 = vpack.c.b16 %v1198, %v1197
        %v1386 = vpack.c.b16 %v1200, %v1199
        %v1387 = vpack.c.b16 %v1202, %v1201
        %v1388 = vpack.c.b16 %v1204, %v1203
        %v1389 = vpack.c.b16 %v1206, %v1205
        %v1390 = vpack.c.b16 %v1208, %v1207
        %v1391 = vpack.c.b16 %v1210, %v1209
        %v1392 = vpack.c.b16 %v1212, %v1211
        %v1393 = vpack.c.b16 %v1214, %v1213
        %v1394 = vpack.c.b16 %v1216, %v1215
        %v1395 = vpack.c.b16 %v1218, %v1217
        %v1396 = vpack.c.b16 %v1220, %v1219
        %v1397 = vpack.c.b16 %v1222, %v1221
        %v1398 = vpack.c.b16 %v1224, %v1223
        %v1399 = vpack.c.b16 %v1226, %v1225
        %v1400 = vpack.c.b16 %v1228, %v1227
        %v1401 = vpack.c.b16 %v1230, %v1229
        %v1402 = vpack.c.b16 %v1232, %v1231
        %v1403 = vpack.c.b16 %v1234, %v1233
        %v1404 = vpack.c.b16 %v1236, %v1235
        %v1405 = vpack.c.b16 %v1238, %v1237
        %v1406 = vpack.c.b16 %v1240, %v1239
        %v1407 = vpack.c.b16 %v1242, %v1241
        %v1408 = vpack.c.b16 %v1244, %v1243
        %v1409 = vpack.c.b16 %v1246, %v1245
        %v1410 = vpack.c.b16 %v1248, %v1247
        %v1411 = vpack.c.b16 %v1250, %v1249
        %v1412 = vpack.c.b16 %v1252, %v1251
        %v1413 = vpack.c.b16 %v1254, %v1253
        %v1414 = vpack.c.b16 %v1256, %v1255
        %v1415 = vpack.c.b16 %v1258, %v1257
        %v1416 = vpack.c.b16 %v1260, %v1259
        %v1417 = vpack.c.b16 %v1262, %v1261
        %v1418 = vpack.c.b16 %v1264, %v1263
        %v1419 = vpack.c.b16 %v1266, %v1265
        %v1420 = vpack.c.b16 %v1268, %v1267
        %v1421 = vpack.c.b16 %v1270, %v1269
        %v1422 = vpack.c.b16 %v1272, %v1271
        %v1423 = vpack.c.b16 %v1274, %v1273
        %v1424 = vpack.c.b16 %v1276, %v1275
        %v1425 = vpack.c.b16 %v1278, %v1277
        %v1426 = vpack.c.b16 %v1280, %v1279
        %v1427 = vpack.c.b16 %v1282, %v1281
        %v1428 = vpack.c.b16 %v1284, %v1283
        %1573 = vmatprep.subr.bf16.mxu0 0
        %1574 = vmatpush1.bf16.msra.mxu0 %v1285
        %1575 = vmatprep.subr.bf16.mxu0 0
        %1576 = vmatpush1.bf16.msra.mxu0 %v1286
        %1577 = vmatprep.subr.bf16.mxu0 0
        %1578 = vmatpush1.bf16.msra.mxu0 %v1287
        %1579 = vmatprep.subr.bf16.mxu0 0
        %1580 = vmatpush1.bf16.msra.mxu0 %v1288
        %1581 = vmatprep.subr.bf16.mxu0 0
        %1582 = vmatpush1.bf16.msra.mxu0 %v1289
        %1583 = vmatprep.subr.bf16.mxu0 0
        %1584 = vmatpush1.bf16.msra.mxu0 %v1290
        %1585 = vmatprep.subr.bf16.mxu0 0
        %1586 = vmatpush1.bf16.msra.mxu0 %v1291
        %1587 = vmatprep.subr.bf16.mxu0 0
        %1588 = vmatpush1.bf16.msra.mxu0 %v1292
        %1589 = vmatprep.subr.bf16.mxu0 0
        %1590 = vmatpush1.bf16.msra.mxu0 %v1293
        %1591 = vmatprep.subr.bf16.mxu0 0
        %1592 = vmatpush1.bf16.msra.mxu0 %v1294
        %1593 = vmatprep.subr.bf16.mxu0 0
        %1594 = vmatpush1.bf16.msra.mxu0 %v1295
        %1595 = vmatprep.subr.bf16.mxu0 0
        %1596 = vmatpush1.bf16.msra.mxu0 %v1296
        %1597 = vmatprep.subr.bf16.mxu0 0
        %1598 = vmatpush1.bf16.msra.mxu0 %v1297
        %1599 = vmatprep.subr.bf16.mxu0 0
        %1600 = vmatpush1.bf16.msra.mxu0 %v1298
        %1601 = vmatprep.subr.bf16.mxu0 0
        %1602 = vmatpush1.bf16.msra.mxu0 %v1299
        %1603 = vmatprep.subr.bf16.mxu0 0
        %1604 = vmatpush1.bf16.msra.mxu0 %v1300
        %1605 = vmatprep.mubr.bf16.mxu0 %v608
        %1606 = vmatmul.mubr.bf16.gmra.mrb[0].mxu0 %v594
        %v1607 = vpop.f32.mrb[0].mxu0
        %v1608 = vadd.f32 0.0, %v1607
        %v1609 = vpop.f32.mrb[0].mxu0
        %v1610 = vpop.f32.mrb[0].mxu0
        %v1611 = vpop.f32.mrb[0].mxu0
        %1612 = vdwg.mxu0
        %1613 = vmatprep.subr.bf16.mxu0 0
        %1614 = vmatpush1.bf16.msra.mxu0 %v1301
        %1615 = vmatprep.subr.bf16.mxu0 0
        %1616 = vmatpush1.bf16.msra.mxu0 %v1302
        %1617 = vmatprep.subr.bf16.mxu0 0
        %1618 = vmatpush1.bf16.msra.mxu0 %v1303
        %1619 = vmatprep.subr.bf16.mxu0 0
        %1620 = vmatpush1.bf16.msra.mxu0 %v1304
        %1621 = vmatprep.subr.bf16.mxu0 0
        %1622 = vmatpush1.bf16.msra.mxu0 %v1305
        %1623 = vmatprep.subr.bf16.mxu0 0
        %1624 = vmatpush1.bf16.msra.mxu0 %v1306
        %1625 = vmatprep.subr.bf16.mxu0 0
        %1626 = vmatpush1.bf16.msra.mxu0 %v1307
        %1627 = vmatprep.subr.bf16.mxu0 0
        %1628 = vmatpush1.bf16.msra.mxu0 %v1308
        %1629 = vmatprep.subr.bf16.mxu0 0
        %1630 = vmatpush1.bf16.msra.mxu0 %v1309
        %1631 = vmatprep.subr.bf16.mxu0 0
        %1632 = vmatpush1.bf16.msra.mxu0 %v1310
        %1633 = vmatprep.subr.bf16.mxu0 0
        %1634 = vmatpush1.bf16.msra.mxu0 %v1311
        %1635 = vmatprep.subr.bf16.mxu0 0
        %1636 = vmatpush1.bf16.msra.mxu0 %v1312
        %1637 = vmatprep.subr.bf16.mxu0 0
        %1638 = vmatpush1.bf16.msra.mxu0 %v1313
        %1639 = vmatprep.subr.bf16.mxu0 0
        %1640 = vmatpush1.bf16.msra.mxu0 %v1314
        %1641 = vmatprep.subr.bf16.mxu0 0
        %1642 = vmatpush1.bf16.msra.mxu0 %v1315
        %1643 = vmatprep.subr.bf16.mxu0 0
        %1644 = vmatpush1.bf16.msra.mxu0 %v1316
        %1645 = vmatprep.mubr.bf16.mxu0 %v618
        %1646 = vmatmul.mubr.bf16.gmra.mrb[0].mxu0 %v616
        %v1647 = vpop.f32.mrb[0].mxu0
        %v1648 = vadd.f32 %v1608, %v1647
        %v1649 = vpop.f32.mrb[0].mxu0
        %v1650 = vpop.f32.mrb[0].mxu0
        %v1651 = vpop.f32.mrb[0].mxu0
        %1652 = vdwg.mxu0
        %1653 = vmatprep.subr.bf16.mxu0 0
        %1654 = vmatpush1.bf16.msra.mxu0 %v1317
        %1655 = vmatprep.subr.bf16.mxu0 0
        %1656 = vmatpush1.bf16.msra.mxu0 %v1318
        %1657 = vmatprep.subr.bf16.mxu0 0
        %1658 = vmatpush1.bf16.msra.mxu0 %v1319
        %1659 = vmatprep.subr.bf16.mxu0 0
        %1660 = vmatpush1.bf16.msra.mxu0 %v1320
        %1661 = vmatprep.subr.bf16.mxu0 0
        %1662 = vmatpush1.bf16.msra.mxu0 %v1321
        %1663 = vmatprep.subr.bf16.mxu0 0
        %1664 = vmatpush1.bf16.msra.mxu0 %v1322
        %1665 = vmatprep.subr.bf16.mxu0 0
        %1666 = vmatpush1.bf16.msra.mxu0 %v1323
        %1667 = vmatprep.subr.bf16.mxu0 0
        %1668 = vmatpush1.bf16.msra.mxu0 %v1324
        %1669 = vmatprep.subr.bf16.mxu0 0
        %1670 = vmatpush1.bf16.msra.mxu0 %v1325
        %1671 = vmatprep.subr.bf16.mxu0 0
        %1672 = vmatpush1.bf16.msra.mxu0 %v1326
        %1673 = vmatprep.subr.bf16.mxu0 0
        %1674 = vmatpush1.bf16.msra.mxu0 %v1327
        %1675 = vmatprep.subr.bf16.mxu0 0
        %1676 = vmatpush1.bf16.msra.mxu0 %v1328
        %1677 = vmatprep.subr.bf16.mxu0 0
        %1678 = vmatpush1.bf16.msra.mxu0 %v1329
        %1679 = vmatprep.subr.bf16.mxu0 0
        %1680 = vmatpush1.bf16.msra.mxu0 %v1330
        %1681 = vmatprep.subr.bf16.mxu0 0
        %1682 = vmatpush1.bf16.msra.mxu0 %v1331
        %1683 = vmatprep.subr.bf16.mxu0 0
        %1684 = vmatpush1.bf16.msra.mxu0 %v1332
        %1685 = vmatprep.mubr.bf16.mxu0 %v615
        %1686 = vmatmul.mubr.bf16.gmra.mrb[0].mxu0 %v601
        %v1687 = vpop.f32.mrb[0].mxu0
        %v1688 = vadd.f32 %v1648, %v1687
        %v1689 = vpop.f32.mrb[0].mxu0
        %v1690 = vpop.f32.mrb[0].mxu0
        %v1691 = vpop.f32.mrb[0].mxu0
        %1692 = vdwg.mxu0
        %1693 = vmatprep.subr.bf16.mxu0 0
        %1694 = vmatpush1.bf16.msra.mxu0 %v1333
        %1695 = vmatprep.subr.bf16.mxu0 0
        %1696 = vmatpush1.bf16.msra.mxu0 %v1334
        %1697 = vmatprep.subr.bf16.mxu0 0
        %1698 = vmatpush1.bf16.msra.mxu0 %v1335
        %1699 = vmatprep.subr.bf16.mxu0 0
        %1700 = vmatpush1.bf16.msra.mxu0 %v1336
        %1701 = vmatprep.subr.bf16.mxu0 0
        %1702 = vmatpush1.bf16.msra.mxu0 %v1337
        %1703 = vmatprep.subr.bf16.mxu0 0
        %1704 = vmatpush1.bf16.msra.mxu0 %v1338
        %1705 = vmatprep.subr.bf16.mxu0 0
        %1706 = vmatpush1.bf16.msra.mxu0 %v1339
        %1707 = vmatprep.subr.bf16.mxu0 0
        %1708 = vmatpush1.bf16.msra.mxu0 %v1340
        %1709 = vmatprep.subr.bf16.mxu0 0
        %1710 = vmatpush1.bf16.msra.mxu0 %v1341
        %1711 = vmatprep.subr.bf16.mxu0 0
        %1712 = vmatpush1.bf16.msra.mxu0 %v1342
        %1713 = vmatprep.subr.bf16.mxu0 0
        %1714 = vmatpush1.bf16.msra.mxu0 %v1343
        %1715 = vmatprep.subr.bf16.mxu0 0
        %1716 = vmatpush1.bf16.msra.mxu0 %v1344
        %1717 = vmatprep.subr.bf16.mxu0 0
        %1718 = vmatpush1.bf16.msra.mxu0 %v1345
        %1719 = vmatprep.subr.bf16.mxu0 0
        %1720 = vmatpush1.bf16.msra.mxu0 %v1346
        %1721 = vmatprep.subr.bf16.mxu0 0
        %1722 = vmatpush1.bf16.msra.mxu0 %v1347
        %1723 = vmatprep.subr.bf16.mxu0 0
        %1724 = vmatpush1.bf16.msra.mxu0 %v1348
        %1725 = vmatprep.mubr.bf16.mxu0 %v619
        %1726 = vmatmul.mubr.bf16.gmra.mrb[0].mxu0 %v617
        %v1727 = vpop.f32.mrb[0].mxu0
        %v1728 = vadd.f32 %v1688, %v1727
        %v1729 = vpop.f32.mrb[0].mxu0
        %v1730 = vpop.f32.mrb[0].mxu0
        %v1731 = vpop.f32.mrb[0].mxu0
        %1732 = vdwg.mxu0
        %1733 = vmatprep.subr.bf16.mxu0 0
        %1734 = vmatpush1.bf16.msra.mxu0 %v1349
        %1735 = vmatprep.subr.bf16.mxu0 0
        %1736 = vmatpush1.bf16.msra.mxu0 %v1350
        %1737 = vmatprep.subr.bf16.mxu0 0
        %1738 = vmatpush1.bf16.msra.mxu0 %v1351
        %1739 = vmatprep.subr.bf16.mxu0 0
        %1740 = vmatpush1.bf16.msra.mxu0 %v1352
        %1741 = vmatprep.subr.bf16.mxu0 0
        %1742 = vmatpush1.bf16.msra.mxu0 %v1353
        %1743 = vmatprep.subr.bf16.mxu0 0
        %1744 = vmatpush1.bf16.msra.mxu0 %v1354
        %1745 = vmatprep.subr.bf16.mxu0 0
        %1746 = vmatpush1.bf16.msra.mxu0 %v1355
        %1747 = vmatprep.subr.bf16.mxu0 0
        %1748 = vmatpush1.bf16.msra.mxu0 %v1356
        %1749 = vmatprep.subr.bf16.mxu0 0
        %1750 = vmatpush1.bf16.msra.mxu0 %v1357
        %1751 = vmatprep.subr.bf16.mxu0 0
        %1752 = vmatpush1.bf16.msra.mxu0 %v1358
        %1753 = vmatprep.subr.bf16.mxu0 0
        %1754 = vmatpush1.bf16.msra.mxu0 %v1359
        %1755 = vmatprep.subr.bf16.mxu0 0
        %1756 = vmatpush1.bf16.msra.mxu0 %v1360
        %1757 = vmatprep.subr.bf16.mxu0 0
        %1758 = vmatpush1.bf16.msra.mxu0 %v1361
        %1759 = vmatprep.subr.bf16.mxu0 0
        %1760 = vmatpush1.bf16.msra.mxu0 %v1362
        %1761 = vmatprep.subr.bf16.mxu0 0
        %1762 = vmatpush1.bf16.msra.mxu0 %v1363
        %1763 = vmatprep.subr.bf16.mxu0 0
        %1764 = vmatpush1.bf16.msra.mxu0 %v1364
        %1765 = vmatprep.mubr.bf16.mxu0 %v657
        %1766 = vmatmul.mubr.bf16.gmra.mrb[0].mxu0 %v643
        %v1767 = vpop.f32.mrb[0].mxu0
        %v1768 = vadd.f32 %v1728, %v1767
        %v1769 = vpop.f32.mrb[0].mxu0
        %v1770 = vpop.f32.mrb[0].mxu0
        %v1771 = vpop.f32.mrb[0].mxu0
        %1772 = vdwg.mxu0
        %1773 = vmatprep.subr.bf16.mxu0 0
        %1774 = vmatpush1.bf16.msra.mxu0 %v1365
        %1775 = vmatprep.subr.bf16.mxu0 0
        %1776 = vmatpush1.bf16.msra.mxu0 %v1366
        %1777 = vmatprep.subr.bf16.mxu0 0
        %1778 = vmatpush1.bf16.msra.mxu0 %v1367
        %1779 = vmatprep.subr.bf16.mxu0 0
        %1780 = vmatpush1.bf16.msra.mxu0 %v1368
        %1781 = vmatprep.subr.bf16.mxu0 0
        %1782 = vmatpush1.bf16.msra.mxu0 %v1369
        %1783 = vmatprep.subr.bf16.mxu0 0
        %1784 = vmatpush1.bf16.msra.mxu0 %v1370
        %1785 = vmatprep.subr.bf16.mxu0 0
        %1786 = vmatpush1.bf16.msra.mxu0 %v1371
        %1787 = vmatprep.subr.bf16.mxu0 0
        %1788 = vmatpush1.bf16.msra.mxu0 %v1372
        %1789 = vmatprep.subr.bf16.mxu0 0
        %1790 = vmatpush1.bf16.msra.mxu0 %v1373
        %1791 = vmatprep.subr.bf16.mxu0 0
        %1792 = vmatpush1.bf16.msra.mxu0 %v1374
        %1793 = vmatprep.subr.bf16.mxu0 0
        %1794 = vmatpush1.bf16.msra.mxu0 %v1375
        %1795 = vmatprep.subr.bf16.mxu0 0
        %1796 = vmatpush1.bf16.msra.mxu0 %v1376
        %1797 = vmatprep.subr.bf16.mxu0 0
        %1798 = vmatpush1.bf16.msra.mxu0 %v1377
        %1799 = vmatprep.subr.bf16.mxu0 0
        %1800 = vmatpush1.bf16.msra.mxu0 %v1378
        %1801 = vmatprep.subr.bf16.mxu0 0
        %1802 = vmatpush1.bf16.msra.mxu0 %v1379
        %1803 = vmatprep.subr.bf16.mxu0 0
        %1804 = vmatpush1.bf16.msra.mxu0 %v1380
        %1805 = vmatprep.mubr.bf16.mxu0 %v667
        %1806 = vmatmul.mubr.bf16.gmra.mrb[0].mxu0 %v665
        %v1807 = vpop.f32.mrb[0].mxu0
        %v1808 = vadd.f32 %v1768, %v1807
        %v1809 = vpop.f32.mrb[0].mxu0
        %v1810 = vpop.f32.mrb[0].mxu0
        %v1811 = vpop.f32.mrb[0].mxu0
        %1812 = vdwg.mxu0
        %1813 = vmatprep.subr.bf16.mxu0 0
        %1814 = vmatpush1.bf16.msra.mxu0 %v1381
        %1815 = vmatprep.subr.bf16.mxu0 0
        %1816 = vmatpush1.bf16.msra.mxu0 %v1382
        %1817 = vmatprep.subr.bf16.mxu0 0
        %1818 = vmatpush1.bf16.msra.mxu0 %v1383
        %1819 = vmatprep.subr.bf16.mxu0 0
        %1820 = vmatpush1.bf16.msra.mxu0 %v1384
        %1821 = vmatprep.subr.bf16.mxu0 0
        %1822 = vmatpush1.bf16.msra.mxu0 %v1385
        %1823 = vmatprep.subr.bf16.mxu0 0
        %1824 = vmatpush1.bf16.msra.mxu0 %v1386
        %1825 = vmatprep.subr.bf16.mxu0 0
        %1826 = vmatpush1.bf16.msra.mxu0 %v1387
        %1827 = vmatprep.subr.bf16.mxu0 0
        %1828 = vmatpush1.bf16.msra.mxu0 %v1388
        %1829 = vmatprep.subr.bf16.mxu0 0
        %1830 = vmatpush1.bf16.msra.mxu0 %v1389
        %1831 = vmatprep.subr.bf16.mxu0 0
        %1832 = vmatpush1.bf16.msra.mxu0 %v1390
        %1833 = vmatprep.subr.bf16.mxu0 0
        %1834 = vmatpush1.bf16.msra.mxu0 %v1391
        %1835 = vmatprep.subr.bf16.mxu0 0
        %1836 = vmatpush1.bf16.msra.mxu0 %v1392
        %1837 = vmatprep.subr.bf16.mxu0 0
        %1838 = vmatpush1.bf16.msra.mxu0 %v1393
        %1839 = vmatprep.subr.bf16.mxu0 0
        %1840 = vmatpush1.bf16.msra.mxu0 %v1394
        %1841 = vmatprep.subr.bf16.mxu0 0
        %1842 = vmatpush1.bf16.msra.mxu0 %v1395
        %1843 = vmatprep.subr.bf16.mxu0 0
        %1844 = vmatpush1.bf16.msra.mxu0 %v1396
        %1845 = vmatprep.mubr.bf16.mxu0 %v664
        %1846 = vmatmul.mubr.bf16.gmra.mrb[0].mxu0 %v650
        %v1847 = vpop.f32.mrb[0].mxu0
        %v1848 = vadd.f32 %v1808, %v1847
        %v1849 = vpop.f32.mrb[0].mxu0
        %v1850 = vpop.f32.mrb[0].mxu0
        %v1851 = vpop.f32.mrb[0].mxu0
        %1852 = vdwg.mxu0
        %1853 = vmatprep.subr.bf16.mxu0 0
        %1854 = vmatpush1.bf16.msra.mxu0 %v1397
        %1855 = vmatprep.subr.bf16.mxu0 0
        %1856 = vmatpush1.bf16.msra.mxu0 %v1398
        %1857 = vmatprep.subr.bf16.mxu0 0
        %1858 = vmatpush1.bf16.msra.mxu0 %v1399
        %1859 = vmatprep.subr.bf16.mxu0 0
        %1860 = vmatpush1.bf16.msra.mxu0 %v1400
        %1861 = vmatprep.subr.bf16.mxu0 0
        %1862 = vmatpush1.bf16.msra.mxu0 %v1401
        %1863 = vmatprep.subr.bf16.mxu0 0
        %1864 = vmatpush1.bf16.msra.mxu0 %v1402
        %1865 = vmatprep.subr.bf16.mxu0 0
        %1866 = vmatpush1.bf16.msra.mxu0 %v1403
        %1867 = vmatprep.subr.bf16.mxu0 0
        %1868 = vmatpush1.bf16.msra.mxu0 %v1404
        %1869 = vmatprep.subr.bf16.mxu0 0
        %1870 = vmatpush1.bf16.msra.mxu0 %v1405
        %1871 = vmatprep.subr.bf16.mxu0 0
        %1872 = vmatpush1.bf16.msra.mxu0 %v1406
        %1873 = vmatprep.subr.bf16.mxu0 0
        %1874 = vmatpush1.bf16.msra.mxu0 %v1407
        %1875 = vmatprep.subr.bf16.mxu0 0
        %1876 = vmatpush1.bf16.msra.mxu0 %v1408
        %1877 = vmatprep.subr.bf16.mxu0 0
        %1878 = vmatpush1.bf16.msra.mxu0 %v1409
        %1879 = vmatprep.subr.bf16.mxu0 0
        %1880 = vmatpush1.bf16.msra.mxu0 %v1410
        %1881 = vmatprep.subr.bf16.mxu0 0
        %1882 = vmatpush1.bf16.msra.mxu0 %v1411
        %1883 = vmatprep.subr.bf16.mxu0 0
        %1884 = vmatpush1.bf16.msra.mxu0 %v1412
        %1885 = vmatprep.mubr.bf16.mxu0 %v668
        %1886 = vmatmul.mubr.bf16.gmra.mrb[0].mxu0 %v666
        %v1887 = vpop.f32.mrb[0].mxu0
        %v1888 = vadd.f32 %v1848, %v1887
        %v1889 = vpop.f32.mrb[0].mxu0
        %v1890 = vpop.f32.mrb[0].mxu0
        %v1891 = vpop.f32.mrb[0].mxu0
        %1892 = vdwg.mxu0
        %1893 = vmatprep.subr.bf16.mxu0 0
        %1894 = vmatpush1.bf16.msra.mxu0 %v1413
        %1895 = vmatprep.subr.bf16.mxu0 0
        %1896 = vmatpush1.bf16.msra.mxu0 %v1414
        %1897 = vmatprep.subr.bf16.mxu0 0
        %1898 = vmatpush1.bf16.msra.mxu0 %v1415
        %1899 = vmatprep.subr.bf16.mxu0 0
        %1900 = vmatpush1.bf16.msra.mxu0 %v1416
        %1901 = vmatprep.subr.bf16.mxu0 0
        %1902 = vmatpush1.bf16.msra.mxu0 %v1417
        %1903 = vmatprep.subr.bf16.mxu0 0
        %1904 = vmatpush1.bf16.msra.mxu0 %v1418
        %1905 = vmatprep.subr.bf16.mxu0 0
        %1906 = vmatpush1.bf16.msra.mxu0 %v1419
        %1907 = vmatprep.subr.bf16.mxu0 0
        %1908 = vmatpush1.bf16.msra.mxu0 %v1420
        %1909 = vmatprep.subr.bf16.mxu0 0
        %1910 = vmatpush1.bf16.msra.mxu0 %v1421
        %1911 = vmatprep.subr.bf16.mxu0 0
        %1912 = vmatpush1.bf16.msra.mxu0 %v1422
        %1913 = vmatprep.subr.bf16.mxu0 0
        %1914 = vmatpush1.bf16.msra.mxu0 %v1423
        %1915 = vmatprep.subr.bf16.mxu0 0
        %1916 = vmatpush1.bf16.msra.mxu0 %v1424
        %1917 = vmatprep.subr.bf16.mxu0 0
        %1918 = vmatpush1.bf16.msra.mxu0 %v1425
        %1919 = vmatprep.subr.bf16.mxu0 0
        %1920 = vmatpush1.bf16.msra.mxu0 %v1426
        %1921 = vmatprep.subr.bf16.mxu0 0
        %1922 = vmatpush1.bf16.msra.mxu0 %v1427
        %1923 = vmatprep.subr.bf16.mxu0 0
        %1924 = vmatpush1.bf16.msra.mxu0 %v1428
        %1925 = vmatprep.mubr.bf16.mxu0 %v690
        %1926 = vmatmul.mubr.bf16.gmra.mrb[0].mxu0 %v683
        %v1927 = vpop.f32.mrb[0].mxu0
        %v1928 = vadd.f32 %v1888, %v1927
        %v1929 = vpop.f32.mrb[0].mxu0
        %v1930 = vpop.f32.mrb[0].mxu0
        %v1931 = vpop.f32.mrb[0].mxu0
        %1932 = vdwg.mxu0
        %p1933 = scmp.eq.s32.totalorder %s21, 0
        // Predicated region
        $region53: #{net_forward.3} parent=39 // pred_check
          %p1934 = pneg %p1933
        $region54: #{net_forward.3} parent=39 // pred_check_branch
          %1936 = sbr.rel (%p1934) target = $region56
        $region55: #{net_forward.3} parent=39 // pred_region
          %1937 = vst [vmem:[#allocation2] sm:$0x3] %v1928
        $region56: #{net_forward.3} parent=39 // pred_fallthru
          _
        %p1938 = scmp.ne.s32.totalorder %s21, 0
        // Predicated region
        $region57: #{net_forward.3} parent=39 // pred_check
          %p1939 = pneg %p1938
        $region58: #{net_forward.3} parent=39 // pred_check_branch
          %1941 = sbr.rel (%p1939) target = $region60
        $region59: #{net_forward.3} parent=39 // pred_region
          %v1942 = vld [vmem:[#allocation2] sm:$0x3]
          %v1943 = vadd.f32 %v1942, %v1928
          %1944 = vst [vmem:[#allocation2] sm:$0x3] %v1943
        $region60: #{net_forward.3} parent=39 // pred_fallthru
          _
        %p1945 = scmp.eq.s32.totalorder %s21, 3
        // Predicated region
        $region61: #{net_forward.3} parent=39 // pred_check
          %p1946 = pneg %p1945
        $region62: #{net_forward.3} parent=39 // pred_check_branch
          %1948 = sbr.rel (%p1946) target = $region64
        $region63: #{net_forward.3} parent=39 // pred_region
          %v1949 = vld [vmem:[#allocation2] sm:$0x3]
          %v1950 = vld [vmem:[#allocation6] sm:$0x1]
          %v1952 = vlaneseq
          %v1953 = vshrl.u32 %v1952, 7
          %v1954 = vsub.s32 0, %v1953
          %v1955 = vrot.slane %v1950, %v1954
          %v1957 = vadd.f32 %v1949, %v1955
          %v1958 = vmax.f32 %v1957, 0.0
          %v1959 = vld [vmem:[%s3] sm:$0xff]
          %v1960 = vld [vmem:[%s3 + $0x8] sm:$0xff]
          %v1961 = vld [vmem:[%s3 + $0x10] sm:$0xff]
          %v1962 = vld [vmem:[%s3 + $0x18] sm:$0xff]
          %v1963 = vld [vmem:[%s3 + $0x20] sm:$0xff]
          %v1964 = vld [vmem:[%s3 + $0x28] sm:$0xff]
          %v1965 = vld [vmem:[%s3 + $0x30] sm:$0xff]
          %v1966 = vld [vmem:[%s3 + $0x38] sm:$0xff]
          %v1967 = vld [vmem:[%s3 + $0x40] sm:$0xff]
          %v1968 = vld [vmem:[%s3 + $0x48] sm:$0xff]
          %v1969 = vld [vmem:[%s3 + $0x50] sm:$0xff]
          %v1970 = vld [vmem:[%s3 + $0x58] sm:$0xff]
          %v1971 = vld [vmem:[%s3 + $0x60] sm:$0xff]
          %v1972 = vld [vmem:[%s3 + $0x68] sm:$0xff]
          %v1973 = vld [vmem:[%s3 + $0x70] sm:$0xff]
          %v1974 = vld [vmem:[%s3 + $0x78] sm:$0xff]
          %v1975 = vld [vmem:[#allocation8] sm:$0x1]
          %v1977 = vlaneseq
          %v1978 = vshrl.u32 %v1977, 7
          %v1979 = vsub.s32 0, %v1978
          %v1980 = vrot.slane %v1975, %v1979
          %1982 = vmatprep.subr.mxu0 0.0
          %1983 = vmatpush1.msra.mxu0 %v1959
          %1984 = vmatprep.subr.mxu0 0.0
          %1985 = vmatpush1.msra.mxu0 %v1960
          %1986 = vmatprep.subr.mxu0 0.0
          %1987 = vmatpush1.msra.mxu0 %v1961
          %1988 = vmatprep.subr.mxu0 0.0
          %1989 = vmatpush1.msra.mxu0 %v1962
          %1990 = vmatprep.subr.mxu0 0.0
          %1991 = vmatpush1.msra.mxu0 %v1963
          %1992 = vmatprep.subr.mxu0 0.0
          %1993 = vmatpush1.msra.mxu0 %v1964
          %1994 = vmatprep.subr.mxu0 0.0
          %1995 = vmatpush1.msra.mxu0 %v1965
          %1996 = vmatprep.subr.mxu0 0.0
          %1997 = vmatpush1.msra.mxu0 %v1966
          %1998 = vmatprep.subr.mxu0 0.0
          %1999 = vmatpush1.msra.mxu0 %v1967
          %2000 = vmatprep.subr.mxu0 0.0
          %2001 = vmatpush1.msra.mxu0 %v1968
          %2002 = vmatprep.subr.mxu0 0.0
          %2003 = vmatpush1.msra.mxu0 %v1969
          %2004 = vmatprep.subr.mxu0 0.0
          %2005 = vmatpush1.msra.mxu0 %v1970
          %2006 = vmatprep.subr.mxu0 0.0
          %2007 = vmatpush1.msra.mxu0 %v1971
          %2008 = vmatprep.subr.mxu0 0.0
          %2009 = vmatpush1.msra.mxu0 %v1972
          %2010 = vmatprep.subr.mxu0 0.0
          %2011 = vmatpush1.msra.mxu0 %v1973
          %2012 = vmatprep.subr.mxu0 0.0
          %2013 = vmatpush1.msra.mxu0 %v1974
          %2014 = vmatprep.subr.mxu0 0.0
          %2015 = vmatpush1.msra.mxu0 0.0
          %2016 = vmatprep.subr.mxu0 0.0
          %2017 = vmatpush1.msra.mxu0 0.0
          %2018 = vmatprep.subr.mxu0 0.0
          %2019 = vmatpush1.msra.mxu0 0.0
          %2020 = vmatprep.subr.mxu0 0.0
          %2021 = vmatpush1.msra.mxu0 0.0
          %2022 = vmatprep.subr.mxu0 0.0
          %2023 = vmatpush1.msra.mxu0 0.0
          %2024 = vmatprep.subr.mxu0 0.0
          %2025 = vmatpush1.msra.mxu0 0.0
          %2026 = vmatprep.subr.mxu0 0.0
          %2027 = vmatpush1.msra.mxu0 0.0
          %2028 = vmatprep.subr.mxu0 0.0
          %2029 = vmatpush1.msra.mxu0 0.0
          %2030 = vmatprep.subr.mxu0 0.0
          %2031 = vmatpush1.msra.mxu0 0.0
          %2032 = vmatprep.subr.mxu0 0.0
          %2033 = vmatpush1.msra.mxu0 0.0
          %2034 = vmatprep.subr.mxu0 0.0
          %2035 = vmatpush1.msra.mxu0 0.0
          %2036 = vmatprep.subr.mxu0 0.0
          %2037 = vmatpush1.msra.mxu0 0.0
          %2038 = vmatprep.subr.mxu0 0.0
          %2039 = vmatpush1.msra.mxu0 0.0
          %2040 = vmatprep.subr.mxu0 0.0
          %2041 = vmatpush1.msra.mxu0 0.0
          %2042 = vmatprep.subr.mxu0 0.0
          %2043 = vmatpush1.msra.mxu0 0.0
          %2044 = vmatprep.subr.mxu0 0.0
          %2045 = vmatpush1.msra.mxu0 0.0
          %2046 = vmatprep.mubr.f32.mxu0 0.0
          %2047 = vmatmul.mubr.f32.gmra.mrb[0].mxu0 %v1958
          %v2048 = vpop.f32.mrb[0].mxu0
          %v2049 = vadd.f32 %v1980, %v2048
          %v2050 = vpop.f32.mrb[0].mxu0
          %2051 = vdwg.mxu0
          %vm2052 = vcmask 74752
          %v2053 = vsel %vm2052, %v2049, -inf
          %2054 = vmax.xlane.f32.xlu0 %v2053
          %v2055 = vpop.xlane.xlu0 %2054
          %v2056 = vsub.f32 %v2049, %v2055
          %v2057 = vmul.f32 %v2056, 1.442695
          %v2058 = vpow.pop %v2057
          %v2059 = vsel %vm2052, %v2058, 0.0
          %2060 = vadd.xlane.f32.xlu0 %v2059
          %v2061 = vpop.xlane.xlu0 %2060
          %v2062 = vlog2.pop %v2061
          %v2063 = vmul.f32 %v2062, 0.6931472
          %v2064 = vsub.f32 %v2056, %v2063
          %2065 = vst.msk [vmem:[#allocation9] sm:$0x3] %vm2052, %v2064
        $region64: #{net_forward.3} parent=39 // pred_fallthru
          _
        // Predicated region
        $region65: #{net_forward.3} parent=39 // pred_check
          %p2066 = pneg %p149
        $region66: #{net_forward.3} parent=39 // pred_check_branch
          %2068 = sbr.rel (%p2066) target = $region68
        $region67: #{net_forward.3} parent=39 // pred_region
          %s2070 = ssub.s32 32, 32
          %2071 = vsyncadd [#allocation5], %s2070
          %s2073 = sshll.u32 [#allocation9], 4
          %s2074 = int_to_ptr.vmem [resolvable:$true] %s2073
          %2076 = dma.vmem_to_hbm [thread:$0]  %s2074, 32, %s5, [#allocation5]
        $region68: #{net_forward.3} parent=39 // pred_fallthru
          _
        // Predicated region
        $region69: #{net_forward.3} parent=39 // pred_check
          %p2077 = pneg %p149
        $region70: #{net_forward.3} parent=39 // pred_check_branch
          %2079 = sbr.rel (%p2077) target = $region72
        $region71: #{net_forward.3} parent=39 // pred_region
          %2080 = dma.done [#allocation5], 32
        $region72: #{net_forward.3} parent=39 // pred_fallthru
          _
      $region40: #{net_forward.3} parent=5 // pred_fallthru
        _
      %p2081 = scmp.le.s32.totalorder 2, %s16
      // Predicated region
      $region73: #{net_forward.3} parent=5 // pred_check
        %p2082 = pneg %p2081
      $region74: #{net_forward.3} parent=5 // pred_check_branch
        %2084 = sbr.rel (%p2082) target = $region76
      $region75: #{net_forward.3} parent=5 // pred_region
        %s2085 = ssub.s32 %s16, 2
      $region76: #{net_forward.3} parent=5 // pred_fallthru
        _
    $region6: #{net_forward.3} parent=1 // loop_footer
      %s20 = sadd.s32 1, %s16
    $region7: #{net_forward.3} parent=1 // loop_footer_branch
      %15 = sbr.rel target = $region3
    $region8: #{net_forward.3} parent=1 // loop_exit
      _
    %2086 = vsyncpa [#allocation4], 1
    %s2087 = scalar_lea.sflag [#allocation4], 1
    %2088 = vsyncpa %s2087, 1
    %2089 = vsyncpa [#allocation7], 1
    %2090 = vsyncpa [#allocation5], 1
    %s2091 = scalar_lea.sflag [#allocation5], 1
    %2092 = vsyncpa %s2091, 1

// kernel: net_forward.2
$region0: #{net_forward.2}
  #allocation0 [shape = 'u32[]', space=smem, size = 0x4, offset = 0x4, fixed_abs, tag = 'smem constant byte address 0x4 - core index']
  #allocation1 [shape = 'u32[144,128]{1,0:T(1,128)}', space=vmem, size = 0x12000, scoped, tag = 'internal scratch']
  #allocation2 [shape = 'f32[1,28,28,32]{3,2,1,0:T(8,128)}', space=vmem, size = 0x70000, scoped, tag = 'scratch operand']
  #allocation3 [shape = 'f32[1,26,26,32]{3,2,1,0:T(8,128)}', space=vmem, size = 0x68000, scoped, tag = 'scratch operand']
  #allocation4 [shape = 'bf16[576,288]{1,0:T(16,128)(2,1)}', space=vmem, size = 0x6c000, scoped, tag = 'scratch operand']
  #allocation5 [shape = 'f32[1,12,24,64]{3,2,1,0:T(8,128)}', space=vmem, size = 0x24000, scoped, tag = 'scratch operand']
  %s0 = inlined_call_operand.vmem [shape: f32[2,28,28,1], index: 0, kind: input, shape index: {}]
  %s1 = inlined_call_operand.hbm [shape: f32[3,3,32], index: 1, kind: input, shape index: {}]
  %s2 = inlined_call_operand.hbm [shape: f32[1,32], index: 2, kind: input, shape index: {}]
  %s3 = inlined_call_operand.vmem [shape: bf16[288,64], index: 3, kind: input, shape index: {}]
  %s4 = inlined_call_operand.hbm [shape: f32[1,64], index: 4, kind: input, shape index: {}]
  %s5 = inlined_call_operand.vmem [shape: bf16[2,12,6,128], index: 5, kind: output, shape index: {}]
  %s6 = sld [smem:[#allocation0]]
  $region65: #{net_forward.2} parent=0
    _
  %s8 = ssub.s32 1, %s6
  %s9 = scalar_select 0, %s8, %s6
  $region1: #{net_forward.2} parent=0
    #allocation6 [shape = 'u8[6144]{0}', space=vmem, size = 0x1800, scoped, tag = 'input window, operand 1, single buffered']
    #allocation7 [shape = 's32[2]{0}', space=sflag, size = 0x8, scoped, tag = 'scoped memory for net_forward.2']
    #allocation8 [shape = 'u8[512]{0}', space=vmem, size = 0x400, scoped, tag = 'input window, operand 2, single buffered']
    #allocation9 [shape = 's32[1]{0}', space=sflag, size = 0x4, scoped, tag = 'scoped memory for net_forward.2']
    #allocation10 [shape = 'u8[512]{0}', space=vmem, size = 0x400, scoped, tag = 'input window, operand 4, single buffered']
    %10 = vsyncpa [#allocation7], 0
    %11 = vsyncpa [#allocation9], 0
    loop: start=0, step=1, limit=4
    $region2: #{net_forward.2} parent=1 // loop_pre_header
      _
    $region3: #{net_forward.2} parent=1 // loop_header
      %s13 = sphi 0, %s17
      %p14 = scmp.ge.s32.totalorder %s13, 4
      %s23 = sphi 0, %s25
      %s26 = sphi 0, %s23
      %s27 = sphi 0, %s26
      %s43 = sphi 0, %s27
      %s47 = sphi 0, %s47
      %s49 = sphi 0, %s47
      %s50 = sphi 0, %s49
      %s64 = sphi 0, %s50
      %s68 = sphi 0, %s68
      %s70 = sphi 0, %s68
      %s71 = sphi 0, %s70
      %s85 = sphi 0, %s71
      %s89 = sphi 0, %s89
      %s91 = sphi 0, %s89
      %s92 = sphi 0, %s91
      %s106 = sphi 0, %s92
      %s110 = sphi 0, %s110
      %s112 = sphi 0, %s110
      %s113 = sphi 0, %s112
      %s127 = sphi 0, %s113
      %s133 = sphi 0, %s135
      %s136 = sphi 0, %s133
      %s137 = sphi 0, %s136
      %s153 = sphi 0, %s137
    $region4: #{net_forward.2} parent=1 // loop_header_branch
      %16 = sbr.rel (%p14) target = $region8
    $region5: #{net_forward.2} parent=1 // loop_body
      %s18 = ssub.s32 %s13, 1
      %s19 = ssub.s32 %s13, 2
      %s20 = sadd.s32 %s13, 1
      %s21 = ssub.s32 %s13, %s20
      %p22 = scmp.eq.s32.totalorder %s21, 0
      %s24 = sadd.s32 %s23, 1
      %s25 = scalar_select %p22, %s23, %s24
      %p28 = pneg %p22
      %p29 = scmp.eq.s32.totalorder %s13, 1
      %p30 = por %p28, %p29
      %p31 = scmp.ne.s32.totalorder %s23, %s26
      %p32 = scmp.eq.s32.totalorder %s13, 0
      %p33 = por %p31, %p32
      %p34 = scmp.ne.s32.totalorder %s23, %s26
      %p35 = scmp.eq.s32.totalorder %s18, 1
      %p36 = por %p34, %p35
      %p37 = scmp.ne.s32.totalorder %s26, %s27
      %p38 = scmp.eq.s32.totalorder %s18, 0
      %p39 = por %p37, %p38
      %p40 = scmp.ne.s32.totalorder %s26, %s27
      %p41 = scmp.eq.s32.totalorder %s19, 1
      %p42 = por %p40, %p41
      %p44 = scmp.ne.s32.totalorder %s27, %s43
      %p45 = scmp.eq.s32.totalorder %s19, 0
      %p46 = por %p44, %p45
      %s48 = sadd.s32 %s47, 1
      %p51 = scmp.eq.s32.totalorder %s13, 1
      %p52 = scmp.ne.s32.totalorder %s47, %s49
      %p53 = scmp.eq.s32.totalorder %s13, 0
      %p54 = por %p52, %p53
      %p55 = scmp.ne.s32.totalorder %s47, %s49
      %p56 = scmp.eq.s32.totalorder %s18, 1
      %p57 = por %p55, %p56
      %p58 = scmp.ne.s32.totalorder %s49, %s50
      %p59 = scmp.eq.s32.totalorder %s18, 0
      %p60 = por %p58, %p59
      %p61 = scmp.ne.s32.totalorder %s49, %s50
      %p62 = scmp.eq.s32.totalorder %s19, 1
      %p63 = por %p61, %p62
      %p65 = scmp.ne.s32.totalorder %s50, %s64
      %p66 = scmp.eq.s32.totalorder %s19, 0
      %p67 = por %p65, %p66
      %s69 = sadd.s32 %s68, 1
      %p72 = scmp.eq.s32.totalorder %s13, 1
      %p73 = scmp.ne.s32.totalorder %s68, %s70
      %p74 = scmp.eq.s32.totalorder %s13, 0
      %p75 = por %p73, %p74
      %p76 = scmp.ne.s32.totalorder %s68, %s70
      %p77 = scmp.eq.s32.totalorder %s18, 1
      %p78 = por %p76, %p77
      %p79 = scmp.ne.s32.totalorder %s70, %s71
      %p80 = scmp.eq.s32.totalorder %s18, 0
      %p81 = por %p79, %p80
      %p82 = scmp.ne.s32.totalorder %s70, %s71
      %p83 = scmp.eq.s32.totalorder %s19, 1
      %p84 = por %p82, %p83
      %p86 = scmp.ne.s32.totalorder %s71, %s85
      %p87 = scmp.eq.s32.totalorder %s19, 0
      %p88 = por %p86, %p87
      %s90 = sadd.s32 %s89, 1
      %p93 = scmp.eq.s32.totalorder %s13, 1
      %p94 = scmp.ne.s32.totalorder %s89, %s91
      %p95 = scmp.eq.s32.totalorder %s13, 0
      %p96 = por %p94, %p95
      %p97 = scmp.ne.s32.totalorder %s89, %s91
      %p98 = scmp.eq.s32.totalorder %s18, 1
      %p99 = por %p97, %p98
      %p100 = scmp.ne.s32.totalorder %s91, %s92
      %p101 = scmp.eq.s32.totalorder %s18, 0
      %p102 = por %p100, %p101
      %p103 = scmp.ne.s32.totalorder %s91, %s92
      %p104 = scmp.eq.s32.totalorder %s19, 1
      %p105 = por %p103, %p104
      %p107 = scmp.ne.s32.totalorder %s92, %s106
      %p108 = scmp.eq.s32.totalorder %s19, 0
      %p109 = por %p107, %p108
      %s111 = sadd.s32 %s110, 1
      %p114 = scmp.eq.s32.totalorder %s13, 1
      %p115 = scmp.ne.s32.totalorder %s110, %s112
      %p116 = scmp.eq.s32.totalorder %s13, 0
      %p117 = por %p115, %p116
      %p118 = scmp.ne.s32.totalorder %s110, %s112
      %p119 = scmp.eq.s32.totalorder %s18, 1
      %p120 = por %p118, %p119
      %p121 = scmp.ne.s32.totalorder %s112, %s113
      %p122 = scmp.eq.s32.totalorder %s18, 0
      %p123 = por %p121, %p122
      %p124 = scmp.ne.s32.totalorder %s112, %s113
      %p125 = scmp.eq.s32.totalorder %s19, 1
      %p126 = por %p124, %p125
      %p128 = scmp.ne.s32.totalorder %s113, %s127
      %p129 = scmp.eq.s32.totalorder %s19, 0
      %p130 = por %p128, %p129
      %s131 = ssub.s32 %s13, %s20
      %p132 = scmp.eq.s32.totalorder %s131, 0
      %s134 = sadd.s32 %s133, 1
      %s135 = scalar_select %p132, %s133, %s134
      %p138 = pneg %p132
      %p139 = scmp.eq.s32.totalorder %s13, 1
      %p140 = por %p138, %p139
      %p141 = scmp.ne.s32.totalorder %s133, %s136
      %p142 = scmp.eq.s32.totalorder %s13, 0
      %p143 = por %p141, %p142
      %p144 = scmp.ne.s32.totalorder %s133, %s136
      %p145 = scmp.eq.s32.totalorder %s18, 1
      %p146 = por %p144, %p145
      %p147 = scmp.ne.s32.totalorder %s136, %s137
      %p148 = scmp.eq.s32.totalorder %s18, 0
      %p149 = por %p147, %p148
      %p150 = scmp.ne.s32.totalorder %s136, %s137
      %p151 = scmp.eq.s32.totalorder %s19, 1
      %p152 = por %p150, %p151
      %p154 = scmp.ne.s32.totalorder %s137, %s153
      %p155 = scmp.eq.s32.totalorder %s19, 0
      %p156 = por %p154, %p155
      %p157 = scmp.le.s32.totalorder 1, %s13
      %p158 = scmp.lt.s32.totalorder %s13, 3
      %p159 = pnand %p157, %p158
      %p160 = pneg %p159
      // Predicated region
      $region9: #{net_forward.2} parent=5 // pred_check
        _
      $region10: #{net_forward.2} parent=5 // pred_check_branch
        %162 = sbr.rel (%p159) target = $region12
      $region11: #{net_forward.2} parent=5 // pred_region
        %s163 = ssub.s32 %s13, 1
        // Predicated region
        $region13: #{net_forward.2} parent=11 // pred_check
          %p164 = pneg %p60
        $region14: #{net_forward.2} parent=11 // pred_check_branch
          %166 = sbr.rel (%p164) target = $region16
        $region15: #{net_forward.2} parent=11 // pred_region
          %s168 = ssub.s32 192, 192
          %169 = vsyncadd [#allocation7], %s168
          %s170 = sshll.u32 [#allocation6], 4
          %s171 = int_to_ptr.vmem [resolvable:$true] %s170
          %176 = dma.hbm_to_vmem [thread:$0]  %s1, 192, %s171, [#allocation7], 64, 64, 4
        $region16: #{net_forward.2} parent=11 // pred_fallthru
          _
        // Predicated region
        $region17: #{net_forward.2} parent=11 // pred_check
          %p177 = pneg %p81
        $region18: #{net_forward.2} parent=11 // pred_check_branch
          %179 = sbr.rel (%p177) target = $region20
        $region19: #{net_forward.2} parent=11 // pred_region
          %s181 = ssub.s32 16, 16
          %182 = vsyncadd [#allocation9], %s181
          %s184 = sshll.u32 [#allocation8], 4
          %s185 = int_to_ptr.vmem [resolvable:$true] %s184
          %187 = dma.hbm_to_vmem [thread:$0]  %s2, 16, %s185, [#allocation9]
        $region20: #{net_forward.2} parent=11 // pred_fallthru
          _
        // Predicated region
        $region21: #{net_forward.2} parent=11 // pred_check
          %p188 = pneg %p102
        $region22: #{net_forward.2} parent=11 // pred_check_branch
          %190 = sbr.rel (%p188) target = $region24
        $region23: #{net_forward.2} parent=11 // pred_region
          _
        $region24: #{net_forward.2} parent=11 // pred_fallthru
          _
        // Predicated region
        $region25: #{net_forward.2} parent=11 // pred_check
          %p191 = pneg %p123
        $region26: #{net_forward.2} parent=11 // pred_check_branch
          %193 = sbr.rel (%p191) target = $region28
        $region27: #{net_forward.2} parent=11 // pred_region
          %s195 = ssub.s32 16, 16
          %196 = vsyncadd [#allocation9], %s195
          %s198 = sshll.u32 [#allocation10], 4
          %s199 = int_to_ptr.vmem [resolvable:$true] %s198
          %201 = dma.hbm_to_vmem [thread:$0]  %s4, 16, %s199, [#allocation9]
        $region28: #{net_forward.2} parent=11 // pred_fallthru
          _
      $region12: #{net_forward.2} parent=5 // pred_fallthru
        _
      %p202 = scmp.lt.s32.totalorder %s13, 2
      // Predicated region
      $region29: #{net_forward.2} parent=5 // pred_check
        %p203 = pneg %p202
      $region30: #{net_forward.2} parent=5 // pred_check_branch
        %205 = sbr.rel (%p203) target = $region32
      $region31: #{net_forward.2} parent=5 // pred_region
        // Predicated region
        $region33: #{net_forward.2} parent=31 // pred_check
          %p206 = pneg %p33
        $region34: #{net_forward.2} parent=31 // pred_check_branch
          %208 = sbr.rel (%p206) target = $region36
        $region35: #{net_forward.2} parent=31 // pred_region
          %p209 = scmp.lt.s32.totalorder %s13, 1
          %s210 = scalar_select %p209, %s13, 1
          %s211 = smul.addr %s210, 112
          %s212 = smul.addr %s211, 8
          %s213 = scalar_lea.vmem %s0, %s212
        $region36: #{net_forward.2} parent=31 // pred_fallthru
          _
      $region32: #{net_forward.2} parent=5 // pred_fallthru
        _
      %p214 = scmp.le.s32.totalorder 1, %s13
      %p215 = scmp.lt.s32.totalorder %s13, 3
      %p216 = pnand %p214, %p215
      %p217 = pneg %p216
      // Predicated region
      $region37: #{net_forward.2} parent=5 // pred_check
        _
      $region38: #{net_forward.2} parent=5 // pred_check_branch
        %219 = sbr.rel (%p216) target = $region40
      $region39: #{net_forward.2} parent=5 // pred_region
        %s220 = ssub.s32 %s13, 1
        // Predicated region
        $region41: #{net_forward.2} parent=39 // pred_check
          %p221 = pneg %p60
        $region42: #{net_forward.2} parent=39 // pred_check_branch
          %223 = sbr.rel (%p221) target = $region44
        $region43: #{net_forward.2} parent=39 // pred_region
          %224 = dma.done [#allocation7], 192
        $region44: #{net_forward.2} parent=39 // pred_fallthru
          _
        // Predicated region
        $region45: #{net_forward.2} parent=39 // pred_check
          %p225 = pneg %p81
        $region46: #{net_forward.2} parent=39 // pred_check_branch
          %227 = sbr.rel (%p225) target = $region48
        $region47: #{net_forward.2} parent=39 // pred_region
          %228 = dma.done [#allocation9], 16
        $region48: #{net_forward.2} parent=39 // pred_fallthru
          _
        // Predicated region
        $region49: #{net_forward.2} parent=39 // pred_check
          %p229 = pneg %p123
        $region50: #{net_forward.2} parent=39 // pred_check_branch
          %231 = sbr.rel (%p229) target = $region52
        $region51: #{net_forward.2} parent=39 // pred_region
          %232 = dma.done [#allocation9], 16
        $region52: #{net_forward.2} parent=39 // pred_fallthru
          _
        %p233 = scmp.lt.s32.totalorder %s18, 1
        %s234 = scalar_select %p233, %s18, 1
        %s235 = smul.addr %s234, 112
        %s236 = smul.addr %s235, 8
        %s237 = scalar_lea.vmem %s0, %s236
        %p238 = pneg %p39
        %p239 = pneg %p36
        %p240 = pneg %p60
        %p241 = pneg %p57
        %p242 = pneg %p81
        %p243 = pneg %p78
        %p244 = pneg %p102
        %p245 = pneg %p99
        %p246 = pneg %p123
        %p247 = pneg %p120
        %p248 = pneg %p149
        %p249 = pneg %p146
        %p250 = scmp.lt.s32.totalorder %s18, 1
        %s251 = scalar_select %p250, %s18, 1
        %s252 = smul.addr %s251, 12
        %s253 = smul.addr %s252, 4
        %s254 = scalar_lea.vmem %s5, %s253
        %p255 = scmp.lt.s32.totalorder %s18, 1
        %s256 = scalar_select %p255, %s18, 1
        %s257 = smul.addr %s256, 112
        %s258 = smul.addr %s257, 8
        %s259 = scalar_lea.vmem %s0, %s258
        %p260 = scmp.lt.s32.totalorder %s18, 1
        %s261 = scalar_select %p260, %s18, 1
        %s262 = smul.addr %s261, 12
        %s263 = smul.addr %s262, 4
        %s264 = scalar_lea.vmem %s5, %s263
        %v266 = vld [vmem:[%s259] sm:$0xff]
        %v267 = vld [vmem:[%s259 + $0x8] sm:$0xff]
        %v268 = vld [vmem:[%s259 + $0x10] sm:$0xff]
        %v269 = vld [vmem:[%s259 + $0x18] sm:$0xf]
        %v270 = vld [vmem:[%s259 + $0x20] sm:$0xff]
        %v271 = vld [vmem:[%s259 + $0x28] sm:$0xff]
        %v272 = vld [vmem:[%s259 + $0x30] sm:$0xff]
        %v273 = vld [vmem:[%s259 + $0x38] sm:$0xf]
        %v274 = vld [vmem:[%s259 + $0x40] sm:$0xff]
        %v275 = vld [vmem:[%s259 + $0x48] sm:$0xff]
        %v276 = vld [vmem:[%s259 + $0x50] sm:$0xff]
        %v277 = vld [vmem:[%s259 + $0x58] sm:$0xf]
        %v278 = vld [vmem:[%s259 + $0x60] sm:$0xff]
        %v279 = vld [vmem:[%s259 + $0x68] sm:$0xff]
        %v280 = vld [vmem:[%s259 + $0x70] sm:$0xff]
        %v281 = vld [vmem:[%s259 + $0x78] sm:$0xf]
        %v282 = vld [vmem:[%s259 + $0x80] sm:$0xff]
        %v283 = vld [vmem:[%s259 + $0x88] sm:$0xff]
        %v284 = vld [vmem:[%s259 + $0x90] sm:$0xff]
        %v285 = vld [vmem:[%s259 + $0x98] sm:$0xf]
        %v286 = vld [vmem:[%s259 + $0xa0] sm:$0xff]
        %v287 = vld [vmem:[%s259 + $0xa8] sm:$0xff]
        %v288 = vld [vmem:[%s259 + $0xb0] sm:$0xff]
        %v289 = vld [vmem:[%s259 + $0xb8] sm:$0xf]
        %v290 = vld [vmem:[%s259 + $0xc0] sm:$0xff]
        %v291 = vld [vmem:[%s259 + $0xc8] sm:$0xff]
        %v292 = vld [vmem:[%s259 + $0xd0] sm:$0xff]
        %v293 = vld [vmem:[%s259 + $0xd8] sm:$0xf]
        %v294 = vld [vmem:[%s259 + $0xe0] sm:$0xff]
        %v295 = vld [vmem:[%s259 + $0xe8] sm:$0xff]
        %v296 = vld [vmem:[%s259 + $0xf0] sm:$0xff]
        %v297 = vld [vmem:[%s259 + $0xf8] sm:$0xf]
        %v298 = vld [vmem:[%s259 + $0x100] sm:$0xff]
        %v299 = vld [vmem:[%s259 + $0x108] sm:$0xff]
        %v300 = vld [vmem:[%s259 + $0x110] sm:$0xff]
        %v301 = vld [vmem:[%s259 + $0x118] sm:$0xf]
        %v302 = vld [vmem:[%s259 + $0x120] sm:$0xff]
        %v303 = vld [vmem:[%s259 + $0x128] sm:$0xff]
        %v304 = vld [vmem:[%s259 + $0x130] sm:$0xff]
        %v305 = vld [vmem:[%s259 + $0x138] sm:$0xf]
        %v306 = vld [vmem:[%s259 + $0x140] sm:$0xff]
        %v307 = vld [vmem:[%s259 + $0x148] sm:$0xff]
        %v308 = vld [vmem:[%s259 + $0x150] sm:$0xff]
        %v309 = vld [vmem:[%s259 + $0x158] sm:$0xf]
        %v310 = vld [vmem:[%s259 + $0x160] sm:$0xff]
        %v311 = vld [vmem:[%s259 + $0x168] sm:$0xff]
        %v312 = vld [vmem:[%s259 + $0x170] sm:$0xff]
        %v313 = vld [vmem:[%s259 + $0x178] sm:$0xf]
        %v314 = vld [vmem:[%s259 + $0x180] sm:$0xff]
        %v315 = vld [vmem:[%s259 + $0x188] sm:$0xff]
        %v316 = vld [vmem:[%s259 + $0x190] sm:$0xff]
        %v317 = vld [vmem:[%s259 + $0x198] sm:$0xf]
        %v318 = vld [vmem:[%s259 + $0x1a0] sm:$0xff]
        %v319 = vld [vmem:[%s259 + $0x1a8] sm:$0xff]
        %v320 = vld [vmem:[%s259 + $0x1b0] sm:$0xff]
        %v321 = vld [vmem:[%s259 + $0x1b8] sm:$0xf]
        %v322 = vld [vmem:[%s259 + $0x1c0] sm:$0xff]
        %v323 = vld [vmem:[%s259 + $0x1c8] sm:$0xff]
        %v324 = vld [vmem:[%s259 + $0x1d0] sm:$0xff]
        %v325 = vld [vmem:[%s259 + $0x1d8] sm:$0xf]
        %v326 = vld [vmem:[%s259 + $0x1e0] sm:$0xff]
        %v327 = vld [vmem:[%s259 + $0x1e8] sm:$0xff]
        %v328 = vld [vmem:[%s259 + $0x1f0] sm:$0xff]
        %v329 = vld [vmem:[%s259 + $0x1f8] sm:$0xf]
        %v330 = vld [vmem:[%s259 + $0x200] sm:$0xff]
        %v331 = vld [vmem:[%s259 + $0x208] sm:$0xff]
        %v332 = vld [vmem:[%s259 + $0x210] sm:$0xff]
        %v333 = vld [vmem:[%s259 + $0x218] sm:$0xf]
        %v334 = vld [vmem:[%s259 + $0x220] sm:$0xff]
        %v335 = vld [vmem:[%s259 + $0x228] sm:$0xff]
        %v336 = vld [vmem:[%s259 + $0x230] sm:$0xff]
        %v337 = vld [vmem:[%s259 + $0x238] sm:$0xf]
        %v338 = vld [vmem:[%s259 + $0x240] sm:$0xff]
        %v339 = vld [vmem:[%s259 + $0x248] sm:$0xff]
        %v340 = vld [vmem:[%s259 + $0x250] sm:$0xff]
        %v341 = vld [vmem:[%s259 + $0x258] sm:$0xf]
        %v342 = vld [vmem:[%s259 + $0x260] sm:$0xff]
        %v343 = vld [vmem:[%s259 + $0x268] sm:$0xff]
        %v344 = vld [vmem:[%s259 + $0x270] sm:$0xff]
        %v345 = vld [vmem:[%s259 + $0x278] sm:$0xf]
        %v346 = vld [vmem:[%s259 + $0x280] sm:$0xff]
        %v347 = vld [vmem:[%s259 + $0x288] sm:$0xff]
        %v348 = vld [vmem:[%s259 + $0x290] sm:$0xff]
        %v349 = vld [vmem:[%s259 + $0x298] sm:$0xf]
        %v350 = vld [vmem:[%s259 + $0x2a0] sm:$0xff]
        %v351 = vld [vmem:[%s259 + $0x2a8] sm:$0xff]
        %v352 = vld [vmem:[%s259 + $0x2b0] sm:$0xff]
        %v353 = vld [vmem:[%s259 + $0x2b8] sm:$0xf]
        %v354 = vld [vmem:[%s259 + $0x2c0] sm:$0xff]
        %v355 = vld [vmem:[%s259 + $0x2c8] sm:$0xff]
        %v356 = vld [vmem:[%s259 + $0x2d0] sm:$0xff]
        %v357 = vld [vmem:[%s259 + $0x2d8] sm:$0xf]
        %v358 = vld [vmem:[%s259 + $0x2e0] sm:$0xff]
        %v359 = vld [vmem:[%s259 + $0x2e8] sm:$0xff]
        %v360 = vld [vmem:[%s259 + $0x2f0] sm:$0xff]
        %v361 = vld [vmem:[%s259 + $0x2f8] sm:$0xf]
        %v362 = vld [vmem:[%s259 + $0x300] sm:$0xff]
        %v363 = vld [vmem:[%s259 + $0x308] sm:$0xff]
        %v364 = vld [vmem:[%s259 + $0x310] sm:$0xff]
        %v365 = vld [vmem:[%s259 + $0x318] sm:$0xf]
        %v366 = vld [vmem:[%s259 + $0x320] sm:$0xff]
        %v367 = vld [vmem:[%s259 + $0x328] sm:$0xff]
        %v368 = vld [vmem:[%s259 + $0x330] sm:$0xff]
        %v369 = vld [vmem:[%s259 + $0x338] sm:$0xf]
        %v370 = vld [vmem:[%s259 + $0x340] sm:$0xff]
        %v371 = vld [vmem:[%s259 + $0x348] sm:$0xff]
        %v372 = vld [vmem:[%s259 + $0x350] sm:$0xff]
        %v373 = vld [vmem:[%s259 + $0x358] sm:$0xf]
        %v374 = vld [vmem:[%s259 + $0x360] sm:$0xff]
        %v375 = vld [vmem:[%s259 + $0x368] sm:$0xff]
        %v376 = vld [vmem:[%s259 + $0x370] sm:$0xff]
        %v377 = vld [vmem:[%s259 + $0x378] sm:$0xf]
        %379 = vset.pattern.permute.xlu0 0
        %380 = vperm.xlu0 %379, %v266
        %v381 = vpop.permute.xlu0 %380
        %384 = vset.pattern.permute.xlu0 0
        %385 = vperm.xlu0 %384, %v267
        %v386 = vpop.permute.xlu0 %385
        %389 = vset.pattern.permute.xlu0 0
        %390 = vperm.xlu0 %389, %v268
        %v391 = vpop.permute.xlu0 %390
        %394 = vset.pattern.permute.xlu0 0
        %395 = vperm.xlu0 %394, %v269
        %v396 = vpop.permute.xlu0 %395
        %399 = vset.pattern.permute.xlu0 0
        %400 = vperm.xlu0 %399, %v270
        %v401 = vpop.permute.xlu0 %400
        %404 = vset.pattern.permute.xlu0 0
        %405 = vperm.xlu0 %404, %v271
        %v406 = vpop.permute.xlu0 %405
        %409 = vset.pattern.permute.xlu0 0
        %410 = vperm.xlu0 %409, %v272
        %v411 = vpop.permute.xlu0 %410
        %414 = vset.pattern.permute.xlu0 0
        %415 = vperm.xlu0 %414, %v273
        %v416 = vpop.permute.xlu0 %415
        %419 = vset.pattern.permute.xlu0 0
        %420 = vperm.xlu0 %419, %v274
        %v421 = vpop.permute.xlu0 %420
        %424 = vset.pattern.permute.xlu0 0
        %425 = vperm.xlu0 %424, %v275
        %v426 = vpop.permute.xlu0 %425
        %429 = vset.pattern.permute.xlu0 0
        %430 = vperm.xlu0 %429, %v276
        %v431 = vpop.permute.xlu0 %430
        %434 = vset.pattern.permute.xlu0 0
        %435 = vperm.xlu0 %434, %v277
        %v436 = vpop.permute.xlu0 %435
        %439 = vset.pattern.permute.xlu0 0
        %440 = vperm.xlu0 %439, %v278
        %v441 = vpop.permute.xlu0 %440
        %444 = vset.pattern.permute.xlu0 0
        %445 = vperm.xlu0 %444, %v279
        %v446 = vpop.permute.xlu0 %445
        %449 = vset.pattern.permute.xlu0 0
        %450 = vperm.xlu0 %449, %v280
        %v451 = vpop.permute.xlu0 %450
        %454 = vset.pattern.permute.xlu0 0
        %455 = vperm.xlu0 %454, %v281
        %v456 = vpop.permute.xlu0 %455
        %459 = vset.pattern.permute.xlu0 0
        %460 = vperm.xlu0 %459, %v282
        %v461 = vpop.permute.xlu0 %460
        %464 = vset.pattern.permute.xlu0 0
        %465 = vperm.xlu0 %464, %v283
        %v466 = vpop.permute.xlu0 %465
        %469 = vset.pattern.permute.xlu0 0
        %470 = vperm.xlu0 %469, %v284
        %v471 = vpop.permute.xlu0 %470
        %474 = vset.pattern.permute.xlu0 0
        %475 = vperm.xlu0 %474, %v285
        %v476 = vpop.permute.xlu0 %475
        %479 = vset.pattern.permute.xlu0 0
        %480 = vperm.xlu0 %479, %v286
        %v481 = vpop.permute.xlu0 %480
        %484 = vset.pattern.permute.xlu0 0
        %485 = vperm.xlu0 %484, %v287
        %v486 = vpop.permute.xlu0 %485
        %489 = vset.pattern.permute.xlu0 0
        %490 = vperm.xlu0 %489, %v288
        %v491 = vpop.permute.xlu0 %490
        %494 = vset.pattern.permute.xlu0 0
        %495 = vperm.xlu0 %494, %v289
        %v496 = vpop.permute.xlu0 %495
        %499 = vset.pattern.permute.xlu0 0
        %500 = vperm.xlu0 %499, %v290
        %v501 = vpop.permute.xlu0 %500
        %504 = vset.pattern.permute.xlu0 0
        %505 = vperm.xlu0 %504, %v291
        %v506 = vpop.permute.xlu0 %505
        %509 = vset.pattern.permute.xlu0 0
        %510 = vperm.xlu0 %509, %v292
        %v511 = vpop.permute.xlu0 %510
        %514 = vset.pattern.permute.xlu0 0
        %515 = vperm.xlu0 %514, %v293
        %v516 = vpop.permute.xlu0 %515
        %519 = vset.pattern.permute.xlu0 0
        %520 = vperm.xlu0 %519, %v294
        %v521 = vpop.permute.xlu0 %520
        %524 = vset.pattern.permute.xlu0 0
        %525 = vperm.xlu0 %524, %v295
        %v526 = vpop.permute.xlu0 %525
        %529 = vset.pattern.permute.xlu0 0
        %530 = vperm.xlu0 %529, %v296
        %v531 = vpop.permute.xlu0 %530
        %534 = vset.pattern.permute.xlu0 0
        %535 = vperm.xlu0 %534, %v297
        %v536 = vpop.permute.xlu0 %535
        %539 = vset.pattern.permute.xlu0 0
        %540 = vperm.xlu0 %539, %v298
        %v541 = vpop.permute.xlu0 %540
        %544 = vset.pattern.permute.xlu0 0
        %545 = vperm.xlu0 %544, %v299
        %v546 = vpop.permute.xlu0 %545
        %549 = vset.pattern.permute.xlu0 0
        %550 = vperm.xlu0 %549, %v300
        %v551 = vpop.permute.xlu0 %550
        %554 = vset.pattern.permute.xlu0 0
        %555 = vperm.xlu0 %554, %v301
        %v556 = vpop.permute.xlu0 %555
        %559 = vset.pattern.permute.xlu0 0
        %560 = vperm.xlu0 %559, %v302
        %v561 = vpop.permute.xlu0 %560
        %564 = vset.pattern.permute.xlu0 0
        %565 = vperm.xlu0 %564, %v303
        %v566 = vpop.permute.xlu0 %565
        %569 = vset.pattern.permute.xlu0 0
        %570 = vperm.xlu0 %569, %v304
        %v571 = vpop.permute.xlu0 %570
        %574 = vset.pattern.permute.xlu0 0
        %575 = vperm.xlu0 %574, %v305
        %v576 = vpop.permute.xlu0 %575
        %579 = vset.pattern.permute.xlu0 0
        %580 = vperm.xlu0 %579, %v306
        %v581 = vpop.permute.xlu0 %580
        %584 = vset.pattern.permute.xlu0 0
        %585 = vperm.xlu0 %584, %v307
        %v586 = vpop.permute.xlu0 %585
        %589 = vset.pattern.permute.xlu0 0
        %590 = vperm.xlu0 %589, %v308
        %v591 = vpop.permute.xlu0 %590
        %594 = vset.pattern.permute.xlu0 0
        %595 = vperm.xlu0 %594, %v309
        %v596 = vpop.permute.xlu0 %595
        %599 = vset.pattern.permute.xlu0 0
        %600 = vperm.xlu0 %599, %v310
        %v601 = vpop.permute.xlu0 %600
        %604 = vset.pattern.permute.xlu0 0
        %605 = vperm.xlu0 %604, %v311
        %v606 = vpop.permute.xlu0 %605
        %609 = vset.pattern.permute.xlu0 0
        %610 = vperm.xlu0 %609, %v312
        %v611 = vpop.permute.xlu0 %610
        %614 = vset.pattern.permute.xlu0 0
        %615 = vperm.xlu0 %614, %v313
        %v616 = vpop.permute.xlu0 %615
        %619 = vset.pattern.permute.xlu0 0
        %620 = vperm.xlu0 %619, %v314
        %v621 = vpop.permute.xlu0 %620
        %624 = vset.pattern.permute.xlu0 0
        %625 = vperm.xlu0 %624, %v315
        %v626 = vpop.permute.xlu0 %625
        %629 = vset.pattern.permute.xlu0 0
        %630 = vperm.xlu0 %629, %v316
        %v631 = vpop.permute.xlu0 %630
        %634 = vset.pattern.permute.xlu0 0
        %635 = vperm.xlu0 %634, %v317
        %v636 = vpop.permute.xlu0 %635
        %639 = vset.pattern.permute.xlu0 0
        %640 = vperm.xlu0 %639, %v318
        %v641 = vpop.permute.xlu0 %640
        %644 = vset.pattern.permute.xlu0 0
        %645 = vperm.xlu0 %644, %v319
        %v646 = vpop.permute.xlu0 %645
        %649 = vset.pattern.permute.xlu0 0
        %650 = vperm.xlu0 %649, %v320
        %v651 = vpop.permute.xlu0 %650
        %654 = vset.pattern.permute.xlu0 0
        %655 = vperm.xlu0 %654, %v321
        %v656 = vpop.permute.xlu0 %655
        %659 = vset.pattern.permute.xlu0 0
        %660 = vperm.xlu0 %659, %v322
        %v661 = vpop.permute.xlu0 %660
        %664 = vset.pattern.permute.xlu0 0
        %665 = vperm.xlu0 %664, %v323
        %v666 = vpop.permute.xlu0 %665
        %669 = vset.pattern.permute.xlu0 0
        %670 = vperm.xlu0 %669, %v324
        %v671 = vpop.permute.xlu0 %670
        %674 = vset.pattern.permute.xlu0 0
        %675 = vperm.xlu0 %674, %v325
        %v676 = vpop.permute.xlu0 %675
        %679 = vset.pattern.permute.xlu0 0
        %680 = vperm.xlu0 %679, %v326
        %v681 = vpop.permute.xlu0 %680
        %684 = vset.pattern.permute.xlu0 0
        %685 = vperm.xlu0 %684, %v327
        %v686 = vpop.permute.xlu0 %685
        %689 = vset.pattern.permute.xlu0 0
        %690 = vperm.xlu0 %689, %v328
        %v691 = vpop.permute.xlu0 %690
        %694 = vset.pattern.permute.xlu0 0
        %695 = vperm.xlu0 %694, %v329
        %v696 = vpop.permute.xlu0 %695
        %699 = vset.pattern.permute.xlu0 0
        %700 = vperm.xlu0 %699, %v330
        %v701 = vpop.permute.xlu0 %700
        %704 = vset.pattern.permute.xlu0 0
        %705 = vperm.xlu0 %704, %v331
        %v706 = vpop.permute.xlu0 %705
        %709 = vset.pattern.permute.xlu0 0
        %710 = vperm.xlu0 %709, %v332
        %v711 = vpop.permute.xlu0 %710
        %714 = vset.pattern.permute.xlu0 0
        %715 = vperm.xlu0 %714, %v333
        %v716 = vpop.permute.xlu0 %715
        %719 = vset.pattern.permute.xlu0 0
        %720 = vperm.xlu0 %719, %v334
        %v721 = vpop.permute.xlu0 %720
        %724 = vset.pattern.permute.xlu0 0
        %725 = vperm.xlu0 %724, %v335
        %v726 = vpop.permute.xlu0 %725
        %729 = vset.pattern.permute.xlu0 0
        %730 = vperm.xlu0 %729, %v336
        %v731 = vpop.permute.xlu0 %730
        %734 = vset.pattern.permute.xlu0 0
        %735 = vperm.xlu0 %734, %v337
        %v736 = vpop.permute.xlu0 %735
        %739 = vset.pattern.permute.xlu0 0
        %740 = vperm.xlu0 %739, %v338
        %v741 = vpop.permute.xlu0 %740
        %744 = vset.pattern.permute.xlu0 0
        %745 = vperm.xlu0 %744, %v339
        %v746 = vpop.permute.xlu0 %745
        %749 = vset.pattern.permute.xlu0 0
        %750 = vperm.xlu0 %749, %v340
        %v751 = vpop.permute.xlu0 %750
        %754 = vset.pattern.permute.xlu0 0
        %755 = vperm.xlu0 %754, %v341
        %v756 = vpop.permute.xlu0 %755
        %759 = vset.pattern.permute.xlu0 0
        %760 = vperm.xlu0 %759, %v342
        %v761 = vpop.permute.xlu0 %760
        %764 = vset.pattern.permute.xlu0 0
        %765 = vperm.xlu0 %764, %v343
        %v766 = vpop.permute.xlu0 %765
        %769 = vset.pattern.permute.xlu0 0
        %770 = vperm.xlu0 %769, %v344
        %v771 = vpop.permute.xlu0 %770
        %774 = vset.pattern.permute.xlu0 0
        %775 = vperm.xlu0 %774, %v345
        %v776 = vpop.permute.xlu0 %775
        %779 = vset.pattern.permute.xlu0 0
        %780 = vperm.xlu0 %779, %v346
        %v781 = vpop.permute.xlu0 %780
        %784 = vset.pattern.permute.xlu0 0
        %785 = vperm.xlu0 %784, %v347
        %v786 = vpop.permute.xlu0 %785
        %789 = vset.pattern.permute.xlu0 0
        %790 = vperm.xlu0 %789, %v348
        %v791 = vpop.permute.xlu0 %790
        %794 = vset.pattern.permute.xlu0 0
        %795 = vperm.xlu0 %794, %v349
        %v796 = vpop.permute.xlu0 %795
        %799 = vset.pattern.permute.xlu0 0
        %800 = vperm.xlu0 %799, %v350
        %v801 = vpop.permute.xlu0 %800
        %804 = vset.pattern.permute.xlu0 0
        %805 = vperm.xlu0 %804, %v351
        %v806 = vpop.permute.xlu0 %805
        %809 = vset.pattern.permute.xlu0 0
        %810 = vperm.xlu0 %809, %v352
        %v811 = vpop.permute.xlu0 %810
        %814 = vset.pattern.permute.xlu0 0
        %815 = vperm.xlu0 %814, %v353
        %v816 = vpop.permute.xlu0 %815
        %819 = vset.pattern.permute.xlu0 0
        %820 = vperm.xlu0 %819, %v354
        %v821 = vpop.permute.xlu0 %820
        %824 = vset.pattern.permute.xlu0 0
        %825 = vperm.xlu0 %824, %v355
        %v826 = vpop.permute.xlu0 %825
        %829 = vset.pattern.permute.xlu0 0
        %830 = vperm.xlu0 %829, %v356
        %v831 = vpop.permute.xlu0 %830
        %834 = vset.pattern.permute.xlu0 0
        %835 = vperm.xlu0 %834, %v357
        %v836 = vpop.permute.xlu0 %835
        %839 = vset.pattern.permute.xlu0 0
        %840 = vperm.xlu0 %839, %v358
        %v841 = vpop.permute.xlu0 %840
        %844 = vset.pattern.permute.xlu0 0
        %845 = vperm.xlu0 %844, %v359
        %v846 = vpop.permute.xlu0 %845
        %849 = vset.pattern.permute.xlu0 0
        %850 = vperm.xlu0 %849, %v360
        %v851 = vpop.permute.xlu0 %850
        %854 = vset.pattern.permute.xlu0 0
        %855 = vperm.xlu0 %854, %v361
        %v856 = vpop.permute.xlu0 %855
        %859 = vset.pattern.permute.xlu0 0
        %860 = vperm.xlu0 %859, %v362
        %v861 = vpop.permute.xlu0 %860
        %864 = vset.pattern.permute.xlu0 0
        %865 = vperm.xlu0 %864, %v363
        %v866 = vpop.permute.xlu0 %865
        %869 = vset.pattern.permute.xlu0 0
        %870 = vperm.xlu0 %869, %v364
        %v871 = vpop.permute.xlu0 %870
        %874 = vset.pattern.permute.xlu0 0
        %875 = vperm.xlu0 %874, %v365
        %v876 = vpop.permute.xlu0 %875
        %879 = vset.pattern.permute.xlu0 0
        %880 = vperm.xlu0 %879, %v366
        %v881 = vpop.permute.xlu0 %880
        %884 = vset.pattern.permute.xlu0 0
        %885 = vperm.xlu0 %884, %v367
        %v886 = vpop.permute.xlu0 %885
        %889 = vset.pattern.permute.xlu0 0
        %890 = vperm.xlu0 %889, %v368
        %v891 = vpop.permute.xlu0 %890
        %894 = vset.pattern.permute.xlu0 0
        %895 = vperm.xlu0 %894, %v369
        %v896 = vpop.permute.xlu0 %895
        %899 = vset.pattern.permute.xlu0 0
        %900 = vperm.xlu0 %899, %v370
        %v901 = vpop.permute.xlu0 %900
        %904 = vset.pattern.permute.xlu0 0
        %905 = vperm.xlu0 %904, %v371
        %v906 = vpop.permute.xlu0 %905
        %909 = vset.pattern.permute.xlu0 0
        %910 = vperm.xlu0 %909, %v372
        %v911 = vpop.permute.xlu0 %910
        %914 = vset.pattern.permute.xlu0 0
        %915 = vperm.xlu0 %914, %v373
        %v916 = vpop.permute.xlu0 %915
        %919 = vset.pattern.permute.xlu0 0
        %920 = vperm.xlu0 %919, %v374
        %v921 = vpop.permute.xlu0 %920
        %924 = vset.pattern.permute.xlu0 0
        %925 = vperm.xlu0 %924, %v375
        %v926 = vpop.permute.xlu0 %925
        %929 = vset.pattern.permute.xlu0 0
        %930 = vperm.xlu0 %929, %v376
        %v931 = vpop.permute.xlu0 %930
        %934 = vset.pattern.permute.xlu0 0
        %935 = vperm.xlu0 %934, %v377
        %v936 = vpop.permute.xlu0 %935
        %vm938 = vcmask 261120
        %939 = vst.msk [vmem:[#allocation2] sm:$0xff] %vm938, %v381
        %940 = vst.msk [vmem:[#allocation2 + $0x8] sm:$0xff] %vm938, %v386
        %941 = vst.msk [vmem:[#allocation2 + $0x10] sm:$0xff] %vm938, %v391
        %vm942 = vcmask 257024
        %943 = vst.msk [vmem:[#allocation2 + $0x18] sm:$0xf] %vm942, %v396
        %944 = vst.msk [vmem:[#allocation2 + $0x20] sm:$0xff] %vm938, %v401
        %945 = vst.msk [vmem:[#allocation2 + $0x28] sm:$0xff] %vm938, %v406
        %946 = vst.msk [vmem:[#allocation2 + $0x30] sm:$0xff] %vm938, %v411
        %947 = vst.msk [vmem:[#allocation2 + $0x38] sm:$0xf] %vm942, %v416
        %948 = vst.msk [vmem:[#allocation2 + $0x40] sm:$0xff] %vm938, %v421
        %949 = vst.msk [vmem:[#allocation2 + $0x48] sm:$0xff] %vm938, %v426
        %950 = vst.msk [vmem:[#allocation2 + $0x50] sm:$0xff] %vm938, %v431
        %951 = vst.msk [vmem:[#allocation2 + $0x58] sm:$0xf] %vm942, %v436
        %952 = vst.msk [vmem:[#allocation2 + $0x60] sm:$0xff] %vm938, %v441
        %953 = vst.msk [vmem:[#allocation2 + $0x68] sm:$0xff] %vm938, %v446
        %954 = vst.msk [vmem:[#allocation2 + $0x70] sm:$0xff] %vm938, %v451
        %955 = vst.msk [vmem:[#allocation2 + $0x78] sm:$0xf] %vm942, %v456
        %956 = vst.msk [vmem:[#allocation2 + $0x80] sm:$0xff] %vm938, %v461
        %957 = vst.msk [vmem:[#allocation2 + $0x88] sm:$0xff] %vm938, %v466
        %958 = vst.msk [vmem:[#allocation2 + $0x90] sm:$0xff] %vm938, %v471
        %959 = vst.msk [vmem:[#allocation2 + $0x98] sm:$0xf] %vm942, %v476
        %960 = vst.msk [vmem:[#allocation2 + $0xa0] sm:$0xff] %vm938, %v481
        %961 = vst.msk [vmem:[#allocation2 + $0xa8] sm:$0xff] %vm938, %v486
        %962 = vst.msk [vmem:[#allocation2 + $0xb0] sm:$0xff] %vm938, %v491
        %963 = vst.msk [vmem:[#allocation2 + $0xb8] sm:$0xf] %vm942, %v496
        %964 = vst.msk [vmem:[#allocation2 + $0xc0] sm:$0xff] %vm938, %v501
        %965 = vst.msk [vmem:[#allocation2 + $0xc8] sm:$0xff] %vm938, %v506
        %966 = vst.msk [vmem:[#allocation2 + $0xd0] sm:$0xff] %vm938, %v511
        %967 = vst.msk [vmem:[#allocation2 + $0xd8] sm:$0xf] %vm942, %v516
        %968 = vst.msk [vmem:[#allocation2 + $0xe0] sm:$0xff] %vm938, %v521
        %969 = vst.msk [vmem:[#allocation2 + $0xe8] sm:$0xff] %vm938, %v526
        %970 = vst.msk [vmem:[#allocation2 + $0xf0] sm:$0xff] %vm938, %v531
        %971 = vst.msk [vmem:[#allocation2 + $0xf8] sm:$0xf] %vm942, %v536
        %972 = vst.msk [vmem:[#allocation2 + $0x100] sm:$0xff] %vm938, %v541
        %973 = vst.msk [vmem:[#allocation2 + $0x108] sm:$0xff] %vm938, %v546
        %974 = vst.msk [vmem:[#allocation2 + $0x110] sm:$0xff] %vm938, %v551
        %975 = vst.msk [vmem:[#allocation2 + $0x118] sm:$0xf] %vm942, %v556
        %976 = vst.msk [vmem:[#allocation2 + $0x120] sm:$0xff] %vm938, %v561
        %977 = vst.msk [vmem:[#allocation2 + $0x128] sm:$0xff] %vm938, %v566
        %978 = vst.msk [vmem:[#allocation2 + $0x130] sm:$0xff] %vm938, %v571
        %979 = vst.msk [vmem:[#allocation2 + $0x138] sm:$0xf] %vm942, %v576
        %980 = vst.msk [vmem:[#allocation2 + $0x140] sm:$0xff] %vm938, %v581
        %981 = vst.msk [vmem:[#allocation2 + $0x148] sm:$0xff] %vm938, %v586
        %982 = vst.msk [vmem:[#allocation2 + $0x150] sm:$0xff] %vm938, %v591
        %983 = vst.msk [vmem:[#allocation2 + $0x158] sm:$0xf] %vm942, %v596
        %984 = vst.msk [vmem:[#allocation2 + $0x160] sm:$0xff] %vm938, %v601
        %985 = vst.msk [vmem:[#allocation2 + $0x168] sm:$0xff] %vm938, %v606
        %986 = vst.msk [vmem:[#allocation2 + $0x170] sm:$0xff] %vm938, %v611
        %987 = vst.msk [vmem:[#allocation2 + $0x178] sm:$0xf] %vm942, %v616
        %988 = vst.msk [vmem:[#allocation2 + $0x180] sm:$0xff] %vm938, %v621
        %989 = vst.msk [vmem:[#allocation2 + $0x188] sm:$0xff] %vm938, %v626
        %990 = vst.msk [vmem:[#allocation2 + $0x190] sm:$0xff] %vm938, %v631
        %991 = vst.msk [vmem:[#allocation2 + $0x198] sm:$0xf] %vm942, %v636
        %992 = vst.msk [vmem:[#allocation2 + $0x1a0] sm:$0xff] %vm938, %v641
        %993 = vst.msk [vmem:[#allocation2 + $0x1a8] sm:$0xff] %vm938, %v646
        %994 = vst.msk [vmem:[#allocation2 + $0x1b0] sm:$0xff] %vm938, %v651
        %995 = vst.msk [vmem:[#allocation2 + $0x1b8] sm:$0xf] %vm942, %v656
        %996 = vst.msk [vmem:[#allocation2 + $0x1c0] sm:$0xff] %vm938, %v661
        %997 = vst.msk [vmem:[#allocation2 + $0x1c8] sm:$0xff] %vm938, %v666
        %998 = vst.msk [vmem:[#allocation2 + $0x1d0] sm:$0xff] %vm938, %v671
        %999 = vst.msk [vmem:[#allocation2 + $0x1d8] sm:$0xf] %vm942, %v676
        %1000 = vst.msk [vmem:[#allocation2 + $0x1e0] sm:$0xff] %vm938, %v681
        %1001 = vst.msk [vmem:[#allocation2 + $0x1e8] sm:$0xff] %vm938, %v686
        %1002 = vst.msk [vmem:[#allocation2 + $0x1f0] sm:$0xff] %vm938, %v691
        %1003 = vst.msk [vmem:[#allocation2 + $0x1f8] sm:$0xf] %vm942, %v696
        %1004 = vst.msk [vmem:[#allocation2 + $0x200] sm:$0xff] %vm938, %v701
        %1005 = vst.msk [vmem:[#allocation2 + $0x208] sm:$0xff] %vm938, %v706
        %1006 = vst.msk [vmem:[#allocation2 + $0x210] sm:$0xff] %vm938, %v711
        %1007 = vst.msk [vmem:[#allocation2 + $0x218] sm:$0xf] %vm942, %v716
        %1008 = vst.msk [vmem:[#allocation2 + $0x220] sm:$0xff] %vm938, %v721
        %1009 = vst.msk [vmem:[#allocation2 + $0x228] sm:$0xff] %vm938, %v726
        %1010 = vst.msk [vmem:[#allocation2 + $0x230] sm:$0xff] %vm938, %v731
        %1011 = vst.msk [vmem:[#allocation2 + $0x238] sm:$0xf] %vm942, %v736
        %1012 = vst.msk [vmem:[#allocation2 + $0x240] sm:$0xff] %vm938, %v741
        %1013 = vst.msk [vmem:[#allocation2 + $0x248] sm:$0xff] %vm938, %v746
        %1014 = vst.msk [vmem:[#allocation2 + $0x250] sm:$0xff] %vm938, %v751
        %1015 = vst.msk [vmem:[#allocation2 + $0x258] sm:$0xf] %vm942, %v756
        %1016 = vst.msk [vmem:[#allocation2 + $0x260] sm:$0xff] %vm938, %v761
        %1017 = vst.msk [vmem:[#allocation2 + $0x268] sm:$0xff] %vm938, %v766
        %1018 = vst.msk [vmem:[#allocation2 + $0x270] sm:$0xff] %vm938, %v771
        %1019 = vst.msk [vmem:[#allocation2 + $0x278] sm:$0xf] %vm942, %v776
        %1020 = vst.msk [vmem:[#allocation2 + $0x280] sm:$0xff] %vm938, %v781
        %1021 = vst.msk [vmem:[#allocation2 + $0x288] sm:$0xff] %vm938, %v786
        %1022 = vst.msk [vmem:[#allocation2 + $0x290] sm:$0xff] %vm938, %v791
        %1023 = vst.msk [vmem:[#allocation2 + $0x298] sm:$0xf] %vm942, %v796
        %1024 = vst.msk [vmem:[#allocation2 + $0x2a0] sm:$0xff] %vm938, %v801
        %1025 = vst.msk [vmem:[#allocation2 + $0x2a8] sm:$0xff] %vm938, %v806
        %1026 = vst.msk [vmem:[#allocation2 + $0x2b0] sm:$0xff] %vm938, %v811
        %1027 = vst.msk [vmem:[#allocation2 + $0x2b8] sm:$0xf] %vm942, %v816
        %1028 = vst.msk [vmem:[#allocation2 + $0x2c0] sm:$0xff] %vm938, %v821
        %1029 = vst.msk [vmem:[#allocation2 + $0x2c8] sm:$0xff] %vm938, %v826
        %1030 = vst.msk [vmem:[#allocation2 + $0x2d0] sm:$0xff] %vm938, %v831
        %1031 = vst.msk [vmem:[#allocation2 + $0x2d8] sm:$0xf] %vm942, %v836
        %1032 = vst.msk [vmem:[#allocation2 + $0x2e0] sm:$0xff] %vm938, %v841
        %1033 = vst.msk [vmem:[#allocation2 + $0x2e8] sm:$0xff] %vm938, %v846
        %1034 = vst.msk [vmem:[#allocation2 + $0x2f0] sm:$0xff] %vm938, %v851
        %1035 = vst.msk [vmem:[#allocation2 + $0x2f8] sm:$0xf] %vm942, %v856
        %1036 = vst.msk [vmem:[#allocation2 + $0x300] sm:$0xff] %vm938, %v861
        %1037 = vst.msk [vmem:[#allocation2 + $0x308] sm:$0xff] %vm938, %v866
        %1038 = vst.msk [vmem:[#allocation2 + $0x310] sm:$0xff] %vm938, %v871
        %1039 = vst.msk [vmem:[#allocation2 + $0x318] sm:$0xf] %vm942, %v876
        %1040 = vst.msk [vmem:[#allocation2 + $0x320] sm:$0xff] %vm938, %v881
        %1041 = vst.msk [vmem:[#allocation2 + $0x328] sm:$0xff] %vm938, %v886
        %1042 = vst.msk [vmem:[#allocation2 + $0x330] sm:$0xff] %vm938, %v891
        %1043 = vst.msk [vmem:[#allocation2 + $0x338] sm:$0xf] %vm942, %v896
        %1044 = vst.msk [vmem:[#allocation2 + $0x340] sm:$0xff] %vm938, %v901
        %1045 = vst.msk [vmem:[#allocation2 + $0x348] sm:$0xff] %vm938, %v906
        %1046 = vst.msk [vmem:[#allocation2 + $0x350] sm:$0xff] %vm938, %v911
        %1047 = vst.msk [vmem:[#allocation2 + $0x358] sm:$0xf] %vm942, %v916
        %1048 = vst.msk [vmem:[#allocation2 + $0x360] sm:$0xff] %vm938, %v921
        %1049 = vst.msk [vmem:[#allocation2 + $0x368] sm:$0xff] %vm938, %v926
        %1050 = vst.msk [vmem:[#allocation2 + $0x370] sm:$0xff] %vm938, %v931
        %1051 = vst.msk [vmem:[#allocation2 + $0x378] sm:$0xf] %vm942, %v936
        %v1052 = vld [vmem:[#allocation2] sm:$0xff]
        %v1053 = vld [vmem:[#allocation2 + $0x8] sm:$0xff]
        %v1054 = vld [vmem:[#allocation2 + $0x10] sm:$0xff]
        %v1055 = vld [vmem:[#allocation2 + $0x18] sm:$0x3]
        %v1056 = vld [vmem:[#allocation2 + $0x20] sm:$0xff]
        %v1057 = vld [vmem:[#allocation2 + $0x28] sm:$0xff]
        %v1058 = vld [vmem:[#allocation2 + $0x30] sm:$0xff]
        %v1059 = vld [vmem:[#allocation2 + $0x38] sm:$0x3]
        %v1060 = vld [vmem:[#allocation2 + $0x40] sm:$0xff]
        %v1061 = vld [vmem:[#allocation2 + $0x48] sm:$0xff]
        %v1062 = vld [vmem:[#allocation2 + $0x50] sm:$0xff]
        %v1063 = vld [vmem:[#allocation2 + $0x58] sm:$0x3]
        %v1064 = vld [vmem:[#allocation2 + $0x60] sm:$0xff]
        %v1065 = vld [vmem:[#allocation2 + $0x68] sm:$0xff]
        %v1066 = vld [vmem:[#allocation2 + $0x70] sm:$0xff]
        %v1067 = vld [vmem:[#allocation2 + $0x78] sm:$0x3]
        %v1068 = vld [vmem:[#allocation2 + $0x80] sm:$0xff]
        %v1069 = vld [vmem:[#allocation2 + $0x88] sm:$0xff]
        %v1070 = vld [vmem:[#allocation2 + $0x90] sm:$0xff]
        %v1071 = vld [vmem:[#allocation2 + $0x98] sm:$0x3]
        %v1072 = vld [vmem:[#allocation2 + $0xa0] sm:$0xff]
        %v1073 = vld [vmem:[#allocation2 + $0xa8] sm:$0xff]
        %v1074 = vld [vmem:[#allocation2 + $0xb0] sm:$0xff]
        %v1075 = vld [vmem:[#allocation2 + $0xb8] sm:$0x3]
        %v1076 = vld [vmem:[#allocation2 + $0xc0] sm:$0xff]
        %v1077 = vld [vmem:[#allocation2 + $0xc8] sm:$0xff]
        %v1078 = vld [vmem:[#allocation2 + $0xd0] sm:$0xff]
        %v1079 = vld [vmem:[#allocation2 + $0xd8] sm:$0x3]
        %v1080 = vld [vmem:[#allocation2 + $0xe0] sm:$0xff]
        %v1081 = vld [vmem:[#allocation2 + $0xe8] sm:$0xff]
        %v1082 = vld [vmem:[#allocation2 + $0xf0] sm:$0xff]
        %v1083 = vld [vmem:[#allocation2 + $0xf8] sm:$0x3]
        %v1084 = vld [vmem:[#allocation2 + $0x100] sm:$0xff]
        %v1085 = vld [vmem:[#allocation2 + $0x108] sm:$0xff]
        %v1086 = vld [vmem:[#allocation2 + $0x110] sm:$0xff]
        %v1087 = vld [vmem:[#allocation2 + $0x118] sm:$0x3]
        %v1088 = vld [vmem:[#allocation2 + $0x120] sm:$0xff]
        %v1089 = vld [vmem:[#allocation2 + $0x128] sm:$0xff]
        %v1090 = vld [vmem:[#allocation2 + $0x130] sm:$0xff]
        %v1091 = vld [vmem:[#allocation2 + $0x138] sm:$0x3]
        %v1092 = vld [vmem:[#allocation2 + $0x140] sm:$0xff]
        %v1093 = vld [vmem:[#allocation2 + $0x148] sm:$0xff]
        %v1094 = vld [vmem:[#allocation2 + $0x150] sm:$0xff]
        %v1095 = vld [vmem:[#allocation2 + $0x158] sm:$0x3]
        %v1096 = vld [vmem:[#allocation2 + $0x160] sm:$0xff]
        %v1097 = vld [vmem:[#allocation2 + $0x168] sm:$0xff]
        %v1098 = vld [vmem:[#allocation2 + $0x170] sm:$0xff]
        %v1099 = vld [vmem:[#allocation2 + $0x178] sm:$0x3]
        %v1100 = vld [vmem:[#allocation2 + $0x180] sm:$0xff]
        %v1101 = vld [vmem:[#allocation2 + $0x188] sm:$0xff]
        %v1102 = vld [vmem:[#allocation2 + $0x190] sm:$0xff]
        %v1103 = vld [vmem:[#allocation2 + $0x198] sm:$0x3]
        %v1104 = vld [vmem:[#allocation2 + $0x1a0] sm:$0xff]
        %v1105 = vld [vmem:[#allocation2 + $0x1a8] sm:$0xff]
        %v1106 = vld [vmem:[#allocation2 + $0x1b0] sm:$0xff]
        %v1107 = vld [vmem:[#allocation2 + $0x1b8] sm:$0x3]
        %v1108 = vld [vmem:[#allocation2 + $0x1c0] sm:$0xff]
        %v1109 = vld [vmem:[#allocation2 + $0x1c8] sm:$0xff]
        %v1110 = vld [vmem:[#allocation2 + $0x1d0] sm:$0xff]
        %v1111 = vld [vmem:[#allocation2 + $0x1d8] sm:$0x3]
        %v1112 = vld [vmem:[#allocation2 + $0x1e0] sm:$0xff]
        %v1113 = vld [vmem:[#allocation2 + $0x1e8] sm:$0xff]
        %v1114 = vld [vmem:[#allocation2 + $0x1f0] sm:$0xff]
        %v1115 = vld [vmem:[#allocation2 + $0x1f8] sm:$0x3]
        %v1116 = vld [vmem:[#allocation2 + $0x200] sm:$0xff]
        %v1117 = vld [vmem:[#allocation2 + $0x208] sm:$0xff]
        %v1118 = vld [vmem:[#allocation2 + $0x210] sm:$0xff]
        %v1119 = vld [vmem:[#allocation2 + $0x218] sm:$0x3]
        %v1120 = vld [vmem:[#allocation2 + $0x220] sm:$0xff]
        %v1121 = vld [vmem:[#allocation2 + $0x228] sm:$0xff]
        %v1122 = vld [vmem:[#allocation2 + $0x230] sm:$0xff]
        %v1123 = vld [vmem:[#allocation2 + $0x238] sm:$0x3]
        %v1124 = vld [vmem:[#allocation2 + $0x240] sm:$0xff]
        %v1125 = vld [vmem:[#allocation2 + $0x248] sm:$0xff]
        %v1126 = vld [vmem:[#allocation2 + $0x250] sm:$0xff]
        %v1127 = vld [vmem:[#allocation2 + $0x258] sm:$0x3]
        %v1128 = vld [vmem:[#allocation2 + $0x260] sm:$0xff]
        %v1129 = vld [vmem:[#allocation2 + $0x268] sm:$0xff]
        %v1130 = vld [vmem:[#allocation2 + $0x270] sm:$0xff]
        %v1131 = vld [vmem:[#allocation2 + $0x278] sm:$0x3]
        %v1132 = vld [vmem:[#allocation2 + $0x280] sm:$0xff]
        %v1133 = vld [vmem:[#allocation2 + $0x288] sm:$0xff]
        %v1134 = vld [vmem:[#allocation2 + $0x290] sm:$0xff]
        %v1135 = vld [vmem:[#allocation2 + $0x298] sm:$0x3]
        %v1136 = vld [vmem:[#allocation2 + $0x2a0] sm:$0xff]
        %v1137 = vld [vmem:[#allocation2 + $0x2a8] sm:$0xff]
        %v1138 = vld [vmem:[#allocation2 + $0x2b0] sm:$0xff]
        %v1139 = vld [vmem:[#allocation2 + $0x2b8] sm:$0x3]
        %v1140 = vld [vmem:[#allocation2 + $0x2c0] sm:$0xff]
        %v1141 = vld [vmem:[#allocation2 + $0x2c8] sm:$0xff]
        %v1142 = vld [vmem:[#allocation2 + $0x2d0] sm:$0xff]
        %v1143 = vld [vmem:[#allocation2 + $0x2d8] sm:$0x3]
        %v1144 = vld [vmem:[#allocation2 + $0x2e0] sm:$0xff]
        %v1145 = vld [vmem:[#allocation2 + $0x2e8] sm:$0xff]
        %v1146 = vld [vmem:[#allocation2 + $0x2f0] sm:$0xff]
        %v1147 = vld [vmem:[#allocation2 + $0x2f8] sm:$0x3]
        %v1148 = vld [vmem:[#allocation2 + $0x300] sm:$0xff]
        %v1149 = vld [vmem:[#allocation2 + $0x308] sm:$0xff]
        %v1150 = vld [vmem:[#allocation2 + $0x310] sm:$0xff]
        %v1151 = vld [vmem:[#allocation2 + $0x318] sm:$0x3]
        %v1152 = vld [vmem:[#allocation2 + $0x320] sm:$0xff]
        %v1153 = vld [vmem:[#allocation2 + $0x328] sm:$0xff]
        %v1154 = vld [vmem:[#allocation2 + $0x330] sm:$0xff]
        %v1155 = vld [vmem:[#allocation2 + $0x338] sm:$0x3]
        %v1156 = vld [vmem:[#allocation6] sm:$0x1]
        %v1157 = vlaneseq
        %v1158 = vshrl.u32 %v1157, 7
        %v1159 = vsub.s32 0, %v1158
        %v1160 = vrot.slane %v1156, %v1159
        %v1161 = vmul.f32 %v1052, %v1160
        %v1162 = vmul.f32 %v1053, %v1160
        %v1163 = vmul.f32 %v1054, %v1160
        %v1164 = vmul.f32 %v1055, %v1160
        %v1165 = vmul.f32 %v1056, %v1160
        %v1166 = vmul.f32 %v1057, %v1160
        %v1167 = vmul.f32 %v1058, %v1160
        %v1168 = vmul.f32 %v1059, %v1160
        %v1169 = vmul.f32 %v1060, %v1160
        %v1170 = vmul.f32 %v1061, %v1160
        %v1171 = vmul.f32 %v1062, %v1160
        %v1172 = vmul.f32 %v1063, %v1160
        %v1173 = vmul.f32 %v1064, %v1160
        %v1174 = vmul.f32 %v1065, %v1160
        %v1175 = vmul.f32 %v1066, %v1160
        %v1176 = vmul.f32 %v1067, %v1160
        %v1177 = vmul.f32 %v1068, %v1160
        %v1178 = vmul.f32 %v1069, %v1160
        %v1179 = vmul.f32 %v1070, %v1160
        %v1180 = vmul.f32 %v1071, %v1160
        %v1181 = vmul.f32 %v1072, %v1160
        %v1182 = vmul.f32 %v1073, %v1160
        %v1183 = vmul.f32 %v1074, %v1160
        %v1184 = vmul.f32 %v1075, %v1160
        %v1185 = vmul.f32 %v1076, %v1160
        %v1186 = vmul.f32 %v1077, %v1160
        %v1187 = vmul.f32 %v1078, %v1160
        %v1188 = vmul.f32 %v1079, %v1160
        %v1189 = vmul.f32 %v1080, %v1160
        %v1190 = vmul.f32 %v1081, %v1160
        %v1191 = vmul.f32 %v1082, %v1160
        %v1192 = vmul.f32 %v1083, %v1160
        %v1193 = vmul.f32 %v1084, %v1160
        %v1194 = vmul.f32 %v1085, %v1160
        %v1195 = vmul.f32 %v1086, %v1160
        %v1196 = vmul.f32 %v1087, %v1160
        %v1197 = vmul.f32 %v1088, %v1160
        %v1198 = vmul.f32 %v1089, %v1160
        %v1199 = vmul.f32 %v1090, %v1160
        %v1200 = vmul.f32 %v1091, %v1160
        %v1201 = vmul.f32 %v1092, %v1160
        %v1202 = vmul.f32 %v1093, %v1160
        %v1203 = vmul.f32 %v1094, %v1160
        %v1204 = vmul.f32 %v1095, %v1160
        %v1205 = vmul.f32 %v1096, %v1160
        %v1206 = vmul.f32 %v1097, %v1160
        %v1207 = vmul.f32 %v1098, %v1160
        %v1208 = vmul.f32 %v1099, %v1160
        %v1209 = vmul.f32 %v1100, %v1160
        %v1210 = vmul.f32 %v1101, %v1160
        %v1211 = vmul.f32 %v1102, %v1160
        %v1212 = vmul.f32 %v1103, %v1160
        %v1213 = vmul.f32 %v1104, %v1160
        %v1214 = vmul.f32 %v1105, %v1160
        %v1215 = vmul.f32 %v1106, %v1160
        %v1216 = vmul.f32 %v1107, %v1160
        %v1217 = vmul.f32 %v1108, %v1160
        %v1218 = vmul.f32 %v1109, %v1160
        %v1219 = vmul.f32 %v1110, %v1160
        %v1220 = vmul.f32 %v1111, %v1160
        %v1221 = vmul.f32 %v1112, %v1160
        %v1222 = vmul.f32 %v1113, %v1160
        %v1223 = vmul.f32 %v1114, %v1160
        %v1224 = vmul.f32 %v1115, %v1160
        %v1225 = vmul.f32 %v1116, %v1160
        %v1226 = vmul.f32 %v1117, %v1160
        %v1227 = vmul.f32 %v1118, %v1160
        %v1228 = vmul.f32 %v1119, %v1160
        %v1229 = vmul.f32 %v1120, %v1160
        %v1230 = vmul.f32 %v1121, %v1160
        %v1231 = vmul.f32 %v1122, %v1160
        %v1232 = vmul.f32 %v1123, %v1160
        %v1233 = vmul.f32 %v1124, %v1160
        %v1234 = vmul.f32 %v1125, %v1160
        %v1235 = vmul.f32 %v1126, %v1160
        %v1236 = vmul.f32 %v1127, %v1160
        %v1237 = vmul.f32 %v1128, %v1160
        %v1238 = vmul.f32 %v1129, %v1160
        %v1239 = vmul.f32 %v1130, %v1160
        %v1240 = vmul.f32 %v1131, %v1160
        %v1241 = vmul.f32 %v1132, %v1160
        %v1242 = vmul.f32 %v1133, %v1160
        %v1243 = vmul.f32 %v1134, %v1160
        %v1244 = vmul.f32 %v1135, %v1160
        %v1245 = vmul.f32 %v1136, %v1160
        %v1246 = vmul.f32 %v1137, %v1160
        %v1247 = vmul.f32 %v1138, %v1160
        %v1248 = vmul.f32 %v1139, %v1160
        %v1249 = vmul.f32 %v1140, %v1160
        %v1250 = vmul.f32 %v1141, %v1160
        %v1251 = vmul.f32 %v1142, %v1160
        %v1252 = vmul.f32 %v1143, %v1160
        %v1253 = vmul.f32 %v1144, %v1160
        %v1254 = vmul.f32 %v1145, %v1160
        %v1255 = vmul.f32 %v1146, %v1160
        %v1256 = vmul.f32 %v1147, %v1160
        %v1257 = vmul.f32 %v1148, %v1160
        %v1258 = vmul.f32 %v1149, %v1160
        %v1259 = vmul.f32 %v1150, %v1160
        %v1260 = vmul.f32 %v1151, %v1160
        %v1261 = vmul.f32 %v1152, %v1160
        %v1262 = vmul.f32 %v1153, %v1160
        %v1263 = vmul.f32 %v1154, %v1160
        %v1264 = vmul.f32 %v1155, %v1160
        %v1265 = vld [vmem:[#allocation2 + $0x1] sm:$0xff]
        %v1266 = vld [vmem:[#allocation2 + $0x9] sm:$0xff]
        %v1267 = vld [vmem:[#allocation2 + $0x11] sm:$0xff]
        %v1268 = vld [vmem:[#allocation2 + $0x19] sm:$0x3]
        %v1269 = vld [vmem:[#allocation2 + $0x21] sm:$0xff]
        %v1270 = vld [vmem:[#allocation2 + $0x29] sm:$0xff]
        %v1271 = vld [vmem:[#allocation2 + $0x31] sm:$0xff]
        %v1272 = vld [vmem:[#allocation2 + $0x39] sm:$0x3]
        %v1273 = vld [vmem:[#allocation2 + $0x41] sm:$0xff]
        %v1274 = vld [vmem:[#allocation2 + $0x49] sm:$0xff]
        %v1275 = vld [vmem:[#allocation2 + $0x51] sm:$0xff]
        %v1276 = vld [vmem:[#allocation2 + $0x59] sm:$0x3]
        %v1277 = vld [vmem:[#allocation2 + $0x61] sm:$0xff]
        %v1278 = vld [vmem:[#allocation2 + $0x69] sm:$0xff]
        %v1279 = vld [vmem:[#allocation2 + $0x71] sm:$0xff]
        %v1280 = vld [vmem:[#allocation2 + $0x79] sm:$0x3]
        %v1281 = vld [vmem:[#allocation2 + $0x81] sm:$0xff]
        %v1282 = vld [vmem:[#allocation2 + $0x89] sm:$0xff]
        %v1283 = vld [vmem:[#allocation2 + $0x91] sm:$0xff]
        %v1284 = vld [vmem:[#allocation2 + $0x99] sm:$0x3]
        %v1285 = vld [vmem:[#allocation2 + $0xa1] sm:$0xff]
        %v1286 = vld [vmem:[#allocation2 + $0xa9] sm:$0xff]
        %v1287 = vld [vmem:[#allocation2 + $0xb1] sm:$0xff]
        %v1288 = vld [vmem:[#allocation2 + $0xb9] sm:$0x3]
        %v1289 = vld [vmem:[#allocation2 + $0xc1] sm:$0xff]
        %v1290 = vld [vmem:[#allocation2 + $0xc9] sm:$0xff]
        %v1291 = vld [vmem:[#allocation2 + $0xd1] sm:$0xff]
        %v1292 = vld [vmem:[#allocation2 + $0xd9] sm:$0x3]
        %v1293 = vld [vmem:[#allocation2 + $0xe1] sm:$0xff]
        %v1294 = vld [vmem:[#allocation2 + $0xe9] sm:$0xff]
        %v1295 = vld [vmem:[#allocation2 + $0xf1] sm:$0xff]
        %v1296 = vld [vmem:[#allocation2 + $0xf9] sm:$0x3]
        %v1297 = vld [vmem:[#allocation2 + $0x101] sm:$0xff]
        %v1298 = vld [vmem:[#allocation2 + $0x109] sm:$0xff]
        %v1299 = vld [vmem:[#allocation2 + $0x111] sm:$0xff]
        %v1300 = vld [vmem:[#allocation2 + $0x119] sm:$0x3]
        %v1301 = vld [vmem:[#allocation2 + $0x121] sm:$0xff]
        %v1302 = vld [vmem:[#allocation2 + $0x129] sm:$0xff]
        %v1303 = vld [vmem:[#allocation2 + $0x131] sm:$0xff]
        %v1304 = vld [vmem:[#allocation2 + $0x139] sm:$0x3]
        %v1305 = vld [vmem:[#allocation2 + $0x141] sm:$0xff]
        %v1306 = vld [vmem:[#allocation2 + $0x149] sm:$0xff]
        %v1307 = vld [vmem:[#allocation2 + $0x151] sm:$0xff]
        %v1308 = vld [vmem:[#allocation2 + $0x159] sm:$0x3]
        %v1309 = vld [vmem:[#allocation2 + $0x161] sm:$0xff]
        %v1310 = vld [vmem:[#allocation2 + $0x169] sm:$0xff]
        %v1311 = vld [vmem:[#allocation2 + $0x171] sm:$0xff]
        %v1312 = vld [vmem:[#allocation2 + $0x179] sm:$0x3]
        %v1313 = vld [vmem:[#allocation2 + $0x181] sm:$0xff]
        %v1314 = vld [vmem:[#allocation2 + $0x189] sm:$0xff]
        %v1315 = vld [vmem:[#allocation2 + $0x191] sm:$0xff]
        %v1316 = vld [vmem:[#allocation2 + $0x199] sm:$0x3]
        %v1317 = vld [vmem:[#allocation2 + $0x1a1] sm:$0xff]
        %v1318 = vld [vmem:[#allocation2 + $0x1a9] sm:$0xff]
        %v1319 = vld [vmem:[#allocation2 + $0x1b1] sm:$0xff]
        %v1320 = vld [vmem:[#allocation2 + $0x1b9] sm:$0x3]
        %v1321 = vld [vmem:[#allocation2 + $0x1c1] sm:$0xff]
        %v1322 = vld [vmem:[#allocation2 + $0x1c9] sm:$0xff]
        %v1323 = vld [vmem:[#allocation2 + $0x1d1] sm:$0xff]
        %v1324 = vld [vmem:[#allocation2 + $0x1d9] sm:$0x3]
        %v1325 = vld [vmem:[#allocation2 + $0x1e1] sm:$0xff]
        %v1326 = vld [vmem:[#allocation2 + $0x1e9] sm:$0xff]
        %v1327 = vld [vmem:[#allocation2 + $0x1f1] sm:$0xff]
        %v1328 = vld [vmem:[#allocation2 + $0x1f9] sm:$0x3]
        %v1329 = vld [vmem:[#allocation2 + $0x201] sm:$0xff]
        %v1330 = vld [vmem:[#allocation2 + $0x209] sm:$0xff]
        %v1331 = vld [vmem:[#allocation2 + $0x211] sm:$0xff]
        %v1332 = vld [vmem:[#allocation2 + $0x219] sm:$0x3]
        %v1333 = vld [vmem:[#allocation2 + $0x221] sm:$0xff]
        %v1334 = vld [vmem:[#allocation2 + $0x229] sm:$0xff]
        %v1335 = vld [vmem:[#allocation2 + $0x231] sm:$0xff]
        %v1336 = vld [vmem:[#allocation2 + $0x239] sm:$0x3]
        %v1337 = vld [vmem:[#allocation2 + $0x241] sm:$0xff]
        %v1338 = vld [vmem:[#allocation2 + $0x249] sm:$0xff]
        %v1339 = vld [vmem:[#allocation2 + $0x251] sm:$0xff]
        %v1340 = vld [vmem:[#allocation2 + $0x259] sm:$0x3]
        %v1341 = vld [vmem:[#allocation2 + $0x261] sm:$0xff]
        %v1342 = vld [vmem:[#allocation2 + $0x269] sm:$0xff]
        %v1343 = vld [vmem:[#allocation2 + $0x271] sm:$0xff]
        %v1344 = vld [vmem:[#allocation2 + $0x279] sm:$0x3]
        %v1345 = vld [vmem:[#allocation2 + $0x281] sm:$0xff]
        %v1346 = vld [vmem:[#allocation2 + $0x289] sm:$0xff]
        %v1347 = vld [vmem:[#allocation2 + $0x291] sm:$0xff]
        %v1348 = vld [vmem:[#allocation2 + $0x299] sm:$0x3]
        %v1349 = vld [vmem:[#allocation2 + $0x2a1] sm:$0xff]
        %v1350 = vld [vmem:[#allocation2 + $0x2a9] sm:$0xff]
        %v1351 = vld [vmem:[#allocation2 + $0x2b1] sm:$0xff]
        %v1352 = vld [vmem:[#allocation2 + $0x2b9] sm:$0x3]
        %v1353 = vld [vmem:[#allocation2 + $0x2c1] sm:$0xff]
        %v1354 = vld [vmem:[#allocation2 + $0x2c9] sm:$0xff]
        %v1355 = vld [vmem:[#allocation2 + $0x2d1] sm:$0xff]
        %v1356 = vld [vmem:[#allocation2 + $0x2d9] sm:$0x3]
        %v1357 = vld [vmem:[#allocation2 + $0x2e1] sm:$0xff]
        %v1358 = vld [vmem:[#allocation2 + $0x2e9] sm:$0xff]
        %v1359 = vld [vmem:[#allocation2 + $0x2f1] sm:$0xff]
        %v1360 = vld [vmem:[#allocation2 + $0x2f9] sm:$0x3]
        %v1361 = vld [vmem:[#allocation2 + $0x301] sm:$0xff]
        %v1362 = vld [vmem:[#allocation2 + $0x309] sm:$0xff]
        %v1363 = vld [vmem:[#allocation2 + $0x311] sm:$0xff]
        %v1364 = vld [vmem:[#allocation2 + $0x319] sm:$0x3]
        %v1365 = vld [vmem:[#allocation2 + $0x321] sm:$0xff]
        %v1366 = vld [vmem:[#allocation2 + $0x329] sm:$0xff]
        %v1367 = vld [vmem:[#allocation2 + $0x331] sm:$0xff]
        %v1368 = vld [vmem:[#allocation2 + $0x339] sm:$0x3]
        %v1369 = vld [vmem:[#allocation6 + $0x1] sm:$0x1]
        %v1370 = vlaneseq
        %v1371 = vshrl.u32 %v1370, 7
        %v1372 = vsub.s32 0, %v1371
        %v1373 = vrot.slane %v1369, %v1372
        %v1374 = vmul.f32 %v1265, %v1373
        %v1375 = vmul.f32 %v1266, %v1373
        %v1376 = vmul.f32 %v1267, %v1373
        %v1377 = vmul.f32 %v1268, %v1373
        %v1378 = vmul.f32 %v1269, %v1373
        %v1379 = vmul.f32 %v1270, %v1373
        %v1380 = vmul.f32 %v1271, %v1373
        %v1381 = vmul.f32 %v1272, %v1373
        %v1382 = vmul.f32 %v1273, %v1373
        %v1383 = vmul.f32 %v1274, %v1373
        %v1384 = vmul.f32 %v1275, %v1373
        %v1385 = vmul.f32 %v1276, %v1373
        %v1386 = vmul.f32 %v1277, %v1373
        %v1387 = vmul.f32 %v1278, %v1373
        %v1388 = vmul.f32 %v1279, %v1373
        %v1389 = vmul.f32 %v1280, %v1373
        %v1390 = vmul.f32 %v1281, %v1373
        %v1391 = vmul.f32 %v1282, %v1373
        %v1392 = vmul.f32 %v1283, %v1373
        %v1393 = vmul.f32 %v1284, %v1373
        %v1394 = vmul.f32 %v1285, %v1373
        %v1395 = vmul.f32 %v1286, %v1373
        %v1396 = vmul.f32 %v1287, %v1373
        %v1397 = vmul.f32 %v1288, %v1373
        %v1398 = vmul.f32 %v1289, %v1373
        %v1399 = vmul.f32 %v1290, %v1373
        %v1400 = vmul.f32 %v1291, %v1373
        %v1401 = vmul.f32 %v1292, %v1373
        %v1402 = vmul.f32 %v1293, %v1373
        %v1403 = vmul.f32 %v1294, %v1373
        %v1404 = vmul.f32 %v1295, %v1373
        %v1405 = vmul.f32 %v1296, %v1373
        %v1406 = vmul.f32 %v1297, %v1373
        %v1407 = vmul.f32 %v1298, %v1373
        %v1408 = vmul.f32 %v1299, %v1373
        %v1409 = vmul.f32 %v1300, %v1373
        %v1410 = vmul.f32 %v1301, %v1373
        %v1411 = vmul.f32 %v1302, %v1373
        %v1412 = vmul.f32 %v1303, %v1373
        %v1413 = vmul.f32 %v1304, %v1373
        %v1414 = vmul.f32 %v1305, %v1373
        %v1415 = vmul.f32 %v1306, %v1373
        %v1416 = vmul.f32 %v1307, %v1373
        %v1417 = vmul.f32 %v1308, %v1373
        %v1418 = vmul.f32 %v1309, %v1373
        %v1419 = vmul.f32 %v1310, %v1373
        %v1420 = vmul.f32 %v1311, %v1373
        %v1421 = vmul.f32 %v1312, %v1373
        %v1422 = vmul.f32 %v1313, %v1373
        %v1423 = vmul.f32 %v1314, %v1373
        %v1424 = vmul.f32 %v1315, %v1373
        %v1425 = vmul.f32 %v1316, %v1373
        %v1426 = vmul.f32 %v1317, %v1373
        %v1427 = vmul.f32 %v1318, %v1373
        %v1428 = vmul.f32 %v1319, %v1373
        %v1429 = vmul.f32 %v1320, %v1373
        %v1430 = vmul.f32 %v1321, %v1373
        %v1431 = vmul.f32 %v1322, %v1373
        %v1432 = vmul.f32 %v1323, %v1373
        %v1433 = vmul.f32 %v1324, %v1373
        %v1434 = vmul.f32 %v1325, %v1373
        %v1435 = vmul.f32 %v1326, %v1373
        %v1436 = vmul.f32 %v1327, %v1373
        %v1437 = vmul.f32 %v1328, %v1373
        %v1438 = vmul.f32 %v1329, %v1373
        %v1439 = vmul.f32 %v1330, %v1373
        %v1440 = vmul.f32 %v1331, %v1373
        %v1441 = vmul.f32 %v1332, %v1373
        %v1442 = vmul.f32 %v1333, %v1373
        %v1443 = vmul.f32 %v1334, %v1373
        %v1444 = vmul.f32 %v1335, %v1373
        %v1445 = vmul.f32 %v1336, %v1373
        %v1446 = vmul.f32 %v1337, %v1373
        %v1447 = vmul.f32 %v1338, %v1373
        %v1448 = vmul.f32 %v1339, %v1373
        %v1449 = vmul.f32 %v1340, %v1373
        %v1450 = vmul.f32 %v1341, %v1373
        %v1451 = vmul.f32 %v1342, %v1373
        %v1452 = vmul.f32 %v1343, %v1373
        %v1453 = vmul.f32 %v1344, %v1373
        %v1454 = vmul.f32 %v1345, %v1373
        %v1455 = vmul.f32 %v1346, %v1373
        %v1456 = vmul.f32 %v1347, %v1373
        %v1457 = vmul.f32 %v1348, %v1373
        %v1458 = vmul.f32 %v1349, %v1373
        %v1459 = vmul.f32 %v1350, %v1373
        %v1460 = vmul.f32 %v1351, %v1373
        %v1461 = vmul.f32 %v1352, %v1373
        %v1462 = vmul.f32 %v1353, %v1373
        %v1463 = vmul.f32 %v1354, %v1373
        %v1464 = vmul.f32 %v1355, %v1373
        %v1465 = vmul.f32 %v1356, %v1373
        %v1466 = vmul.f32 %v1357, %v1373
        %v1467 = vmul.f32 %v1358, %v1373
        %v1468 = vmul.f32 %v1359, %v1373
        %v1469 = vmul.f32 %v1360, %v1373
        %v1470 = vmul.f32 %v1361, %v1373
        %v1471 = vmul.f32 %v1362, %v1373
        %v1472 = vmul.f32 %v1363, %v1373
        %v1473 = vmul.f32 %v1364, %v1373
        %v1474 = vmul.f32 %v1365, %v1373
        %v1475 = vmul.f32 %v1366, %v1373
        %v1476 = vmul.f32 %v1367, %v1373
        %v1477 = vmul.f32 %v1368, %v1373
        %v1478 = vadd.f32 %v1161, %v1374
        %v1479 = vadd.f32 %v1162, %v1375
        %v1480 = vadd.f32 %v1163, %v1376
        %v1481 = vadd.f32 %v1164, %v1377
        %v1482 = vadd.f32 %v1165, %v1378
        %v1483 = vadd.f32 %v1166, %v1379
        %v1484 = vadd.f32 %v1167, %v1380
        %v1485 = vadd.f32 %v1168, %v1381
        %v1486 = vadd.f32 %v1169, %v1382
        %v1487 = vadd.f32 %v1170, %v1383
        %v1488 = vadd.f32 %v1171, %v1384
        %v1489 = vadd.f32 %v1172, %v1385
        %v1490 = vadd.f32 %v1173, %v1386
        %v1491 = vadd.f32 %v1174, %v1387
        %v1492 = vadd.f32 %v1175, %v1388
        %v1493 = vadd.f32 %v1176, %v1389
        %v1494 = vadd.f32 %v1177, %v1390
        %v1495 = vadd.f32 %v1178, %v1391
        %v1496 = vadd.f32 %v1179, %v1392
        %v1497 = vadd.f32 %v1180, %v1393
        %v1498 = vadd.f32 %v1181, %v1394
        %v1499 = vadd.f32 %v1182, %v1395
        %v1500 = vadd.f32 %v1183, %v1396
        %v1501 = vadd.f32 %v1184, %v1397
        %v1502 = vadd.f32 %v1185, %v1398
        %v1503 = vadd.f32 %v1186, %v1399
        %v1504 = vadd.f32 %v1187, %v1400
        %v1505 = vadd.f32 %v1188, %v1401
        %v1506 = vadd.f32 %v1189, %v1402
        %v1507 = vadd.f32 %v1190, %v1403
        %v1508 = vadd.f32 %v1191, %v1404
        %v1509 = vadd.f32 %v1192, %v1405
        %v1510 = vadd.f32 %v1193, %v1406
        %v1511 = vadd.f32 %v1194, %v1407
        %v1512 = vadd.f32 %v1195, %v1408
        %v1513 = vadd.f32 %v1196, %v1409
        %v1514 = vadd.f32 %v1197, %v1410
        %v1515 = vadd.f32 %v1198, %v1411
        %v1516 = vadd.f32 %v1199, %v1412
        %v1517 = vadd.f32 %v1200, %v1413
        %v1518 = vadd.f32 %v1201, %v1414
        %v1519 = vadd.f32 %v1202, %v1415
        %v1520 = vadd.f32 %v1203, %v1416
        %v1521 = vadd.f32 %v1204, %v1417
        %v1522 = vadd.f32 %v1205, %v1418
        %v1523 = vadd.f32 %v1206, %v1419
        %v1524 = vadd.f32 %v1207, %v1420
        %v1525 = vadd.f32 %v1208, %v1421
        %v1526 = vadd.f32 %v1209, %v1422
        %v1527 = vadd.f32 %v1210, %v1423
        %v1528 = vadd.f32 %v1211, %v1424
        %v1529 = vadd.f32 %v1212, %v1425
        %v1530 = vadd.f32 %v1213, %v1426
        %v1531 = vadd.f32 %v1214, %v1427
        %v1532 = vadd.f32 %v1215, %v1428
        %v1533 = vadd.f32 %v1216, %v1429
        %v1534 = vadd.f32 %v1217, %v1430
        %v1535 = vadd.f32 %v1218, %v1431
        %v1536 = vadd.f32 %v1219, %v1432
        %v1537 = vadd.f32 %v1220, %v1433
        %v1538 = vadd.f32 %v1221, %v1434
        %v1539 = vadd.f32 %v1222, %v1435
        %v1540 = vadd.f32 %v1223, %v1436
        %v1541 = vadd.f32 %v1224, %v1437
        %v1542 = vadd.f32 %v1225, %v1438
        %v1543 = vadd.f32 %v1226, %v1439
        %v1544 = vadd.f32 %v1227, %v1440
        %v1545 = vadd.f32 %v1228, %v1441
        %v1546 = vadd.f32 %v1229, %v1442
        %v1547 = vadd.f32 %v1230, %v1443
        %v1548 = vadd.f32 %v1231, %v1444
        %v1549 = vadd.f32 %v1232, %v1445
        %v1550 = vadd.f32 %v1233, %v1446
        %v1551 = vadd.f32 %v1234, %v1447
        %v1552 = vadd.f32 %v1235, %v1448
        %v1553 = vadd.f32 %v1236, %v1449
        %v1554 = vadd.f32 %v1237, %v1450
        %v1555 = vadd.f32 %v1238, %v1451
        %v1556 = vadd.f32 %v1239, %v1452
        %v1557 = vadd.f32 %v1240, %v1453
        %v1558 = vadd.f32 %v1241, %v1454
        %v1559 = vadd.f32 %v1242, %v1455
        %v1560 = vadd.f32 %v1243, %v1456
        %v1561 = vadd.f32 %v1244, %v1457
        %v1562 = vadd.f32 %v1245, %v1458
        %v1563 = vadd.f32 %v1246, %v1459
        %v1564 = vadd.f32 %v1247, %v1460
        %v1565 = vadd.f32 %v1248, %v1461
        %v1566 = vadd.f32 %v1249, %v1462
        %v1567 = vadd.f32 %v1250, %v1463
        %v1568 = vadd.f32 %v1251, %v1464
        %v1569 = vadd.f32 %v1252, %v1465
        %v1570 = vadd.f32 %v1253, %v1466
        %v1571 = vadd.f32 %v1254, %v1467
        %v1572 = vadd.f32 %v1255, %v1468
        %v1573 = vadd.f32 %v1256, %v1469
        %v1574 = vadd.f32 %v1257, %v1470
        %v1575 = vadd.f32 %v1258, %v1471
        %v1576 = vadd.f32 %v1259, %v1472
        %v1577 = vadd.f32 %v1260, %v1473
        %v1578 = vadd.f32 %v1261, %v1474
        %v1579 = vadd.f32 %v1262, %v1475
        %v1580 = vadd.f32 %v1263, %v1476
        %v1581 = vadd.f32 %v1264, %v1477
        %v1582 = vld [vmem:[#allocation2 + $0x2] sm:$0xff]
        %v1583 = vld [vmem:[#allocation2 + $0xa] sm:$0xff]
        %v1584 = vld [vmem:[#allocation2 + $0x12] sm:$0xff]
        %v1585 = vld [vmem:[#allocation2 + $0x1a] sm:$0x3]
        %v1586 = vld [vmem:[#allocation2 + $0x22] sm:$0xff]
        %v1587 = vld [vmem:[#allocation2 + $0x2a] sm:$0xff]
        %v1588 = vld [vmem:[#allocation2 + $0x32] sm:$0xff]
        %v1589 = vld [vmem:[#allocation2 + $0x3a] sm:$0x3]
        %v1590 = vld [vmem:[#allocation2 + $0x42] sm:$0xff]
        %v1591 = vld [vmem:[#allocation2 + $0x4a] sm:$0xff]
        %v1592 = vld [vmem:[#allocation2 + $0x52] sm:$0xff]
        %v1593 = vld [vmem:[#allocation2 + $0x5a] sm:$0x3]
        %v1594 = vld [vmem:[#allocation2 + $0x62] sm:$0xff]
        %v1595 = vld [vmem:[#allocation2 + $0x6a] sm:$0xff]
        %v1596 = vld [vmem:[#allocation2 + $0x72] sm:$0xff]
        %v1597 = vld [vmem:[#allocation2 + $0x7a] sm:$0x3]
        %v1598 = vld [vmem:[#allocation2 + $0x82] sm:$0xff]
        %v1599 = vld [vmem:[#allocation2 + $0x8a] sm:$0xff]
        %v1600 = vld [vmem:[#allocation2 + $0x92] sm:$0xff]
        %v1601 = vld [vmem:[#allocation2 + $0x9a] sm:$0x3]
        %v1602 = vld [vmem:[#allocation2 + $0xa2] sm:$0xff]
        %v1603 = vld [vmem:[#allocation2 + $0xaa] sm:$0xff]
        %v1604 = vld [vmem:[#allocation2 + $0xb2] sm:$0xff]
        %v1605 = vld [vmem:[#allocation2 + $0xba] sm:$0x3]
        %v1606 = vld [vmem:[#allocation2 + $0xc2] sm:$0xff]
        %v1607 = vld [vmem:[#allocation2 + $0xca] sm:$0xff]
        %v1608 = vld [vmem:[#allocation2 + $0xd2] sm:$0xff]
        %v1609 = vld [vmem:[#allocation2 + $0xda] sm:$0x3]
        %v1610 = vld [vmem:[#allocation2 + $0xe2] sm:$0xff]
        %v1611 = vld [vmem:[#allocation2 + $0xea] sm:$0xff]
        %v1612 = vld [vmem:[#allocation2 + $0xf2] sm:$0xff]
        %v1613 = vld [vmem:[#allocation2 + $0xfa] sm:$0x3]
        %v1614 = vld [vmem:[#allocation2 + $0x102] sm:$0xff]
        %v1615 = vld [vmem:[#allocation2 + $0x10a] sm:$0xff]
        %v1616 = vld [vmem:[#allocation2 + $0x112] sm:$0xff]
        %v1617 = vld [vmem:[#allocation2 + $0x11a] sm:$0x3]
        %v1618 = vld [vmem:[#allocation2 + $0x122] sm:$0xff]
        %v1619 = vld [vmem:[#allocation2 + $0x12a] sm:$0xff]
        %v1620 = vld [vmem:[#allocation2 + $0x132] sm:$0xff]
        %v1621 = vld [vmem:[#allocation2 + $0x13a] sm:$0x3]
        %v1622 = vld [vmem:[#allocation2 + $0x142] sm:$0xff]
        %v1623 = vld [vmem:[#allocation2 + $0x14a] sm:$0xff]
        %v1624 = vld [vmem:[#allocation2 + $0x152] sm:$0xff]
        %v1625 = vld [vmem:[#allocation2 + $0x15a] sm:$0x3]
        %v1626 = vld [vmem:[#allocation2 + $0x162] sm:$0xff]
        %v1627 = vld [vmem:[#allocation2 + $0x16a] sm:$0xff]
        %v1628 = vld [vmem:[#allocation2 + $0x172] sm:$0xff]
        %v1629 = vld [vmem:[#allocation2 + $0x17a] sm:$0x3]
        %v1630 = vld [vmem:[#allocation2 + $0x182] sm:$0xff]
        %v1631 = vld [vmem:[#allocation2 + $0x18a] sm:$0xff]
        %v1632 = vld [vmem:[#allocation2 + $0x192] sm:$0xff]
        %v1633 = vld [vmem:[#allocation2 + $0x19a] sm:$0x3]
        %v1634 = vld [vmem:[#allocation2 + $0x1a2] sm:$0xff]
        %v1635 = vld [vmem:[#allocation2 + $0x1aa] sm:$0xff]
        %v1636 = vld [vmem:[#allocation2 + $0x1b2] sm:$0xff]
        %v1637 = vld [vmem:[#allocation2 + $0x1ba] sm:$0x3]
        %v1638 = vld [vmem:[#allocation2 + $0x1c2] sm:$0xff]
        %v1639 = vld [vmem:[#allocation2 + $0x1ca] sm:$0xff]
        %v1640 = vld [vmem:[#allocation2 + $0x1d2] sm:$0xff]
        %v1641 = vld [vmem:[#allocation2 + $0x1da] sm:$0x3]
        %v1642 = vld [vmem:[#allocation2 + $0x1e2] sm:$0xff]
        %v1643 = vld [vmem:[#allocation2 + $0x1ea] sm:$0xff]
        %v1644 = vld [vmem:[#allocation2 + $0x1f2] sm:$0xff]
        %v1645 = vld [vmem:[#allocation2 + $0x1fa] sm:$0x3]
        %v1646 = vld [vmem:[#allocation2 + $0x202] sm:$0xff]
        %v1647 = vld [vmem:[#allocation2 + $0x20a] sm:$0xff]
        %v1648 = vld [vmem:[#allocation2 + $0x212] sm:$0xff]
        %v1649 = vld [vmem:[#allocation2 + $0x21a] sm:$0x3]
        %v1650 = vld [vmem:[#allocation2 + $0x222] sm:$0xff]
        %v1651 = vld [vmem:[#allocation2 + $0x22a] sm:$0xff]
        %v1652 = vld [vmem:[#allocation2 + $0x232] sm:$0xff]
        %v1653 = vld [vmem:[#allocation2 + $0x23a] sm:$0x3]
        %v1654 = vld [vmem:[#allocation2 + $0x242] sm:$0xff]
        %v1655 = vld [vmem:[#allocation2 + $0x24a] sm:$0xff]
        %v1656 = vld [vmem:[#allocation2 + $0x252] sm:$0xff]
        %v1657 = vld [vmem:[#allocation2 + $0x25a] sm:$0x3]
        %v1658 = vld [vmem:[#allocation2 + $0x262] sm:$0xff]
        %v1659 = vld [vmem:[#allocation2 + $0x26a] sm:$0xff]
        %v1660 = vld [vmem:[#allocation2 + $0x272] sm:$0xff]
        %v1661 = vld [vmem:[#allocation2 + $0x27a] sm:$0x3]
        %v1662 = vld [vmem:[#allocation2 + $0x282] sm:$0xff]
        %v1663 = vld [vmem:[#allocation2 + $0x28a] sm:$0xff]
        %v1664 = vld [vmem:[#allocation2 + $0x292] sm:$0xff]
        %v1665 = vld [vmem:[#allocation2 + $0x29a] sm:$0x3]
        %v1666 = vld [vmem:[#allocation2 + $0x2a2] sm:$0xff]
        %v1667 = vld [vmem:[#allocation2 + $0x2aa] sm:$0xff]
        %v1668 = vld [vmem:[#allocation2 + $0x2b2] sm:$0xff]
        %v1669 = vld [vmem:[#allocation2 + $0x2ba] sm:$0x3]
        %v1670 = vld [vmem:[#allocation2 + $0x2c2] sm:$0xff]
        %v1671 = vld [vmem:[#allocation2 + $0x2ca] sm:$0xff]
        %v1672 = vld [vmem:[#allocation2 + $0x2d2] sm:$0xff]
        %v1673 = vld [vmem:[#allocation2 + $0x2da] sm:$0x3]
        %v1674 = vld [vmem:[#allocation2 + $0x2e2] sm:$0xff]
        %v1675 = vld [vmem:[#allocation2 + $0x2ea] sm:$0xff]
        %v1676 = vld [vmem:[#allocation2 + $0x2f2] sm:$0xff]
        %v1677 = vld [vmem:[#allocation2 + $0x2fa] sm:$0x3]
        %v1678 = vld [vmem:[#allocation2 + $0x302] sm:$0xff]
        %v1679 = vld [vmem:[#allocation2 + $0x30a] sm:$0xff]
        %v1680 = vld [vmem:[#allocation2 + $0x312] sm:$0xff]
        %v1681 = vld [vmem:[#allocation2 + $0x31a] sm:$0x3]
        %v1682 = vld [vmem:[#allocation2 + $0x322] sm:$0xff]
        %v1683 = vld [vmem:[#allocation2 + $0x32a] sm:$0xff]
        %v1684 = vld [vmem:[#allocation2 + $0x332] sm:$0xff]
        %v1685 = vld [vmem:[#allocation2 + $0x33a] sm:$0x3]
        %v1686 = vld [vmem:[#allocation6 + $0x2] sm:$0x1]
        %v1687 = vlaneseq
        %v1688 = vshrl.u32 %v1687, 7
        %v1689 = vsub.s32 0, %v1688
        %v1690 = vrot.slane %v1686, %v1689
        %v1691 = vmul.f32 %v1582, %v1690
        %v1692 = vmul.f32 %v1583, %v1690
        %v1693 = vmul.f32 %v1584, %v1690
        %v1694 = vmul.f32 %v1585, %v1690
        %v1695 = vmul.f32 %v1586, %v1690
        %v1696 = vmul.f32 %v1587, %v1690
        %v1697 = vmul.f32 %v1588, %v1690
        %v1698 = vmul.f32 %v1589, %v1690
        %v1699 = vmul.f32 %v1590, %v1690
        %v1700 = vmul.f32 %v1591, %v1690
        %v1701 = vmul.f32 %v1592, %v1690
        %v1702 = vmul.f32 %v1593, %v1690
        %v1703 = vmul.f32 %v1594, %v1690
        %v1704 = vmul.f32 %v1595, %v1690
        %v1705 = vmul.f32 %v1596, %v1690
        %v1706 = vmul.f32 %v1597, %v1690
        %v1707 = vmul.f32 %v1598, %v1690
        %v1708 = vmul.f32 %v1599, %v1690
        %v1709 = vmul.f32 %v1600, %v1690
        %v1710 = vmul.f32 %v1601, %v1690
        %v1711 = vmul.f32 %v1602, %v1690
        %v1712 = vmul.f32 %v1603, %v1690
        %v1713 = vmul.f32 %v1604, %v1690
        %v1714 = vmul.f32 %v1605, %v1690
        %v1715 = vmul.f32 %v1606, %v1690
        %v1716 = vmul.f32 %v1607, %v1690
        %v1717 = vmul.f32 %v1608, %v1690
        %v1718 = vmul.f32 %v1609, %v1690
        %v1719 = vmul.f32 %v1610, %v1690
        %v1720 = vmul.f32 %v1611, %v1690
        %v1721 = vmul.f32 %v1612, %v1690
        %v1722 = vmul.f32 %v1613, %v1690
        %v1723 = vmul.f32 %v1614, %v1690
        %v1724 = vmul.f32 %v1615, %v1690
        %v1725 = vmul.f32 %v1616, %v1690
        %v1726 = vmul.f32 %v1617, %v1690
        %v1727 = vmul.f32 %v1618, %v1690
        %v1728 = vmul.f32 %v1619, %v1690
        %v1729 = vmul.f32 %v1620, %v1690
        %v1730 = vmul.f32 %v1621, %v1690
        %v1731 = vmul.f32 %v1622, %v1690
        %v1732 = vmul.f32 %v1623, %v1690
        %v1733 = vmul.f32 %v1624, %v1690
        %v1734 = vmul.f32 %v1625, %v1690
        %v1735 = vmul.f32 %v1626, %v1690
        %v1736 = vmul.f32 %v1627, %v1690
        %v1737 = vmul.f32 %v1628, %v1690
        %v1738 = vmul.f32 %v1629, %v1690
        %v1739 = vmul.f32 %v1630, %v1690
        %v1740 = vmul.f32 %v1631, %v1690
        %v1741 = vmul.f32 %v1632, %v1690
        %v1742 = vmul.f32 %v1633, %v1690
        %v1743 = vmul.f32 %v1634, %v1690
        %v1744 = vmul.f32 %v1635, %v1690
        %v1745 = vmul.f32 %v1636, %v1690
        %v1746 = vmul.f32 %v1637, %v1690
        %v1747 = vmul.f32 %v1638, %v1690
        %v1748 = vmul.f32 %v1639, %v1690
        %v1749 = vmul.f32 %v1640, %v1690
        %v1750 = vmul.f32 %v1641, %v1690
        %v1751 = vmul.f32 %v1642, %v1690
        %v1752 = vmul.f32 %v1643, %v1690
        %v1753 = vmul.f32 %v1644, %v1690
        %v1754 = vmul.f32 %v1645, %v1690
        %v1755 = vmul.f32 %v1646, %v1690
        %v1756 = vmul.f32 %v1647, %v1690
        %v1757 = vmul.f32 %v1648, %v1690
        %v1758 = vmul.f32 %v1649, %v1690
        %v1759 = vmul.f32 %v1650, %v1690
        %v1760 = vmul.f32 %v1651, %v1690
        %v1761 = vmul.f32 %v1652, %v1690
        %v1762 = vmul.f32 %v1653, %v1690
        %v1763 = vmul.f32 %v1654, %v1690
        %v1764 = vmul.f32 %v1655, %v1690
        %v1765 = vmul.f32 %v1656, %v1690
        %v1766 = vmul.f32 %v1657, %v1690
        %v1767 = vmul.f32 %v1658, %v1690
        %v1768 = vmul.f32 %v1659, %v1690
        %v1769 = vmul.f32 %v1660, %v1690
        %v1770 = vmul.f32 %v1661, %v1690
        %v1771 = vmul.f32 %v1662, %v1690
        %v1772 = vmul.f32 %v1663, %v1690
        %v1773 = vmul.f32 %v1664, %v1690
        %v1774 = vmul.f32 %v1665, %v1690
        %v1775 = vmul.f32 %v1666, %v1690
        %v1776 = vmul.f32 %v1667, %v1690
        %v1777 = vmul.f32 %v1668, %v1690
        %v1778 = vmul.f32 %v1669, %v1690
        %v1779 = vmul.f32 %v1670, %v1690
        %v1780 = vmul.f32 %v1671, %v1690
        %v1781 = vmul.f32 %v1672, %v1690
        %v1782 = vmul.f32 %v1673, %v1690
        %v1783 = vmul.f32 %v1674, %v1690
        %v1784 = vmul.f32 %v1675, %v1690
        %v1785 = vmul.f32 %v1676, %v1690
        %v1786 = vmul.f32 %v1677, %v1690
        %v1787 = vmul.f32 %v1678, %v1690
        %v1788 = vmul.f32 %v1679, %v1690
        %v1789 = vmul.f32 %v1680, %v1690
        %v1790 = vmul.f32 %v1681, %v1690
        %v1791 = vmul.f32 %v1682, %v1690
        %v1792 = vmul.f32 %v1683, %v1690
        %v1793 = vmul.f32 %v1684, %v1690
        %v1794 = vmul.f32 %v1685, %v1690
        %v1795 = vadd.f32 %v1478, %v1691
        %v1796 = vadd.f32 %v1479, %v1692
        %v1797 = vadd.f32 %v1480, %v1693
        %v1798 = vadd.f32 %v1481, %v1694
        %v1799 = vadd.f32 %v1482, %v1695
        %v1800 = vadd.f32 %v1483, %v1696
        %v1801 = vadd.f32 %v1484, %v1697
        %v1802 = vadd.f32 %v1485, %v1698
        %v1803 = vadd.f32 %v1486, %v1699
        %v1804 = vadd.f32 %v1487, %v1700
        %v1805 = vadd.f32 %v1488, %v1701
        %v1806 = vadd.f32 %v1489, %v1702
        %v1807 = vadd.f32 %v1490, %v1703
        %v1808 = vadd.f32 %v1491, %v1704
        %v1809 = vadd.f32 %v1492, %v1705
        %v1810 = vadd.f32 %v1493, %v1706
        %v1811 = vadd.f32 %v1494, %v1707
        %v1812 = vadd.f32 %v1495, %v1708
        %v1813 = vadd.f32 %v1496, %v1709
        %v1814 = vadd.f32 %v1497, %v1710
        %v1815 = vadd.f32 %v1498, %v1711
        %v1816 = vadd.f32 %v1499, %v1712
        %v1817 = vadd.f32 %v1500, %v1713
        %v1818 = vadd.f32 %v1501, %v1714
        %v1819 = vadd.f32 %v1502, %v1715
        %v1820 = vadd.f32 %v1503, %v1716
        %v1821 = vadd.f32 %v1504, %v1717
        %v1822 = vadd.f32 %v1505, %v1718
        %v1823 = vadd.f32 %v1506, %v1719
        %v1824 = vadd.f32 %v1507, %v1720
        %v1825 = vadd.f32 %v1508, %v1721
        %v1826 = vadd.f32 %v1509, %v1722
        %v1827 = vadd.f32 %v1510, %v1723
        %v1828 = vadd.f32 %v1511, %v1724
        %v1829 = vadd.f32 %v1512, %v1725
        %v1830 = vadd.f32 %v1513, %v1726
        %v1831 = vadd.f32 %v1514, %v1727
        %v1832 = vadd.f32 %v1515, %v1728
        %v1833 = vadd.f32 %v1516, %v1729
        %v1834 = vadd.f32 %v1517, %v1730
        %v1835 = vadd.f32 %v1518, %v1731
        %v1836 = vadd.f32 %v1519, %v1732
        %v1837 = vadd.f32 %v1520, %v1733
        %v1838 = vadd.f32 %v1521, %v1734
        %v1839 = vadd.f32 %v1522, %v1735
        %v1840 = vadd.f32 %v1523, %v1736
        %v1841 = vadd.f32 %v1524, %v1737
        %v1842 = vadd.f32 %v1525, %v1738
        %v1843 = vadd.f32 %v1526, %v1739
        %v1844 = vadd.f32 %v1527, %v1740
        %v1845 = vadd.f32 %v1528, %v1741
        %v1846 = vadd.f32 %v1529, %v1742
        %v1847 = vadd.f32 %v1530, %v1743
        %v1848 = vadd.f32 %v1531, %v1744
        %v1849 = vadd.f32 %v1532, %v1745
        %v1850 = vadd.f32 %v1533, %v1746
        %v1851 = vadd.f32 %v1534, %v1747
        %v1852 = vadd.f32 %v1535, %v1748
        %v1853 = vadd.f32 %v1536, %v1749
        %v1854 = vadd.f32 %v1537, %v1750
        %v1855 = vadd.f32 %v1538, %v1751
        %v1856 = vadd.f32 %v1539, %v1752
        %v1857 = vadd.f32 %v1540, %v1753
        %v1858 = vadd.f32 %v1541, %v1754
        %v1859 = vadd.f32 %v1542, %v1755
        %v1860 = vadd.f32 %v1543, %v1756
        %v1861 = vadd.f32 %v1544, %v1757
        %v1862 = vadd.f32 %v1545, %v1758
        %v1863 = vadd.f32 %v1546, %v1759
        %v1864 = vadd.f32 %v1547, %v1760
        %v1865 = vadd.f32 %v1548, %v1761
        %v1866 = vadd.f32 %v1549, %v1762
        %v1867 = vadd.f32 %v1550, %v1763
        %v1868 = vadd.f32 %v1551, %v1764
        %v1869 = vadd.f32 %v1552, %v1765
        %v1870 = vadd.f32 %v1553, %v1766
        %v1871 = vadd.f32 %v1554, %v1767
        %v1872 = vadd.f32 %v1555, %v1768
        %v1873 = vadd.f32 %v1556, %v1769
        %v1874 = vadd.f32 %v1557, %v1770
        %v1875 = vadd.f32 %v1558, %v1771
        %v1876 = vadd.f32 %v1559, %v1772
        %v1877 = vadd.f32 %v1560, %v1773
        %v1878 = vadd.f32 %v1561, %v1774
        %v1879 = vadd.f32 %v1562, %v1775
        %v1880 = vadd.f32 %v1563, %v1776
        %v1881 = vadd.f32 %v1564, %v1777
        %v1882 = vadd.f32 %v1565, %v1778
        %v1883 = vadd.f32 %v1566, %v1779
        %v1884 = vadd.f32 %v1567, %v1780
        %v1885 = vadd.f32 %v1568, %v1781
        %v1886 = vadd.f32 %v1569, %v1782
        %v1887 = vadd.f32 %v1570, %v1783
        %v1888 = vadd.f32 %v1571, %v1784
        %v1889 = vadd.f32 %v1572, %v1785
        %v1890 = vadd.f32 %v1573, %v1786
        %v1891 = vadd.f32 %v1574, %v1787
        %v1892 = vadd.f32 %v1575, %v1788
        %v1893 = vadd.f32 %v1576, %v1789
        %v1894 = vadd.f32 %v1577, %v1790
        %v1895 = vadd.f32 %v1578, %v1791
        %v1896 = vadd.f32 %v1579, %v1792
        %v1897 = vadd.f32 %v1580, %v1793
        %v1898 = vadd.f32 %v1581, %v1794
        %s1899 = scalar_lea.vmem [#allocation2], 32
        %v1900 = vld [vmem:[%s1899] sm:$0xff]
        %v1901 = vld [vmem:[%s1899 + $0x8] sm:$0xff]
        %v1902 = vld [vmem:[%s1899 + $0x10] sm:$0xff]
        %v1903 = vld [vmem:[%s1899 + $0x18] sm:$0x3]
        %v1904 = vld [vmem:[%s1899 + $0x20] sm:$0xff]
        %v1905 = vld [vmem:[%s1899 + $0x28] sm:$0xff]
        %v1906 = vld [vmem:[%s1899 + $0x30] sm:$0xff]
        %v1907 = vld [vmem:[%s1899 + $0x38] sm:$0x3]
        %v1908 = vld [vmem:[%s1899 + $0x40] sm:$0xff]
        %v1909 = vld [vmem:[%s1899 + $0x48] sm:$0xff]
        %v1910 = vld [vmem:[%s1899 + $0x50] sm:$0xff]
        %v1911 = vld [vmem:[%s1899 + $0x58] sm:$0x3]
        %v1912 = vld [vmem:[%s1899 + $0x60] sm:$0xff]
        %v1913 = vld [vmem:[%s1899 + $0x68] sm:$0xff]
        %v1914 = vld [vmem:[%s1899 + $0x70] sm:$0xff]
        %v1915 = vld [vmem:[%s1899 + $0x78] sm:$0x3]
        %v1916 = vld [vmem:[%s1899 + $0x80] sm:$0xff]
        %v1917 = vld [vmem:[%s1899 + $0x88] sm:$0xff]
        %v1918 = vld [vmem:[%s1899 + $0x90] sm:$0xff]
        %v1919 = vld [vmem:[%s1899 + $0x98] sm:$0x3]
        %v1920 = vld [vmem:[%s1899 + $0xa0] sm:$0xff]
        %v1921 = vld [vmem:[%s1899 + $0xa8] sm:$0xff]
        %v1922 = vld [vmem:[%s1899 + $0xb0] sm:$0xff]
        %v1923 = vld [vmem:[%s1899 + $0xb8] sm:$0x3]
        %v1924 = vld [vmem:[%s1899 + $0xc0] sm:$0xff]
        %v1925 = vld [vmem:[%s1899 + $0xc8] sm:$0xff]
        %v1926 = vld [vmem:[%s1899 + $0xd0] sm:$0xff]
        %v1927 = vld [vmem:[%s1899 + $0xd8] sm:$0x3]
        %v1928 = vld [vmem:[%s1899 + $0xe0] sm:$0xff]
        %v1929 = vld [vmem:[%s1899 + $0xe8] sm:$0xff]
        %v1930 = vld [vmem:[%s1899 + $0xf0] sm:$0xff]
        %v1931 = vld [vmem:[%s1899 + $0xf8] sm:$0x3]
        %v1932 = vld [vmem:[%s1899 + $0x100] sm:$0xff]
        %v1933 = vld [vmem:[%s1899 + $0x108] sm:$0xff]
        %v1934 = vld [vmem:[%s1899 + $0x110] sm:$0xff]
        %v1935 = vld [vmem:[%s1899 + $0x118] sm:$0x3]
        %v1936 = vld [vmem:[%s1899 + $0x120] sm:$0xff]
        %v1937 = vld [vmem:[%s1899 + $0x128] sm:$0xff]
        %v1938 = vld [vmem:[%s1899 + $0x130] sm:$0xff]
        %v1939 = vld [vmem:[%s1899 + $0x138] sm:$0x3]
        %v1940 = vld [vmem:[%s1899 + $0x140] sm:$0xff]
        %v1941 = vld [vmem:[%s1899 + $0x148] sm:$0xff]
        %v1942 = vld [vmem:[%s1899 + $0x150] sm:$0xff]
        %v1943 = vld [vmem:[%s1899 + $0x158] sm:$0x3]
        %v1944 = vld [vmem:[%s1899 + $0x160] sm:$0xff]
        %v1945 = vld [vmem:[%s1899 + $0x168] sm:$0xff]
        %v1946 = vld [vmem:[%s1899 + $0x170] sm:$0xff]
        %v1947 = vld [vmem:[%s1899 + $0x178] sm:$0x3]
        %v1948 = vld [vmem:[%s1899 + $0x180] sm:$0xff]
        %v1949 = vld [vmem:[%s1899 + $0x188] sm:$0xff]
        %v1950 = vld [vmem:[%s1899 + $0x190] sm:$0xff]
        %v1951 = vld [vmem:[%s1899 + $0x198] sm:$0x3]
        %v1952 = vld [vmem:[%s1899 + $0x1a0] sm:$0xff]
        %v1953 = vld [vmem:[%s1899 + $0x1a8] sm:$0xff]
        %v1954 = vld [vmem:[%s1899 + $0x1b0] sm:$0xff]
        %v1955 = vld [vmem:[%s1899 + $0x1b8] sm:$0x3]
        %v1956 = vld [vmem:[%s1899 + $0x1c0] sm:$0xff]
        %v1957 = vld [vmem:[%s1899 + $0x1c8] sm:$0xff]
        %v1958 = vld [vmem:[%s1899 + $0x1d0] sm:$0xff]
        %v1959 = vld [vmem:[%s1899 + $0x1d8] sm:$0x3]
        %v1960 = vld [vmem:[%s1899 + $0x1e0] sm:$0xff]
        %v1961 = vld [vmem:[%s1899 + $0x1e8] sm:$0xff]
        %v1962 = vld [vmem:[%s1899 + $0x1f0] sm:$0xff]
        %v1963 = vld [vmem:[%s1899 + $0x1f8] sm:$0x3]
        %v1964 = vld [vmem:[%s1899 + $0x200] sm:$0xff]
        %v1965 = vld [vmem:[%s1899 + $0x208] sm:$0xff]
        %v1966 = vld [vmem:[%s1899 + $0x210] sm:$0xff]
        %v1967 = vld [vmem:[%s1899 + $0x218] sm:$0x3]
        %v1968 = vld [vmem:[%s1899 + $0x220] sm:$0xff]
        %v1969 = vld [vmem:[%s1899 + $0x228] sm:$0xff]
        %v1970 = vld [vmem:[%s1899 + $0x230] sm:$0xff]
        %v1971 = vld [vmem:[%s1899 + $0x238] sm:$0x3]
        %v1972 = vld [vmem:[%s1899 + $0x240] sm:$0xff]
        %v1973 = vld [vmem:[%s1899 + $0x248] sm:$0xff]
        %v1974 = vld [vmem:[%s1899 + $0x250] sm:$0xff]
        %v1975 = vld [vmem:[%s1899 + $0x258] sm:$0x3]
        %v1976 = vld [vmem:[%s1899 + $0x260] sm:$0xff]
        %v1977 = vld [vmem:[%s1899 + $0x268] sm:$0xff]
        %v1978 = vld [vmem:[%s1899 + $0x270] sm:$0xff]
        %v1979 = vld [vmem:[%s1899 + $0x278] sm:$0x3]
        %v1980 = vld [vmem:[%s1899 + $0x280] sm:$0xff]
        %v1981 = vld [vmem:[%s1899 + $0x288] sm:$0xff]
        %v1982 = vld [vmem:[%s1899 + $0x290] sm:$0xff]
        %v1983 = vld [vmem:[%s1899 + $0x298] sm:$0x3]
        %v1984 = vld [vmem:[%s1899 + $0x2a0] sm:$0xff]
        %v1985 = vld [vmem:[%s1899 + $0x2a8] sm:$0xff]
        %v1986 = vld [vmem:[%s1899 + $0x2b0] sm:$0xff]
        %v1987 = vld [vmem:[%s1899 + $0x2b8] sm:$0x3]
        %v1988 = vld [vmem:[%s1899 + $0x2c0] sm:$0xff]
        %v1989 = vld [vmem:[%s1899 + $0x2c8] sm:$0xff]
        %v1990 = vld [vmem:[%s1899 + $0x2d0] sm:$0xff]
        %v1991 = vld [vmem:[%s1899 + $0x2d8] sm:$0x3]
        %v1992 = vld [vmem:[%s1899 + $0x2e0] sm:$0xff]
        %v1993 = vld [vmem:[%s1899 + $0x2e8] sm:$0xff]
        %v1994 = vld [vmem:[%s1899 + $0x2f0] sm:$0xff]
        %v1995 = vld [vmem:[%s1899 + $0x2f8] sm:$0x3]
        %v1996 = vld [vmem:[%s1899 + $0x300] sm:$0xff]
        %v1997 = vld [vmem:[%s1899 + $0x308] sm:$0xff]
        %v1998 = vld [vmem:[%s1899 + $0x310] sm:$0xff]
        %v1999 = vld [vmem:[%s1899 + $0x318] sm:$0x3]
        %v2000 = vld [vmem:[%s1899 + $0x320] sm:$0xff]
        %v2001 = vld [vmem:[%s1899 + $0x328] sm:$0xff]
        %v2002 = vld [vmem:[%s1899 + $0x330] sm:$0xff]
        %v2003 = vld [vmem:[%s1899 + $0x338] sm:$0x3]
        %s2004 = scalar_lea.vmem [#allocation6], 4
        %v2005 = vld [vmem:[%s2004] sm:$0x1]
        %v2006 = vlaneseq
        %v2007 = vshrl.u32 %v2006, 7
        %v2008 = vsub.s32 0, %v2007
        %v2009 = vrot.slane %v2005, %v2008
        %v2010 = vmul.f32 %v1900, %v2009
        %v2011 = vmul.f32 %v1901, %v2009
        %v2012 = vmul.f32 %v1902, %v2009
        %v2013 = vmul.f32 %v1903, %v2009
        %v2014 = vmul.f32 %v1904, %v2009
        %v2015 = vmul.f32 %v1905, %v2009
        %v2016 = vmul.f32 %v1906, %v2009
        %v2017 = vmul.f32 %v1907, %v2009
        %v2018 = vmul.f32 %v1908, %v2009
        %v2019 = vmul.f32 %v1909, %v2009
        %v2020 = vmul.f32 %v1910, %v2009
        %v2021 = vmul.f32 %v1911, %v2009
        %v2022 = vmul.f32 %v1912, %v2009
        %v2023 = vmul.f32 %v1913, %v2009
        %v2024 = vmul.f32 %v1914, %v2009
        %v2025 = vmul.f32 %v1915, %v2009
        %v2026 = vmul.f32 %v1916, %v2009
        %v2027 = vmul.f32 %v1917, %v2009
        %v2028 = vmul.f32 %v1918, %v2009
        %v2029 = vmul.f32 %v1919, %v2009
        %v2030 = vmul.f32 %v1920, %v2009
        %v2031 = vmul.f32 %v1921, %v2009
        %v2032 = vmul.f32 %v1922, %v2009
        %v2033 = vmul.f32 %v1923, %v2009
        %v2034 = vmul.f32 %v1924, %v2009
        %v2035 = vmul.f32 %v1925, %v2009
        %v2036 = vmul.f32 %v1926, %v2009
        %v2037 = vmul.f32 %v1927, %v2009
        %v2038 = vmul.f32 %v1928, %v2009
        %v2039 = vmul.f32 %v1929, %v2009
        %v2040 = vmul.f32 %v1930, %v2009
        %v2041 = vmul.f32 %v1931, %v2009
        %v2042 = vmul.f32 %v1932, %v2009
        %v2043 = vmul.f32 %v1933, %v2009
        %v2044 = vmul.f32 %v1934, %v2009
        %v2045 = vmul.f32 %v1935, %v2009
        %v2046 = vmul.f32 %v1936, %v2009
        %v2047 = vmul.f32 %v1937, %v2009
        %v2048 = vmul.f32 %v1938, %v2009
        %v2049 = vmul.f32 %v1939, %v2009
        %v2050 = vmul.f32 %v1940, %v2009
        %v2051 = vmul.f32 %v1941, %v2009
        %v2052 = vmul.f32 %v1942, %v2009
        %v2053 = vmul.f32 %v1943, %v2009
        %v2054 = vmul.f32 %v1944, %v2009
        %v2055 = vmul.f32 %v1945, %v2009
        %v2056 = vmul.f32 %v1946, %v2009
        %v2057 = vmul.f32 %v1947, %v2009
        %v2058 = vmul.f32 %v1948, %v2009
        %v2059 = vmul.f32 %v1949, %v2009
        %v2060 = vmul.f32 %v1950, %v2009
        %v2061 = vmul.f32 %v1951, %v2009
        %v2062 = vmul.f32 %v1952, %v2009
        %v2063 = vmul.f32 %v1953, %v2009
        %v2064 = vmul.f32 %v1954, %v2009
        %v2065 = vmul.f32 %v1955, %v2009
        %v2066 = vmul.f32 %v1956, %v2009
        %v2067 = vmul.f32 %v1957, %v2009
        %v2068 = vmul.f32 %v1958, %v2009
        %v2069 = vmul.f32 %v1959, %v2009
        %v2070 = vmul.f32 %v1960, %v2009
        %v2071 = vmul.f32 %v1961, %v2009
        %v2072 = vmul.f32 %v1962, %v2009
        %v2073 = vmul.f32 %v1963, %v2009
        %v2074 = vmul.f32 %v1964, %v2009
        %v2075 = vmul.f32 %v1965, %v2009
        %v2076 = vmul.f32 %v1966, %v2009
        %v2077 = vmul.f32 %v1967, %v2009
        %v2078 = vmul.f32 %v1968, %v2009
        %v2079 = vmul.f32 %v1969, %v2009
        %v2080 = vmul.f32 %v1970, %v2009
        %v2081 = vmul.f32 %v1971, %v2009
        %v2082 = vmul.f32 %v1972, %v2009
        %v2083 = vmul.f32 %v1973, %v2009
        %v2084 = vmul.f32 %v1974, %v2009
        %v2085 = vmul.f32 %v1975, %v2009
        %v2086 = vmul.f32 %v1976, %v2009
        %v2087 = vmul.f32 %v1977, %v2009
        %v2088 = vmul.f32 %v1978, %v2009
        %v2089 = vmul.f32 %v1979, %v2009
        %v2090 = vmul.f32 %v1980, %v2009
        %v2091 = vmul.f32 %v1981, %v2009
        %v2092 = vmul.f32 %v1982, %v2009
        %v2093 = vmul.f32 %v1983, %v2009
        %v2094 = vmul.f32 %v1984, %v2009
        %v2095 = vmul.f32 %v1985, %v2009
        %v2096 = vmul.f32 %v1986, %v2009
        %v2097 = vmul.f32 %v1987, %v2009
        %v2098 = vmul.f32 %v1988, %v2009
        %v2099 = vmul.f32 %v1989, %v2009
        %v2100 = vmul.f32 %v1990, %v2009
        %v2101 = vmul.f32 %v1991, %v2009
        %v2102 = vmul.f32 %v1992, %v2009
        %v2103 = vmul.f32 %v1993, %v2009
        %v2104 = vmul.f32 %v1994, %v2009
        %v2105 = vmul.f32 %v1995, %v2009
        %v2106 = vmul.f32 %v1996, %v2009
        %v2107 = vmul.f32 %v1997, %v2009
        %v2108 = vmul.f32 %v1998, %v2009
        %v2109 = vmul.f32 %v1999, %v2009
        %v2110 = vmul.f32 %v2000, %v2009
        %v2111 = vmul.f32 %v2001, %v2009
        %v2112 = vmul.f32 %v2002, %v2009
        %v2113 = vmul.f32 %v2003, %v2009
        %v2114 = vadd.f32 %v1795, %v2010
        %v2115 = vadd.f32 %v1796, %v2011
        %v2116 = vadd.f32 %v1797, %v2012
        %v2117 = vadd.f32 %v1798, %v2013
        %v2118 = vadd.f32 %v1799, %v2014
        %v2119 = vadd.f32 %v1800, %v2015
        %v2120 = vadd.f32 %v1801, %v2016
        %v2121 = vadd.f32 %v1802, %v2017
        %v2122 = vadd.f32 %v1803, %v2018
        %v2123 = vadd.f32 %v1804, %v2019
        %v2124 = vadd.f32 %v1805, %v2020
        %v2125 = vadd.f32 %v1806, %v2021
        %v2126 = vadd.f32 %v1807, %v2022
        %v2127 = vadd.f32 %v1808, %v2023
        %v2128 = vadd.f32 %v1809, %v2024
        %v2129 = vadd.f32 %v1810, %v2025
        %v2130 = vadd.f32 %v1811, %v2026
        %v2131 = vadd.f32 %v1812, %v2027
        %v2132 = vadd.f32 %v1813, %v2028
        %v2133 = vadd.f32 %v1814, %v2029
        %v2134 = vadd.f32 %v1815, %v2030
        %v2135 = vadd.f32 %v1816, %v2031
        %v2136 = vadd.f32 %v1817, %v2032
        %v2137 = vadd.f32 %v1818, %v2033
        %v2138 = vadd.f32 %v1819, %v2034
        %v2139 = vadd.f32 %v1820, %v2035
        %v2140 = vadd.f32 %v1821, %v2036
        %v2141 = vadd.f32 %v1822, %v2037
        %v2142 = vadd.f32 %v1823, %v2038
        %v2143 = vadd.f32 %v1824, %v2039
        %v2144 = vadd.f32 %v1825, %v2040
        %v2145 = vadd.f32 %v1826, %v2041
        %v2146 = vadd.f32 %v1827, %v2042
        %v2147 = vadd.f32 %v1828, %v2043
        %v2148 = vadd.f32 %v1829, %v2044
        %v2149 = vadd.f32 %v1830, %v2045
        %v2150 = vadd.f32 %v1831, %v2046
        %v2151 = vadd.f32 %v1832, %v2047
        %v2152 = vadd.f32 %v1833, %v2048
        %v2153 = vadd.f32 %v1834, %v2049
        %v2154 = vadd.f32 %v1835, %v2050
        %v2155 = vadd.f32 %v1836, %v2051
        %v2156 = vadd.f32 %v1837, %v2052
        %v2157 = vadd.f32 %v1838, %v2053
        %v2158 = vadd.f32 %v1839, %v2054
        %v2159 = vadd.f32 %v1840, %v2055
        %v2160 = vadd.f32 %v1841, %v2056
        %v2161 = vadd.f32 %v1842, %v2057
        %v2162 = vadd.f32 %v1843, %v2058
        %v2163 = vadd.f32 %v1844, %v2059
        %v2164 = vadd.f32 %v1845, %v2060
        %v2165 = vadd.f32 %v1846, %v2061
        %v2166 = vadd.f32 %v1847, %v2062
        %v2167 = vadd.f32 %v1848, %v2063
        %v2168 = vadd.f32 %v1849, %v2064
        %v2169 = vadd.f32 %v1850, %v2065
        %v2170 = vadd.f32 %v1851, %v2066
        %v2171 = vadd.f32 %v1852, %v2067
        %v2172 = vadd.f32 %v1853, %v2068
        %v2173 = vadd.f32 %v1854, %v2069
        %v2174 = vadd.f32 %v1855, %v2070
        %v2175 = vadd.f32 %v1856, %v2071
        %v2176 = vadd.f32 %v1857, %v2072
        %v2177 = vadd.f32 %v1858, %v2073
        %v2178 = vadd.f32 %v1859, %v2074
        %v2179 = vadd.f32 %v1860, %v2075
        %v2180 = vadd.f32 %v1861, %v2076
        %v2181 = vadd.f32 %v1862, %v2077
        %v2182 = vadd.f32 %v1863, %v2078
        %v2183 = vadd.f32 %v1864, %v2079
        %v2184 = vadd.f32 %v1865, %v2080
        %v2185 = vadd.f32 %v1866, %v2081
        %v2186 = vadd.f32 %v1867, %v2082
        %v2187 = vadd.f32 %v1868, %v2083
        %v2188 = vadd.f32 %v1869, %v2084
        %v2189 = vadd.f32 %v1870, %v2085
        %v2190 = vadd.f32 %v1871, %v2086
        %v2191 = vadd.f32 %v1872, %v2087
        %v2192 = vadd.f32 %v1873, %v2088
        %v2193 = vadd.f32 %v1874, %v2089
        %v2194 = vadd.f32 %v1875, %v2090
        %v2195 = vadd.f32 %v1876, %v2091
        %v2196 = vadd.f32 %v1877, %v2092
        %v2197 = vadd.f32 %v1878, %v2093
        %v2198 = vadd.f32 %v1879, %v2094
        %v2199 = vadd.f32 %v1880, %v2095
        %v2200 = vadd.f32 %v1881, %v2096
        %v2201 = vadd.f32 %v1882, %v2097
        %v2202 = vadd.f32 %v1883, %v2098
        %v2203 = vadd.f32 %v1884, %v2099
        %v2204 = vadd.f32 %v1885, %v2100
        %v2205 = vadd.f32 %v1886, %v2101
        %v2206 = vadd.f32 %v1887, %v2102
        %v2207 = vadd.f32 %v1888, %v2103
        %v2208 = vadd.f32 %v1889, %v2104
        %v2209 = vadd.f32 %v1890, %v2105
        %v2210 = vadd.f32 %v1891, %v2106
        %v2211 = vadd.f32 %v1892, %v2107
        %v2212 = vadd.f32 %v1893, %v2108
        %v2213 = vadd.f32 %v1894, %v2109
        %v2214 = vadd.f32 %v1895, %v2110
        %v2215 = vadd.f32 %v1896, %v2111
        %v2216 = vadd.f32 %v1897, %v2112
        %v2217 = vadd.f32 %v1898, %v2113
        %v2218 = vld [vmem:[%s1899 + $0x1] sm:$0xff]
        %v2219 = vld [vmem:[%s1899 + $0x9] sm:$0xff]
        %v2220 = vld [vmem:[%s1899 + $0x11] sm:$0xff]
        %v2221 = vld [vmem:[%s1899 + $0x19] sm:$0x3]
        %v2222 = vld [vmem:[%s1899 + $0x21] sm:$0xff]
        %v2223 = vld [vmem:[%s1899 + $0x29] sm:$0xff]
        %v2224 = vld [vmem:[%s1899 + $0x31] sm:$0xff]
        %v2225 = vld [vmem:[%s1899 + $0x39] sm:$0x3]
        %v2226 = vld [vmem:[%s1899 + $0x41] sm:$0xff]
        %v2227 = vld [vmem:[%s1899 + $0x49] sm:$0xff]
        %v2228 = vld [vmem:[%s1899 + $0x51] sm:$0xff]
        %v2229 = vld [vmem:[%s1899 + $0x59] sm:$0x3]
        %v2230 = vld [vmem:[%s1899 + $0x61] sm:$0xff]
        %v2231 = vld [vmem:[%s1899 + $0x69] sm:$0xff]
        %v2232 = vld [vmem:[%s1899 + $0x71] sm:$0xff]
        %v2233 = vld [vmem:[%s1899 + $0x79] sm:$0x3]
        %v2234 = vld [vmem:[%s1899 + $0x81] sm:$0xff]
        %v2235 = vld [vmem:[%s1899 + $0x89] sm:$0xff]
        %v2236 = vld [vmem:[%s1899 + $0x91] sm:$0xff]
        %v2237 = vld [vmem:[%s1899 + $0x99] sm:$0x3]
        %v2238 = vld [vmem:[%s1899 + $0xa1] sm:$0xff]
        %v2239 = vld [vmem:[%s1899 + $0xa9] sm:$0xff]
        %v2240 = vld [vmem:[%s1899 + $0xb1] sm:$0xff]
        %v2241 = vld [vmem:[%s1899 + $0xb9] sm:$0x3]
        %v2242 = vld [vmem:[%s1899 + $0xc1] sm:$0xff]
        %v2243 = vld [vmem:[%s1899 + $0xc9] sm:$0xff]
        %v2244 = vld [vmem:[%s1899 + $0xd1] sm:$0xff]
        %v2245 = vld [vmem:[%s1899 + $0xd9] sm:$0x3]
        %v2246 = vld [vmem:[%s1899 + $0xe1] sm:$0xff]
        %v2247 = vld [vmem:[%s1899 + $0xe9] sm:$0xff]
        %v2248 = vld [vmem:[%s1899 + $0xf1] sm:$0xff]
        %v2249 = vld [vmem:[%s1899 + $0xf9] sm:$0x3]
        %v2250 = vld [vmem:[%s1899 + $0x101] sm:$0xff]
        %v2251 = vld [vmem:[%s1899 + $0x109] sm:$0xff]
        %v2252 = vld [vmem:[%s1899 + $0x111] sm:$0xff]
        %v2253 = vld [vmem:[%s1899 + $0x119] sm:$0x3]
        %v2254 = vld [vmem:[%s1899 + $0x121] sm:$0xff]
        %v2255 = vld [vmem:[%s1899 + $0x129] sm:$0xff]
        %v2256 = vld [vmem:[%s1899 + $0x131] sm:$0xff]
        %v2257 = vld [vmem:[%s1899 + $0x139] sm:$0x3]
        %v2258 = vld [vmem:[%s1899 + $0x141] sm:$0xff]
        %v2259 = vld [vmem:[%s1899 + $0x149] sm:$0xff]
        %v2260 = vld [vmem:[%s1899 + $0x151] sm:$0xff]
        %v2261 = vld [vmem:[%s1899 + $0x159] sm:$0x3]
        %v2262 = vld [vmem:[%s1899 + $0x161] sm:$0xff]
        %v2263 = vld [vmem:[%s1899 + $0x169] sm:$0xff]
        %v2264 = vld [vmem:[%s1899 + $0x171] sm:$0xff]
        %v2265 = vld [vmem:[%s1899 + $0x179] sm:$0x3]
        %v2266 = vld [vmem:[%s1899 + $0x181] sm:$0xff]
        %v2267 = vld [vmem:[%s1899 + $0x189] sm:$0xff]
        %v2268 = vld [vmem:[%s1899 + $0x191] sm:$0xff]
        %v2269 = vld [vmem:[%s1899 + $0x199] sm:$0x3]
        %v2270 = vld [vmem:[%s1899 + $0x1a1] sm:$0xff]
        %v2271 = vld [vmem:[%s1899 + $0x1a9] sm:$0xff]
        %v2272 = vld [vmem:[%s1899 + $0x1b1] sm:$0xff]
        %v2273 = vld [vmem:[%s1899 + $0x1b9] sm:$0x3]
        %v2274 = vld [vmem:[%s1899 + $0x1c1] sm:$0xff]
        %v2275 = vld [vmem:[%s1899 + $0x1c9] sm:$0xff]
        %v2276 = vld [vmem:[%s1899 + $0x1d1] sm:$0xff]
        %v2277 = vld [vmem:[%s1899 + $0x1d9] sm:$0x3]
        %v2278 = vld [vmem:[%s1899 + $0x1e1] sm:$0xff]
        %v2279 = vld [vmem:[%s1899 + $0x1e9] sm:$0xff]
        %v2280 = vld [vmem:[%s1899 + $0x1f1] sm:$0xff]
        %v2281 = vld [vmem:[%s1899 + $0x1f9] sm:$0x3]
        %v2282 = vld [vmem:[%s1899 + $0x201] sm:$0xff]
        %v2283 = vld [vmem:[%s1899 + $0x209] sm:$0xff]
        %v2284 = vld [vmem:[%s1899 + $0x211] sm:$0xff]
        %v2285 = vld [vmem:[%s1899 + $0x219] sm:$0x3]
        %v2286 = vld [vmem:[%s1899 + $0x221] sm:$0xff]
        %v2287 = vld [vmem:[%s1899 + $0x229] sm:$0xff]
        %v2288 = vld [vmem:[%s1899 + $0x231] sm:$0xff]
        %v2289 = vld [vmem:[%s1899 + $0x239] sm:$0x3]
        %v2290 = vld [vmem:[%s1899 + $0x241] sm:$0xff]
        %v2291 = vld [vmem:[%s1899 + $0x249] sm:$0xff]
        %v2292 = vld [vmem:[%s1899 + $0x251] sm:$0xff]
        %v2293 = vld [vmem:[%s1899 + $0x259] sm:$0x3]
        %v2294 = vld [vmem:[%s1899 + $0x261] sm:$0xff]
        %v2295 = vld [vmem:[%s1899 + $0x269] sm:$0xff]
        %v2296 = vld [vmem:[%s1899 + $0x271] sm:$0xff]
        %v2297 = vld [vmem:[%s1899 + $0x279] sm:$0x3]
        %v2298 = vld [vmem:[%s1899 + $0x281] sm:$0xff]
        %v2299 = vld [vmem:[%s1899 + $0x289] sm:$0xff]
        %v2300 = vld [vmem:[%s1899 + $0x291] sm:$0xff]
        %v2301 = vld [vmem:[%s1899 + $0x299] sm:$0x3]
        %v2302 = vld [vmem:[%s1899 + $0x2a1] sm:$0xff]
        %v2303 = vld [vmem:[%s1899 + $0x2a9] sm:$0xff]
        %v2304 = vld [vmem:[%s1899 + $0x2b1] sm:$0xff]
        %v2305 = vld [vmem:[%s1899 + $0x2b9] sm:$0x3]
        %v2306 = vld [vmem:[%s1899 + $0x2c1] sm:$0xff]
        %v2307 = vld [vmem:[%s1899 + $0x2c9] sm:$0xff]
        %v2308 = vld [vmem:[%s1899 + $0x2d1] sm:$0xff]
        %v2309 = vld [vmem:[%s1899 + $0x2d9] sm:$0x3]
        %v2310 = vld [vmem:[%s1899 + $0x2e1] sm:$0xff]
        %v2311 = vld [vmem:[%s1899 + $0x2e9] sm:$0xff]
        %v2312 = vld [vmem:[%s1899 + $0x2f1] sm:$0xff]
        %v2313 = vld [vmem:[%s1899 + $0x2f9] sm:$0x3]
        %v2314 = vld [vmem:[%s1899 + $0x301] sm:$0xff]
        %v2315 = vld [vmem:[%s1899 + $0x309] sm:$0xff]
        %v2316 = vld [vmem:[%s1899 + $0x311] sm:$0xff]
        %v2317 = vld [vmem:[%s1899 + $0x319] sm:$0x3]
        %v2318 = vld [vmem:[%s1899 + $0x321] sm:$0xff]
        %v2319 = vld [vmem:[%s1899 + $0x329] sm:$0xff]
        %v2320 = vld [vmem:[%s1899 + $0x331] sm:$0xff]
        %v2321 = vld [vmem:[%s1899 + $0x339] sm:$0x3]
        %v2322 = vld [vmem:[%s2004 + $0x1] sm:$0x1]
        %v2323 = vlaneseq
        %v2324 = vshrl.u32 %v2323, 7
        %v2325 = vsub.s32 0, %v2324
        %v2326 = vrot.slane %v2322, %v2325
        %v2327 = vmul.f32 %v2218, %v2326
        %v2328 = vmul.f32 %v2219, %v2326
        %v2329 = vmul.f32 %v2220, %v2326
        %v2330 = vmul.f32 %v2221, %v2326
        %v2331 = vmul.f32 %v2222, %v2326
        %v2332 = vmul.f32 %v2223, %v2326
        %v2333 = vmul.f32 %v2224, %v2326
        %v2334 = vmul.f32 %v2225, %v2326
        %v2335 = vmul.f32 %v2226, %v2326
        %v2336 = vmul.f32 %v2227, %v2326
        %v2337 = vmul.f32 %v2228, %v2326
        %v2338 = vmul.f32 %v2229, %v2326
        %v2339 = vmul.f32 %v2230, %v2326
        %v2340 = vmul.f32 %v2231, %v2326
        %v2341 = vmul.f32 %v2232, %v2326
        %v2342 = vmul.f32 %v2233, %v2326
        %v2343 = vmul.f32 %v2234, %v2326
        %v2344 = vmul.f32 %v2235, %v2326
        %v2345 = vmul.f32 %v2236, %v2326
        %v2346 = vmul.f32 %v2237, %v2326
        %v2347 = vmul.f32 %v2238, %v2326
        %v2348 = vmul.f32 %v2239, %v2326
        %v2349 = vmul.f32 %v2240, %v2326
        %v2350 = vmul.f32 %v2241, %v2326
        %v2351 = vmul.f32 %v2242, %v2326
        %v2352 = vmul.f32 %v2243, %v2326
        %v2353 = vmul.f32 %v2244, %v2326
        %v2354 = vmul.f32 %v2245, %v2326
        %v2355 = vmul.f32 %v2246, %v2326
        %v2356 = vmul.f32 %v2247, %v2326
        %v2357 = vmul.f32 %v2248, %v2326
        %v2358 = vmul.f32 %v2249, %v2326
        %v2359 = vmul.f32 %v2250, %v2326
        %v2360 = vmul.f32 %v2251, %v2326
        %v2361 = vmul.f32 %v2252, %v2326
        %v2362 = vmul.f32 %v2253, %v2326
        %v2363 = vmul.f32 %v2254, %v2326
        %v2364 = vmul.f32 %v2255, %v2326
        %v2365 = vmul.f32 %v2256, %v2326
        %v2366 = vmul.f32 %v2257, %v2326
        %v2367 = vmul.f32 %v2258, %v2326
        %v2368 = vmul.f32 %v2259, %v2326
        %v2369 = vmul.f32 %v2260, %v2326
        %v2370 = vmul.f32 %v2261, %v2326
        %v2371 = vmul.f32 %v2262, %v2326
        %v2372 = vmul.f32 %v2263, %v2326
        %v2373 = vmul.f32 %v2264, %v2326
        %v2374 = vmul.f32 %v2265, %v2326
        %v2375 = vmul.f32 %v2266, %v2326
        %v2376 = vmul.f32 %v2267, %v2326
        %v2377 = vmul.f32 %v2268, %v2326
        %v2378 = vmul.f32 %v2269, %v2326
        %v2379 = vmul.f32 %v2270, %v2326
        %v2380 = vmul.f32 %v2271, %v2326
        %v2381 = vmul.f32 %v2272, %v2326
        %v2382 = vmul.f32 %v2273, %v2326
        %v2383 = vmul.f32 %v2274, %v2326
        %v2384 = vmul.f32 %v2275, %v2326
        %v2385 = vmul.f32 %v2276, %v2326
        %v2386 = vmul.f32 %v2277, %v2326
        %v2387 = vmul.f32 %v2278, %v2326
        %v2388 = vmul.f32 %v2279, %v2326
        %v2389 = vmul.f32 %v2280, %v2326
        %v2390 = vmul.f32 %v2281, %v2326
        %v2391 = vmul.f32 %v2282, %v2326
        %v2392 = vmul.f32 %v2283, %v2326
        %v2393 = vmul.f32 %v2284, %v2326
        %v2394 = vmul.f32 %v2285, %v2326
        %v2395 = vmul.f32 %v2286, %v2326
        %v2396 = vmul.f32 %v2287, %v2326
        %v2397 = vmul.f32 %v2288, %v2326
        %v2398 = vmul.f32 %v2289, %v2326
        %v2399 = vmul.f32 %v2290, %v2326
        %v2400 = vmul.f32 %v2291, %v2326
        %v2401 = vmul.f32 %v2292, %v2326
        %v2402 = vmul.f32 %v2293, %v2326
        %v2403 = vmul.f32 %v2294, %v2326
        %v2404 = vmul.f32 %v2295, %v2326
        %v2405 = vmul.f32 %v2296, %v2326
        %v2406 = vmul.f32 %v2297, %v2326
        %v2407 = vmul.f32 %v2298, %v2326
        %v2408 = vmul.f32 %v2299, %v2326
        %v2409 = vmul.f32 %v2300, %v2326
        %v2410 = vmul.f32 %v2301, %v2326
        %v2411 = vmul.f32 %v2302, %v2326
        %v2412 = vmul.f32 %v2303, %v2326
        %v2413 = vmul.f32 %v2304, %v2326
        %v2414 = vmul.f32 %v2305, %v2326
        %v2415 = vmul.f32 %v2306, %v2326
        %v2416 = vmul.f32 %v2307, %v2326
        %v2417 = vmul.f32 %v2308, %v2326
        %v2418 = vmul.f32 %v2309, %v2326
        %v2419 = vmul.f32 %v2310, %v2326
        %v2420 = vmul.f32 %v2311, %v2326
        %v2421 = vmul.f32 %v2312, %v2326
        %v2422 = vmul.f32 %v2313, %v2326
        %v2423 = vmul.f32 %v2314, %v2326
        %v2424 = vmul.f32 %v2315, %v2326
        %v2425 = vmul.f32 %v2316, %v2326
        %v2426 = vmul.f32 %v2317, %v2326
        %v2427 = vmul.f32 %v2318, %v2326
        %v2428 = vmul.f32 %v2319, %v2326
        %v2429 = vmul.f32 %v2320, %v2326
        %v2430 = vmul.f32 %v2321, %v2326
        %v2431 = vadd.f32 %v2114, %v2327
        %v2432 = vadd.f32 %v2115, %v2328
        %v2433 = vadd.f32 %v2116, %v2329
        %v2434 = vadd.f32 %v2117, %v2330
        %v2435 = vadd.f32 %v2118, %v2331
        %v2436 = vadd.f32 %v2119, %v2332
        %v2437 = vadd.f32 %v2120, %v2333
        %v2438 = vadd.f32 %v2121, %v2334
        %v2439 = vadd.f32 %v2122, %v2335
        %v2440 = vadd.f32 %v2123, %v2336
        %v2441 = vadd.f32 %v2124, %v2337
        %v2442 = vadd.f32 %v2125, %v2338
        %v2443 = vadd.f32 %v2126, %v2339
        %v2444 = vadd.f32 %v2127, %v2340
        %v2445 = vadd.f32 %v2128, %v2341
        %v2446 = vadd.f32 %v2129, %v2342
        %v2447 = vadd.f32 %v2130, %v2343
        %v2448 = vadd.f32 %v2131, %v2344
        %v2449 = vadd.f32 %v2132, %v2345
        %v2450 = vadd.f32 %v2133, %v2346
        %v2451 = vadd.f32 %v2134, %v2347
        %v2452 = vadd.f32 %v2135, %v2348
        %v2453 = vadd.f32 %v2136, %v2349
        %v2454 = vadd.f32 %v2137, %v2350
        %v2455 = vadd.f32 %v2138, %v2351
        %v2456 = vadd.f32 %v2139, %v2352
        %v2457 = vadd.f32 %v2140, %v2353
        %v2458 = vadd.f32 %v2141, %v2354
        %v2459 = vadd.f32 %v2142, %v2355
        %v2460 = vadd.f32 %v2143, %v2356
        %v2461 = vadd.f32 %v2144, %v2357
        %v2462 = vadd.f32 %v2145, %v2358
        %v2463 = vadd.f32 %v2146, %v2359
        %v2464 = vadd.f32 %v2147, %v2360
        %v2465 = vadd.f32 %v2148, %v2361
        %v2466 = vadd.f32 %v2149, %v2362
        %v2467 = vadd.f32 %v2150, %v2363
        %v2468 = vadd.f32 %v2151, %v2364
        %v2469 = vadd.f32 %v2152, %v2365
        %v2470 = vadd.f32 %v2153, %v2366
        %v2471 = vadd.f32 %v2154, %v2367
        %v2472 = vadd.f32 %v2155, %v2368
        %v2473 = vadd.f32 %v2156, %v2369
        %v2474 = vadd.f32 %v2157, %v2370
        %v2475 = vadd.f32 %v2158, %v2371
        %v2476 = vadd.f32 %v2159, %v2372
        %v2477 = vadd.f32 %v2160, %v2373
        %v2478 = vadd.f32 %v2161, %v2374
        %v2479 = vadd.f32 %v2162, %v2375
        %v2480 = vadd.f32 %v2163, %v2376
        %v2481 = vadd.f32 %v2164, %v2377
        %v2482 = vadd.f32 %v2165, %v2378
        %v2483 = vadd.f32 %v2166, %v2379
        %v2484 = vadd.f32 %v2167, %v2380
        %v2485 = vadd.f32 %v2168, %v2381
        %v2486 = vadd.f32 %v2169, %v2382
        %v2487 = vadd.f32 %v2170, %v2383
        %v2488 = vadd.f32 %v2171, %v2384
        %v2489 = vadd.f32 %v2172, %v2385
        %v2490 = vadd.f32 %v2173, %v2386
        %v2491 = vadd.f32 %v2174, %v2387
        %v2492 = vadd.f32 %v2175, %v2388
        %v2493 = vadd.f32 %v2176, %v2389
        %v2494 = vadd.f32 %v2177, %v2390
        %v2495 = vadd.f32 %v2178, %v2391
        %v2496 = vadd.f32 %v2179, %v2392
        %v2497 = vadd.f32 %v2180, %v2393
        %v2498 = vadd.f32 %v2181, %v2394
        %v2499 = vadd.f32 %v2182, %v2395
        %v2500 = vadd.f32 %v2183, %v2396
        %v2501 = vadd.f32 %v2184, %v2397
        %v2502 = vadd.f32 %v2185, %v2398
        %v2503 = vadd.f32 %v2186, %v2399
        %v2504 = vadd.f32 %v2187, %v2400
        %v2505 = vadd.f32 %v2188, %v2401
        %v2506 = vadd.f32 %v2189, %v2402
        %v2507 = vadd.f32 %v2190, %v2403
        %v2508 = vadd.f32 %v2191, %v2404
        %v2509 = vadd.f32 %v2192, %v2405
        %v2510 = vadd.f32 %v2193, %v2406
        %v2511 = vadd.f32 %v2194, %v2407
        %v2512 = vadd.f32 %v2195, %v2408
        %v2513 = vadd.f32 %v2196, %v2409
        %v2514 = vadd.f32 %v2197, %v2410
        %v2515 = vadd.f32 %v2198, %v2411
        %v2516 = vadd.f32 %v2199, %v2412
        %v2517 = vadd.f32 %v2200, %v2413
        %v2518 = vadd.f32 %v2201, %v2414
        %v2519 = vadd.f32 %v2202, %v2415
        %v2520 = vadd.f32 %v2203, %v2416
        %v2521 = vadd.f32 %v2204, %v2417
        %v2522 = vadd.f32 %v2205, %v2418
        %v2523 = vadd.f32 %v2206, %v2419
        %v2524 = vadd.f32 %v2207, %v2420
        %v2525 = vadd.f32 %v2208, %v2421
        %v2526 = vadd.f32 %v2209, %v2422
        %v2527 = vadd.f32 %v2210, %v2423
        %v2528 = vadd.f32 %v2211, %v2424
        %v2529 = vadd.f32 %v2212, %v2425
        %v2530 = vadd.f32 %v2213, %v2426
        %v2531 = vadd.f32 %v2214, %v2427
        %v2532 = vadd.f32 %v2215, %v2428
        %v2533 = vadd.f32 %v2216, %v2429
        %v2534 = vadd.f32 %v2217, %v2430
        %v2535 = vld [vmem:[%s1899 + $0x2] sm:$0xff]
        %v2536 = vld [vmem:[%s1899 + $0xa] sm:$0xff]
        %v2537 = vld [vmem:[%s1899 + $0x12] sm:$0xff]
        %v2538 = vld [vmem:[%s1899 + $0x1a] sm:$0x3]
        %v2539 = vld [vmem:[%s1899 + $0x22] sm:$0xff]
        %v2540 = vld [vmem:[%s1899 + $0x2a] sm:$0xff]
        %v2541 = vld [vmem:[%s1899 + $0x32] sm:$0xff]
        %v2542 = vld [vmem:[%s1899 + $0x3a] sm:$0x3]
        %v2543 = vld [vmem:[%s1899 + $0x42] sm:$0xff]
        %v2544 = vld [vmem:[%s1899 + $0x4a] sm:$0xff]
        %v2545 = vld [vmem:[%s1899 + $0x52] sm:$0xff]
        %v2546 = vld [vmem:[%s1899 + $0x5a] sm:$0x3]
        %v2547 = vld [vmem:[%s1899 + $0x62] sm:$0xff]
        %v2548 = vld [vmem:[%s1899 + $0x6a] sm:$0xff]
        %v2549 = vld [vmem:[%s1899 + $0x72] sm:$0xff]
        %v2550 = vld [vmem:[%s1899 + $0x7a] sm:$0x3]
        %v2551 = vld [vmem:[%s1899 + $0x82] sm:$0xff]
        %v2552 = vld [vmem:[%s1899 + $0x8a] sm:$0xff]
        %v2553 = vld [vmem:[%s1899 + $0x92] sm:$0xff]
        %v2554 = vld [vmem:[%s1899 + $0x9a] sm:$0x3]
        %v2555 = vld [vmem:[%s1899 + $0xa2] sm:$0xff]
        %v2556 = vld [vmem:[%s1899 + $0xaa] sm:$0xff]
        %v2557 = vld [vmem:[%s1899 + $0xb2] sm:$0xff]
        %v2558 = vld [vmem:[%s1899 + $0xba] sm:$0x3]
        %v2559 = vld [vmem:[%s1899 + $0xc2] sm:$0xff]
        %v2560 = vld [vmem:[%s1899 + $0xca] sm:$0xff]
        %v2561 = vld [vmem:[%s1899 + $0xd2] sm:$0xff]
        %v2562 = vld [vmem:[%s1899 + $0xda] sm:$0x3]
        %v2563 = vld [vmem:[%s1899 + $0xe2] sm:$0xff]
        %v2564 = vld [vmem:[%s1899 + $0xea] sm:$0xff]
        %v2565 = vld [vmem:[%s1899 + $0xf2] sm:$0xff]
        %v2566 = vld [vmem:[%s1899 + $0xfa] sm:$0x3]
        %v2567 = vld [vmem:[%s1899 + $0x102] sm:$0xff]
        %v2568 = vld [vmem:[%s1899 + $0x10a] sm:$0xff]
        %v2569 = vld [vmem:[%s1899 + $0x112] sm:$0xff]
        %v2570 = vld [vmem:[%s1899 + $0x11a] sm:$0x3]
        %v2571 = vld [vmem:[%s1899 + $0x122] sm:$0xff]
        %v2572 = vld [vmem:[%s1899 + $0x12a] sm:$0xff]
        %v2573 = vld [vmem:[%s1899 + $0x132] sm:$0xff]
        %v2574 = vld [vmem:[%s1899 + $0x13a] sm:$0x3]
        %v2575 = vld [vmem:[%s1899 + $0x142] sm:$0xff]
        %v2576 = vld [vmem:[%s1899 + $0x14a] sm:$0xff]
        %v2577 = vld [vmem:[%s1899 + $0x152] sm:$0xff]
        %v2578 = vld [vmem:[%s1899 + $0x15a] sm:$0x3]
        %v2579 = vld [vmem:[%s1899 + $0x162] sm:$0xff]
        %v2580 = vld [vmem:[%s1899 + $0x16a] sm:$0xff]
        %v2581 = vld [vmem:[%s1899 + $0x172] sm:$0xff]
        %v2582 = vld [vmem:[%s1899 + $0x17a] sm:$0x3]
        %v2583 = vld [vmem:[%s1899 + $0x182] sm:$0xff]
        %v2584 = vld [vmem:[%s1899 + $0x18a] sm:$0xff]
        %v2585 = vld [vmem:[%s1899 + $0x192] sm:$0xff]
        %v2586 = vld [vmem:[%s1899 + $0x19a] sm:$0x3]
        %v2587 = vld [vmem:[%s1899 + $0x1a2] sm:$0xff]
        %v2588 = vld [vmem:[%s1899 + $0x1aa] sm:$0xff]
        %v2589 = vld [vmem:[%s1899 + $0x1b2] sm:$0xff]
        %v2590 = vld [vmem:[%s1899 + $0x1ba] sm:$0x3]
        %v2591 = vld [vmem:[%s1899 + $0x1c2] sm:$0xff]
        %v2592 = vld [vmem:[%s1899 + $0x1ca] sm:$0xff]
        %v2593 = vld [vmem:[%s1899 + $0x1d2] sm:$0xff]
        %v2594 = vld [vmem:[%s1899 + $0x1da] sm:$0x3]
        %v2595 = vld [vmem:[%s1899 + $0x1e2] sm:$0xff]
        %v2596 = vld [vmem:[%s1899 + $0x1ea] sm:$0xff]
        %v2597 = vld [vmem:[%s1899 + $0x1f2] sm:$0xff]
        %v2598 = vld [vmem:[%s1899 + $0x1fa] sm:$0x3]
        %v2599 = vld [vmem:[%s1899 + $0x202] sm:$0xff]
        %v2600 = vld [vmem:[%s1899 + $0x20a] sm:$0xff]
        %v2601 = vld [vmem:[%s1899 + $0x212] sm:$0xff]
        %v2602 = vld [vmem:[%s1899 + $0x21a] sm:$0x3]
        %v2603 = vld [vmem:[%s1899 + $0x222] sm:$0xff]
        %v2604 = vld [vmem:[%s1899 + $0x22a] sm:$0xff]
        %v2605 = vld [vmem:[%s1899 + $0x232] sm:$0xff]
        %v2606 = vld [vmem:[%s1899 + $0x23a] sm:$0x3]
        %v2607 = vld [vmem:[%s1899 + $0x242] sm:$0xff]
        %v2608 = vld [vmem:[%s1899 + $0x24a] sm:$0xff]
        %v2609 = vld [vmem:[%s1899 + $0x252] sm:$0xff]
        %v2610 = vld [vmem:[%s1899 + $0x25a] sm:$0x3]
        %v2611 = vld [vmem:[%s1899 + $0x262] sm:$0xff]
        %v2612 = vld [vmem:[%s1899 + $0x26a] sm:$0xff]
        %v2613 = vld [vmem:[%s1899 + $0x272] sm:$0xff]
        %v2614 = vld [vmem:[%s1899 + $0x27a] sm:$0x3]
        %v2615 = vld [vmem:[%s1899 + $0x282] sm:$0xff]
        %v2616 = vld [vmem:[%s1899 + $0x28a] sm:$0xff]
        %v2617 = vld [vmem:[%s1899 + $0x292] sm:$0xff]
        %v2618 = vld [vmem:[%s1899 + $0x29a] sm:$0x3]
        %v2619 = vld [vmem:[%s1899 + $0x2a2] sm:$0xff]
        %v2620 = vld [vmem:[%s1899 + $0x2aa] sm:$0xff]
        %v2621 = vld [vmem:[%s1899 + $0x2b2] sm:$0xff]
        %v2622 = vld [vmem:[%s1899 + $0x2ba] sm:$0x3]
        %v2623 = vld [vmem:[%s1899 + $0x2c2] sm:$0xff]
        %v2624 = vld [vmem:[%s1899 + $0x2ca] sm:$0xff]
        %v2625 = vld [vmem:[%s1899 + $0x2d2] sm:$0xff]
        %v2626 = vld [vmem:[%s1899 + $0x2da] sm:$0x3]
        %v2627 = vld [vmem:[%s1899 + $0x2e2] sm:$0xff]
        %v2628 = vld [vmem:[%s1899 + $0x2ea] sm:$0xff]
        %v2629 = vld [vmem:[%s1899 + $0x2f2] sm:$0xff]
        %v2630 = vld [vmem:[%s1899 + $0x2fa] sm:$0x3]
        %v2631 = vld [vmem:[%s1899 + $0x302] sm:$0xff]
        %v2632 = vld [vmem:[%s1899 + $0x30a] sm:$0xff]
        %v2633 = vld [vmem:[%s1899 + $0x312] sm:$0xff]
        %v2634 = vld [vmem:[%s1899 + $0x31a] sm:$0x3]
        %v2635 = vld [vmem:[%s1899 + $0x322] sm:$0xff]
        %v2636 = vld [vmem:[%s1899 + $0x32a] sm:$0xff]
        %v2637 = vld [vmem:[%s1899 + $0x332] sm:$0xff]
        %v2638 = vld [vmem:[%s1899 + $0x33a] sm:$0x3]
        %v2639 = vld [vmem:[%s2004 + $0x2] sm:$0x1]
        %v2640 = vlaneseq
        %v2641 = vshrl.u32 %v2640, 7
        %v2642 = vsub.s32 0, %v2641
        %v2643 = vrot.slane %v2639, %v2642
        %v2644 = vmul.f32 %v2535, %v2643
        %v2645 = vmul.f32 %v2536, %v2643
        %v2646 = vmul.f32 %v2537, %v2643
        %v2647 = vmul.f32 %v2538, %v2643
        %v2648 = vmul.f32 %v2539, %v2643
        %v2649 = vmul.f32 %v2540, %v2643
        %v2650 = vmul.f32 %v2541, %v2643
        %v2651 = vmul.f32 %v2542, %v2643
        %v2652 = vmul.f32 %v2543, %v2643
        %v2653 = vmul.f32 %v2544, %v2643
        %v2654 = vmul.f32 %v2545, %v2643
        %v2655 = vmul.f32 %v2546, %v2643
        %v2656 = vmul.f32 %v2547, %v2643
        %v2657 = vmul.f32 %v2548, %v2643
        %v2658 = vmul.f32 %v2549, %v2643
        %v2659 = vmul.f32 %v2550, %v2643
        %v2660 = vmul.f32 %v2551, %v2643
        %v2661 = vmul.f32 %v2552, %v2643
        %v2662 = vmul.f32 %v2553, %v2643
        %v2663 = vmul.f32 %v2554, %v2643
        %v2664 = vmul.f32 %v2555, %v2643
        %v2665 = vmul.f32 %v2556, %v2643
        %v2666 = vmul.f32 %v2557, %v2643
        %v2667 = vmul.f32 %v2558, %v2643
        %v2668 = vmul.f32 %v2559, %v2643
        %v2669 = vmul.f32 %v2560, %v2643
        %v2670 = vmul.f32 %v2561, %v2643
        %v2671 = vmul.f32 %v2562, %v2643
        %v2672 = vmul.f32 %v2563, %v2643
        %v2673 = vmul.f32 %v2564, %v2643
        %v2674 = vmul.f32 %v2565, %v2643
        %v2675 = vmul.f32 %v2566, %v2643
        %v2676 = vmul.f32 %v2567, %v2643
        %v2677 = vmul.f32 %v2568, %v2643
        %v2678 = vmul.f32 %v2569, %v2643
        %v2679 = vmul.f32 %v2570, %v2643
        %v2680 = vmul.f32 %v2571, %v2643
        %v2681 = vmul.f32 %v2572, %v2643
        %v2682 = vmul.f32 %v2573, %v2643
        %v2683 = vmul.f32 %v2574, %v2643
        %v2684 = vmul.f32 %v2575, %v2643
        %v2685 = vmul.f32 %v2576, %v2643
        %v2686 = vmul.f32 %v2577, %v2643
        %v2687 = vmul.f32 %v2578, %v2643
        %v2688 = vmul.f32 %v2579, %v2643
        %v2689 = vmul.f32 %v2580, %v2643
        %v2690 = vmul.f32 %v2581, %v2643
        %v2691 = vmul.f32 %v2582, %v2643
        %v2692 = vmul.f32 %v2583, %v2643
        %v2693 = vmul.f32 %v2584, %v2643
        %v2694 = vmul.f32 %v2585, %v2643
        %v2695 = vmul.f32 %v2586, %v2643
        %v2696 = vmul.f32 %v2587, %v2643
        %v2697 = vmul.f32 %v2588, %v2643
        %v2698 = vmul.f32 %v2589, %v2643
        %v2699 = vmul.f32 %v2590, %v2643
        %v2700 = vmul.f32 %v2591, %v2643
        %v2701 = vmul.f32 %v2592, %v2643
        %v2702 = vmul.f32 %v2593, %v2643
        %v2703 = vmul.f32 %v2594, %v2643
        %v2704 = vmul.f32 %v2595, %v2643
        %v2705 = vmul.f32 %v2596, %v2643
        %v2706 = vmul.f32 %v2597, %v2643
        %v2707 = vmul.f32 %v2598, %v2643
        %v2708 = vmul.f32 %v2599, %v2643
        %v2709 = vmul.f32 %v2600, %v2643
        %v2710 = vmul.f32 %v2601, %v2643
        %v2711 = vmul.f32 %v2602, %v2643
        %v2712 = vmul.f32 %v2603, %v2643
        %v2713 = vmul.f32 %v2604, %v2643
        %v2714 = vmul.f32 %v2605, %v2643
        %v2715 = vmul.f32 %v2606, %v2643
        %v2716 = vmul.f32 %v2607, %v2643
        %v2717 = vmul.f32 %v2608, %v2643
        %v2718 = vmul.f32 %v2609, %v2643
        %v2719 = vmul.f32 %v2610, %v2643
        %v2720 = vmul.f32 %v2611, %v2643
        %v2721 = vmul.f32 %v2612, %v2643
        %v2722 = vmul.f32 %v2613, %v2643
        %v2723 = vmul.f32 %v2614, %v2643
        %v2724 = vmul.f32 %v2615, %v2643
        %v2725 = vmul.f32 %v2616, %v2643
        %v2726 = vmul.f32 %v2617, %v2643
        %v2727 = vmul.f32 %v2618, %v2643
        %v2728 = vmul.f32 %v2619, %v2643
        %v2729 = vmul.f32 %v2620, %v2643
        %v2730 = vmul.f32 %v2621, %v2643
        %v2731 = vmul.f32 %v2622, %v2643
        %v2732 = vmul.f32 %v2623, %v2643
        %v2733 = vmul.f32 %v2624, %v2643
        %v2734 = vmul.f32 %v2625, %v2643
        %v2735 = vmul.f32 %v2626, %v2643
        %v2736 = vmul.f32 %v2627, %v2643
        %v2737 = vmul.f32 %v2628, %v2643
        %v2738 = vmul.f32 %v2629, %v2643
        %v2739 = vmul.f32 %v2630, %v2643
        %v2740 = vmul.f32 %v2631, %v2643
        %v2741 = vmul.f32 %v2632, %v2643
        %v2742 = vmul.f32 %v2633, %v2643
        %v2743 = vmul.f32 %v2634, %v2643
        %v2744 = vmul.f32 %v2635, %v2643
        %v2745 = vmul.f32 %v2636, %v2643
        %v2746 = vmul.f32 %v2637, %v2643
        %v2747 = vmul.f32 %v2638, %v2643
        %v2748 = vadd.f32 %v2431, %v2644
        %v2749 = vadd.f32 %v2432, %v2645
        %v2750 = vadd.f32 %v2433, %v2646
        %v2751 = vadd.f32 %v2434, %v2647
        %v2752 = vadd.f32 %v2435, %v2648
        %v2753 = vadd.f32 %v2436, %v2649
        %v2754 = vadd.f32 %v2437, %v2650
        %v2755 = vadd.f32 %v2438, %v2651
        %v2756 = vadd.f32 %v2439, %v2652
        %v2757 = vadd.f32 %v2440, %v2653
        %v2758 = vadd.f32 %v2441, %v2654
        %v2759 = vadd.f32 %v2442, %v2655
        %v2760 = vadd.f32 %v2443, %v2656
        %v2761 = vadd.f32 %v2444, %v2657
        %v2762 = vadd.f32 %v2445, %v2658
        %v2763 = vadd.f32 %v2446, %v2659
        %v2764 = vadd.f32 %v2447, %v2660
        %v2765 = vadd.f32 %v2448, %v2661
        %v2766 = vadd.f32 %v2449, %v2662
        %v2767 = vadd.f32 %v2450, %v2663
        %v2768 = vadd.f32 %v2451, %v2664
        %v2769 = vadd.f32 %v2452, %v2665
        %v2770 = vadd.f32 %v2453, %v2666
        %v2771 = vadd.f32 %v2454, %v2667
        %v2772 = vadd.f32 %v2455, %v2668
        %v2773 = vadd.f32 %v2456, %v2669
        %v2774 = vadd.f32 %v2457, %v2670
        %v2775 = vadd.f32 %v2458, %v2671
        %v2776 = vadd.f32 %v2459, %v2672
        %v2777 = vadd.f32 %v2460, %v2673
        %v2778 = vadd.f32 %v2461, %v2674
        %v2779 = vadd.f32 %v2462, %v2675
        %v2780 = vadd.f32 %v2463, %v2676
        %v2781 = vadd.f32 %v2464, %v2677
        %v2782 = vadd.f32 %v2465, %v2678
        %v2783 = vadd.f32 %v2466, %v2679
        %v2784 = vadd.f32 %v2467, %v2680
        %v2785 = vadd.f32 %v2468, %v2681
        %v2786 = vadd.f32 %v2469, %v2682
        %v2787 = vadd.f32 %v2470, %v2683
        %v2788 = vadd.f32 %v2471, %v2684
        %v2789 = vadd.f32 %v2472, %v2685
        %v2790 = vadd.f32 %v2473, %v2686
        %v2791 = vadd.f32 %v2474, %v2687
        %v2792 = vadd.f32 %v2475, %v2688
        %v2793 = vadd.f32 %v2476, %v2689
        %v2794 = vadd.f32 %v2477, %v2690
        %v2795 = vadd.f32 %v2478, %v2691
        %v2796 = vadd.f32 %v2479, %v2692
        %v2797 = vadd.f32 %v2480, %v2693
        %v2798 = vadd.f32 %v2481, %v2694
        %v2799 = vadd.f32 %v2482, %v2695
        %v2800 = vadd.f32 %v2483, %v2696
        %v2801 = vadd.f32 %v2484, %v2697
        %v2802 = vadd.f32 %v2485, %v2698
        %v2803 = vadd.f32 %v2486, %v2699
        %v2804 = vadd.f32 %v2487, %v2700
        %v2805 = vadd.f32 %v2488, %v2701
        %v2806 = vadd.f32 %v2489, %v2702
        %v2807 = vadd.f32 %v2490, %v2703
        %v2808 = vadd.f32 %v2491, %v2704
        %v2809 = vadd.f32 %v2492, %v2705
        %v2810 = vadd.f32 %v2493, %v2706
        %v2811 = vadd.f32 %v2494, %v2707
        %v2812 = vadd.f32 %v2495, %v2708
        %v2813 = vadd.f32 %v2496, %v2709
        %v2814 = vadd.f32 %v2497, %v2710
        %v2815 = vadd.f32 %v2498, %v2711
        %v2816 = vadd.f32 %v2499, %v2712
        %v2817 = vadd.f32 %v2500, %v2713
        %v2818 = vadd.f32 %v2501, %v2714
        %v2819 = vadd.f32 %v2502, %v2715
        %v2820 = vadd.f32 %v2503, %v2716
        %v2821 = vadd.f32 %v2504, %v2717
        %v2822 = vadd.f32 %v2505, %v2718
        %v2823 = vadd.f32 %v2506, %v2719
        %v2824 = vadd.f32 %v2507, %v2720
        %v2825 = vadd.f32 %v2508, %v2721
        %v2826 = vadd.f32 %v2509, %v2722
        %v2827 = vadd.f32 %v2510, %v2723
        %v2828 = vadd.f32 %v2511, %v2724
        %v2829 = vadd.f32 %v2512, %v2725
        %v2830 = vadd.f32 %v2513, %v2726
        %v2831 = vadd.f32 %v2514, %v2727
        %v2832 = vadd.f32 %v2515, %v2728
        %v2833 = vadd.f32 %v2516, %v2729
        %v2834 = vadd.f32 %v2517, %v2730
        %v2835 = vadd.f32 %v2518, %v2731
        %v2836 = vadd.f32 %v2519, %v2732
        %v2837 = vadd.f32 %v2520, %v2733
        %v2838 = vadd.f32 %v2521, %v2734
        %v2839 = vadd.f32 %v2522, %v2735
        %v2840 = vadd.f32 %v2523, %v2736
        %v2841 = vadd.f32 %v2524, %v2737
        %v2842 = vadd.f32 %v2525, %v2738
        %v2843 = vadd.f32 %v2526, %v2739
        %v2844 = vadd.f32 %v2527, %v2740
        %v2845 = vadd.f32 %v2528, %v2741
        %v2846 = vadd.f32 %v2529, %v2742
        %v2847 = vadd.f32 %v2530, %v2743
        %v2848 = vadd.f32 %v2531, %v2744
        %v2849 = vadd.f32 %v2532, %v2745
        %v2850 = vadd.f32 %v2533, %v2746
        %v2851 = vadd.f32 %v2534, %v2747
        %s2852 = scalar_lea.vmem [#allocation2], 64
        %v2853 = vld [vmem:[%s2852] sm:$0xff]
        %v2854 = vld [vmem:[%s2852 + $0x8] sm:$0xff]
        %v2855 = vld [vmem:[%s2852 + $0x10] sm:$0xff]
        %v2856 = vld [vmem:[%s2852 + $0x18] sm:$0x3]
        %v2857 = vld [vmem:[%s2852 + $0x20] sm:$0xff]
        %v2858 = vld [vmem:[%s2852 + $0x28] sm:$0xff]
        %v2859 = vld [vmem:[%s2852 + $0x30] sm:$0xff]
        %v2860 = vld [vmem:[%s2852 + $0x38] sm:$0x3]
        %v2861 = vld [vmem:[%s2852 + $0x40] sm:$0xff]
        %v2862 = vld [vmem:[%s2852 + $0x48] sm:$0xff]
        %v2863 = vld [vmem:[%s2852 + $0x50] sm:$0xff]
        %v2864 = vld [vmem:[%s2852 + $0x58] sm:$0x3]
        %v2865 = vld [vmem:[%s2852 + $0x60] sm:$0xff]
        %v2866 = vld [vmem:[%s2852 + $0x68] sm:$0xff]
        %v2867 = vld [vmem:[%s2852 + $0x70] sm:$0xff]
        %v2868 = vld [vmem:[%s2852 + $0x78] sm:$0x3]
        %v2869 = vld [vmem:[%s2852 + $0x80] sm:$0xff]
        %v2870 = vld [vmem:[%s2852 + $0x88] sm:$0xff]
        %v2871 = vld [vmem:[%s2852 + $0x90] sm:$0xff]
        %v2872 = vld [vmem:[%s2852 + $0x98] sm:$0x3]
        %v2873 = vld [vmem:[%s2852 + $0xa0] sm:$0xff]
        %v2874 = vld [vmem:[%s2852 + $0xa8] sm:$0xff]
        %v2875 = vld [vmem:[%s2852 + $0xb0] sm:$0xff]
        %v2876 = vld [vmem:[%s2852 + $0xb8] sm:$0x3]
        %v2877 = vld [vmem:[%s2852 + $0xc0] sm:$0xff]
        %v2878 = vld [vmem:[%s2852 + $0xc8] sm:$0xff]
        %v2879 = vld [vmem:[%s2852 + $0xd0] sm:$0xff]
        %v2880 = vld [vmem:[%s2852 + $0xd8] sm:$0x3]
        %v2881 = vld [vmem:[%s2852 + $0xe0] sm:$0xff]
        %v2882 = vld [vmem:[%s2852 + $0xe8] sm:$0xff]
        %v2883 = vld [vmem:[%s2852 + $0xf0] sm:$0xff]
        %v2884 = vld [vmem:[%s2852 + $0xf8] sm:$0x3]
        %v2885 = vld [vmem:[%s2852 + $0x100] sm:$0xff]
        %v2886 = vld [vmem:[%s2852 + $0x108] sm:$0xff]
        %v2887 = vld [vmem:[%s2852 + $0x110] sm:$0xff]
        %v2888 = vld [vmem:[%s2852 + $0x118] sm:$0x3]
        %v2889 = vld [vmem:[%s2852 + $0x120] sm:$0xff]
        %v2890 = vld [vmem:[%s2852 + $0x128] sm:$0xff]
        %v2891 = vld [vmem:[%s2852 + $0x130] sm:$0xff]
        %v2892 = vld [vmem:[%s2852 + $0x138] sm:$0x3]
        %v2893 = vld [vmem:[%s2852 + $0x140] sm:$0xff]
        %v2894 = vld [vmem:[%s2852 + $0x148] sm:$0xff]
        %v2895 = vld [vmem:[%s2852 + $0x150] sm:$0xff]
        %v2896 = vld [vmem:[%s2852 + $0x158] sm:$0x3]
        %v2897 = vld [vmem:[%s2852 + $0x160] sm:$0xff]
        %v2898 = vld [vmem:[%s2852 + $0x168] sm:$0xff]
        %v2899 = vld [vmem:[%s2852 + $0x170] sm:$0xff]
        %v2900 = vld [vmem:[%s2852 + $0x178] sm:$0x3]
        %v2901 = vld [vmem:[%s2852 + $0x180] sm:$0xff]
        %v2902 = vld [vmem:[%s2852 + $0x188] sm:$0xff]
        %v2903 = vld [vmem:[%s2852 + $0x190] sm:$0xff]
        %v2904 = vld [vmem:[%s2852 + $0x198] sm:$0x3]
        %v2905 = vld [vmem:[%s2852 + $0x1a0] sm:$0xff]
        %v2906 = vld [vmem:[%s2852 + $0x1a8] sm:$0xff]
        %v2907 = vld [vmem:[%s2852 + $0x1b0] sm:$0xff]
        %v2908 = vld [vmem:[%s2852 + $0x1b8] sm:$0x3]
        %v2909 = vld [vmem:[%s2852 + $0x1c0] sm:$0xff]
        %v2910 = vld [vmem:[%s2852 + $0x1c8] sm:$0xff]
        %v2911 = vld [vmem:[%s2852 + $0x1d0] sm:$0xff]
        %v2912 = vld [vmem:[%s2852 + $0x1d8] sm:$0x3]
        %v2913 = vld [vmem:[%s2852 + $0x1e0] sm:$0xff]
        %v2914 = vld [vmem:[%s2852 + $0x1e8] sm:$0xff]
        %v2915 = vld [vmem:[%s2852 + $0x1f0] sm:$0xff]
        %v2916 = vld [vmem:[%s2852 + $0x1f8] sm:$0x3]
        %v2917 = vld [vmem:[%s2852 + $0x200] sm:$0xff]
        %v2918 = vld [vmem:[%s2852 + $0x208] sm:$0xff]
        %v2919 = vld [vmem:[%s2852 + $0x210] sm:$0xff]
        %v2920 = vld [vmem:[%s2852 + $0x218] sm:$0x3]
        %v2921 = vld [vmem:[%s2852 + $0x220] sm:$0xff]
        %v2922 = vld [vmem:[%s2852 + $0x228] sm:$0xff]
        %v2923 = vld [vmem:[%s2852 + $0x230] sm:$0xff]
        %v2924 = vld [vmem:[%s2852 + $0x238] sm:$0x3]
        %v2925 = vld [vmem:[%s2852 + $0x240] sm:$0xff]
        %v2926 = vld [vmem:[%s2852 + $0x248] sm:$0xff]
        %v2927 = vld [vmem:[%s2852 + $0x250] sm:$0xff]
        %v2928 = vld [vmem:[%s2852 + $0x258] sm:$0x3]
        %v2929 = vld [vmem:[%s2852 + $0x260] sm:$0xff]
        %v2930 = vld [vmem:[%s2852 + $0x268] sm:$0xff]
        %v2931 = vld [vmem:[%s2852 + $0x270] sm:$0xff]
        %v2932 = vld [vmem:[%s2852 + $0x278] sm:$0x3]
        %v2933 = vld [vmem:[%s2852 + $0x280] sm:$0xff]
        %v2934 = vld [vmem:[%s2852 + $0x288] sm:$0xff]
        %v2935 = vld [vmem:[%s2852 + $0x290] sm:$0xff]
        %v2936 = vld [vmem:[%s2852 + $0x298] sm:$0x3]
        %v2937 = vld [vmem:[%s2852 + $0x2a0] sm:$0xff]
        %v2938 = vld [vmem:[%s2852 + $0x2a8] sm:$0xff]
        %v2939 = vld [vmem:[%s2852 + $0x2b0] sm:$0xff]
        %v2940 = vld [vmem:[%s2852 + $0x2b8] sm:$0x3]
        %v2941 = vld [vmem:[%s2852 + $0x2c0] sm:$0xff]
        %v2942 = vld [vmem:[%s2852 + $0x2c8] sm:$0xff]
        %v2943 = vld [vmem:[%s2852 + $0x2d0] sm:$0xff]
        %v2944 = vld [vmem:[%s2852 + $0x2d8] sm:$0x3]
        %v2945 = vld [vmem:[%s2852 + $0x2e0] sm:$0xff]
        %v2946 = vld [vmem:[%s2852 + $0x2e8] sm:$0xff]
        %v2947 = vld [vmem:[%s2852 + $0x2f0] sm:$0xff]
        %v2948 = vld [vmem:[%s2852 + $0x2f8] sm:$0x3]
        %v2949 = vld [vmem:[%s2852 + $0x300] sm:$0xff]
        %v2950 = vld [vmem:[%s2852 + $0x308] sm:$0xff]
        %v2951 = vld [vmem:[%s2852 + $0x310] sm:$0xff]
        %v2952 = vld [vmem:[%s2852 + $0x318] sm:$0x3]
        %v2953 = vld [vmem:[%s2852 + $0x320] sm:$0xff]
        %v2954 = vld [vmem:[%s2852 + $0x328] sm:$0xff]
        %v2955 = vld [vmem:[%s2852 + $0x330] sm:$0xff]
        %v2956 = vld [vmem:[%s2852 + $0x338] sm:$0x3]
        %s2957 = scalar_lea.vmem [#allocation6], 8
        %v2958 = vld [vmem:[%s2957] sm:$0x1]
        %v2959 = vlaneseq
        %v2960 = vshrl.u32 %v2959, 7
        %v2961 = vsub.s32 0, %v2960
        %v2962 = vrot.slane %v2958, %v2961
        %v2963 = vmul.f32 %v2853, %v2962
        %v2964 = vmul.f32 %v2854, %v2962
        %v2965 = vmul.f32 %v2855, %v2962
        %v2966 = vmul.f32 %v2856, %v2962
        %v2967 = vmul.f32 %v2857, %v2962
        %v2968 = vmul.f32 %v2858, %v2962
        %v2969 = vmul.f32 %v2859, %v2962
        %v2970 = vmul.f32 %v2860, %v2962
        %v2971 = vmul.f32 %v2861, %v2962
        %v2972 = vmul.f32 %v2862, %v2962
        %v2973 = vmul.f32 %v2863, %v2962
        %v2974 = vmul.f32 %v2864, %v2962
        %v2975 = vmul.f32 %v2865, %v2962
        %v2976 = vmul.f32 %v2866, %v2962
        %v2977 = vmul.f32 %v2867, %v2962
        %v2978 = vmul.f32 %v2868, %v2962
        %v2979 = vmul.f32 %v2869, %v2962
        %v2980 = vmul.f32 %v2870, %v2962
        %v2981 = vmul.f32 %v2871, %v2962
        %v2982 = vmul.f32 %v2872, %v2962
        %v2983 = vmul.f32 %v2873, %v2962
        %v2984 = vmul.f32 %v2874, %v2962
        %v2985 = vmul.f32 %v2875, %v2962
        %v2986 = vmul.f32 %v2876, %v2962
        %v2987 = vmul.f32 %v2877, %v2962
        %v2988 = vmul.f32 %v2878, %v2962
        %v2989 = vmul.f32 %v2879, %v2962
        %v2990 = vmul.f32 %v2880, %v2962
        %v2991 = vmul.f32 %v2881, %v2962
        %v2992 = vmul.f32 %v2882, %v2962
        %v2993 = vmul.f32 %v2883, %v2962
        %v2994 = vmul.f32 %v2884, %v2962
        %v2995 = vmul.f32 %v2885, %v2962
        %v2996 = vmul.f32 %v2886, %v2962
        %v2997 = vmul.f32 %v2887, %v2962
        %v2998 = vmul.f32 %v2888, %v2962
        %v2999 = vmul.f32 %v2889, %v2962
        %v3000 = vmul.f32 %v2890, %v2962
        %v3001 = vmul.f32 %v2891, %v2962
        %v3002 = vmul.f32 %v2892, %v2962
        %v3003 = vmul.f32 %v2893, %v2962
        %v3004 = vmul.f32 %v2894, %v2962
        %v3005 = vmul.f32 %v2895, %v2962
        %v3006 = vmul.f32 %v2896, %v2962
        %v3007 = vmul.f32 %v2897, %v2962
        %v3008 = vmul.f32 %v2898, %v2962
        %v3009 = vmul.f32 %v2899, %v2962
        %v3010 = vmul.f32 %v2900, %v2962
        %v3011 = vmul.f32 %v2901, %v2962
        %v3012 = vmul.f32 %v2902, %v2962
        %v3013 = vmul.f32 %v2903, %v2962
        %v3014 = vmul.f32 %v2904, %v2962
        %v3015 = vmul.f32 %v2905, %v2962
        %v3016 = vmul.f32 %v2906, %v2962
        %v3017 = vmul.f32 %v2907, %v2962
        %v3018 = vmul.f32 %v2908, %v2962
        %v3019 = vmul.f32 %v2909, %v2962
        %v3020 = vmul.f32 %v2910, %v2962
        %v3021 = vmul.f32 %v2911, %v2962
        %v3022 = vmul.f32 %v2912, %v2962
        %v3023 = vmul.f32 %v2913, %v2962
        %v3024 = vmul.f32 %v2914, %v2962
        %v3025 = vmul.f32 %v2915, %v2962
        %v3026 = vmul.f32 %v2916, %v2962
        %v3027 = vmul.f32 %v2917, %v2962
        %v3028 = vmul.f32 %v2918, %v2962
        %v3029 = vmul.f32 %v2919, %v2962
        %v3030 = vmul.f32 %v2920, %v2962
        %v3031 = vmul.f32 %v2921, %v2962
        %v3032 = vmul.f32 %v2922, %v2962
        %v3033 = vmul.f32 %v2923, %v2962
        %v3034 = vmul.f32 %v2924, %v2962
        %v3035 = vmul.f32 %v2925, %v2962
        %v3036 = vmul.f32 %v2926, %v2962
        %v3037 = vmul.f32 %v2927, %v2962
        %v3038 = vmul.f32 %v2928, %v2962
        %v3039 = vmul.f32 %v2929, %v2962
        %v3040 = vmul.f32 %v2930, %v2962
        %v3041 = vmul.f32 %v2931, %v2962
        %v3042 = vmul.f32 %v2932, %v2962
        %v3043 = vmul.f32 %v2933, %v2962
        %v3044 = vmul.f32 %v2934, %v2962
        %v3045 = vmul.f32 %v2935, %v2962
        %v3046 = vmul.f32 %v2936, %v2962
        %v3047 = vmul.f32 %v2937, %v2962
        %v3048 = vmul.f32 %v2938, %v2962
        %v3049 = vmul.f32 %v2939, %v2962
        %v3050 = vmul.f32 %v2940, %v2962
        %v3051 = vmul.f32 %v2941, %v2962
        %v3052 = vmul.f32 %v2942, %v2962
        %v3053 = vmul.f32 %v2943, %v2962
        %v3054 = vmul.f32 %v2944, %v2962
        %v3055 = vmul.f32 %v2945, %v2962
        %v3056 = vmul.f32 %v2946, %v2962
        %v3057 = vmul.f32 %v2947, %v2962
        %v3058 = vmul.f32 %v2948, %v2962
        %v3059 = vmul.f32 %v2949, %v2962
        %v3060 = vmul.f32 %v2950, %v2962
        %v3061 = vmul.f32 %v2951, %v2962
        %v3062 = vmul.f32 %v2952, %v2962
        %v3063 = vmul.f32 %v2953, %v2962
        %v3064 = vmul.f32 %v2954, %v2962
        %v3065 = vmul.f32 %v2955, %v2962
        %v3066 = vmul.f32 %v2956, %v2962
        %v3067 = vadd.f32 %v2748, %v2963
        %v3068 = vadd.f32 %v2749, %v2964
        %v3069 = vadd.f32 %v2750, %v2965
        %v3070 = vadd.f32 %v2751, %v2966
        %v3071 = vadd.f32 %v2752, %v2967
        %v3072 = vadd.f32 %v2753, %v2968
        %v3073 = vadd.f32 %v2754, %v2969
        %v3074 = vadd.f32 %v2755, %v2970
        %v3075 = vadd.f32 %v2756, %v2971
        %v3076 = vadd.f32 %v2757, %v2972
        %v3077 = vadd.f32 %v2758, %v2973
        %v3078 = vadd.f32 %v2759, %v2974
        %v3079 = vadd.f32 %v2760, %v2975
        %v3080 = vadd.f32 %v2761, %v2976
        %v3081 = vadd.f32 %v2762, %v2977
        %v3082 = vadd.f32 %v2763, %v2978
        %v3083 = vadd.f32 %v2764, %v2979
        %v3084 = vadd.f32 %v2765, %v2980
        %v3085 = vadd.f32 %v2766, %v2981
        %v3086 = vadd.f32 %v2767, %v2982
        %v3087 = vadd.f32 %v2768, %v2983
        %v3088 = vadd.f32 %v2769, %v2984
        %v3089 = vadd.f32 %v2770, %v2985
        %v3090 = vadd.f32 %v2771, %v2986
        %v3091 = vadd.f32 %v2772, %v2987
        %v3092 = vadd.f32 %v2773, %v2988
        %v3093 = vadd.f32 %v2774, %v2989
        %v3094 = vadd.f32 %v2775, %v2990
        %v3095 = vadd.f32 %v2776, %v2991
        %v3096 = vadd.f32 %v2777, %v2992
        %v3097 = vadd.f32 %v2778, %v2993
        %v3098 = vadd.f32 %v2779, %v2994
        %v3099 = vadd.f32 %v2780, %v2995
        %v3100 = vadd.f32 %v2781, %v2996
        %v3101 = vadd.f32 %v2782, %v2997
        %v3102 = vadd.f32 %v2783, %v2998
        %v3103 = vadd.f32 %v2784, %v2999
        %v3104 = vadd.f32 %v2785, %v3000
        %v3105 = vadd.f32 %v2786, %v3001
        %v3106 = vadd.f32 %v2787, %v3002
        %v3107 = vadd.f32 %v2788, %v3003
        %v3108 = vadd.f32 %v2789, %v3004
        %v3109 = vadd.f32 %v2790, %v3005
        %v3110 = vadd.f32 %v2791, %v3006
        %v3111 = vadd.f32 %v2792, %v3007
        %v3112 = vadd.f32 %v2793, %v3008
        %v3113 = vadd.f32 %v2794, %v3009
        %v3114 = vadd.f32 %v2795, %v3010
        %v3115 = vadd.f32 %v2796, %v3011
        %v3116 = vadd.f32 %v2797, %v3012
        %v3117 = vadd.f32 %v2798, %v3013
        %v3118 = vadd.f32 %v2799, %v3014
        %v3119 = vadd.f32 %v2800, %v3015
        %v3120 = vadd.f32 %v2801, %v3016
        %v3121 = vadd.f32 %v2802, %v3017
        %v3122 = vadd.f32 %v2803, %v3018
        %v3123 = vadd.f32 %v2804, %v3019
        %v3124 = vadd.f32 %v2805, %v3020
        %v3125 = vadd.f32 %v2806, %v3021
        %v3126 = vadd.f32 %v2807, %v3022
        %v3127 = vadd.f32 %v2808, %v3023
        %v3128 = vadd.f32 %v2809, %v3024
        %v3129 = vadd.f32 %v2810, %v3025
        %v3130 = vadd.f32 %v2811, %v3026
        %v3131 = vadd.f32 %v2812, %v3027
        %v3132 = vadd.f32 %v2813, %v3028
        %v3133 = vadd.f32 %v2814, %v3029
        %v3134 = vadd.f32 %v2815, %v3030
        %v3135 = vadd.f32 %v2816, %v3031
        %v3136 = vadd.f32 %v2817, %v3032
        %v3137 = vadd.f32 %v2818, %v3033
        %v3138 = vadd.f32 %v2819, %v3034
        %v3139 = vadd.f32 %v2820, %v3035
        %v3140 = vadd.f32 %v2821, %v3036
        %v3141 = vadd.f32 %v2822, %v3037
        %v3142 = vadd.f32 %v2823, %v3038
        %v3143 = vadd.f32 %v2824, %v3039
        %v3144 = vadd.f32 %v2825, %v3040
        %v3145 = vadd.f32 %v2826, %v3041
        %v3146 = vadd.f32 %v2827, %v3042
        %v3147 = vadd.f32 %v2828, %v3043
        %v3148 = vadd.f32 %v2829, %v3044
        %v3149 = vadd.f32 %v2830, %v3045
        %v3150 = vadd.f32 %v2831, %v3046
        %v3151 = vadd.f32 %v2832, %v3047
        %v3152 = vadd.f32 %v2833, %v3048
        %v3153 = vadd.f32 %v2834, %v3049
        %v3154 = vadd.f32 %v2835, %v3050
        %v3155 = vadd.f32 %v2836, %v3051
        %v3156 = vadd.f32 %v2837, %v3052
        %v3157 = vadd.f32 %v2838, %v3053
        %v3158 = vadd.f32 %v2839, %v3054
        %v3159 = vadd.f32 %v2840, %v3055
        %v3160 = vadd.f32 %v2841, %v3056
        %v3161 = vadd.f32 %v2842, %v3057
        %v3162 = vadd.f32 %v2843, %v3058
        %v3163 = vadd.f32 %v2844, %v3059
        %v3164 = vadd.f32 %v2845, %v3060
        %v3165 = vadd.f32 %v2846, %v3061
        %v3166 = vadd.f32 %v2847, %v3062
        %v3167 = vadd.f32 %v2848, %v3063
        %v3168 = vadd.f32 %v2849, %v3064
        %v3169 = vadd.f32 %v2850, %v3065
        %v3170 = vadd.f32 %v2851, %v3066
        %v3171 = vld [vmem:[%s2852 + $0x1] sm:$0xff]
        %v3172 = vld [vmem:[%s2852 + $0x9] sm:$0xff]
        %v3173 = vld [vmem:[%s2852 + $0x11] sm:$0xff]
        %v3174 = vld [vmem:[%s2852 + $0x19] sm:$0x3]
        %v3175 = vld [vmem:[%s2852 + $0x21] sm:$0xff]
        %v3176 = vld [vmem:[%s2852 + $0x29] sm:$0xff]
        %v3177 = vld [vmem:[%s2852 + $0x31] sm:$0xff]
        %v3178 = vld [vmem:[%s2852 + $0x39] sm:$0x3]
        %v3179 = vld [vmem:[%s2852 + $0x41] sm:$0xff]
        %v3180 = vld [vmem:[%s2852 + $0x49] sm:$0xff]
        %v3181 = vld [vmem:[%s2852 + $0x51] sm:$0xff]
        %v3182 = vld [vmem:[%s2852 + $0x59] sm:$0x3]
        %v3183 = vld [vmem:[%s2852 + $0x61] sm:$0xff]
        %v3184 = vld [vmem:[%s2852 + $0x69] sm:$0xff]
        %v3185 = vld [vmem:[%s2852 + $0x71] sm:$0xff]
        %v3186 = vld [vmem:[%s2852 + $0x79] sm:$0x3]
        %v3187 = vld [vmem:[%s2852 + $0x81] sm:$0xff]
        %v3188 = vld [vmem:[%s2852 + $0x89] sm:$0xff]
        %v3189 = vld [vmem:[%s2852 + $0x91] sm:$0xff]
        %v3190 = vld [vmem:[%s2852 + $0x99] sm:$0x3]
        %v3191 = vld [vmem:[%s2852 + $0xa1] sm:$0xff]
        %v3192 = vld [vmem:[%s2852 + $0xa9] sm:$0xff]
        %v3193 = vld [vmem:[%s2852 + $0xb1] sm:$0xff]
        %v3194 = vld [vmem:[%s2852 + $0xb9] sm:$0x3]
        %v3195 = vld [vmem:[%s2852 + $0xc1] sm:$0xff]
        %v3196 = vld [vmem:[%s2852 + $0xc9] sm:$0xff]
        %v3197 = vld [vmem:[%s2852 + $0xd1] sm:$0xff]
        %v3198 = vld [vmem:[%s2852 + $0xd9] sm:$0x3]
        %v3199 = vld [vmem:[%s2852 + $0xe1] sm:$0xff]
        %v3200 = vld [vmem:[%s2852 + $0xe9] sm:$0xff]
        %v3201 = vld [vmem:[%s2852 + $0xf1] sm:$0xff]
        %v3202 = vld [vmem:[%s2852 + $0xf9] sm:$0x3]
        %v3203 = vld [vmem:[%s2852 + $0x101] sm:$0xff]
        %v3204 = vld [vmem:[%s2852 + $0x109] sm:$0xff]
        %v3205 = vld [vmem:[%s2852 + $0x111] sm:$0xff]
        %v3206 = vld [vmem:[%s2852 + $0x119] sm:$0x3]
        %v3207 = vld [vmem:[%s2852 + $0x121] sm:$0xff]
        %v3208 = vld [vmem:[%s2852 + $0x129] sm:$0xff]
        %v3209 = vld [vmem:[%s2852 + $0x131] sm:$0xff]
        %v3210 = vld [vmem:[%s2852 + $0x139] sm:$0x3]
        %v3211 = vld [vmem:[%s2852 + $0x141] sm:$0xff]
        %v3212 = vld [vmem:[%s2852 + $0x149] sm:$0xff]
        %v3213 = vld [vmem:[%s2852 + $0x151] sm:$0xff]
        %v3214 = vld [vmem:[%s2852 + $0x159] sm:$0x3]
        %v3215 = vld [vmem:[%s2852 + $0x161] sm:$0xff]
        %v3216 = vld [vmem:[%s2852 + $0x169] sm:$0xff]
        %v3217 = vld [vmem:[%s2852 + $0x171] sm:$0xff]
        %v3218 = vld [vmem:[%s2852 + $0x179] sm:$0x3]
        %v3219 = vld [vmem:[%s2852 + $0x181] sm:$0xff]
        %v3220 = vld [vmem:[%s2852 + $0x189] sm:$0xff]
        %v3221 = vld [vmem:[%s2852 + $0x191] sm:$0xff]
        %v3222 = vld [vmem:[%s2852 + $0x199] sm:$0x3]
        %v3223 = vld [vmem:[%s2852 + $0x1a1] sm:$0xff]
        %v3224 = vld [vmem:[%s2852 + $0x1a9] sm:$0xff]
        %v3225 = vld [vmem:[%s2852 + $0x1b1] sm:$0xff]
        %v3226 = vld [vmem:[%s2852 + $0x1b9] sm:$0x3]
        %v3227 = vld [vmem:[%s2852 + $0x1c1] sm:$0xff]
        %v3228 = vld [vmem:[%s2852 + $0x1c9] sm:$0xff]
        %v3229 = vld [vmem:[%s2852 + $0x1d1] sm:$0xff]
        %v3230 = vld [vmem:[%s2852 + $0x1d9] sm:$0x3]
        %v3231 = vld [vmem:[%s2852 + $0x1e1] sm:$0xff]
        %v3232 = vld [vmem:[%s2852 + $0x1e9] sm:$0xff]
        %v3233 = vld [vmem:[%s2852 + $0x1f1] sm:$0xff]
        %v3234 = vld [vmem:[%s2852 + $0x1f9] sm:$0x3]
        %v3235 = vld [vmem:[%s2852 + $0x201] sm:$0xff]
        %v3236 = vld [vmem:[%s2852 + $0x209] sm:$0xff]
        %v3237 = vld [vmem:[%s2852 + $0x211] sm:$0xff]
        %v3238 = vld [vmem:[%s2852 + $0x219] sm:$0x3]
        %v3239 = vld [vmem:[%s2852 + $0x221] sm:$0xff]
        %v3240 = vld [vmem:[%s2852 + $0x229] sm:$0xff]
        %v3241 = vld [vmem:[%s2852 + $0x231] sm:$0xff]
        %v3242 = vld [vmem:[%s2852 + $0x239] sm:$0x3]
        %v3243 = vld [vmem:[%s2852 + $0x241] sm:$0xff]
        %v3244 = vld [vmem:[%s2852 + $0x249] sm:$0xff]
        %v3245 = vld [vmem:[%s2852 + $0x251] sm:$0xff]
        %v3246 = vld [vmem:[%s2852 + $0x259] sm:$0x3]
        %v3247 = vld [vmem:[%s2852 + $0x261] sm:$0xff]
        %v3248 = vld [vmem:[%s2852 + $0x269] sm:$0xff]
        %v3249 = vld [vmem:[%s2852 + $0x271] sm:$0xff]
        %v3250 = vld [vmem:[%s2852 + $0x279] sm:$0x3]
        %v3251 = vld [vmem:[%s2852 + $0x281] sm:$0xff]
        %v3252 = vld [vmem:[%s2852 + $0x289] sm:$0xff]
        %v3253 = vld [vmem:[%s2852 + $0x291] sm:$0xff]
        %v3254 = vld [vmem:[%s2852 + $0x299] sm:$0x3]
        %v3255 = vld [vmem:[%s2852 + $0x2a1] sm:$0xff]
        %v3256 = vld [vmem:[%s2852 + $0x2a9] sm:$0xff]
        %v3257 = vld [vmem:[%s2852 + $0x2b1] sm:$0xff]
        %v3258 = vld [vmem:[%s2852 + $0x2b9] sm:$0x3]
        %v3259 = vld [vmem:[%s2852 + $0x2c1] sm:$0xff]
        %v3260 = vld [vmem:[%s2852 + $0x2c9] sm:$0xff]
        %v3261 = vld [vmem:[%s2852 + $0x2d1] sm:$0xff]
        %v3262 = vld [vmem:[%s2852 + $0x2d9] sm:$0x3]
        %v3263 = vld [vmem:[%s2852 + $0x2e1] sm:$0xff]
        %v3264 = vld [vmem:[%s2852 + $0x2e9] sm:$0xff]
        %v3265 = vld [vmem:[%s2852 + $0x2f1] sm:$0xff]
        %v3266 = vld [vmem:[%s2852 + $0x2f9] sm:$0x3]
        %v3267 = vld [vmem:[%s2852 + $0x301] sm:$0xff]
        %v3268 = vld [vmem:[%s2852 + $0x309] sm:$0xff]
        %v3269 = vld [vmem:[%s2852 + $0x311] sm:$0xff]
        %v3270 = vld [vmem:[%s2852 + $0x319] sm:$0x3]
        %v3271 = vld [vmem:[%s2852 + $0x321] sm:$0xff]
        %v3272 = vld [vmem:[%s2852 + $0x329] sm:$0xff]
        %v3273 = vld [vmem:[%s2852 + $0x331] sm:$0xff]
        %v3274 = vld [vmem:[%s2852 + $0x339] sm:$0x3]
        %v3275 = vld [vmem:[%s2957 + $0x1] sm:$0x1]
        %v3276 = vlaneseq
        %v3277 = vshrl.u32 %v3276, 7
        %v3278 = vsub.s32 0, %v3277
        %v3279 = vrot.slane %v3275, %v3278
        %v3280 = vmul.f32 %v3171, %v3279
        %v3281 = vmul.f32 %v3172, %v3279
        %v3282 = vmul.f32 %v3173, %v3279
        %v3283 = vmul.f32 %v3174, %v3279
        %v3284 = vmul.f32 %v3175, %v3279
        %v3285 = vmul.f32 %v3176, %v3279
        %v3286 = vmul.f32 %v3177, %v3279
        %v3287 = vmul.f32 %v3178, %v3279
        %v3288 = vmul.f32 %v3179, %v3279
        %v3289 = vmul.f32 %v3180, %v3279
        %v3290 = vmul.f32 %v3181, %v3279
        %v3291 = vmul.f32 %v3182, %v3279
        %v3292 = vmul.f32 %v3183, %v3279
        %v3293 = vmul.f32 %v3184, %v3279
        %v3294 = vmul.f32 %v3185, %v3279
        %v3295 = vmul.f32 %v3186, %v3279
        %v3296 = vmul.f32 %v3187, %v3279
        %v3297 = vmul.f32 %v3188, %v3279
        %v3298 = vmul.f32 %v3189, %v3279
        %v3299 = vmul.f32 %v3190, %v3279
        %v3300 = vmul.f32 %v3191, %v3279
        %v3301 = vmul.f32 %v3192, %v3279
        %v3302 = vmul.f32 %v3193, %v3279
        %v3303 = vmul.f32 %v3194, %v3279
        %v3304 = vmul.f32 %v3195, %v3279
        %v3305 = vmul.f32 %v3196, %v3279
        %v3306 = vmul.f32 %v3197, %v3279
        %v3307 = vmul.f32 %v3198, %v3279
        %v3308 = vmul.f32 %v3199, %v3279
        %v3309 = vmul.f32 %v3200, %v3279
        %v3310 = vmul.f32 %v3201, %v3279
        %v3311 = vmul.f32 %v3202, %v3279
        %v3312 = vmul.f32 %v3203, %v3279
        %v3313 = vmul.f32 %v3204, %v3279
        %v3314 = vmul.f32 %v3205, %v3279
        %v3315 = vmul.f32 %v3206, %v3279
        %v3316 = vmul.f32 %v3207, %v3279
        %v3317 = vmul.f32 %v3208, %v3279
        %v3318 = vmul.f32 %v3209, %v3279
        %v3319 = vmul.f32 %v3210, %v3279
        %v3320 = vmul.f32 %v3211, %v3279
        %v3321 = vmul.f32 %v3212, %v3279
        %v3322 = vmul.f32 %v3213, %v3279
        %v3323 = vmul.f32 %v3214, %v3279
        %v3324 = vmul.f32 %v3215, %v3279
        %v3325 = vmul.f32 %v3216, %v3279
        %v3326 = vmul.f32 %v3217, %v3279
        %v3327 = vmul.f32 %v3218, %v3279
        %v3328 = vmul.f32 %v3219, %v3279
        %v3329 = vmul.f32 %v3220, %v3279
        %v3330 = vmul.f32 %v3221, %v3279
        %v3331 = vmul.f32 %v3222, %v3279
        %v3332 = vmul.f32 %v3223, %v3279
        %v3333 = vmul.f32 %v3224, %v3279
        %v3334 = vmul.f32 %v3225, %v3279
        %v3335 = vmul.f32 %v3226, %v3279
        %v3336 = vmul.f32 %v3227, %v3279
        %v3337 = vmul.f32 %v3228, %v3279
        %v3338 = vmul.f32 %v3229, %v3279
        %v3339 = vmul.f32 %v3230, %v3279
        %v3340 = vmul.f32 %v3231, %v3279
        %v3341 = vmul.f32 %v3232, %v3279
        %v3342 = vmul.f32 %v3233, %v3279
        %v3343 = vmul.f32 %v3234, %v3279
        %v3344 = vmul.f32 %v3235, %v3279
        %v3345 = vmul.f32 %v3236, %v3279
        %v3346 = vmul.f32 %v3237, %v3279
        %v3347 = vmul.f32 %v3238, %v3279
        %v3348 = vmul.f32 %v3239, %v3279
        %v3349 = vmul.f32 %v3240, %v3279
        %v3350 = vmul.f32 %v3241, %v3279
        %v3351 = vmul.f32 %v3242, %v3279
        %v3352 = vmul.f32 %v3243, %v3279
        %v3353 = vmul.f32 %v3244, %v3279
        %v3354 = vmul.f32 %v3245, %v3279
        %v3355 = vmul.f32 %v3246, %v3279
        %v3356 = vmul.f32 %v3247, %v3279
        %v3357 = vmul.f32 %v3248, %v3279
        %v3358 = vmul.f32 %v3249, %v3279
        %v3359 = vmul.f32 %v3250, %v3279
        %v3360 = vmul.f32 %v3251, %v3279
        %v3361 = vmul.f32 %v3252, %v3279
        %v3362 = vmul.f32 %v3253, %v3279
        %v3363 = vmul.f32 %v3254, %v3279
        %v3364 = vmul.f32 %v3255, %v3279
        %v3365 = vmul.f32 %v3256, %v3279
        %v3366 = vmul.f32 %v3257, %v3279
        %v3367 = vmul.f32 %v3258, %v3279
        %v3368 = vmul.f32 %v3259, %v3279
        %v3369 = vmul.f32 %v3260, %v3279
        %v3370 = vmul.f32 %v3261, %v3279
        %v3371 = vmul.f32 %v3262, %v3279
        %v3372 = vmul.f32 %v3263, %v3279
        %v3373 = vmul.f32 %v3264, %v3279
        %v3374 = vmul.f32 %v3265, %v3279
        %v3375 = vmul.f32 %v3266, %v3279
        %v3376 = vmul.f32 %v3267, %v3279
        %v3377 = vmul.f32 %v3268, %v3279
        %v3378 = vmul.f32 %v3269, %v3279
        %v3379 = vmul.f32 %v3270, %v3279
        %v3380 = vmul.f32 %v3271, %v3279
        %v3381 = vmul.f32 %v3272, %v3279
        %v3382 = vmul.f32 %v3273, %v3279
        %v3383 = vmul.f32 %v3274, %v3279
        %v3384 = vadd.f32 %v3067, %v3280
        %v3385 = vadd.f32 %v3068, %v3281
        %v3386 = vadd.f32 %v3069, %v3282
        %v3387 = vadd.f32 %v3070, %v3283
        %v3388 = vadd.f32 %v3071, %v3284
        %v3389 = vadd.f32 %v3072, %v3285
        %v3390 = vadd.f32 %v3073, %v3286
        %v3391 = vadd.f32 %v3074, %v3287
        %v3392 = vadd.f32 %v3075, %v3288
        %v3393 = vadd.f32 %v3076, %v3289
        %v3394 = vadd.f32 %v3077, %v3290
        %v3395 = vadd.f32 %v3078, %v3291
        %v3396 = vadd.f32 %v3079, %v3292
        %v3397 = vadd.f32 %v3080, %v3293
        %v3398 = vadd.f32 %v3081, %v3294
        %v3399 = vadd.f32 %v3082, %v3295
        %v3400 = vadd.f32 %v3083, %v3296
        %v3401 = vadd.f32 %v3084, %v3297
        %v3402 = vadd.f32 %v3085, %v3298
        %v3403 = vadd.f32 %v3086, %v3299
        %v3404 = vadd.f32 %v3087, %v3300
        %v3405 = vadd.f32 %v3088, %v3301
        %v3406 = vadd.f32 %v3089, %v3302
        %v3407 = vadd.f32 %v3090, %v3303
        %v3408 = vadd.f32 %v3091, %v3304
        %v3409 = vadd.f32 %v3092, %v3305
        %v3410 = vadd.f32 %v3093, %v3306
        %v3411 = vadd.f32 %v3094, %v3307
        %v3412 = vadd.f32 %v3095, %v3308
        %v3413 = vadd.f32 %v3096, %v3309
        %v3414 = vadd.f32 %v3097, %v3310
        %v3415 = vadd.f32 %v3098, %v3311
        %v3416 = vadd.f32 %v3099, %v3312
        %v3417 = vadd.f32 %v3100, %v3313
        %v3418 = vadd.f32 %v3101, %v3314
        %v3419 = vadd.f32 %v3102, %v3315
        %v3420 = vadd.f32 %v3103, %v3316
        %v3421 = vadd.f32 %v3104, %v3317
        %v3422 = vadd.f32 %v3105, %v3318
        %v3423 = vadd.f32 %v3106, %v3319
        %v3424 = vadd.f32 %v3107, %v3320
        %v3425 = vadd.f32 %v3108, %v3321
        %v3426 = vadd.f32 %v3109, %v3322
        %v3427 = vadd.f32 %v3110, %v3323
        %v3428 = vadd.f32 %v3111, %v3324
        %v3429 = vadd.f32 %v3112, %v3325
        %v3430 = vadd.f32 %v3113, %v3326
        %v3431 = vadd.f32 %v3114, %v3327
        %v3432 = vadd.f32 %v3115, %v3328
        %v3433 = vadd.f32 %v3116, %v3329
        %v3434 = vadd.f32 %v3117, %v3330
        %v3435 = vadd.f32 %v3118, %v3331
        %v3436 = vadd.f32 %v3119, %v3332
        %v3437 = vadd.f32 %v3120, %v3333
        %v3438 = vadd.f32 %v3121, %v3334
        %v3439 = vadd.f32 %v3122, %v3335
        %v3440 = vadd.f32 %v3123, %v3336
        %v3441 = vadd.f32 %v3124, %v3337
        %v3442 = vadd.f32 %v3125, %v3338
        %v3443 = vadd.f32 %v3126, %v3339
        %v3444 = vadd.f32 %v3127, %v3340
        %v3445 = vadd.f32 %v3128, %v3341
        %v3446 = vadd.f32 %v3129, %v3342
        %v3447 = vadd.f32 %v3130, %v3343
        %v3448 = vadd.f32 %v3131, %v3344
        %v3449 = vadd.f32 %v3132, %v3345
        %v3450 = vadd.f32 %v3133, %v3346
        %v3451 = vadd.f32 %v3134, %v3347
        %v3452 = vadd.f32 %v3135, %v3348
        %v3453 = vadd.f32 %v3136, %v3349
        %v3454 = vadd.f32 %v3137, %v3350
        %v3455 = vadd.f32 %v3138, %v3351
        %v3456 = vadd.f32 %v3139, %v3352
        %v3457 = vadd.f32 %v3140, %v3353
        %v3458 = vadd.f32 %v3141, %v3354
        %v3459 = vadd.f32 %v3142, %v3355
        %v3460 = vadd.f32 %v3143, %v3356
        %v3461 = vadd.f32 %v3144, %v3357
        %v3462 = vadd.f32 %v3145, %v3358
        %v3463 = vadd.f32 %v3146, %v3359
        %v3464 = vadd.f32 %v3147, %v3360
        %v3465 = vadd.f32 %v3148, %v3361
        %v3466 = vadd.f32 %v3149, %v3362
        %v3467 = vadd.f32 %v3150, %v3363
        %v3468 = vadd.f32 %v3151, %v3364
        %v3469 = vadd.f32 %v3152, %v3365
        %v3470 = vadd.f32 %v3153, %v3366
        %v3471 = vadd.f32 %v3154, %v3367
        %v3472 = vadd.f32 %v3155, %v3368
        %v3473 = vadd.f32 %v3156, %v3369
        %v3474 = vadd.f32 %v3157, %v3370
        %v3475 = vadd.f32 %v3158, %v3371
        %v3476 = vadd.f32 %v3159, %v3372
        %v3477 = vadd.f32 %v3160, %v3373
        %v3478 = vadd.f32 %v3161, %v3374
        %v3479 = vadd.f32 %v3162, %v3375
        %v3480 = vadd.f32 %v3163, %v3376
        %v3481 = vadd.f32 %v3164, %v3377
        %v3482 = vadd.f32 %v3165, %v3378
        %v3483 = vadd.f32 %v3166, %v3379
        %v3484 = vadd.f32 %v3167, %v3380
        %v3485 = vadd.f32 %v3168, %v3381
        %v3486 = vadd.f32 %v3169, %v3382
        %v3487 = vadd.f32 %v3170, %v3383
        %v3488 = vld [vmem:[%s2852 + $0x2] sm:$0xff]
        %v3489 = vld [vmem:[%s2852 + $0xa] sm:$0xff]
        %v3490 = vld [vmem:[%s2852 + $0x12] sm:$0xff]
        %v3491 = vld [vmem:[%s2852 + $0x1a] sm:$0x3]
        %v3492 = vld [vmem:[%s2852 + $0x22] sm:$0xff]
        %v3493 = vld [vmem:[%s2852 + $0x2a] sm:$0xff]
        %v3494 = vld [vmem:[%s2852 + $0x32] sm:$0xff]
        %v3495 = vld [vmem:[%s2852 + $0x3a] sm:$0x3]
        %v3496 = vld [vmem:[%s2852 + $0x42] sm:$0xff]
        %v3497 = vld [vmem:[%s2852 + $0x4a] sm:$0xff]
        %v3498 = vld [vmem:[%s2852 + $0x52] sm:$0xff]
        %v3499 = vld [vmem:[%s2852 + $0x5a] sm:$0x3]
        %v3500 = vld [vmem:[%s2852 + $0x62] sm:$0xff]
        %v3501 = vld [vmem:[%s2852 + $0x6a] sm:$0xff]
        %v3502 = vld [vmem:[%s2852 + $0x72] sm:$0xff]
        %v3503 = vld [vmem:[%s2852 + $0x7a] sm:$0x3]
        %v3504 = vld [vmem:[%s2852 + $0x82] sm:$0xff]
        %v3505 = vld [vmem:[%s2852 + $0x8a] sm:$0xff]
        %v3506 = vld [vmem:[%s2852 + $0x92] sm:$0xff]
        %v3507 = vld [vmem:[%s2852 + $0x9a] sm:$0x3]
        %v3508 = vld [vmem:[%s2852 + $0xa2] sm:$0xff]
        %v3509 = vld [vmem:[%s2852 + $0xaa] sm:$0xff]
        %v3510 = vld [vmem:[%s2852 + $0xb2] sm:$0xff]
        %v3511 = vld [vmem:[%s2852 + $0xba] sm:$0x3]
        %v3512 = vld [vmem:[%s2852 + $0xc2] sm:$0xff]
        %v3513 = vld [vmem:[%s2852 + $0xca] sm:$0xff]
        %v3514 = vld [vmem:[%s2852 + $0xd2] sm:$0xff]
        %v3515 = vld [vmem:[%s2852 + $0xda] sm:$0x3]
        %v3516 = vld [vmem:[%s2852 + $0xe2] sm:$0xff]
        %v3517 = vld [vmem:[%s2852 + $0xea] sm:$0xff]
        %v3518 = vld [vmem:[%s2852 + $0xf2] sm:$0xff]
        %v3519 = vld [vmem:[%s2852 + $0xfa] sm:$0x3]
        %v3520 = vld [vmem:[%s2852 + $0x102] sm:$0xff]
        %v3521 = vld [vmem:[%s2852 + $0x10a] sm:$0xff]
        %v3522 = vld [vmem:[%s2852 + $0x112] sm:$0xff]
        %v3523 = vld [vmem:[%s2852 + $0x11a] sm:$0x3]
        %v3524 = vld [vmem:[%s2852 + $0x122] sm:$0xff]
        %v3525 = vld [vmem:[%s2852 + $0x12a] sm:$0xff]
        %v3526 = vld [vmem:[%s2852 + $0x132] sm:$0xff]
        %v3527 = vld [vmem:[%s2852 + $0x13a] sm:$0x3]
        %v3528 = vld [vmem:[%s2852 + $0x142] sm:$0xff]
        %v3529 = vld [vmem:[%s2852 + $0x14a] sm:$0xff]
        %v3530 = vld [vmem:[%s2852 + $0x152] sm:$0xff]
        %v3531 = vld [vmem:[%s2852 + $0x15a] sm:$0x3]
        %v3532 = vld [vmem:[%s2852 + $0x162] sm:$0xff]
        %v3533 = vld [vmem:[%s2852 + $0x16a] sm:$0xff]
        %v3534 = vld [vmem:[%s2852 + $0x172] sm:$0xff]
        %v3535 = vld [vmem:[%s2852 + $0x17a] sm:$0x3]
        %v3536 = vld [vmem:[%s2852 + $0x182] sm:$0xff]
        %v3537 = vld [vmem:[%s2852 + $0x18a] sm:$0xff]
        %v3538 = vld [vmem:[%s2852 + $0x192] sm:$0xff]
        %v3539 = vld [vmem:[%s2852 + $0x19a] sm:$0x3]
        %v3540 = vld [vmem:[%s2852 + $0x1a2] sm:$0xff]
        %v3541 = vld [vmem:[%s2852 + $0x1aa] sm:$0xff]
        %v3542 = vld [vmem:[%s2852 + $0x1b2] sm:$0xff]
        %v3543 = vld [vmem:[%s2852 + $0x1ba] sm:$0x3]
        %v3544 = vld [vmem:[%s2852 + $0x1c2] sm:$0xff]
        %v3545 = vld [vmem:[%s2852 + $0x1ca] sm:$0xff]
        %v3546 = vld [vmem:[%s2852 + $0x1d2] sm:$0xff]
        %v3547 = vld [vmem:[%s2852 + $0x1da] sm:$0x3]
        %v3548 = vld [vmem:[%s2852 + $0x1e2] sm:$0xff]
        %v3549 = vld [vmem:[%s2852 + $0x1ea] sm:$0xff]
        %v3550 = vld [vmem:[%s2852 + $0x1f2] sm:$0xff]
        %v3551 = vld [vmem:[%s2852 + $0x1fa] sm:$0x3]
        %v3552 = vld [vmem:[%s2852 + $0x202] sm:$0xff]
        %v3553 = vld [vmem:[%s2852 + $0x20a] sm:$0xff]
        %v3554 = vld [vmem:[%s2852 + $0x212] sm:$0xff]
        %v3555 = vld [vmem:[%s2852 + $0x21a] sm:$0x3]
        %v3556 = vld [vmem:[%s2852 + $0x222] sm:$0xff]
        %v3557 = vld [vmem:[%s2852 + $0x22a] sm:$0xff]
        %v3558 = vld [vmem:[%s2852 + $0x232] sm:$0xff]
        %v3559 = vld [vmem:[%s2852 + $0x23a] sm:$0x3]
        %v3560 = vld [vmem:[%s2852 + $0x242] sm:$0xff]
        %v3561 = vld [vmem:[%s2852 + $0x24a] sm:$0xff]
        %v3562 = vld [vmem:[%s2852 + $0x252] sm:$0xff]
        %v3563 = vld [vmem:[%s2852 + $0x25a] sm:$0x3]
        %v3564 = vld [vmem:[%s2852 + $0x262] sm:$0xff]
        %v3565 = vld [vmem:[%s2852 + $0x26a] sm:$0xff]
        %v3566 = vld [vmem:[%s2852 + $0x272] sm:$0xff]
        %v3567 = vld [vmem:[%s2852 + $0x27a] sm:$0x3]
        %v3568 = vld [vmem:[%s2852 + $0x282] sm:$0xff]
        %v3569 = vld [vmem:[%s2852 + $0x28a] sm:$0xff]
        %v3570 = vld [vmem:[%s2852 + $0x292] sm:$0xff]
        %v3571 = vld [vmem:[%s2852 + $0x29a] sm:$0x3]
        %v3572 = vld [vmem:[%s2852 + $0x2a2] sm:$0xff]
        %v3573 = vld [vmem:[%s2852 + $0x2aa] sm:$0xff]
        %v3574 = vld [vmem:[%s2852 + $0x2b2] sm:$0xff]
        %v3575 = vld [vmem:[%s2852 + $0x2ba] sm:$0x3]
        %v3576 = vld [vmem:[%s2852 + $0x2c2] sm:$0xff]
        %v3577 = vld [vmem:[%s2852 + $0x2ca] sm:$0xff]
        %v3578 = vld [vmem:[%s2852 + $0x2d2] sm:$0xff]
        %v3579 = vld [vmem:[%s2852 + $0x2da] sm:$0x3]
        %v3580 = vld [vmem:[%s2852 + $0x2e2] sm:$0xff]
        %v3581 = vld [vmem:[%s2852 + $0x2ea] sm:$0xff]
        %v3582 = vld [vmem:[%s2852 + $0x2f2] sm:$0xff]
        %v3583 = vld [vmem:[%s2852 + $0x2fa] sm:$0x3]
        %v3584 = vld [vmem:[%s2852 + $0x302] sm:$0xff]
        %v3585 = vld [vmem:[%s2852 + $0x30a] sm:$0xff]
        %v3586 = vld [vmem:[%s2852 + $0x312] sm:$0xff]
        %v3587 = vld [vmem:[%s2852 + $0x31a] sm:$0x3]
        %v3588 = vld [vmem:[%s2852 + $0x322] sm:$0xff]
        %v3589 = vld [vmem:[%s2852 + $0x32a] sm:$0xff]
        %v3590 = vld [vmem:[%s2852 + $0x332] sm:$0xff]
        %v3591 = vld [vmem:[%s2852 + $0x33a] sm:$0x3]
        %v3592 = vld [vmem:[%s2957 + $0x2] sm:$0x1]
        %v3593 = vlaneseq
        %v3594 = vshrl.u32 %v3593, 7
        %v3595 = vsub.s32 0, %v3594
        %v3596 = vrot.slane %v3592, %v3595
        %v3597 = vmul.f32 %v3488, %v3596
        %v3598 = vmul.f32 %v3489, %v3596
        %v3599 = vmul.f32 %v3490, %v3596
        %v3600 = vmul.f32 %v3491, %v3596
        %v3601 = vmul.f32 %v3492, %v3596
        %v3602 = vmul.f32 %v3493, %v3596
        %v3603 = vmul.f32 %v3494, %v3596
        %v3604 = vmul.f32 %v3495, %v3596
        %v3605 = vmul.f32 %v3496, %v3596
        %v3606 = vmul.f32 %v3497, %v3596
        %v3607 = vmul.f32 %v3498, %v3596
        %v3608 = vmul.f32 %v3499, %v3596
        %v3609 = vmul.f32 %v3500, %v3596
        %v3610 = vmul.f32 %v3501, %v3596
        %v3611 = vmul.f32 %v3502, %v3596
        %v3612 = vmul.f32 %v3503, %v3596
        %v3613 = vmul.f32 %v3504, %v3596
        %v3614 = vmul.f32 %v3505, %v3596
        %v3615 = vmul.f32 %v3506, %v3596
        %v3616 = vmul.f32 %v3507, %v3596
        %v3617 = vmul.f32 %v3508, %v3596
        %v3618 = vmul.f32 %v3509, %v3596
        %v3619 = vmul.f32 %v3510, %v3596
        %v3620 = vmul.f32 %v3511, %v3596
        %v3621 = vmul.f32 %v3512, %v3596
        %v3622 = vmul.f32 %v3513, %v3596
        %v3623 = vmul.f32 %v3514, %v3596
        %v3624 = vmul.f32 %v3515, %v3596
        %v3625 = vmul.f32 %v3516, %v3596
        %v3626 = vmul.f32 %v3517, %v3596
        %v3627 = vmul.f32 %v3518, %v3596
        %v3628 = vmul.f32 %v3519, %v3596
        %v3629 = vmul.f32 %v3520, %v3596
        %v3630 = vmul.f32 %v3521, %v3596
        %v3631 = vmul.f32 %v3522, %v3596
        %v3632 = vmul.f32 %v3523, %v3596
        %v3633 = vmul.f32 %v3524, %v3596
        %v3634 = vmul.f32 %v3525, %v3596
        %v3635 = vmul.f32 %v3526, %v3596
        %v3636 = vmul.f32 %v3527, %v3596
        %v3637 = vmul.f32 %v3528, %v3596
        %v3638 = vmul.f32 %v3529, %v3596
        %v3639 = vmul.f32 %v3530, %v3596
        %v3640 = vmul.f32 %v3531, %v3596
        %v3641 = vmul.f32 %v3532, %v3596
        %v3642 = vmul.f32 %v3533, %v3596
        %v3643 = vmul.f32 %v3534, %v3596
        %v3644 = vmul.f32 %v3535, %v3596
        %v3645 = vmul.f32 %v3536, %v3596
        %v3646 = vmul.f32 %v3537, %v3596
        %v3647 = vmul.f32 %v3538, %v3596
        %v3648 = vmul.f32 %v3539, %v3596
        %v3649 = vmul.f32 %v3540, %v3596
        %v3650 = vmul.f32 %v3541, %v3596
        %v3651 = vmul.f32 %v3542, %v3596
        %v3652 = vmul.f32 %v3543, %v3596
        %v3653 = vmul.f32 %v3544, %v3596
        %v3654 = vmul.f32 %v3545, %v3596
        %v3655 = vmul.f32 %v3546, %v3596
        %v3656 = vmul.f32 %v3547, %v3596
        %v3657 = vmul.f32 %v3548, %v3596
        %v3658 = vmul.f32 %v3549, %v3596
        %v3659 = vmul.f32 %v3550, %v3596
        %v3660 = vmul.f32 %v3551, %v3596
        %v3661 = vmul.f32 %v3552, %v3596
        %v3662 = vmul.f32 %v3553, %v3596
        %v3663 = vmul.f32 %v3554, %v3596
        %v3664 = vmul.f32 %v3555, %v3596
        %v3665 = vmul.f32 %v3556, %v3596
        %v3666 = vmul.f32 %v3557, %v3596
        %v3667 = vmul.f32 %v3558, %v3596
        %v3668 = vmul.f32 %v3559, %v3596
        %v3669 = vmul.f32 %v3560, %v3596
        %v3670 = vmul.f32 %v3561, %v3596
        %v3671 = vmul.f32 %v3562, %v3596
        %v3672 = vmul.f32 %v3563, %v3596
        %v3673 = vmul.f32 %v3564, %v3596
        %v3674 = vmul.f32 %v3565, %v3596
        %v3675 = vmul.f32 %v3566, %v3596
        %v3676 = vmul.f32 %v3567, %v3596
        %v3677 = vmul.f32 %v3568, %v3596
        %v3678 = vmul.f32 %v3569, %v3596
        %v3679 = vmul.f32 %v3570, %v3596
        %v3680 = vmul.f32 %v3571, %v3596
        %v3681 = vmul.f32 %v3572, %v3596
        %v3682 = vmul.f32 %v3573, %v3596
        %v3683 = vmul.f32 %v3574, %v3596
        %v3684 = vmul.f32 %v3575, %v3596
        %v3685 = vmul.f32 %v3576, %v3596
        %v3686 = vmul.f32 %v3577, %v3596
        %v3687 = vmul.f32 %v3578, %v3596
        %v3688 = vmul.f32 %v3579, %v3596
        %v3689 = vmul.f32 %v3580, %v3596
        %v3690 = vmul.f32 %v3581, %v3596
        %v3691 = vmul.f32 %v3582, %v3596
        %v3692 = vmul.f32 %v3583, %v3596
        %v3693 = vmul.f32 %v3584, %v3596
        %v3694 = vmul.f32 %v3585, %v3596
        %v3695 = vmul.f32 %v3586, %v3596
        %v3696 = vmul.f32 %v3587, %v3596
        %v3697 = vmul.f32 %v3588, %v3596
        %v3698 = vmul.f32 %v3589, %v3596
        %v3699 = vmul.f32 %v3590, %v3596
        %v3700 = vmul.f32 %v3591, %v3596
        %v3701 = vadd.f32 %v3384, %v3597
        %v3702 = vadd.f32 %v3385, %v3598
        %v3703 = vadd.f32 %v3386, %v3599
        %v3704 = vadd.f32 %v3387, %v3600
        %v3705 = vadd.f32 %v3388, %v3601
        %v3706 = vadd.f32 %v3389, %v3602
        %v3707 = vadd.f32 %v3390, %v3603
        %v3708 = vadd.f32 %v3391, %v3604
        %v3709 = vadd.f32 %v3392, %v3605
        %v3710 = vadd.f32 %v3393, %v3606
        %v3711 = vadd.f32 %v3394, %v3607
        %v3712 = vadd.f32 %v3395, %v3608
        %v3713 = vadd.f32 %v3396, %v3609
        %v3714 = vadd.f32 %v3397, %v3610
        %v3715 = vadd.f32 %v3398, %v3611
        %v3716 = vadd.f32 %v3399, %v3612
        %v3717 = vadd.f32 %v3400, %v3613
        %v3718 = vadd.f32 %v3401, %v3614
        %v3719 = vadd.f32 %v3402, %v3615
        %v3720 = vadd.f32 %v3403, %v3616
        %v3721 = vadd.f32 %v3404, %v3617
        %v3722 = vadd.f32 %v3405, %v3618
        %v3723 = vadd.f32 %v3406, %v3619
        %v3724 = vadd.f32 %v3407, %v3620
        %v3725 = vadd.f32 %v3408, %v3621
        %v3726 = vadd.f32 %v3409, %v3622
        %v3727 = vadd.f32 %v3410, %v3623
        %v3728 = vadd.f32 %v3411, %v3624
        %v3729 = vadd.f32 %v3412, %v3625
        %v3730 = vadd.f32 %v3413, %v3626
        %v3731 = vadd.f32 %v3414, %v3627
        %v3732 = vadd.f32 %v3415, %v3628
        %v3733 = vadd.f32 %v3416, %v3629
        %v3734 = vadd.f32 %v3417, %v3630
        %v3735 = vadd.f32 %v3418, %v3631
        %v3736 = vadd.f32 %v3419, %v3632
        %v3737 = vadd.f32 %v3420, %v3633
        %v3738 = vadd.f32 %v3421, %v3634
        %v3739 = vadd.f32 %v3422, %v3635
        %v3740 = vadd.f32 %v3423, %v3636
        %v3741 = vadd.f32 %v3424, %v3637
        %v3742 = vadd.f32 %v3425, %v3638
        %v3743 = vadd.f32 %v3426, %v3639
        %v3744 = vadd.f32 %v3427, %v3640
        %v3745 = vadd.f32 %v3428, %v3641
        %v3746 = vadd.f32 %v3429, %v3642
        %v3747 = vadd.f32 %v3430, %v3643
        %v3748 = vadd.f32 %v3431, %v3644
        %v3749 = vadd.f32 %v3432, %v3645
        %v3750 = vadd.f32 %v3433, %v3646
        %v3751 = vadd.f32 %v3434, %v3647
        %v3752 = vadd.f32 %v3435, %v3648
        %v3753 = vadd.f32 %v3436, %v3649
        %v3754 = vadd.f32 %v3437, %v3650
        %v3755 = vadd.f32 %v3438, %v3651
        %v3756 = vadd.f32 %v3439, %v3652
        %v3757 = vadd.f32 %v3440, %v3653
        %v3758 = vadd.f32 %v3441, %v3654
        %v3759 = vadd.f32 %v3442, %v3655
        %v3760 = vadd.f32 %v3443, %v3656
        %v3761 = vadd.f32 %v3444, %v3657
        %v3762 = vadd.f32 %v3445, %v3658
        %v3763 = vadd.f32 %v3446, %v3659
        %v3764 = vadd.f32 %v3447, %v3660
        %v3765 = vadd.f32 %v3448, %v3661
        %v3766 = vadd.f32 %v3449, %v3662
        %v3767 = vadd.f32 %v3450, %v3663
        %v3768 = vadd.f32 %v3451, %v3664
        %v3769 = vadd.f32 %v3452, %v3665
        %v3770 = vadd.f32 %v3453, %v3666
        %v3771 = vadd.f32 %v3454, %v3667
        %v3772 = vadd.f32 %v3455, %v3668
        %v3773 = vadd.f32 %v3456, %v3669
        %v3774 = vadd.f32 %v3457, %v3670
        %v3775 = vadd.f32 %v3458, %v3671
        %v3776 = vadd.f32 %v3459, %v3672
        %v3777 = vadd.f32 %v3460, %v3673
        %v3778 = vadd.f32 %v3461, %v3674
        %v3779 = vadd.f32 %v3462, %v3675
        %v3780 = vadd.f32 %v3463, %v3676
        %v3781 = vadd.f32 %v3464, %v3677
        %v3782 = vadd.f32 %v3465, %v3678
        %v3783 = vadd.f32 %v3466, %v3679
        %v3784 = vadd.f32 %v3467, %v3680
        %v3785 = vadd.f32 %v3468, %v3681
        %v3786 = vadd.f32 %v3469, %v3682
        %v3787 = vadd.f32 %v3470, %v3683
        %v3788 = vadd.f32 %v3471, %v3684
        %v3789 = vadd.f32 %v3472, %v3685
        %v3790 = vadd.f32 %v3473, %v3686
        %v3791 = vadd.f32 %v3474, %v3687
        %v3792 = vadd.f32 %v3475, %v3688
        %v3793 = vadd.f32 %v3476, %v3689
        %v3794 = vadd.f32 %v3477, %v3690
        %v3795 = vadd.f32 %v3478, %v3691
        %v3796 = vadd.f32 %v3479, %v3692
        %v3797 = vadd.f32 %v3480, %v3693
        %v3798 = vadd.f32 %v3481, %v3694
        %v3799 = vadd.f32 %v3482, %v3695
        %v3800 = vadd.f32 %v3483, %v3696
        %v3801 = vadd.f32 %v3484, %v3697
        %v3802 = vadd.f32 %v3485, %v3698
        %v3803 = vadd.f32 %v3486, %v3699
        %v3804 = vadd.f32 %v3487, %v3700
        %v3805 = vld [vmem:[#allocation8] sm:$0x1]
        %v3807 = vlaneseq
        %v3808 = vshrl.u32 %v3807, 7
        %v3809 = vsub.s32 0, %v3808
        %v3810 = vrot.slane %v3805, %v3809
        %v3812 = vadd.f32 %v3701, %v3810
        %v3813 = vadd.f32 %v3702, %v3810
        %v3814 = vadd.f32 %v3703, %v3810
        %v3815 = vadd.f32 %v3704, %v3810
        %v3816 = vadd.f32 %v3705, %v3810
        %v3817 = vadd.f32 %v3706, %v3810
        %v3818 = vadd.f32 %v3707, %v3810
        %v3819 = vadd.f32 %v3708, %v3810
        %v3820 = vadd.f32 %v3709, %v3810
        %v3821 = vadd.f32 %v3710, %v3810
        %v3822 = vadd.f32 %v3711, %v3810
        %v3823 = vadd.f32 %v3712, %v3810
        %v3824 = vadd.f32 %v3713, %v3810
        %v3825 = vadd.f32 %v3714, %v3810
        %v3826 = vadd.f32 %v3715, %v3810
        %v3827 = vadd.f32 %v3716, %v3810
        %v3828 = vadd.f32 %v3717, %v3810
        %v3829 = vadd.f32 %v3718, %v3810
        %v3830 = vadd.f32 %v3719, %v3810
        %v3831 = vadd.f32 %v3720, %v3810
        %v3832 = vadd.f32 %v3721, %v3810
        %v3833 = vadd.f32 %v3722, %v3810
        %v3834 = vadd.f32 %v3723, %v3810
        %v3835 = vadd.f32 %v3724, %v3810
        %v3836 = vadd.f32 %v3725, %v3810
        %v3837 = vadd.f32 %v3726, %v3810
        %v3838 = vadd.f32 %v3727, %v3810
        %v3839 = vadd.f32 %v3728, %v3810
        %v3840 = vadd.f32 %v3729, %v3810
        %v3841 = vadd.f32 %v3730, %v3810
        %v3842 = vadd.f32 %v3731, %v3810
        %v3843 = vadd.f32 %v3732, %v3810
        %v3844 = vadd.f32 %v3733, %v3810
        %v3845 = vadd.f32 %v3734, %v3810
        %v3846 = vadd.f32 %v3735, %v3810
        %v3847 = vadd.f32 %v3736, %v3810
        %v3848 = vadd.f32 %v3737, %v3810
        %v3849 = vadd.f32 %v3738, %v3810
        %v3850 = vadd.f32 %v3739, %v3810
        %v3851 = vadd.f32 %v3740, %v3810
        %v3852 = vadd.f32 %v3741, %v3810
        %v3853 = vadd.f32 %v3742, %v3810
        %v3854 = vadd.f32 %v3743, %v3810
        %v3855 = vadd.f32 %v3744, %v3810
        %v3856 = vadd.f32 %v3745, %v3810
        %v3857 = vadd.f32 %v3746, %v3810
        %v3858 = vadd.f32 %v3747, %v3810
        %v3859 = vadd.f32 %v3748, %v3810
        %v3860 = vadd.f32 %v3749, %v3810
        %v3861 = vadd.f32 %v3750, %v3810
        %v3862 = vadd.f32 %v3751, %v3810
        %v3863 = vadd.f32 %v3752, %v3810
        %v3864 = vadd.f32 %v3753, %v3810
        %v3865 = vadd.f32 %v3754, %v3810
        %v3866 = vadd.f32 %v3755, %v3810
        %v3867 = vadd.f32 %v3756, %v3810
        %v3868 = vadd.f32 %v3757, %v3810
        %v3869 = vadd.f32 %v3758, %v3810
        %v3870 = vadd.f32 %v3759, %v3810
        %v3871 = vadd.f32 %v3760, %v3810
        %v3872 = vadd.f32 %v3761, %v3810
        %v3873 = vadd.f32 %v3762, %v3810
        %v3874 = vadd.f32 %v3763, %v3810
        %v3875 = vadd.f32 %v3764, %v3810
        %v3876 = vadd.f32 %v3765, %v3810
        %v3877 = vadd.f32 %v3766, %v3810
        %v3878 = vadd.f32 %v3767, %v3810
        %v3879 = vadd.f32 %v3768, %v3810
        %v3880 = vadd.f32 %v3769, %v3810
        %v3881 = vadd.f32 %v3770, %v3810
        %v3882 = vadd.f32 %v3771, %v3810
        %v3883 = vadd.f32 %v3772, %v3810
        %v3884 = vadd.f32 %v3773, %v3810
        %v3885 = vadd.f32 %v3774, %v3810
        %v3886 = vadd.f32 %v3775, %v3810
        %v3887 = vadd.f32 %v3776, %v3810
        %v3888 = vadd.f32 %v3777, %v3810
        %v3889 = vadd.f32 %v3778, %v3810
        %v3890 = vadd.f32 %v3779, %v3810
        %v3891 = vadd.f32 %v3780, %v3810
        %v3892 = vadd.f32 %v3781, %v3810
        %v3893 = vadd.f32 %v3782, %v3810
        %v3894 = vadd.f32 %v3783, %v3810
        %v3895 = vadd.f32 %v3784, %v3810
        %v3896 = vadd.f32 %v3785, %v3810
        %v3897 = vadd.f32 %v3786, %v3810
        %v3898 = vadd.f32 %v3787, %v3810
        %v3899 = vadd.f32 %v3788, %v3810
        %v3900 = vadd.f32 %v3789, %v3810
        %v3901 = vadd.f32 %v3790, %v3810
        %v3902 = vadd.f32 %v3791, %v3810
        %v3903 = vadd.f32 %v3792, %v3810
        %v3904 = vadd.f32 %v3793, %v3810
        %v3905 = vadd.f32 %v3794, %v3810
        %v3906 = vadd.f32 %v3795, %v3810
        %v3907 = vadd.f32 %v3796, %v3810
        %v3908 = vadd.f32 %v3797, %v3810
        %v3909 = vadd.f32 %v3798, %v3810
        %v3910 = vadd.f32 %v3799, %v3810
        %v3911 = vadd.f32 %v3800, %v3810
        %v3912 = vadd.f32 %v3801, %v3810
        %v3913 = vadd.f32 %v3802, %v3810
        %v3914 = vadd.f32 %v3803, %v3810
        %v3915 = vadd.f32 %v3804, %v3810
        %v3916 = vmax.f32 %v3812, 0.0
        %v3917 = vmax.f32 %v3813, 0.0
        %v3918 = vmax.f32 %v3814, 0.0
        %v3919 = vmax.f32 %v3815, 0.0
        %v3920 = vmax.f32 %v3816, 0.0
        %v3921 = vmax.f32 %v3817, 0.0
        %v3922 = vmax.f32 %v3818, 0.0
        %v3923 = vmax.f32 %v3819, 0.0
        %v3924 = vmax.f32 %v3820, 0.0
        %v3925 = vmax.f32 %v3821, 0.0
        %v3926 = vmax.f32 %v3822, 0.0
        %v3927 = vmax.f32 %v3823, 0.0
        %v3928 = vmax.f32 %v3824, 0.0
        %v3929 = vmax.f32 %v3825, 0.0
        %v3930 = vmax.f32 %v3826, 0.0
        %v3931 = vmax.f32 %v3827, 0.0
        %v3932 = vmax.f32 %v3828, 0.0
        %v3933 = vmax.f32 %v3829, 0.0
        %v3934 = vmax.f32 %v3830, 0.0
        %v3935 = vmax.f32 %v3831, 0.0
        %v3936 = vmax.f32 %v3832, 0.0
        %v3937 = vmax.f32 %v3833, 0.0
        %v3938 = vmax.f32 %v3834, 0.0
        %v3939 = vmax.f32 %v3835, 0.0
        %v3940 = vmax.f32 %v3836, 0.0
        %v3941 = vmax.f32 %v3837, 0.0
        %v3942 = vmax.f32 %v3838, 0.0
        %v3943 = vmax.f32 %v3839, 0.0
        %v3944 = vmax.f32 %v3840, 0.0
        %v3945 = vmax.f32 %v3841, 0.0
        %v3946 = vmax.f32 %v3842, 0.0
        %v3947 = vmax.f32 %v3843, 0.0
        %v3948 = vmax.f32 %v3844, 0.0
        %v3949 = vmax.f32 %v3845, 0.0
        %v3950 = vmax.f32 %v3846, 0.0
        %v3951 = vmax.f32 %v3847, 0.0
        %v3952 = vmax.f32 %v3848, 0.0
        %v3953 = vmax.f32 %v3849, 0.0
        %v3954 = vmax.f32 %v3850, 0.0
        %v3955 = vmax.f32 %v3851, 0.0
        %v3956 = vmax.f32 %v3852, 0.0
        %v3957 = vmax.f32 %v3853, 0.0
        %v3958 = vmax.f32 %v3854, 0.0
        %v3959 = vmax.f32 %v3855, 0.0
        %v3960 = vmax.f32 %v3856, 0.0
        %v3961 = vmax.f32 %v3857, 0.0
        %v3962 = vmax.f32 %v3858, 0.0
        %v3963 = vmax.f32 %v3859, 0.0
        %v3964 = vmax.f32 %v3860, 0.0
        %v3965 = vmax.f32 %v3861, 0.0
        %v3966 = vmax.f32 %v3862, 0.0
        %v3967 = vmax.f32 %v3863, 0.0
        %v3968 = vmax.f32 %v3864, 0.0
        %v3969 = vmax.f32 %v3865, 0.0
        %v3970 = vmax.f32 %v3866, 0.0
        %v3971 = vmax.f32 %v3867, 0.0
        %v3972 = vmax.f32 %v3868, 0.0
        %v3973 = vmax.f32 %v3869, 0.0
        %v3974 = vmax.f32 %v3870, 0.0
        %v3975 = vmax.f32 %v3871, 0.0
        %v3976 = vmax.f32 %v3872, 0.0
        %v3977 = vmax.f32 %v3873, 0.0
        %v3978 = vmax.f32 %v3874, 0.0
        %v3979 = vmax.f32 %v3875, 0.0
        %v3980 = vmax.f32 %v3876, 0.0
        %v3981 = vmax.f32 %v3877, 0.0
        %v3982 = vmax.f32 %v3878, 0.0
        %v3983 = vmax.f32 %v3879, 0.0
        %v3984 = vmax.f32 %v3880, 0.0
        %v3985 = vmax.f32 %v3881, 0.0
        %v3986 = vmax.f32 %v3882, 0.0
        %v3987 = vmax.f32 %v3883, 0.0
        %v3988 = vmax.f32 %v3884, 0.0
        %v3989 = vmax.f32 %v3885, 0.0
        %v3990 = vmax.f32 %v3886, 0.0
        %v3991 = vmax.f32 %v3887, 0.0
        %v3992 = vmax.f32 %v3888, 0.0
        %v3993 = vmax.f32 %v3889, 0.0
        %v3994 = vmax.f32 %v3890, 0.0
        %v3995 = vmax.f32 %v3891, 0.0
        %v3996 = vmax.f32 %v3892, 0.0
        %v3997 = vmax.f32 %v3893, 0.0
        %v3998 = vmax.f32 %v3894, 0.0
        %v3999 = vmax.f32 %v3895, 0.0
        %v4000 = vmax.f32 %v3896, 0.0
        %v4001 = vmax.f32 %v3897, 0.0
        %v4002 = vmax.f32 %v3898, 0.0
        %v4003 = vmax.f32 %v3899, 0.0
        %v4004 = vmax.f32 %v3900, 0.0
        %v4005 = vmax.f32 %v3901, 0.0
        %v4006 = vmax.f32 %v3902, 0.0
        %v4007 = vmax.f32 %v3903, 0.0
        %v4008 = vmax.f32 %v3904, 0.0
        %v4009 = vmax.f32 %v3905, 0.0
        %v4010 = vmax.f32 %v3906, 0.0
        %v4011 = vmax.f32 %v3907, 0.0
        %v4012 = vmax.f32 %v3908, 0.0
        %v4013 = vmax.f32 %v3909, 0.0
        %v4014 = vmax.f32 %v3910, 0.0
        %v4015 = vmax.f32 %v3911, 0.0
        %v4016 = vmax.f32 %v3912, 0.0
        %v4017 = vmax.f32 %v3913, 0.0
        %v4018 = vmax.f32 %v3914, 0.0
        %v4019 = vmax.f32 %v3915, 0.0
        %4020 = vst.msk [vmem:[#allocation3] sm:$0xff] %vm938, %v3916
        %4021 = vst.msk [vmem:[#allocation3 + $0x8] sm:$0xff] %vm938, %v3917
        %4022 = vst.msk [vmem:[#allocation3 + $0x10] sm:$0xff] %vm938, %v3918
        %vm4023 = vcmask 254976
        %4024 = vst.msk [vmem:[#allocation3 + $0x18] sm:$0x3] %vm4023, %v3919
        %4025 = vst.msk [vmem:[#allocation3 + $0x20] sm:$0xff] %vm938, %v3920
        %4026 = vst.msk [vmem:[#allocation3 + $0x28] sm:$0xff] %vm938, %v3921
        %4027 = vst.msk [vmem:[#allocation3 + $0x30] sm:$0xff] %vm938, %v3922
        %4028 = vst.msk [vmem:[#allocation3 + $0x38] sm:$0x3] %vm4023, %v3923
        %4029 = vst.msk [vmem:[#allocation3 + $0x40] sm:$0xff] %vm938, %v3924
        %4030 = vst.msk [vmem:[#allocation3 + $0x48] sm:$0xff] %vm938, %v3925
        %4031 = vst.msk [vmem:[#allocation3 + $0x50] sm:$0xff] %vm938, %v3926
        %4032 = vst.msk [vmem:[#allocation3 + $0x58] sm:$0x3] %vm4023, %v3927
        %4033 = vst.msk [vmem:[#allocation3 + $0x60] sm:$0xff] %vm938, %v3928
        %4034 = vst.msk [vmem:[#allocation3 + $0x68] sm:$0xff] %vm938, %v3929
        %4035 = vst.msk [vmem:[#allocation3 + $0x70] sm:$0xff] %vm938, %v3930
        %4036 = vst.msk [vmem:[#allocation3 + $0x78] sm:$0x3] %vm4023, %v3931
        %4037 = vst.msk [vmem:[#allocation3 + $0x80] sm:$0xff] %vm938, %v3932
        %4038 = vst.msk [vmem:[#allocation3 + $0x88] sm:$0xff] %vm938, %v3933
        %4039 = vst.msk [vmem:[#allocation3 + $0x90] sm:$0xff] %vm938, %v3934
        %4040 = vst.msk [vmem:[#allocation3 + $0x98] sm:$0x3] %vm4023, %v3935
        %4041 = vst.msk [vmem:[#allocation3 + $0xa0] sm:$0xff] %vm938, %v3936
        %4042 = vst.msk [vmem:[#allocation3 + $0xa8] sm:$0xff] %vm938, %v3937
        %4043 = vst.msk [vmem:[#allocation3 + $0xb0] sm:$0xff] %vm938, %v3938
        %4044 = vst.msk [vmem:[#allocation3 + $0xb8] sm:$0x3] %vm4023, %v3939
        %4045 = vst.msk [vmem:[#allocation3 + $0xc0] sm:$0xff] %vm938, %v3940
        %4046 = vst.msk [vmem:[#allocation3 + $0xc8] sm:$0xff] %vm938, %v3941
        %4047 = vst.msk [vmem:[#allocation3 + $0xd0] sm:$0xff] %vm938, %v3942
        %4048 = vst.msk [vmem:[#allocation3 + $0xd8] sm:$0x3] %vm4023, %v3943
        %4049 = vst.msk [vmem:[#allocation3 + $0xe0] sm:$0xff] %vm938, %v3944
        %4050 = vst.msk [vmem:[#allocation3 + $0xe8] sm:$0xff] %vm938, %v3945
        %4051 = vst.msk [vmem:[#allocation3 + $0xf0] sm:$0xff] %vm938, %v3946
        %4052 = vst.msk [vmem:[#allocation3 + $0xf8] sm:$0x3] %vm4023, %v3947
        %4053 = vst.msk [vmem:[#allocation3 + $0x100] sm:$0xff] %vm938, %v3948
        %4054 = vst.msk [vmem:[#allocation3 + $0x108] sm:$0xff] %vm938, %v3949
        %4055 = vst.msk [vmem:[#allocation3 + $0x110] sm:$0xff] %vm938, %v3950
        %4056 = vst.msk [vmem:[#allocation3 + $0x118] sm:$0x3] %vm4023, %v3951
        %4057 = vst.msk [vmem:[#allocation3 + $0x120] sm:$0xff] %vm938, %v3952
        %4058 = vst.msk [vmem:[#allocation3 + $0x128] sm:$0xff] %vm938, %v3953
        %4059 = vst.msk [vmem:[#allocation3 + $0x130] sm:$0xff] %vm938, %v3954
        %4060 = vst.msk [vmem:[#allocation3 + $0x138] sm:$0x3] %vm4023, %v3955
        %4061 = vst.msk [vmem:[#allocation3 + $0x140] sm:$0xff] %vm938, %v3956
        %4062 = vst.msk [vmem:[#allocation3 + $0x148] sm:$0xff] %vm938, %v3957
        %4063 = vst.msk [vmem:[#allocation3 + $0x150] sm:$0xff] %vm938, %v3958
        %4064 = vst.msk [vmem:[#allocation3 + $0x158] sm:$0x3] %vm4023, %v3959
        %4065 = vst.msk [vmem:[#allocation3 + $0x160] sm:$0xff] %vm938, %v3960
        %4066 = vst.msk [vmem:[#allocation3 + $0x168] sm:$0xff] %vm938, %v3961
        %4067 = vst.msk [vmem:[#allocation3 + $0x170] sm:$0xff] %vm938, %v3962
        %4068 = vst.msk [vmem:[#allocation3 + $0x178] sm:$0x3] %vm4023, %v3963
        %4069 = vst.msk [vmem:[#allocation3 + $0x180] sm:$0xff] %vm938, %v3964
        %4070 = vst.msk [vmem:[#allocation3 + $0x188] sm:$0xff] %vm938, %v3965
        %4071 = vst.msk [vmem:[#allocation3 + $0x190] sm:$0xff] %vm938, %v3966
        %4072 = vst.msk [vmem:[#allocation3 + $0x198] sm:$0x3] %vm4023, %v3967
        %4073 = vst.msk [vmem:[#allocation3 + $0x1a0] sm:$0xff] %vm938, %v3968
        %4074 = vst.msk [vmem:[#allocation3 + $0x1a8] sm:$0xff] %vm938, %v3969
        %4075 = vst.msk [vmem:[#allocation3 + $0x1b0] sm:$0xff] %vm938, %v3970
        %4076 = vst.msk [vmem:[#allocation3 + $0x1b8] sm:$0x3] %vm4023, %v3971
        %4077 = vst.msk [vmem:[#allocation3 + $0x1c0] sm:$0xff] %vm938, %v3972
        %4078 = vst.msk [vmem:[#allocation3 + $0x1c8] sm:$0xff] %vm938, %v3973
        %4079 = vst.msk [vmem:[#allocation3 + $0x1d0] sm:$0xff] %vm938, %v3974
        %4080 = vst.msk [vmem:[#allocation3 + $0x1d8] sm:$0x3] %vm4023, %v3975
        %4081 = vst.msk [vmem:[#allocation3 + $0x1e0] sm:$0xff] %vm938, %v3976
        %4082 = vst.msk [vmem:[#allocation3 + $0x1e8] sm:$0xff] %vm938, %v3977
        %4083 = vst.msk [vmem:[#allocation3 + $0x1f0] sm:$0xff] %vm938, %v3978
        %4084 = vst.msk [vmem:[#allocation3 + $0x1f8] sm:$0x3] %vm4023, %v3979
        %4085 = vst.msk [vmem:[#allocation3 + $0x200] sm:$0xff] %vm938, %v3980
        %4086 = vst.msk [vmem:[#allocation3 + $0x208] sm:$0xff] %vm938, %v3981
        %4087 = vst.msk [vmem:[#allocation3 + $0x210] sm:$0xff] %vm938, %v3982
        %4088 = vst.msk [vmem:[#allocation3 + $0x218] sm:$0x3] %vm4023, %v3983
        %4089 = vst.msk [vmem:[#allocation3 + $0x220] sm:$0xff] %vm938, %v3984
        %4090 = vst.msk [vmem:[#allocation3 + $0x228] sm:$0xff] %vm938, %v3985
        %4091 = vst.msk [vmem:[#allocation3 + $0x230] sm:$0xff] %vm938, %v3986
        %4092 = vst.msk [vmem:[#allocation3 + $0x238] sm:$0x3] %vm4023, %v3987
        %4093 = vst.msk [vmem:[#allocation3 + $0x240] sm:$0xff] %vm938, %v3988
        %4094 = vst.msk [vmem:[#allocation3 + $0x248] sm:$0xff] %vm938, %v3989
        %4095 = vst.msk [vmem:[#allocation3 + $0x250] sm:$0xff] %vm938, %v3990
        %4096 = vst.msk [vmem:[#allocation3 + $0x258] sm:$0x3] %vm4023, %v3991
        %4097 = vst.msk [vmem:[#allocation3 + $0x260] sm:$0xff] %vm938, %v3992
        %4098 = vst.msk [vmem:[#allocation3 + $0x268] sm:$0xff] %vm938, %v3993
        %4099 = vst.msk [vmem:[#allocation3 + $0x270] sm:$0xff] %vm938, %v3994
        %4100 = vst.msk [vmem:[#allocation3 + $0x278] sm:$0x3] %vm4023, %v3995
        %4101 = vst.msk [vmem:[#allocation3 + $0x280] sm:$0xff] %vm938, %v3996
        %4102 = vst.msk [vmem:[#allocation3 + $0x288] sm:$0xff] %vm938, %v3997
        %4103 = vst.msk [vmem:[#allocation3 + $0x290] sm:$0xff] %vm938, %v3998
        %4104 = vst.msk [vmem:[#allocation3 + $0x298] sm:$0x3] %vm4023, %v3999
        %4105 = vst.msk [vmem:[#allocation3 + $0x2a0] sm:$0xff] %vm938, %v4000
        %4106 = vst.msk [vmem:[#allocation3 + $0x2a8] sm:$0xff] %vm938, %v4001
        %4107 = vst.msk [vmem:[#allocation3 + $0x2b0] sm:$0xff] %vm938, %v4002
        %4108 = vst.msk [vmem:[#allocation3 + $0x2b8] sm:$0x3] %vm4023, %v4003
        %4109 = vst.msk [vmem:[#allocation3 + $0x2c0] sm:$0xff] %vm938, %v4004
        %4110 = vst.msk [vmem:[#allocation3 + $0x2c8] sm:$0xff] %vm938, %v4005
        %4111 = vst.msk [vmem:[#allocation3 + $0x2d0] sm:$0xff] %vm938, %v4006
        %4112 = vst.msk [vmem:[#allocation3 + $0x2d8] sm:$0x3] %vm4023, %v4007
        %4113 = vst.msk [vmem:[#allocation3 + $0x2e0] sm:$0xff] %vm938, %v4008
        %4114 = vst.msk [vmem:[#allocation3 + $0x2e8] sm:$0xff] %vm938, %v4009
        %4115 = vst.msk [vmem:[#allocation3 + $0x2f0] sm:$0xff] %vm938, %v4010
        %4116 = vst.msk [vmem:[#allocation3 + $0x2f8] sm:$0x3] %vm4023, %v4011
        %4117 = vst.msk [vmem:[#allocation3 + $0x300] sm:$0xff] %vm938, %v4012
        %4118 = vst.msk [vmem:[#allocation3 + $0x308] sm:$0xff] %vm938, %v4013
        %4119 = vst.msk [vmem:[#allocation3 + $0x310] sm:$0xff] %vm938, %v4014
        %4120 = vst.msk [vmem:[#allocation3 + $0x318] sm:$0x3] %vm4023, %v4015
        %4121 = vst.msk [vmem:[#allocation3 + $0x320] sm:$0xff] %vm938, %v4016
        %4122 = vst.msk [vmem:[#allocation3 + $0x328] sm:$0xff] %vm938, %v4017
        %4123 = vst.msk [vmem:[#allocation3 + $0x330] sm:$0xff] %vm938, %v4018
        %4124 = vst.msk [vmem:[#allocation3 + $0x338] sm:$0x3] %vm4023, %v4019
        %v4125 = vld [vmem:[#allocation3] sm:$0xff]
        %v4126 = vld [vmem:[#allocation3 + $0x8] sm:$0xff]
        %v4127 = vld [vmem:[#allocation3 + $0x10] sm:$0xff]
        %v4128 = vld [vmem:[#allocation3 + $0x20] sm:$0xff]
        %v4129 = vld [vmem:[#allocation3 + $0x28] sm:$0xff]
        %v4130 = vld [vmem:[#allocation3 + $0x30] sm:$0xff]
        %v4131 = vld [vmem:[#allocation3 + $0x40] sm:$0xff]
        %v4132 = vld [vmem:[#allocation3 + $0x48] sm:$0xff]
        %v4133 = vld [vmem:[#allocation3 + $0x50] sm:$0xff]
        %v4134 = vld [vmem:[#allocation3 + $0x60] sm:$0xff]
        %v4135 = vld [vmem:[#allocation3 + $0x68] sm:$0xff]
        %v4136 = vld [vmem:[#allocation3 + $0x70] sm:$0xff]
        %v4137 = vld [vmem:[#allocation3 + $0x80] sm:$0xff]
        %v4138 = vld [vmem:[#allocation3 + $0x88] sm:$0xff]
        %v4139 = vld [vmem:[#allocation3 + $0x90] sm:$0xff]
        %v4140 = vld [vmem:[#allocation3 + $0xa0] sm:$0xff]
        %v4141 = vld [vmem:[#allocation3 + $0xa8] sm:$0xff]
        %v4142 = vld [vmem:[#allocation3 + $0xb0] sm:$0xff]
        %v4143 = vld [vmem:[#allocation3 + $0xc0] sm:$0xff]
        %v4144 = vld [vmem:[#allocation3 + $0xc8] sm:$0xff]
        %v4145 = vld [vmem:[#allocation3 + $0xd0] sm:$0xff]
        %v4146 = vld [vmem:[#allocation3 + $0xe0] sm:$0xff]
        %v4147 = vld [vmem:[#allocation3 + $0xe8] sm:$0xff]
        %v4148 = vld [vmem:[#allocation3 + $0xf0] sm:$0xff]
        %v4149 = vld [vmem:[#allocation3 + $0x100] sm:$0xff]
        %v4150 = vld [vmem:[#allocation3 + $0x108] sm:$0xff]
        %v4151 = vld [vmem:[#allocation3 + $0x110] sm:$0xff]
        %v4152 = vld [vmem:[#allocation3 + $0x120] sm:$0xff]
        %v4153 = vld [vmem:[#allocation3 + $0x128] sm:$0xff]
        %v4154 = vld [vmem:[#allocation3 + $0x130] sm:$0xff]
        %v4155 = vld [vmem:[#allocation3 + $0x140] sm:$0xff]
        %v4156 = vld [vmem:[#allocation3 + $0x148] sm:$0xff]
        %v4157 = vld [vmem:[#allocation3 + $0x150] sm:$0xff]
        %v4158 = vld [vmem:[#allocation3 + $0x160] sm:$0xff]
        %v4159 = vld [vmem:[#allocation3 + $0x168] sm:$0xff]
        %v4160 = vld [vmem:[#allocation3 + $0x170] sm:$0xff]
        %v4161 = vld [vmem:[#allocation3 + $0x180] sm:$0xff]
        %v4162 = vld [vmem:[#allocation3 + $0x188] sm:$0xff]
        %v4163 = vld [vmem:[#allocation3 + $0x190] sm:$0xff]
        %v4164 = vld [vmem:[#allocation3 + $0x1a0] sm:$0xff]
        %v4165 = vld [vmem:[#allocation3 + $0x1a8] sm:$0xff]
        %v4166 = vld [vmem:[#allocation3 + $0x1b0] sm:$0xff]
        %v4167 = vld [vmem:[#allocation3 + $0x1c0] sm:$0xff]
        %v4168 = vld [vmem:[#allocation3 + $0x1c8] sm:$0xff]
        %v4169 = vld [vmem:[#allocation3 + $0x1d0] sm:$0xff]
        %v4170 = vld [vmem:[#allocation3 + $0x1e0] sm:$0xff]
        %v4171 = vld [vmem:[#allocation3 + $0x1e8] sm:$0xff]
        %v4172 = vld [vmem:[#allocation3 + $0x1f0] sm:$0xff]
        %v4173 = vld [vmem:[#allocation3 + $0x200] sm:$0xff]
        %v4174 = vld [vmem:[#allocation3 + $0x208] sm:$0xff]
        %v4175 = vld [vmem:[#allocation3 + $0x210] sm:$0xff]
        %v4176 = vld [vmem:[#allocation3 + $0x220] sm:$0xff]
        %v4177 = vld [vmem:[#allocation3 + $0x228] sm:$0xff]
        %v4178 = vld [vmem:[#allocation3 + $0x230] sm:$0xff]
        %v4179 = vld [vmem:[#allocation3 + $0x240] sm:$0xff]
        %v4180 = vld [vmem:[#allocation3 + $0x248] sm:$0xff]
        %v4181 = vld [vmem:[#allocation3 + $0x250] sm:$0xff]
        %v4182 = vld [vmem:[#allocation3 + $0x260] sm:$0xff]
        %v4183 = vld [vmem:[#allocation3 + $0x268] sm:$0xff]
        %v4184 = vld [vmem:[#allocation3 + $0x270] sm:$0xff]
        %v4185 = vld [vmem:[#allocation3 + $0x280] sm:$0xff]
        %v4186 = vld [vmem:[#allocation3 + $0x288] sm:$0xff]
        %v4187 = vld [vmem:[#allocation3 + $0x290] sm:$0xff]
        %v4188 = vld [vmem:[#allocation3 + $0x2a0] sm:$0xff]
        %v4189 = vld [vmem:[#allocation3 + $0x2a8] sm:$0xff]
        %v4190 = vld [vmem:[#allocation3 + $0x2b0] sm:$0xff]
        %v4191 = vld [vmem:[#allocation3 + $0x2c0] sm:$0xff]
        %v4192 = vld [vmem:[#allocation3 + $0x2c8] sm:$0xff]
        %v4193 = vld [vmem:[#allocation3 + $0x2d0] sm:$0xff]
        %v4194 = vld [vmem:[#allocation3 + $0x2e0] sm:$0xff]
        %v4195 = vld [vmem:[#allocation3 + $0x2e8] sm:$0xff]
        %v4196 = vld [vmem:[#allocation3 + $0x2f0] sm:$0xff]
        %v4197 = vpack.c.bf16 %v4126, %v4125
        %v4198 = vpack.c.bf16 %v4128, %v4127
        %v4199 = vpack.c.bf16 %v4130, %v4129
        %v4200 = vpack.c.bf16 %v4132, %v4131
        %v4201 = vpack.c.bf16 %v4134, %v4133
        %v4202 = vpack.c.bf16 %v4136, %v4135
        %v4203 = vpack.c.bf16 %v4138, %v4137
        %v4204 = vpack.c.bf16 %v4140, %v4139
        %v4205 = vpack.c.bf16 %v4142, %v4141
        %v4206 = vpack.c.bf16 %v4144, %v4143
        %v4207 = vpack.c.bf16 %v4146, %v4145
        %v4208 = vpack.c.bf16 %v4148, %v4147
        %v4209 = vpack.c.bf16 %v4150, %v4149
        %v4210 = vpack.c.bf16 %v4152, %v4151
        %v4211 = vpack.c.bf16 %v4154, %v4153
        %v4212 = vpack.c.bf16 %v4156, %v4155
        %v4213 = vpack.c.bf16 %v4158, %v4157
        %v4214 = vpack.c.bf16 %v4160, %v4159
        %v4215 = vpack.c.bf16 %v4162, %v4161
        %v4216 = vpack.c.bf16 %v4164, %v4163
        %v4217 = vpack.c.bf16 %v4166, %v4165
        %v4218 = vpack.c.bf16 %v4168, %v4167
        %v4219 = vpack.c.bf16 %v4170, %v4169
        %v4220 = vpack.c.bf16 %v4172, %v4171
        %v4221 = vpack.c.bf16 %v4174, %v4173
        %v4222 = vpack.c.bf16 %v4176, %v4175
        %v4223 = vpack.c.bf16 %v4178, %v4177
        %v4224 = vpack.c.bf16 %v4180, %v4179
        %v4225 = vpack.c.bf16 %v4182, %v4181
        %v4226 = vpack.c.bf16 %v4184, %v4183
        %v4227 = vpack.c.bf16 %v4186, %v4185
        %v4228 = vpack.c.bf16 %v4188, %v4187
        %v4229 = vpack.c.bf16 %v4190, %v4189
        %v4230 = vpack.c.bf16 %v4192, %v4191
        %v4231 = vpack.c.bf16 %v4194, %v4193
        %v4232 = vpack.c.bf16 %v4196, %v4195
        %4233 = vst.msk [vmem:[#allocation4] sm:$0xff] %vm938, %v4197
        %4234 = vst.msk [vmem:[#allocation4 + $0x18] sm:$0xff] %vm938, %v4198
        %4235 = vst.msk [vmem:[#allocation4 + $0x30] sm:$0xff] %vm938, %v4199
        %4236 = vst.msk [vmem:[#allocation4 + $0x48] sm:$0xff] %vm938, %v4200
        %4237 = vst.msk [vmem:[#allocation4 + $0x60] sm:$0xff] %vm938, %v4201
        %4238 = vst.msk [vmem:[#allocation4 + $0x78] sm:$0xff] %vm938, %v4202
        %4239 = vst.msk [vmem:[#allocation4 + $0x90] sm:$0xff] %vm938, %v4203
        %4240 = vst.msk [vmem:[#allocation4 + $0xa8] sm:$0xff] %vm938, %v4204
        %4241 = vst.msk [vmem:[#allocation4 + $0xc0] sm:$0xff] %vm938, %v4205
        %4242 = vst.msk [vmem:[#allocation4 + $0xd8] sm:$0xff] %vm938, %v4206
        %4243 = vst.msk [vmem:[#allocation4 + $0xf0] sm:$0xff] %vm938, %v4207
        %4244 = vst.msk [vmem:[#allocation4 + $0x108] sm:$0xff] %vm938, %v4208
        %4245 = vst.msk [vmem:[#allocation4 + $0x120] sm:$0xff] %vm938, %v4209
        %4246 = vst.msk [vmem:[#allocation4 + $0x138] sm:$0xff] %vm938, %v4210
        %4247 = vst.msk [vmem:[#allocation4 + $0x150] sm:$0xff] %vm938, %v4211
        %4248 = vst.msk [vmem:[#allocation4 + $0x168] sm:$0xff] %vm938, %v4212
        %4249 = vst.msk [vmem:[#allocation4 + $0x180] sm:$0xff] %vm938, %v4213
        %4250 = vst.msk [vmem:[#allocation4 + $0x198] sm:$0xff] %vm938, %v4214
        %4251 = vst.msk [vmem:[#allocation4 + $0x1b0] sm:$0xff] %vm938, %v4215
        %4252 = vst.msk [vmem:[#allocation4 + $0x1c8] sm:$0xff] %vm938, %v4216
        %4253 = vst.msk [vmem:[#allocation4 + $0x1e0] sm:$0xff] %vm938, %v4217
        %4254 = vst.msk [vmem:[#allocation4 + $0x1f8] sm:$0xff] %vm938, %v4218
        %4255 = vst.msk [vmem:[#allocation4 + $0x210] sm:$0xff] %vm938, %v4219
        %4256 = vst.msk [vmem:[#allocation4 + $0x228] sm:$0xff] %vm938, %v4220
        %4257 = vst.msk [vmem:[#allocation4 + $0x240] sm:$0xff] %vm938, %v4221
        %4258 = vst.msk [vmem:[#allocation4 + $0x258] sm:$0xff] %vm938, %v4222
        %4259 = vst.msk [vmem:[#allocation4 + $0x270] sm:$0xff] %vm938, %v4223
        %4260 = vst.msk [vmem:[#allocation4 + $0x288] sm:$0xff] %vm938, %v4224
        %4261 = vst.msk [vmem:[#allocation4 + $0x2a0] sm:$0xff] %vm938, %v4225
        %4262 = vst.msk [vmem:[#allocation4 + $0x2b8] sm:$0xff] %vm938, %v4226
        %4263 = vst.msk [vmem:[#allocation4 + $0x2d0] sm:$0xff] %vm938, %v4227
        %4264 = vst.msk [vmem:[#allocation4 + $0x2e8] sm:$0xff] %vm938, %v4228
        %4265 = vst.msk [vmem:[#allocation4 + $0x300] sm:$0xff] %vm938, %v4229
        %4266 = vst.msk [vmem:[#allocation4 + $0x318] sm:$0xff] %vm938, %v4230
        %4267 = vst.msk [vmem:[#allocation4 + $0x330] sm:$0xff] %vm938, %v4231
        %4268 = vst.msk [vmem:[#allocation4 + $0x348] sm:$0xff] %vm938, %v4232
        %v4269 = vld [vmem:[#allocation3 + $0x1] sm:$0xff]
        %v4270 = vld [vmem:[#allocation3 + $0x9] sm:$0xff]
        %v4271 = vld [vmem:[#allocation3 + $0x11] sm:$0xff]
        %v4272 = vld [vmem:[#allocation3 + $0x21] sm:$0xff]
        %v4273 = vld [vmem:[#allocation3 + $0x29] sm:$0xff]
        %v4274 = vld [vmem:[#allocation3 + $0x31] sm:$0xff]
        %v4275 = vld [vmem:[#allocation3 + $0x41] sm:$0xff]
        %v4276 = vld [vmem:[#allocation3 + $0x49] sm:$0xff]
        %v4277 = vld [vmem:[#allocation3 + $0x51] sm:$0xff]
        %v4278 = vld [vmem:[#allocation3 + $0x61] sm:$0xff]
        %v4279 = vld [vmem:[#allocation3 + $0x69] sm:$0xff]
        %v4280 = vld [vmem:[#allocation3 + $0x71] sm:$0xff]
        %v4281 = vld [vmem:[#allocation3 + $0x81] sm:$0xff]
        %v4282 = vld [vmem:[#allocation3 + $0x89] sm:$0xff]
        %v4283 = vld [vmem:[#allocation3 + $0x91] sm:$0xff]
        %v4284 = vld [vmem:[#allocation3 + $0xa1] sm:$0xff]
        %v4285 = vld [vmem:[#allocation3 + $0xa9] sm:$0xff]
        %v4286 = vld [vmem:[#allocation3 + $0xb1] sm:$0xff]
        %v4287 = vld [vmem:[#allocation3 + $0xc1] sm:$0xff]
        %v4288 = vld [vmem:[#allocation3 + $0xc9] sm:$0xff]
        %v4289 = vld [vmem:[#allocation3 + $0xd1] sm:$0xff]
        %v4290 = vld [vmem:[#allocation3 + $0xe1] sm:$0xff]
        %v4291 = vld [vmem:[#allocation3 + $0xe9] sm:$0xff]
        %v4292 = vld [vmem:[#allocation3 + $0xf1] sm:$0xff]
        %v4293 = vld [vmem:[#allocation3 + $0x101] sm:$0xff]
        %v4294 = vld [vmem:[#allocation3 + $0x109] sm:$0xff]
        %v4295 = vld [vmem:[#allocation3 + $0x111] sm:$0xff]
        %v4296 = vld [vmem:[#allocation3 + $0x121] sm:$0xff]
        %v4297 = vld [vmem:[#allocation3 + $0x129] sm:$0xff]
        %v4298 = vld [vmem:[#allocation3 + $0x131] sm:$0xff]
        %v4299 = vld [vmem:[#allocation3 + $0x141] sm:$0xff]
        %v4300 = vld [vmem:[#allocation3 + $0x149] sm:$0xff]
        %v4301 = vld [vmem:[#allocation3 + $0x151] sm:$0xff]
        %v4302 = vld [vmem:[#allocation3 + $0x161] sm:$0xff]
        %v4303 = vld [vmem:[#allocation3 + $0x169] sm:$0xff]
        %v4304 = vld [vmem:[#allocation3 + $0x171] sm:$0xff]
        %v4305 = vld [vmem:[#allocation3 + $0x181] sm:$0xff]
        %v4306 = vld [vmem:[#allocation3 + $0x189] sm:$0xff]
        %v4307 = vld [vmem:[#allocation3 + $0x191] sm:$0xff]
        %v4308 = vld [vmem:[#allocation3 + $0x1a1] sm:$0xff]
        %v4309 = vld [vmem:[#allocation3 + $0x1a9] sm:$0xff]
        %v4310 = vld [vmem:[#allocation3 + $0x1b1] sm:$0xff]
        %v4311 = vld [vmem:[#allocation3 + $0x1c1] sm:$0xff]
        %v4312 = vld [vmem:[#allocation3 + $0x1c9] sm:$0xff]
        %v4313 = vld [vmem:[#allocation3 + $0x1d1] sm:$0xff]
        %v4314 = vld [vmem:[#allocation3 + $0x1e1] sm:$0xff]
        %v4315 = vld [vmem:[#allocation3 + $0x1e9] sm:$0xff]
        %v4316 = vld [vmem:[#allocation3 + $0x1f1] sm:$0xff]
        %v4317 = vld [vmem:[#allocation3 + $0x201] sm:$0xff]
        %v4318 = vld [vmem:[#allocation3 + $0x209] sm:$0xff]
        %v4319 = vld [vmem:[#allocation3 + $0x211] sm:$0xff]
        %v4320 = vld [vmem:[#allocation3 + $0x221] sm:$0xff]
        %v4321 = vld [vmem:[#allocation3 + $0x229] sm:$0xff]
        %v4322 = vld [vmem:[#allocation3 + $0x231] sm:$0xff]
        %v4323 = vld [vmem:[#allocation3 + $0x241] sm:$0xff]
        %v4324 = vld [vmem:[#allocation3 + $0x249] sm:$0xff]
        %v4325 = vld [vmem:[#allocation3 + $0x251] sm:$0xff]
        %v4326 = vld [vmem:[#allocation3 + $0x261] sm:$0xff]
        %v4327 = vld [vmem:[#allocation3 + $0x269] sm:$0xff]
        %v4328 = vld [vmem:[#allocation3 + $0x271] sm:$0xff]
        %v4329 = vld [vmem:[#allocation3 + $0x281] sm:$0xff]
        %v4330 = vld [vmem:[#allocation3 + $0x289] sm:$0xff]
        %v4331 = vld [vmem:[#allocation3 + $0x291] sm:$0xff]
        %v4332 = vld [vmem:[#allocation3 + $0x2a1] sm:$0xff]
        %v4333 = vld [vmem:[#allocation3 + $0x2a9] sm:$0xff]
        %v4334 = vld [vmem:[#allocation3 + $0x2b1] sm:$0xff]
        %v4335 = vld [vmem:[#allocation3 + $0x2c1] sm:$0xff]
        %v4336 = vld [vmem:[#allocation3 + $0x2c9] sm:$0xff]
        %v4337 = vld [vmem:[#allocation3 + $0x2d1] sm:$0xff]
        %v4338 = vld [vmem:[#allocation3 + $0x2e1] sm:$0xff]
        %v4339 = vld [vmem:[#allocation3 + $0x2e9] sm:$0xff]
        %v4340 = vld [vmem:[#allocation3 + $0x2f1] sm:$0xff]
        %v4341 = vpack.c.bf16 %v4270, %v4269
        %v4342 = vpack.c.bf16 %v4272, %v4271
        %v4343 = vpack.c.bf16 %v4274, %v4273
        %v4344 = vpack.c.bf16 %v4276, %v4275
        %v4345 = vpack.c.bf16 %v4278, %v4277
        %v4346 = vpack.c.bf16 %v4280, %v4279
        %v4347 = vpack.c.bf16 %v4282, %v4281
        %v4348 = vpack.c.bf16 %v4284, %v4283
        %v4349 = vpack.c.bf16 %v4286, %v4285
        %v4350 = vpack.c.bf16 %v4288, %v4287
        %v4351 = vpack.c.bf16 %v4290, %v4289
        %v4352 = vpack.c.bf16 %v4292, %v4291
        %v4353 = vpack.c.bf16 %v4294, %v4293
        %v4354 = vpack.c.bf16 %v4296, %v4295
        %v4355 = vpack.c.bf16 %v4298, %v4297
        %v4356 = vpack.c.bf16 %v4300, %v4299
        %v4357 = vpack.c.bf16 %v4302, %v4301
        %v4358 = vpack.c.bf16 %v4304, %v4303
        %v4359 = vpack.c.bf16 %v4306, %v4305
        %v4360 = vpack.c.bf16 %v4308, %v4307
        %v4361 = vpack.c.bf16 %v4310, %v4309
        %v4362 = vpack.c.bf16 %v4312, %v4311
        %v4363 = vpack.c.bf16 %v4314, %v4313
        %v4364 = vpack.c.bf16 %v4316, %v4315
        %v4365 = vpack.c.bf16 %v4318, %v4317
        %v4366 = vpack.c.bf16 %v4320, %v4319
        %v4367 = vpack.c.bf16 %v4322, %v4321
        %v4368 = vpack.c.bf16 %v4324, %v4323
        %v4369 = vpack.c.bf16 %v4326, %v4325
        %v4370 = vpack.c.bf16 %v4328, %v4327
        %v4371 = vpack.c.bf16 %v4330, %v4329
        %v4372 = vpack.c.bf16 %v4332, %v4331
        %v4373 = vpack.c.bf16 %v4334, %v4333
        %v4374 = vpack.c.bf16 %v4336, %v4335
        %v4375 = vpack.c.bf16 %v4338, %v4337
        %v4376 = vpack.c.bf16 %v4340, %v4339
        %4413 = vrot.lane.b32.xlu0 %v4341, 32
        %v4414 = vpop.permute.xlu0 %4413
        %4415 = vrot.lane.b32.xlu0 %v4342, 32
        %v4416 = vpop.permute.xlu0 %4415
        %4417 = vrot.lane.b32.xlu0 %v4343, 32
        %v4418 = vpop.permute.xlu0 %4417
        %4419 = vrot.lane.b32.xlu0 %v4344, 32
        %v4420 = vpop.permute.xlu0 %4419
        %4421 = vrot.lane.b32.xlu0 %v4345, 32
        %v4422 = vpop.permute.xlu0 %4421
        %4423 = vrot.lane.b32.xlu0 %v4346, 32
        %v4424 = vpop.permute.xlu0 %4423
        %4425 = vrot.lane.b32.xlu0 %v4347, 32
        %v4426 = vpop.permute.xlu0 %4425
        %4427 = vrot.lane.b32.xlu0 %v4348, 32
        %v4428 = vpop.permute.xlu0 %4427
        %4429 = vrot.lane.b32.xlu0 %v4349, 32
        %v4430 = vpop.permute.xlu0 %4429
        %4431 = vrot.lane.b32.xlu0 %v4350, 32
        %v4432 = vpop.permute.xlu0 %4431
        %4433 = vrot.lane.b32.xlu0 %v4351, 32
        %v4434 = vpop.permute.xlu0 %4433
        %4435 = vrot.lane.b32.xlu0 %v4352, 32
        %v4436 = vpop.permute.xlu0 %4435
        %4437 = vrot.lane.b32.xlu0 %v4353, 32
        %v4438 = vpop.permute.xlu0 %4437
        %4439 = vrot.lane.b32.xlu0 %v4354, 32
        %v4440 = vpop.permute.xlu0 %4439
        %4441 = vrot.lane.b32.xlu0 %v4355, 32
        %v4442 = vpop.permute.xlu0 %4441
        %4443 = vrot.lane.b32.xlu0 %v4356, 32
        %v4444 = vpop.permute.xlu0 %4443
        %4445 = vrot.lane.b32.xlu0 %v4357, 32
        %v4446 = vpop.permute.xlu0 %4445
        %4447 = vrot.lane.b32.xlu0 %v4358, 32
        %v4448 = vpop.permute.xlu0 %4447
        %4449 = vrot.lane.b32.xlu0 %v4359, 32
        %v4450 = vpop.permute.xlu0 %4449
        %4451 = vrot.lane.b32.xlu0 %v4360, 32
        %v4452 = vpop.permute.xlu0 %4451
        %4453 = vrot.lane.b32.xlu0 %v4361, 32
        %v4454 = vpop.permute.xlu0 %4453
        %4455 = vrot.lane.b32.xlu0 %v4362, 32
        %v4456 = vpop.permute.xlu0 %4455
        %4457 = vrot.lane.b32.xlu0 %v4363, 32
        %v4458 = vpop.permute.xlu0 %4457
        %4459 = vrot.lane.b32.xlu0 %v4364, 32
        %v4460 = vpop.permute.xlu0 %4459
        %4461 = vrot.lane.b32.xlu0 %v4365, 32
        %v4462 = vpop.permute.xlu0 %4461
        %4463 = vrot.lane.b32.xlu0 %v4366, 32
        %v4464 = vpop.permute.xlu0 %4463
        %4465 = vrot.lane.b32.xlu0 %v4367, 32
        %v4466 = vpop.permute.xlu0 %4465
        %4467 = vrot.lane.b32.xlu0 %v4368, 32
        %v4468 = vpop.permute.xlu0 %4467
        %4469 = vrot.lane.b32.xlu0 %v4369, 32
        %v4470 = vpop.permute.xlu0 %4469
        %4471 = vrot.lane.b32.xlu0 %v4370, 32
        %v4472 = vpop.permute.xlu0 %4471
        %4473 = vrot.lane.b32.xlu0 %v4371, 32
        %v4474 = vpop.permute.xlu0 %4473
        %4475 = vrot.lane.b32.xlu0 %v4372, 32
        %v4476 = vpop.permute.xlu0 %4475
        %4477 = vrot.lane.b32.xlu0 %v4373, 32
        %v4478 = vpop.permute.xlu0 %4477
        %4479 = vrot.lane.b32.xlu0 %v4374, 32
        %v4480 = vpop.permute.xlu0 %4479
        %4481 = vrot.lane.b32.xlu0 %v4375, 32
        %v4482 = vpop.permute.xlu0 %4481
        %4483 = vrot.lane.b32.xlu0 %v4376, 32
        %v4484 = vpop.permute.xlu0 %4483
        %vm4521 = vcmask 523520
        %4522 = vst.msk [vmem:[#allocation4] sm:$0xff] %vm4521, %v4414
        %4523 = vst.msk [vmem:[#allocation4 + $0x18] sm:$0xff] %vm4521, %v4416
        %4524 = vst.msk [vmem:[#allocation4 + $0x30] sm:$0xff] %vm4521, %v4418
        %4525 = vst.msk [vmem:[#allocation4 + $0x48] sm:$0xff] %vm4521, %v4420
        %4526 = vst.msk [vmem:[#allocation4 + $0x60] sm:$0xff] %vm4521, %v4422
        %4527 = vst.msk [vmem:[#allocation4 + $0x78] sm:$0xff] %vm4521, %v4424
        %4528 = vst.msk [vmem:[#allocation4 + $0x90] sm:$0xff] %vm4521, %v4426
        %4529 = vst.msk [vmem:[#allocation4 + $0xa8] sm:$0xff] %vm4521, %v4428
        %4530 = vst.msk [vmem:[#allocation4 + $0xc0] sm:$0xff] %vm4521, %v4430
        %4531 = vst.msk [vmem:[#allocation4 + $0xd8] sm:$0xff] %vm4521, %v4432
        %4532 = vst.msk [vmem:[#allocation4 + $0xf0] sm:$0xff] %vm4521, %v4434
        %4533 = vst.msk [vmem:[#allocation4 + $0x108] sm:$0xff] %vm4521, %v4436
        %4534 = vst.msk [vmem:[#allocation4 + $0x120] sm:$0xff] %vm4521, %v4438
        %4535 = vst.msk [vmem:[#allocation4 + $0x138] sm:$0xff] %vm4521, %v4440
        %4536 = vst.msk [vmem:[#allocation4 + $0x150] sm:$0xff] %vm4521, %v4442
        %4537 = vst.msk [vmem:[#allocation4 + $0x168] sm:$0xff] %vm4521, %v4444
        %4538 = vst.msk [vmem:[#allocation4 + $0x180] sm:$0xff] %vm4521, %v4446
        %4539 = vst.msk [vmem:[#allocation4 + $0x198] sm:$0xff] %vm4521, %v4448
        %4540 = vst.msk [vmem:[#allocation4 + $0x1b0] sm:$0xff] %vm4521, %v4450
        %4541 = vst.msk [vmem:[#allocation4 + $0x1c8] sm:$0xff] %vm4521, %v4452
        %4542 = vst.msk [vmem:[#allocation4 + $0x1e0] sm:$0xff] %vm4521, %v4454
        %4543 = vst.msk [vmem:[#allocation4 + $0x1f8] sm:$0xff] %vm4521, %v4456
        %4544 = vst.msk [vmem:[#allocation4 + $0x210] sm:$0xff] %vm4521, %v4458
        %4545 = vst.msk [vmem:[#allocation4 + $0x228] sm:$0xff] %vm4521, %v4460
        %4546 = vst.msk [vmem:[#allocation4 + $0x240] sm:$0xff] %vm4521, %v4462
        %4547 = vst.msk [vmem:[#allocation4 + $0x258] sm:$0xff] %vm4521, %v4464
        %4548 = vst.msk [vmem:[#allocation4 + $0x270] sm:$0xff] %vm4521, %v4466
        %4549 = vst.msk [vmem:[#allocation4 + $0x288] sm:$0xff] %vm4521, %v4468
        %4550 = vst.msk [vmem:[#allocation4 + $0x2a0] sm:$0xff] %vm4521, %v4470
        %4551 = vst.msk [vmem:[#allocation4 + $0x2b8] sm:$0xff] %vm4521, %v4472
        %4552 = vst.msk [vmem:[#allocation4 + $0x2d0] sm:$0xff] %vm4521, %v4474
        %4553 = vst.msk [vmem:[#allocation4 + $0x2e8] sm:$0xff] %vm4521, %v4476
        %4554 = vst.msk [vmem:[#allocation4 + $0x300] sm:$0xff] %vm4521, %v4478
        %4555 = vst.msk [vmem:[#allocation4 + $0x318] sm:$0xff] %vm4521, %v4480
        %4556 = vst.msk [vmem:[#allocation4 + $0x330] sm:$0xff] %vm4521, %v4482
        %4557 = vst.msk [vmem:[#allocation4 + $0x348] sm:$0xff] %vm4521, %v4484
        %v4558 = vld [vmem:[#allocation3 + $0x2] sm:$0xff]
        %v4559 = vld [vmem:[#allocation3 + $0xa] sm:$0xff]
        %v4560 = vld [vmem:[#allocation3 + $0x12] sm:$0xff]
        %v4561 = vld [vmem:[#allocation3 + $0x22] sm:$0xff]
        %v4562 = vld [vmem:[#allocation3 + $0x2a] sm:$0xff]
        %v4563 = vld [vmem:[#allocation3 + $0x32] sm:$0xff]
        %v4564 = vld [vmem:[#allocation3 + $0x42] sm:$0xff]
        %v4565 = vld [vmem:[#allocation3 + $0x4a] sm:$0xff]
        %v4566 = vld [vmem:[#allocation3 + $0x52] sm:$0xff]
        %v4567 = vld [vmem:[#allocation3 + $0x62] sm:$0xff]
        %v4568 = vld [vmem:[#allocation3 + $0x6a] sm:$0xff]
        %v4569 = vld [vmem:[#allocation3 + $0x72] sm:$0xff]
        %v4570 = vld [vmem:[#allocation3 + $0x82] sm:$0xff]
        %v4571 = vld [vmem:[#allocation3 + $0x8a] sm:$0xff]
        %v4572 = vld [vmem:[#allocation3 + $0x92] sm:$0xff]
        %v4573 = vld [vmem:[#allocation3 + $0xa2] sm:$0xff]
        %v4574 = vld [vmem:[#allocation3 + $0xaa] sm:$0xff]
        %v4575 = vld [vmem:[#allocation3 + $0xb2] sm:$0xff]
        %v4576 = vld [vmem:[#allocation3 + $0xc2] sm:$0xff]
        %v4577 = vld [vmem:[#allocation3 + $0xca] sm:$0xff]
        %v4578 = vld [vmem:[#allocation3 + $0xd2] sm:$0xff]
        %v4579 = vld [vmem:[#allocation3 + $0xe2] sm:$0xff]
        %v4580 = vld [vmem:[#allocation3 + $0xea] sm:$0xff]
        %v4581 = vld [vmem:[#allocation3 + $0xf2] sm:$0xff]
        %v4582 = vld [vmem:[#allocation3 + $0x102] sm:$0xff]
        %v4583 = vld [vmem:[#allocation3 + $0x10a] sm:$0xff]
        %v4584 = vld [vmem:[#allocation3 + $0x112] sm:$0xff]
        %v4585 = vld [vmem:[#allocation3 + $0x122] sm:$0xff]
        %v4586 = vld [vmem:[#allocation3 + $0x12a] sm:$0xff]
        %v4587 = vld [vmem:[#allocation3 + $0x132] sm:$0xff]
        %v4588 = vld [vmem:[#allocation3 + $0x142] sm:$0xff]
        %v4589 = vld [vmem:[#allocation3 + $0x14a] sm:$0xff]
        %v4590 = vld [vmem:[#allocation3 + $0x152] sm:$0xff]
        %v4591 = vld [vmem:[#allocation3 + $0x162] sm:$0xff]
        %v4592 = vld [vmem:[#allocation3 + $0x16a] sm:$0xff]
        %v4593 = vld [vmem:[#allocation3 + $0x172] sm:$0xff]
        %v4594 = vld [vmem:[#allocation3 + $0x182] sm:$0xff]
        %v4595 = vld [vmem:[#allocation3 + $0x18a] sm:$0xff]
        %v4596 = vld [vmem:[#allocation3 + $0x192] sm:$0xff]
        %v4597 = vld [vmem:[#allocation3 + $0x1a2] sm:$0xff]
        %v4598 = vld [vmem:[#allocation3 + $0x1aa] sm:$0xff]
        %v4599 = vld [vmem:[#allocation3 + $0x1b2] sm:$0xff]
        %v4600 = vld [vmem:[#allocation3 + $0x1c2] sm:$0xff]
        %v4601 = vld [vmem:[#allocation3 + $0x1ca] sm:$0xff]
        %v4602 = vld [vmem:[#allocation3 + $0x1d2] sm:$0xff]
        %v4603 = vld [vmem:[#allocation3 + $0x1e2] sm:$0xff]
        %v4604 = vld [vmem:[#allocation3 + $0x1ea] sm:$0xff]
        %v4605 = vld [vmem:[#allocation3 + $0x1f2] sm:$0xff]
        %v4606 = vld [vmem:[#allocation3 + $0x202] sm:$0xff]
        %v4607 = vld [vmem:[#allocation3 + $0x20a] sm:$0xff]
        %v4608 = vld [vmem:[#allocation3 + $0x212] sm:$0xff]
        %v4609 = vld [vmem:[#allocation3 + $0x222] sm:$0xff]
        %v4610 = vld [vmem:[#allocation3 + $0x22a] sm:$0xff]
        %v4611 = vld [vmem:[#allocation3 + $0x232] sm:$0xff]
        %v4612 = vld [vmem:[#allocation3 + $0x242] sm:$0xff]
        %v4613 = vld [vmem:[#allocation3 + $0x24a] sm:$0xff]
        %v4614 = vld [vmem:[#allocation3 + $0x252] sm:$0xff]
        %v4615 = vld [vmem:[#allocation3 + $0x262] sm:$0xff]
        %v4616 = vld [vmem:[#allocation3 + $0x26a] sm:$0xff]
        %v4617 = vld [vmem:[#allocation3 + $0x272] sm:$0xff]
        %v4618 = vld [vmem:[#allocation3 + $0x282] sm:$0xff]
        %v4619 = vld [vmem:[#allocation3 + $0x28a] sm:$0xff]
        %v4620 = vld [vmem:[#allocation3 + $0x292] sm:$0xff]
        %v4621 = vld [vmem:[#allocation3 + $0x2a2] sm:$0xff]
        %v4622 = vld [vmem:[#allocation3 + $0x2aa] sm:$0xff]
        %v4623 = vld [vmem:[#allocation3 + $0x2b2] sm:$0xff]
        %v4624 = vld [vmem:[#allocation3 + $0x2c2] sm:$0xff]
        %v4625 = vld [vmem:[#allocation3 + $0x2ca] sm:$0xff]
        %v4626 = vld [vmem:[#allocation3 + $0x2d2] sm:$0xff]
        %v4627 = vld [vmem:[#allocation3 + $0x2e2] sm:$0xff]
        %v4628 = vld [vmem:[#allocation3 + $0x2ea] sm:$0xff]
        %v4629 = vld [vmem:[#allocation3 + $0x2f2] sm:$0xff]
        %v4630 = vpack.c.bf16 %v4559, %v4558
        %v4631 = vpack.c.bf16 %v4561, %v4560
        %v4632 = vpack.c.bf16 %v4563, %v4562
        %v4633 = vpack.c.bf16 %v4565, %v4564
        %v4634 = vpack.c.bf16 %v4567, %v4566
        %v4635 = vpack.c.bf16 %v4569, %v4568
        %v4636 = vpack.c.bf16 %v4571, %v4570
        %v4637 = vpack.c.bf16 %v4573, %v4572
        %v4638 = vpack.c.bf16 %v4575, %v4574
        %v4639 = vpack.c.bf16 %v4577, %v4576
        %v4640 = vpack.c.bf16 %v4579, %v4578
        %v4641 = vpack.c.bf16 %v4581, %v4580
        %v4642 = vpack.c.bf16 %v4583, %v4582
        %v4643 = vpack.c.bf16 %v4585, %v4584
        %v4644 = vpack.c.bf16 %v4587, %v4586
        %v4645 = vpack.c.bf16 %v4589, %v4588
        %v4646 = vpack.c.bf16 %v4591, %v4590
        %v4647 = vpack.c.bf16 %v4593, %v4592
        %v4648 = vpack.c.bf16 %v4595, %v4594
        %v4649 = vpack.c.bf16 %v4597, %v4596
        %v4650 = vpack.c.bf16 %v4599, %v4598
        %v4651 = vpack.c.bf16 %v4601, %v4600
        %v4652 = vpack.c.bf16 %v4603, %v4602
        %v4653 = vpack.c.bf16 %v4605, %v4604
        %v4654 = vpack.c.bf16 %v4607, %v4606
        %v4655 = vpack.c.bf16 %v4609, %v4608
        %v4656 = vpack.c.bf16 %v4611, %v4610
        %v4657 = vpack.c.bf16 %v4613, %v4612
        %v4658 = vpack.c.bf16 %v4615, %v4614
        %v4659 = vpack.c.bf16 %v4617, %v4616
        %v4660 = vpack.c.bf16 %v4619, %v4618
        %v4661 = vpack.c.bf16 %v4621, %v4620
        %v4662 = vpack.c.bf16 %v4623, %v4622
        %v4663 = vpack.c.bf16 %v4625, %v4624
        %v4664 = vpack.c.bf16 %v4627, %v4626
        %v4665 = vpack.c.bf16 %v4629, %v4628
        %4702 = vrot.lane.b32.xlu0 %v4630, 64
        %v4703 = vpop.permute.xlu0 %4702
        %4704 = vrot.lane.b32.xlu0 %v4631, 64
        %v4705 = vpop.permute.xlu0 %4704
        %4706 = vrot.lane.b32.xlu0 %v4632, 64
        %v4707 = vpop.permute.xlu0 %4706
        %4708 = vrot.lane.b32.xlu0 %v4633, 64
        %v4709 = vpop.permute.xlu0 %4708
        %4710 = vrot.lane.b32.xlu0 %v4634, 64
        %v4711 = vpop.permute.xlu0 %4710
        %4712 = vrot.lane.b32.xlu0 %v4635, 64
        %v4713 = vpop.permute.xlu0 %4712
        %4714 = vrot.lane.b32.xlu0 %v4636, 64
        %v4715 = vpop.permute.xlu0 %4714
        %4716 = vrot.lane.b32.xlu0 %v4637, 64
        %v4717 = vpop.permute.xlu0 %4716
        %4718 = vrot.lane.b32.xlu0 %v4638, 64
        %v4719 = vpop.permute.xlu0 %4718
        %4720 = vrot.lane.b32.xlu0 %v4639, 64
        %v4721 = vpop.permute.xlu0 %4720
        %4722 = vrot.lane.b32.xlu0 %v4640, 64
        %v4723 = vpop.permute.xlu0 %4722
        %4724 = vrot.lane.b32.xlu0 %v4641, 64
        %v4725 = vpop.permute.xlu0 %4724
        %4726 = vrot.lane.b32.xlu0 %v4642, 64
        %v4727 = vpop.permute.xlu0 %4726
        %4728 = vrot.lane.b32.xlu0 %v4643, 64
        %v4729 = vpop.permute.xlu0 %4728
        %4730 = vrot.lane.b32.xlu0 %v4644, 64
        %v4731 = vpop.permute.xlu0 %4730
        %4732 = vrot.lane.b32.xlu0 %v4645, 64
        %v4733 = vpop.permute.xlu0 %4732
        %4734 = vrot.lane.b32.xlu0 %v4646, 64
        %v4735 = vpop.permute.xlu0 %4734
        %4736 = vrot.lane.b32.xlu0 %v4647, 64
        %v4737 = vpop.permute.xlu0 %4736
        %4738 = vrot.lane.b32.xlu0 %v4648, 64
        %v4739 = vpop.permute.xlu0 %4738
        %4740 = vrot.lane.b32.xlu0 %v4649, 64
        %v4741 = vpop.permute.xlu0 %4740
        %4742 = vrot.lane.b32.xlu0 %v4650, 64
        %v4743 = vpop.permute.xlu0 %4742
        %4744 = vrot.lane.b32.xlu0 %v4651, 64
        %v4745 = vpop.permute.xlu0 %4744
        %4746 = vrot.lane.b32.xlu0 %v4652, 64
        %v4747 = vpop.permute.xlu0 %4746
        %4748 = vrot.lane.b32.xlu0 %v4653, 64
        %v4749 = vpop.permute.xlu0 %4748
        %4750 = vrot.lane.b32.xlu0 %v4654, 64
        %v4751 = vpop.permute.xlu0 %4750
        %4752 = vrot.lane.b32.xlu0 %v4655, 64
        %v4753 = vpop.permute.xlu0 %4752
        %4754 = vrot.lane.b32.xlu0 %v4656, 64
        %v4755 = vpop.permute.xlu0 %4754
        %4756 = vrot.lane.b32.xlu0 %v4657, 64
        %v4757 = vpop.permute.xlu0 %4756
        %4758 = vrot.lane.b32.xlu0 %v4658, 64
        %v4759 = vpop.permute.xlu0 %4758
        %4760 = vrot.lane.b32.xlu0 %v4659, 64
        %v4761 = vpop.permute.xlu0 %4760
        %4762 = vrot.lane.b32.xlu0 %v4660, 64
        %v4763 = vpop.permute.xlu0 %4762
        %4764 = vrot.lane.b32.xlu0 %v4661, 64
        %v4765 = vpop.permute.xlu0 %4764
        %4766 = vrot.lane.b32.xlu0 %v4662, 64
        %v4767 = vpop.permute.xlu0 %4766
        %4768 = vrot.lane.b32.xlu0 %v4663, 64
        %v4769 = vpop.permute.xlu0 %4768
        %4770 = vrot.lane.b32.xlu0 %v4664, 64
        %v4771 = vpop.permute.xlu0 %4770
        %4772 = vrot.lane.b32.xlu0 %v4665, 64
        %v4773 = vpop.permute.xlu0 %4772
        %vm4810 = vcmask 785920
        %4811 = vst.msk [vmem:[#allocation4] sm:$0xff] %vm4810, %v4703
        %4812 = vst.msk [vmem:[#allocation4 + $0x18] sm:$0xff] %vm4810, %v4705
        %4813 = vst.msk [vmem:[#allocation4 + $0x30] sm:$0xff] %vm4810, %v4707
        %4814 = vst.msk [vmem:[#allocation4 + $0x48] sm:$0xff] %vm4810, %v4709
        %4815 = vst.msk [vmem:[#allocation4 + $0x60] sm:$0xff] %vm4810, %v4711
        %4816 = vst.msk [vmem:[#allocation4 + $0x78] sm:$0xff] %vm4810, %v4713
        %4817 = vst.msk [vmem:[#allocation4 + $0x90] sm:$0xff] %vm4810, %v4715
        %4818 = vst.msk [vmem:[#allocation4 + $0xa8] sm:$0xff] %vm4810, %v4717
        %4819 = vst.msk [vmem:[#allocation4 + $0xc0] sm:$0xff] %vm4810, %v4719
        %4820 = vst.msk [vmem:[#allocation4 + $0xd8] sm:$0xff] %vm4810, %v4721
        %4821 = vst.msk [vmem:[#allocation4 + $0xf0] sm:$0xff] %vm4810, %v4723
        %4822 = vst.msk [vmem:[#allocation4 + $0x108] sm:$0xff] %vm4810, %v4725
        %4823 = vst.msk [vmem:[#allocation4 + $0x120] sm:$0xff] %vm4810, %v4727
        %4824 = vst.msk [vmem:[#allocation4 + $0x138] sm:$0xff] %vm4810, %v4729
        %4825 = vst.msk [vmem:[#allocation4 + $0x150] sm:$0xff] %vm4810, %v4731
        %4826 = vst.msk [vmem:[#allocation4 + $0x168] sm:$0xff] %vm4810, %v4733
        %4827 = vst.msk [vmem:[#allocation4 + $0x180] sm:$0xff] %vm4810, %v4735
        %4828 = vst.msk [vmem:[#allocation4 + $0x198] sm:$0xff] %vm4810, %v4737
        %4829 = vst.msk [vmem:[#allocation4 + $0x1b0] sm:$0xff] %vm4810, %v4739
        %4830 = vst.msk [vmem:[#allocation4 + $0x1c8] sm:$0xff] %vm4810, %v4741
        %4831 = vst.msk [vmem:[#allocation4 + $0x1e0] sm:$0xff] %vm4810, %v4743
        %4832 = vst.msk [vmem:[#allocation4 + $0x1f8] sm:$0xff] %vm4810, %v4745
        %4833 = vst.msk [vmem:[#allocation4 + $0x210] sm:$0xff] %vm4810, %v4747
        %4834 = vst.msk [vmem:[#allocation4 + $0x228] sm:$0xff] %vm4810, %v4749
        %4835 = vst.msk [vmem:[#allocation4 + $0x240] sm:$0xff] %vm4810, %v4751
        %4836 = vst.msk [vmem:[#allocation4 + $0x258] sm:$0xff] %vm4810, %v4753
        %4837 = vst.msk [vmem:[#allocation4 + $0x270] sm:$0xff] %vm4810, %v4755
        %4838 = vst.msk [vmem:[#allocation4 + $0x288] sm:$0xff] %vm4810, %v4757
        %4839 = vst.msk [vmem:[#allocation4 + $0x2a0] sm:$0xff] %vm4810, %v4759
        %4840 = vst.msk [vmem:[#allocation4 + $0x2b8] sm:$0xff] %vm4810, %v4761
        %4841 = vst.msk [vmem:[#allocation4 + $0x2d0] sm:$0xff] %vm4810, %v4763
        %4842 = vst.msk [vmem:[#allocation4 + $0x2e8] sm:$0xff] %vm4810, %v4765
        %4843 = vst.msk [vmem:[#allocation4 + $0x300] sm:$0xff] %vm4810, %v4767
        %4844 = vst.msk [vmem:[#allocation4 + $0x318] sm:$0xff] %vm4810, %v4769
        %4845 = vst.msk [vmem:[#allocation4 + $0x330] sm:$0xff] %vm4810, %v4771
        %4846 = vst.msk [vmem:[#allocation4 + $0x348] sm:$0xff] %vm4810, %v4773
        %s4847 = scalar_lea.vmem [#allocation3], 32
        %v4848 = vld [vmem:[%s4847] sm:$0xff]
        %v4849 = vld [vmem:[%s4847 + $0x8] sm:$0xff]
        %v4850 = vld [vmem:[%s4847 + $0x10] sm:$0xff]
        %v4851 = vld [vmem:[%s4847 + $0x20] sm:$0xff]
        %v4852 = vld [vmem:[%s4847 + $0x28] sm:$0xff]
        %v4853 = vld [vmem:[%s4847 + $0x30] sm:$0xff]
        %v4854 = vld [vmem:[%s4847 + $0x40] sm:$0xff]
        %v4855 = vld [vmem:[%s4847 + $0x48] sm:$0xff]
        %v4856 = vld [vmem:[%s4847 + $0x50] sm:$0xff]
        %v4857 = vld [vmem:[%s4847 + $0x60] sm:$0xff]
        %v4858 = vld [vmem:[%s4847 + $0x68] sm:$0xff]
        %v4859 = vld [vmem:[%s4847 + $0x70] sm:$0xff]
        %v4860 = vld [vmem:[%s4847 + $0x80] sm:$0xff]
        %v4861 = vld [vmem:[%s4847 + $0x88] sm:$0xff]
        %v4862 = vld [vmem:[%s4847 + $0x90] sm:$0xff]
        %v4863 = vld [vmem:[%s4847 + $0xa0] sm:$0xff]
        %v4864 = vld [vmem:[%s4847 + $0xa8] sm:$0xff]
        %v4865 = vld [vmem:[%s4847 + $0xb0] sm:$0xff]
        %v4866 = vld [vmem:[%s4847 + $0xc0] sm:$0xff]
        %v4867 = vld [vmem:[%s4847 + $0xc8] sm:$0xff]
        %v4868 = vld [vmem:[%s4847 + $0xd0] sm:$0xff]
        %v4869 = vld [vmem:[%s4847 + $0xe0] sm:$0xff]
        %v4870 = vld [vmem:[%s4847 + $0xe8] sm:$0xff]
        %v4871 = vld [vmem:[%s4847 + $0xf0] sm:$0xff]
        %v4872 = vld [vmem:[%s4847 + $0x100] sm:$0xff]
        %v4873 = vld [vmem:[%s4847 + $0x108] sm:$0xff]
        %v4874 = vld [vmem:[%s4847 + $0x110] sm:$0xff]
        %v4875 = vld [vmem:[%s4847 + $0x120] sm:$0xff]
        %v4876 = vld [vmem:[%s4847 + $0x128] sm:$0xff]
        %v4877 = vld [vmem:[%s4847 + $0x130] sm:$0xff]
        %v4878 = vld [vmem:[%s4847 + $0x140] sm:$0xff]
        %v4879 = vld [vmem:[%s4847 + $0x148] sm:$0xff]
        %v4880 = vld [vmem:[%s4847 + $0x150] sm:$0xff]
        %v4881 = vld [vmem:[%s4847 + $0x160] sm:$0xff]
        %v4882 = vld [vmem:[%s4847 + $0x168] sm:$0xff]
        %v4883 = vld [vmem:[%s4847 + $0x170] sm:$0xff]
        %v4884 = vld [vmem:[%s4847 + $0x180] sm:$0xff]
        %v4885 = vld [vmem:[%s4847 + $0x188] sm:$0xff]
        %v4886 = vld [vmem:[%s4847 + $0x190] sm:$0xff]
        %v4887 = vld [vmem:[%s4847 + $0x1a0] sm:$0xff]
        %v4888 = vld [vmem:[%s4847 + $0x1a8] sm:$0xff]
        %v4889 = vld [vmem:[%s4847 + $0x1b0] sm:$0xff]
        %v4890 = vld [vmem:[%s4847 + $0x1c0] sm:$0xff]
        %v4891 = vld [vmem:[%s4847 + $0x1c8] sm:$0xff]
        %v4892 = vld [vmem:[%s4847 + $0x1d0] sm:$0xff]
        %v4893 = vld [vmem:[%s4847 + $0x1e0] sm:$0xff]
        %v4894 = vld [vmem:[%s4847 + $0x1e8] sm:$0xff]
        %v4895 = vld [vmem:[%s4847 + $0x1f0] sm:$0xff]
        %v4896 = vld [vmem:[%s4847 + $0x200] sm:$0xff]
        %v4897 = vld [vmem:[%s4847 + $0x208] sm:$0xff]
        %v4898 = vld [vmem:[%s4847 + $0x210] sm:$0xff]
        %v4899 = vld [vmem:[%s4847 + $0x220] sm:$0xff]
        %v4900 = vld [vmem:[%s4847 + $0x228] sm:$0xff]
        %v4901 = vld [vmem:[%s4847 + $0x230] sm:$0xff]
        %v4902 = vld [vmem:[%s4847 + $0x240] sm:$0xff]
        %v4903 = vld [vmem:[%s4847 + $0x248] sm:$0xff]
        %v4904 = vld [vmem:[%s4847 + $0x250] sm:$0xff]
        %v4905 = vld [vmem:[%s4847 + $0x260] sm:$0xff]
        %v4906 = vld [vmem:[%s4847 + $0x268] sm:$0xff]
        %v4907 = vld [vmem:[%s4847 + $0x270] sm:$0xff]
        %v4908 = vld [vmem:[%s4847 + $0x280] sm:$0xff]
        %v4909 = vld [vmem:[%s4847 + $0x288] sm:$0xff]
        %v4910 = vld [vmem:[%s4847 + $0x290] sm:$0xff]
        %v4911 = vld [vmem:[%s4847 + $0x2a0] sm:$0xff]
        %v4912 = vld [vmem:[%s4847 + $0x2a8] sm:$0xff]
        %v4913 = vld [vmem:[%s4847 + $0x2b0] sm:$0xff]
        %v4914 = vld [vmem:[%s4847 + $0x2c0] sm:$0xff]
        %v4915 = vld [vmem:[%s4847 + $0x2c8] sm:$0xff]
        %v4916 = vld [vmem:[%s4847 + $0x2d0] sm:$0xff]
        %v4917 = vld [vmem:[%s4847 + $0x2e0] sm:$0xff]
        %v4918 = vld [vmem:[%s4847 + $0x2e8] sm:$0xff]
        %v4919 = vld [vmem:[%s4847 + $0x2f0] sm:$0xff]
        %v4920 = vpack.c.bf16 %v4849, %v4848
        %v4921 = vpack.c.bf16 %v4851, %v4850
        %v4922 = vpack.c.bf16 %v4853, %v4852
        %v4923 = vpack.c.bf16 %v4855, %v4854
        %v4924 = vpack.c.bf16 %v4857, %v4856
        %v4925 = vpack.c.bf16 %v4859, %v4858
        %v4926 = vpack.c.bf16 %v4861, %v4860
        %v4927 = vpack.c.bf16 %v4863, %v4862
        %v4928 = vpack.c.bf16 %v4865, %v4864
        %v4929 = vpack.c.bf16 %v4867, %v4866
        %v4930 = vpack.c.bf16 %v4869, %v4868
        %v4931 = vpack.c.bf16 %v4871, %v4870
        %v4932 = vpack.c.bf16 %v4873, %v4872
        %v4933 = vpack.c.bf16 %v4875, %v4874
        %v4934 = vpack.c.bf16 %v4877, %v4876
        %v4935 = vpack.c.bf16 %v4879, %v4878
        %v4936 = vpack.c.bf16 %v4881, %v4880
        %v4937 = vpack.c.bf16 %v4883, %v4882
        %v4938 = vpack.c.bf16 %v4885, %v4884
        %v4939 = vpack.c.bf16 %v4887, %v4886
        %v4940 = vpack.c.bf16 %v4889, %v4888
        %v4941 = vpack.c.bf16 %v4891, %v4890
        %v4942 = vpack.c.bf16 %v4893, %v4892
        %v4943 = vpack.c.bf16 %v4895, %v4894
        %v4944 = vpack.c.bf16 %v4897, %v4896
        %v4945 = vpack.c.bf16 %v4899, %v4898
        %v4946 = vpack.c.bf16 %v4901, %v4900
        %v4947 = vpack.c.bf16 %v4903, %v4902
        %v4948 = vpack.c.bf16 %v4905, %v4904
        %v4949 = vpack.c.bf16 %v4907, %v4906
        %v4950 = vpack.c.bf16 %v4909, %v4908
        %v4951 = vpack.c.bf16 %v4911, %v4910
        %v4952 = vpack.c.bf16 %v4913, %v4912
        %v4953 = vpack.c.bf16 %v4915, %v4914
        %v4954 = vpack.c.bf16 %v4917, %v4916
        %v4955 = vpack.c.bf16 %v4919, %v4918
        %4992 = vrot.lane.b32.xlu0 %v4920, 96
        %v4993 = vpop.permute.xlu0 %4992
        %4994 = vrot.lane.b32.xlu0 %v4921, 96
        %v4995 = vpop.permute.xlu0 %4994
        %4996 = vrot.lane.b32.xlu0 %v4922, 96
        %v4997 = vpop.permute.xlu0 %4996
        %4998 = vrot.lane.b32.xlu0 %v4923, 96
        %v4999 = vpop.permute.xlu0 %4998
        %5000 = vrot.lane.b32.xlu0 %v4924, 96
        %v5001 = vpop.permute.xlu0 %5000
        %5002 = vrot.lane.b32.xlu0 %v4925, 96
        %v5003 = vpop.permute.xlu0 %5002
        %5004 = vrot.lane.b32.xlu0 %v4926, 96
        %v5005 = vpop.permute.xlu0 %5004
        %5006 = vrot.lane.b32.xlu0 %v4927, 96
        %v5007 = vpop.permute.xlu0 %5006
        %5008 = vrot.lane.b32.xlu0 %v4928, 96
        %v5009 = vpop.permute.xlu0 %5008
        %5010 = vrot.lane.b32.xlu0 %v4929, 96
        %v5011 = vpop.permute.xlu0 %5010
        %5012 = vrot.lane.b32.xlu0 %v4930, 96
        %v5013 = vpop.permute.xlu0 %5012
        %5014 = vrot.lane.b32.xlu0 %v4931, 96
        %v5015 = vpop.permute.xlu0 %5014
        %5016 = vrot.lane.b32.xlu0 %v4932, 96
        %v5017 = vpop.permute.xlu0 %5016
        %5018 = vrot.lane.b32.xlu0 %v4933, 96
        %v5019 = vpop.permute.xlu0 %5018
        %5020 = vrot.lane.b32.xlu0 %v4934, 96
        %v5021 = vpop.permute.xlu0 %5020
        %5022 = vrot.lane.b32.xlu0 %v4935, 96
        %v5023 = vpop.permute.xlu0 %5022
        %5024 = vrot.lane.b32.xlu0 %v4936, 96
        %v5025 = vpop.permute.xlu0 %5024
        %5026 = vrot.lane.b32.xlu0 %v4937, 96
        %v5027 = vpop.permute.xlu0 %5026
        %5028 = vrot.lane.b32.xlu0 %v4938, 96
        %v5029 = vpop.permute.xlu0 %5028
        %5030 = vrot.lane.b32.xlu0 %v4939, 96
        %v5031 = vpop.permute.xlu0 %5030
        %5032 = vrot.lane.b32.xlu0 %v4940, 96
        %v5033 = vpop.permute.xlu0 %5032
        %5034 = vrot.lane.b32.xlu0 %v4941, 96
        %v5035 = vpop.permute.xlu0 %5034
        %5036 = vrot.lane.b32.xlu0 %v4942, 96
        %v5037 = vpop.permute.xlu0 %5036
        %5038 = vrot.lane.b32.xlu0 %v4943, 96
        %v5039 = vpop.permute.xlu0 %5038
        %5040 = vrot.lane.b32.xlu0 %v4944, 96
        %v5041 = vpop.permute.xlu0 %5040
        %5042 = vrot.lane.b32.xlu0 %v4945, 96
        %v5043 = vpop.permute.xlu0 %5042
        %5044 = vrot.lane.b32.xlu0 %v4946, 96
        %v5045 = vpop.permute.xlu0 %5044
        %5046 = vrot.lane.b32.xlu0 %v4947, 96
        %v5047 = vpop.permute.xlu0 %5046
        %5048 = vrot.lane.b32.xlu0 %v4948, 96
        %v5049 = vpop.permute.xlu0 %5048
        %5050 = vrot.lane.b32.xlu0 %v4949, 96
        %v5051 = vpop.permute.xlu0 %5050
        %5052 = vrot.lane.b32.xlu0 %v4950, 96
        %v5053 = vpop.permute.xlu0 %5052
        %5054 = vrot.lane.b32.xlu0 %v4951, 96
        %v5055 = vpop.permute.xlu0 %5054
        %5056 = vrot.lane.b32.xlu0 %v4952, 96
        %v5057 = vpop.permute.xlu0 %5056
        %5058 = vrot.lane.b32.xlu0 %v4953, 96
        %v5059 = vpop.permute.xlu0 %5058
        %5060 = vrot.lane.b32.xlu0 %v4954, 96
        %v5061 = vpop.permute.xlu0 %5060
        %5062 = vrot.lane.b32.xlu0 %v4955, 96
        %v5063 = vpop.permute.xlu0 %5062
        %vm5100 = vcmask 1048320
        %5101 = vst.msk [vmem:[#allocation4] sm:$0xff] %vm5100, %v4993
        %5102 = vst.msk [vmem:[#allocation4 + $0x18] sm:$0xff] %vm5100, %v4995
        %5103 = vst.msk [vmem:[#allocation4 + $0x30] sm:$0xff] %vm5100, %v4997
        %5104 = vst.msk [vmem:[#allocation4 + $0x48] sm:$0xff] %vm5100, %v4999
        %5105 = vst.msk [vmem:[#allocation4 + $0x60] sm:$0xff] %vm5100, %v5001
        %5106 = vst.msk [vmem:[#allocation4 + $0x78] sm:$0xff] %vm5100, %v5003
        %5107 = vst.msk [vmem:[#allocation4 + $0x90] sm:$0xff] %vm5100, %v5005
        %5108 = vst.msk [vmem:[#allocation4 + $0xa8] sm:$0xff] %vm5100, %v5007
        %5109 = vst.msk [vmem:[#allocation4 + $0xc0] sm:$0xff] %vm5100, %v5009
        %5110 = vst.msk [vmem:[#allocation4 + $0xd8] sm:$0xff] %vm5100, %v5011
        %5111 = vst.msk [vmem:[#allocation4 + $0xf0] sm:$0xff] %vm5100, %v5013
        %5112 = vst.msk [vmem:[#allocation4 + $0x108] sm:$0xff] %vm5100, %v5015
        %5113 = vst.msk [vmem:[#allocation4 + $0x120] sm:$0xff] %vm5100, %v5017
        %5114 = vst.msk [vmem:[#allocation4 + $0x138] sm:$0xff] %vm5100, %v5019
        %5115 = vst.msk [vmem:[#allocation4 + $0x150] sm:$0xff] %vm5100, %v5021
        %5116 = vst.msk [vmem:[#allocation4 + $0x168] sm:$0xff] %vm5100, %v5023
        %5117 = vst.msk [vmem:[#allocation4 + $0x180] sm:$0xff] %vm5100, %v5025
        %5118 = vst.msk [vmem:[#allocation4 + $0x198] sm:$0xff] %vm5100, %v5027
        %5119 = vst.msk [vmem:[#allocation4 + $0x1b0] sm:$0xff] %vm5100, %v5029
        %5120 = vst.msk [vmem:[#allocation4 + $0x1c8] sm:$0xff] %vm5100, %v5031
        %5121 = vst.msk [vmem:[#allocation4 + $0x1e0] sm:$0xff] %vm5100, %v5033
        %5122 = vst.msk [vmem:[#allocation4 + $0x1f8] sm:$0xff] %vm5100, %v5035
        %5123 = vst.msk [vmem:[#allocation4 + $0x210] sm:$0xff] %vm5100, %v5037
        %5124 = vst.msk [vmem:[#allocation4 + $0x228] sm:$0xff] %vm5100, %v5039
        %5125 = vst.msk [vmem:[#allocation4 + $0x240] sm:$0xff] %vm5100, %v5041
        %5126 = vst.msk [vmem:[#allocation4 + $0x258] sm:$0xff] %vm5100, %v5043
        %5127 = vst.msk [vmem:[#allocation4 + $0x270] sm:$0xff] %vm5100, %v5045
        %5128 = vst.msk [vmem:[#allocation4 + $0x288] sm:$0xff] %vm5100, %v5047
        %5129 = vst.msk [vmem:[#allocation4 + $0x2a0] sm:$0xff] %vm5100, %v5049
        %5130 = vst.msk [vmem:[#allocation4 + $0x2b8] sm:$0xff] %vm5100, %v5051
        %5131 = vst.msk [vmem:[#allocation4 + $0x2d0] sm:$0xff] %vm5100, %v5053
        %5132 = vst.msk [vmem:[#allocation4 + $0x2e8] sm:$0xff] %vm5100, %v5055
        %5133 = vst.msk [vmem:[#allocation4 + $0x300] sm:$0xff] %vm5100, %v5057
        %5134 = vst.msk [vmem:[#allocation4 + $0x318] sm:$0xff] %vm5100, %v5059
        %5135 = vst.msk [vmem:[#allocation4 + $0x330] sm:$0xff] %vm5100, %v5061
        %5136 = vst.msk [vmem:[#allocation4 + $0x348] sm:$0xff] %vm5100, %v5063
        %v5137 = vld [vmem:[%s4847 + $0x1] sm:$0xff]
        %v5138 = vld [vmem:[%s4847 + $0x9] sm:$0xff]
        %v5139 = vld [vmem:[%s4847 + $0x11] sm:$0xff]
        %v5140 = vld [vmem:[%s4847 + $0x21] sm:$0xff]
        %v5141 = vld [vmem:[%s4847 + $0x29] sm:$0xff]
        %v5142 = vld [vmem:[%s4847 + $0x31] sm:$0xff]
        %v5143 = vld [vmem:[%s4847 + $0x41] sm:$0xff]
        %v5144 = vld [vmem:[%s4847 + $0x49] sm:$0xff]
        %v5145 = vld [vmem:[%s4847 + $0x51] sm:$0xff]
        %v5146 = vld [vmem:[%s4847 + $0x61] sm:$0xff]
        %v5147 = vld [vmem:[%s4847 + $0x69] sm:$0xff]
        %v5148 = vld [vmem:[%s4847 + $0x71] sm:$0xff]
        %v5149 = vld [vmem:[%s4847 + $0x81] sm:$0xff]
        %v5150 = vld [vmem:[%s4847 + $0x89] sm:$0xff]
        %v5151 = vld [vmem:[%s4847 + $0x91] sm:$0xff]
        %v5152 = vld [vmem:[%s4847 + $0xa1] sm:$0xff]
        %v5153 = vld [vmem:[%s4847 + $0xa9] sm:$0xff]
        %v5154 = vld [vmem:[%s4847 + $0xb1] sm:$0xff]
        %v5155 = vld [vmem:[%s4847 + $0xc1] sm:$0xff]
        %v5156 = vld [vmem:[%s4847 + $0xc9] sm:$0xff]
        %v5157 = vld [vmem:[%s4847 + $0xd1] sm:$0xff]
        %v5158 = vld [vmem:[%s4847 + $0xe1] sm:$0xff]
        %v5159 = vld [vmem:[%s4847 + $0xe9] sm:$0xff]
        %v5160 = vld [vmem:[%s4847 + $0xf1] sm:$0xff]
        %v5161 = vld [vmem:[%s4847 + $0x101] sm:$0xff]
        %v5162 = vld [vmem:[%s4847 + $0x109] sm:$0xff]
        %v5163 = vld [vmem:[%s4847 + $0x111] sm:$0xff]
        %v5164 = vld [vmem:[%s4847 + $0x121] sm:$0xff]
        %v5165 = vld [vmem:[%s4847 + $0x129] sm:$0xff]
        %v5166 = vld [vmem:[%s4847 + $0x131] sm:$0xff]
        %v5167 = vld [vmem:[%s4847 + $0x141] sm:$0xff]
        %v5168 = vld [vmem:[%s4847 + $0x149] sm:$0xff]
        %v5169 = vld [vmem:[%s4847 + $0x151] sm:$0xff]
        %v5170 = vld [vmem:[%s4847 + $0x161] sm:$0xff]
        %v5171 = vld [vmem:[%s4847 + $0x169] sm:$0xff]
        %v5172 = vld [vmem:[%s4847 + $0x171] sm:$0xff]
        %v5173 = vld [vmem:[%s4847 + $0x181] sm:$0xff]
        %v5174 = vld [vmem:[%s4847 + $0x189] sm:$0xff]
        %v5175 = vld [vmem:[%s4847 + $0x191] sm:$0xff]
        %v5176 = vld [vmem:[%s4847 + $0x1a1] sm:$0xff]
        %v5177 = vld [vmem:[%s4847 + $0x1a9] sm:$0xff]
        %v5178 = vld [vmem:[%s4847 + $0x1b1] sm:$0xff]
        %v5179 = vld [vmem:[%s4847 + $0x1c1] sm:$0xff]
        %v5180 = vld [vmem:[%s4847 + $0x1c9] sm:$0xff]
        %v5181 = vld [vmem:[%s4847 + $0x1d1] sm:$0xff]
        %v5182 = vld [vmem:[%s4847 + $0x1e1] sm:$0xff]
        %v5183 = vld [vmem:[%s4847 + $0x1e9] sm:$0xff]
        %v5184 = vld [vmem:[%s4847 + $0x1f1] sm:$0xff]
        %v5185 = vld [vmem:[%s4847 + $0x201] sm:$0xff]
        %v5186 = vld [vmem:[%s4847 + $0x209] sm:$0xff]
        %v5187 = vld [vmem:[%s4847 + $0x211] sm:$0xff]
        %v5188 = vld [vmem:[%s4847 + $0x221] sm:$0xff]
        %v5189 = vld [vmem:[%s4847 + $0x229] sm:$0xff]
        %v5190 = vld [vmem:[%s4847 + $0x231] sm:$0xff]
        %v5191 = vld [vmem:[%s4847 + $0x241] sm:$0xff]
        %v5192 = vld [vmem:[%s4847 + $0x249] sm:$0xff]
        %v5193 = vld [vmem:[%s4847 + $0x251] sm:$0xff]
        %v5194 = vld [vmem:[%s4847 + $0x261] sm:$0xff]
        %v5195 = vld [vmem:[%s4847 + $0x269] sm:$0xff]
        %v5196 = vld [vmem:[%s4847 + $0x271] sm:$0xff]
        %v5197 = vld [vmem:[%s4847 + $0x281] sm:$0xff]
        %v5198 = vld [vmem:[%s4847 + $0x289] sm:$0xff]
        %v5199 = vld [vmem:[%s4847 + $0x291] sm:$0xff]
        %v5200 = vld [vmem:[%s4847 + $0x2a1] sm:$0xff]
        %v5201 = vld [vmem:[%s4847 + $0x2a9] sm:$0xff]
        %v5202 = vld [vmem:[%s4847 + $0x2b1] sm:$0xff]
        %v5203 = vld [vmem:[%s4847 + $0x2c1] sm:$0xff]
        %v5204 = vld [vmem:[%s4847 + $0x2c9] sm:$0xff]
        %v5205 = vld [vmem:[%s4847 + $0x2d1] sm:$0xff]
        %v5206 = vld [vmem:[%s4847 + $0x2e1] sm:$0xff]
        %v5207 = vld [vmem:[%s4847 + $0x2e9] sm:$0xff]
        %v5208 = vld [vmem:[%s4847 + $0x2f1] sm:$0xff]
        %v5209 = vpack.c.bf16 %v5138, %v5137
        %v5210 = vpack.c.bf16 %v5140, %v5139
        %v5211 = vpack.c.bf16 %v5142, %v5141
        %v5212 = vpack.c.bf16 %v5144, %v5143
        %v5213 = vpack.c.bf16 %v5146, %v5145
        %v5214 = vpack.c.bf16 %v5148, %v5147
        %v5215 = vpack.c.bf16 %v5150, %v5149
        %v5216 = vpack.c.bf16 %v5152, %v5151
        %v5217 = vpack.c.bf16 %v5154, %v5153
        %v5218 = vpack.c.bf16 %v5156, %v5155
        %v5219 = vpack.c.bf16 %v5158, %v5157
        %v5220 = vpack.c.bf16 %v5160, %v5159
        %v5221 = vpack.c.bf16 %v5162, %v5161
        %v5222 = vpack.c.bf16 %v5164, %v5163
        %v5223 = vpack.c.bf16 %v5166, %v5165
        %v5224 = vpack.c.bf16 %v5168, %v5167
        %v5225 = vpack.c.bf16 %v5170, %v5169
        %v5226 = vpack.c.bf16 %v5172, %v5171
        %v5227 = vpack.c.bf16 %v5174, %v5173
        %v5228 = vpack.c.bf16 %v5176, %v5175
        %v5229 = vpack.c.bf16 %v5178, %v5177
        %v5230 = vpack.c.bf16 %v5180, %v5179
        %v5231 = vpack.c.bf16 %v5182, %v5181
        %v5232 = vpack.c.bf16 %v5184, %v5183
        %v5233 = vpack.c.bf16 %v5186, %v5185
        %v5234 = vpack.c.bf16 %v5188, %v5187
        %v5235 = vpack.c.bf16 %v5190, %v5189
        %v5236 = vpack.c.bf16 %v5192, %v5191
        %v5237 = vpack.c.bf16 %v5194, %v5193
        %v5238 = vpack.c.bf16 %v5196, %v5195
        %v5239 = vpack.c.bf16 %v5198, %v5197
        %v5240 = vpack.c.bf16 %v5200, %v5199
        %v5241 = vpack.c.bf16 %v5202, %v5201
        %v5242 = vpack.c.bf16 %v5204, %v5203
        %v5243 = vpack.c.bf16 %v5206, %v5205
        %v5244 = vpack.c.bf16 %v5208, %v5207
        %5245 = vst.msk [vmem:[#allocation4 + $0x8] sm:$0xff] %vm938, %v5209
        %5246 = vst.msk [vmem:[#allocation4 + $0x20] sm:$0xff] %vm938, %v5210
        %5247 = vst.msk [vmem:[#allocation4 + $0x38] sm:$0xff] %vm938, %v5211
        %5248 = vst.msk [vmem:[#allocation4 + $0x50] sm:$0xff] %vm938, %v5212
        %5249 = vst.msk [vmem:[#allocation4 + $0x68] sm:$0xff] %vm938, %v5213
        %5250 = vst.msk [vmem:[#allocation4 + $0x80] sm:$0xff] %vm938, %v5214
        %5251 = vst.msk [vmem:[#allocation4 + $0x98] sm:$0xff] %vm938, %v5215
        %5252 = vst.msk [vmem:[#allocation4 + $0xb0] sm:$0xff] %vm938, %v5216
        %5253 = vst.msk [vmem:[#allocation4 + $0xc8] sm:$0xff] %vm938, %v5217
        %5254 = vst.msk [vmem:[#allocation4 + $0xe0] sm:$0xff] %vm938, %v5218
        %5255 = vst.msk [vmem:[#allocation4 + $0xf8] sm:$0xff] %vm938, %v5219
        %5256 = vst.msk [vmem:[#allocation4 + $0x110] sm:$0xff] %vm938, %v5220
        %5257 = vst.msk [vmem:[#allocation4 + $0x128] sm:$0xff] %vm938, %v5221
        %5258 = vst.msk [vmem:[#allocation4 + $0x140] sm:$0xff] %vm938, %v5222
        %5259 = vst.msk [vmem:[#allocation4 + $0x158] sm:$0xff] %vm938, %v5223
        %5260 = vst.msk [vmem:[#allocation4 + $0x170] sm:$0xff] %vm938, %v5224
        %5261 = vst.msk [vmem:[#allocation4 + $0x188] sm:$0xff] %vm938, %v5225
        %5262 = vst.msk [vmem:[#allocation4 + $0x1a0] sm:$0xff] %vm938, %v5226
        %5263 = vst.msk [vmem:[#allocation4 + $0x1b8] sm:$0xff] %vm938, %v5227
        %5264 = vst.msk [vmem:[#allocation4 + $0x1d0] sm:$0xff] %vm938, %v5228
        %5265 = vst.msk [vmem:[#allocation4 + $0x1e8] sm:$0xff] %vm938, %v5229
        %5266 = vst.msk [vmem:[#allocation4 + $0x200] sm:$0xff] %vm938, %v5230
        %5267 = vst.msk [vmem:[#allocation4 + $0x218] sm:$0xff] %vm938, %v5231
        %5268 = vst.msk [vmem:[#allocation4 + $0x230] sm:$0xff] %vm938, %v5232
        %5269 = vst.msk [vmem:[#allocation4 + $0x248] sm:$0xff] %vm938, %v5233
        %5270 = vst.msk [vmem:[#allocation4 + $0x260] sm:$0xff] %vm938, %v5234
        %5271 = vst.msk [vmem:[#allocation4 + $0x278] sm:$0xff] %vm938, %v5235
        %5272 = vst.msk [vmem:[#allocation4 + $0x290] sm:$0xff] %vm938, %v5236
        %5273 = vst.msk [vmem:[#allocation4 + $0x2a8] sm:$0xff] %vm938, %v5237
        %5274 = vst.msk [vmem:[#allocation4 + $0x2c0] sm:$0xff] %vm938, %v5238
        %5275 = vst.msk [vmem:[#allocation4 + $0x2d8] sm:$0xff] %vm938, %v5239
        %5276 = vst.msk [vmem:[#allocation4 + $0x2f0] sm:$0xff] %vm938, %v5240
        %5277 = vst.msk [vmem:[#allocation4 + $0x308] sm:$0xff] %vm938, %v5241
        %5278 = vst.msk [vmem:[#allocation4 + $0x320] sm:$0xff] %vm938, %v5242
        %5279 = vst.msk [vmem:[#allocation4 + $0x338] sm:$0xff] %vm938, %v5243
        %5280 = vst.msk [vmem:[#allocation4 + $0x350] sm:$0xff] %vm938, %v5244
        %v5281 = vld [vmem:[%s4847 + $0x2] sm:$0xff]
        %v5282 = vld [vmem:[%s4847 + $0xa] sm:$0xff]
        %v5283 = vld [vmem:[%s4847 + $0x12] sm:$0xff]
        %v5284 = vld [vmem:[%s4847 + $0x22] sm:$0xff]
        %v5285 = vld [vmem:[%s4847 + $0x2a] sm:$0xff]
        %v5286 = vld [vmem:[%s4847 + $0x32] sm:$0xff]
        %v5287 = vld [vmem:[%s4847 + $0x42] sm:$0xff]
        %v5288 = vld [vmem:[%s4847 + $0x4a] sm:$0xff]
        %v5289 = vld [vmem:[%s4847 + $0x52] sm:$0xff]
        %v5290 = vld [vmem:[%s4847 + $0x62] sm:$0xff]
        %v5291 = vld [vmem:[%s4847 + $0x6a] sm:$0xff]
        %v5292 = vld [vmem:[%s4847 + $0x72] sm:$0xff]
        %v5293 = vld [vmem:[%s4847 + $0x82] sm:$0xff]
        %v5294 = vld [vmem:[%s4847 + $0x8a] sm:$0xff]
        %v5295 = vld [vmem:[%s4847 + $0x92] sm:$0xff]
        %v5296 = vld [vmem:[%s4847 + $0xa2] sm:$0xff]
        %v5297 = vld [vmem:[%s4847 + $0xaa] sm:$0xff]
        %v5298 = vld [vmem:[%s4847 + $0xb2] sm:$0xff]
        %v5299 = vld [vmem:[%s4847 + $0xc2] sm:$0xff]
        %v5300 = vld [vmem:[%s4847 + $0xca] sm:$0xff]
        %v5301 = vld [vmem:[%s4847 + $0xd2] sm:$0xff]
        %v5302 = vld [vmem:[%s4847 + $0xe2] sm:$0xff]
        %v5303 = vld [vmem:[%s4847 + $0xea] sm:$0xff]
        %v5304 = vld [vmem:[%s4847 + $0xf2] sm:$0xff]
        %v5305 = vld [vmem:[%s4847 + $0x102] sm:$0xff]
        %v5306 = vld [vmem:[%s4847 + $0x10a] sm:$0xff]
        %v5307 = vld [vmem:[%s4847 + $0x112] sm:$0xff]
        %v5308 = vld [vmem:[%s4847 + $0x122] sm:$0xff]
        %v5309 = vld [vmem:[%s4847 + $0x12a] sm:$0xff]
        %v5310 = vld [vmem:[%s4847 + $0x132] sm:$0xff]
        %v5311 = vld [vmem:[%s4847 + $0x142] sm:$0xff]
        %v5312 = vld [vmem:[%s4847 + $0x14a] sm:$0xff]
        %v5313 = vld [vmem:[%s4847 + $0x152] sm:$0xff]
        %v5314 = vld [vmem:[%s4847 + $0x162] sm:$0xff]
        %v5315 = vld [vmem:[%s4847 + $0x16a] sm:$0xff]
        %v5316 = vld [vmem:[%s4847 + $0x172] sm:$0xff]
        %v5317 = vld [vmem:[%s4847 + $0x182] sm:$0xff]
        %v5318 = vld [vmem:[%s4847 + $0x18a] sm:$0xff]
        %v5319 = vld [vmem:[%s4847 + $0x192] sm:$0xff]
        %v5320 = vld [vmem:[%s4847 + $0x1a2] sm:$0xff]
        %v5321 = vld [vmem:[%s4847 + $0x1aa] sm:$0xff]
        %v5322 = vld [vmem:[%s4847 + $0x1b2] sm:$0xff]
        %v5323 = vld [vmem:[%s4847 + $0x1c2] sm:$0xff]
        %v5324 = vld [vmem:[%s4847 + $0x1ca] sm:$0xff]
        %v5325 = vld [vmem:[%s4847 + $0x1d2] sm:$0xff]
        %v5326 = vld [vmem:[%s4847 + $0x1e2] sm:$0xff]
        %v5327 = vld [vmem:[%s4847 + $0x1ea] sm:$0xff]
        %v5328 = vld [vmem:[%s4847 + $0x1f2] sm:$0xff]
        %v5329 = vld [vmem:[%s4847 + $0x202] sm:$0xff]
        %v5330 = vld [vmem:[%s4847 + $0x20a] sm:$0xff]
        %v5331 = vld [vmem:[%s4847 + $0x212] sm:$0xff]
        %v5332 = vld [vmem:[%s4847 + $0x222] sm:$0xff]
        %v5333 = vld [vmem:[%s4847 + $0x22a] sm:$0xff]
        %v5334 = vld [vmem:[%s4847 + $0x232] sm:$0xff]
        %v5335 = vld [vmem:[%s4847 + $0x242] sm:$0xff]
        %v5336 = vld [vmem:[%s4847 + $0x24a] sm:$0xff]
        %v5337 = vld [vmem:[%s4847 + $0x252] sm:$0xff]
        %v5338 = vld [vmem:[%s4847 + $0x262] sm:$0xff]
        %v5339 = vld [vmem:[%s4847 + $0x26a] sm:$0xff]
        %v5340 = vld [vmem:[%s4847 + $0x272] sm:$0xff]
        %v5341 = vld [vmem:[%s4847 + $0x282] sm:$0xff]
        %v5342 = vld [vmem:[%s4847 + $0x28a] sm:$0xff]
        %v5343 = vld [vmem:[%s4847 + $0x292] sm:$0xff]
        %v5344 = vld [vmem:[%s4847 + $0x2a2] sm:$0xff]
        %v5345 = vld [vmem:[%s4847 + $0x2aa] sm:$0xff]
        %v5346 = vld [vmem:[%s4847 + $0x2b2] sm:$0xff]
        %v5347 = vld [vmem:[%s4847 + $0x2c2] sm:$0xff]
        %v5348 = vld [vmem:[%s4847 + $0x2ca] sm:$0xff]
        %v5349 = vld [vmem:[%s4847 + $0x2d2] sm:$0xff]
        %v5350 = vld [vmem:[%s4847 + $0x2e2] sm:$0xff]
        %v5351 = vld [vmem:[%s4847 + $0x2ea] sm:$0xff]
        %v5352 = vld [vmem:[%s4847 + $0x2f2] sm:$0xff]
        %v5353 = vpack.c.bf16 %v5282, %v5281
        %v5354 = vpack.c.bf16 %v5284, %v5283
        %v5355 = vpack.c.bf16 %v5286, %v5285
        %v5356 = vpack.c.bf16 %v5288, %v5287
        %v5357 = vpack.c.bf16 %v5290, %v5289
        %v5358 = vpack.c.bf16 %v5292, %v5291
        %v5359 = vpack.c.bf16 %v5294, %v5293
        %v5360 = vpack.c.bf16 %v5296, %v5295
        %v5361 = vpack.c.bf16 %v5298, %v5297
        %v5362 = vpack.c.bf16 %v5300, %v5299
        %v5363 = vpack.c.bf16 %v5302, %v5301
        %v5364 = vpack.c.bf16 %v5304, %v5303
        %v5365 = vpack.c.bf16 %v5306, %v5305
        %v5366 = vpack.c.bf16 %v5308, %v5307
        %v5367 = vpack.c.bf16 %v5310, %v5309
        %v5368 = vpack.c.bf16 %v5312, %v5311
        %v5369 = vpack.c.bf16 %v5314, %v5313
        %v5370 = vpack.c.bf16 %v5316, %v5315
        %v5371 = vpack.c.bf16 %v5318, %v5317
        %v5372 = vpack.c.bf16 %v5320, %v5319
        %v5373 = vpack.c.bf16 %v5322, %v5321
        %v5374 = vpack.c.bf16 %v5324, %v5323
        %v5375 = vpack.c.bf16 %v5326, %v5325
        %v5376 = vpack.c.bf16 %v5328, %v5327
        %v5377 = vpack.c.bf16 %v5330, %v5329
        %v5378 = vpack.c.bf16 %v5332, %v5331
        %v5379 = vpack.c.bf16 %v5334, %v5333
        %v5380 = vpack.c.bf16 %v5336, %v5335
        %v5381 = vpack.c.bf16 %v5338, %v5337
        %v5382 = vpack.c.bf16 %v5340, %v5339
        %v5383 = vpack.c.bf16 %v5342, %v5341
        %v5384 = vpack.c.bf16 %v5344, %v5343
        %v5385 = vpack.c.bf16 %v5346, %v5345
        %v5386 = vpack.c.bf16 %v5348, %v5347
        %v5387 = vpack.c.bf16 %v5350, %v5349
        %v5388 = vpack.c.bf16 %v5352, %v5351
        %5425 = vrot.lane.b32.xlu0 %v5353, 32
        %v5426 = vpop.permute.xlu0 %5425
        %5427 = vrot.lane.b32.xlu0 %v5354, 32
        %v5428 = vpop.permute.xlu0 %5427
        %5429 = vrot.lane.b32.xlu0 %v5355, 32
        %v5430 = vpop.permute.xlu0 %5429
        %5431 = vrot.lane.b32.xlu0 %v5356, 32
        %v5432 = vpop.permute.xlu0 %5431
        %5433 = vrot.lane.b32.xlu0 %v5357, 32
        %v5434 = vpop.permute.xlu0 %5433
        %5435 = vrot.lane.b32.xlu0 %v5358, 32
        %v5436 = vpop.permute.xlu0 %5435
        %5437 = vrot.lane.b32.xlu0 %v5359, 32
        %v5438 = vpop.permute.xlu0 %5437
        %5439 = vrot.lane.b32.xlu0 %v5360, 32
        %v5440 = vpop.permute.xlu0 %5439
        %5441 = vrot.lane.b32.xlu0 %v5361, 32
        %v5442 = vpop.permute.xlu0 %5441
        %5443 = vrot.lane.b32.xlu0 %v5362, 32
        %v5444 = vpop.permute.xlu0 %5443
        %5445 = vrot.lane.b32.xlu0 %v5363, 32
        %v5446 = vpop.permute.xlu0 %5445
        %5447 = vrot.lane.b32.xlu0 %v5364, 32
        %v5448 = vpop.permute.xlu0 %5447
        %5449 = vrot.lane.b32.xlu0 %v5365, 32
        %v5450 = vpop.permute.xlu0 %5449
        %5451 = vrot.lane.b32.xlu0 %v5366, 32
        %v5452 = vpop.permute.xlu0 %5451
        %5453 = vrot.lane.b32.xlu0 %v5367, 32
        %v5454 = vpop.permute.xlu0 %5453
        %5455 = vrot.lane.b32.xlu0 %v5368, 32
        %v5456 = vpop.permute.xlu0 %5455
        %5457 = vrot.lane.b32.xlu0 %v5369, 32
        %v5458 = vpop.permute.xlu0 %5457
        %5459 = vrot.lane.b32.xlu0 %v5370, 32
        %v5460 = vpop.permute.xlu0 %5459
        %5461 = vrot.lane.b32.xlu0 %v5371, 32
        %v5462 = vpop.permute.xlu0 %5461
        %5463 = vrot.lane.b32.xlu0 %v5372, 32
        %v5464 = vpop.permute.xlu0 %5463
        %5465 = vrot.lane.b32.xlu0 %v5373, 32
        %v5466 = vpop.permute.xlu0 %5465
        %5467 = vrot.lane.b32.xlu0 %v5374, 32
        %v5468 = vpop.permute.xlu0 %5467
        %5469 = vrot.lane.b32.xlu0 %v5375, 32
        %v5470 = vpop.permute.xlu0 %5469
        %5471 = vrot.lane.b32.xlu0 %v5376, 32
        %v5472 = vpop.permute.xlu0 %5471
        %5473 = vrot.lane.b32.xlu0 %v5377, 32
        %v5474 = vpop.permute.xlu0 %5473
        %5475 = vrot.lane.b32.xlu0 %v5378, 32
        %v5476 = vpop.permute.xlu0 %5475
        %5477 = vrot.lane.b32.xlu0 %v5379, 32
        %v5478 = vpop.permute.xlu0 %5477
        %5479 = vrot.lane.b32.xlu0 %v5380, 32
        %v5480 = vpop.permute.xlu0 %5479
        %5481 = vrot.lane.b32.xlu0 %v5381, 32
        %v5482 = vpop.permute.xlu0 %5481
        %5483 = vrot.lane.b32.xlu0 %v5382, 32
        %v5484 = vpop.permute.xlu0 %5483
        %5485 = vrot.lane.b32.xlu0 %v5383, 32
        %v5486 = vpop.permute.xlu0 %5485
        %5487 = vrot.lane.b32.xlu0 %v5384, 32
        %v5488 = vpop.permute.xlu0 %5487
        %5489 = vrot.lane.b32.xlu0 %v5385, 32
        %v5490 = vpop.permute.xlu0 %5489
        %5491 = vrot.lane.b32.xlu0 %v5386, 32
        %v5492 = vpop.permute.xlu0 %5491
        %5493 = vrot.lane.b32.xlu0 %v5387, 32
        %v5494 = vpop.permute.xlu0 %5493
        %5495 = vrot.lane.b32.xlu0 %v5388, 32
        %v5496 = vpop.permute.xlu0 %5495
        %5533 = vst.msk [vmem:[#allocation4 + $0x8] sm:$0xff] %vm4521, %v5426
        %5534 = vst.msk [vmem:[#allocation4 + $0x20] sm:$0xff] %vm4521, %v5428
        %5535 = vst.msk [vmem:[#allocation4 + $0x38] sm:$0xff] %vm4521, %v5430
        %5536 = vst.msk [vmem:[#allocation4 + $0x50] sm:$0xff] %vm4521, %v5432
        %5537 = vst.msk [vmem:[#allocation4 + $0x68] sm:$0xff] %vm4521, %v5434
        %5538 = vst.msk [vmem:[#allocation4 + $0x80] sm:$0xff] %vm4521, %v5436
        %5539 = vst.msk [vmem:[#allocation4 + $0x98] sm:$0xff] %vm4521, %v5438
        %5540 = vst.msk [vmem:[#allocation4 + $0xb0] sm:$0xff] %vm4521, %v5440
        %5541 = vst.msk [vmem:[#allocation4 + $0xc8] sm:$0xff] %vm4521, %v5442
        %5542 = vst.msk [vmem:[#allocation4 + $0xe0] sm:$0xff] %vm4521, %v5444
        %5543 = vst.msk [vmem:[#allocation4 + $0xf8] sm:$0xff] %vm4521, %v5446
        %5544 = vst.msk [vmem:[#allocation4 + $0x110] sm:$0xff] %vm4521, %v5448
        %5545 = vst.msk [vmem:[#allocation4 + $0x128] sm:$0xff] %vm4521, %v5450
        %5546 = vst.msk [vmem:[#allocation4 + $0x140] sm:$0xff] %vm4521, %v5452
        %5547 = vst.msk [vmem:[#allocation4 + $0x158] sm:$0xff] %vm4521, %v5454
        %5548 = vst.msk [vmem:[#allocation4 + $0x170] sm:$0xff] %vm4521, %v5456
        %5549 = vst.msk [vmem:[#allocation4 + $0x188] sm:$0xff] %vm4521, %v5458
        %5550 = vst.msk [vmem:[#allocation4 + $0x1a0] sm:$0xff] %vm4521, %v5460
        %5551 = vst.msk [vmem:[#allocation4 + $0x1b8] sm:$0xff] %vm4521, %v5462
        %5552 = vst.msk [vmem:[#allocation4 + $0x1d0] sm:$0xff] %vm4521, %v5464
        %5553 = vst.msk [vmem:[#allocation4 + $0x1e8] sm:$0xff] %vm4521, %v5466
        %5554 = vst.msk [vmem:[#allocation4 + $0x200] sm:$0xff] %vm4521, %v5468
        %5555 = vst.msk [vmem:[#allocation4 + $0x218] sm:$0xff] %vm4521, %v5470
        %5556 = vst.msk [vmem:[#allocation4 + $0x230] sm:$0xff] %vm4521, %v5472
        %5557 = vst.msk [vmem:[#allocation4 + $0x248] sm:$0xff] %vm4521, %v5474
        %5558 = vst.msk [vmem:[#allocation4 + $0x260] sm:$0xff] %vm4521, %v5476
        %5559 = vst.msk [vmem:[#allocation4 + $0x278] sm:$0xff] %vm4521, %v5478
        %5560 = vst.msk [vmem:[#allocation4 + $0x290] sm:$0xff] %vm4521, %v5480
        %5561 = vst.msk [vmem:[#allocation4 + $0x2a8] sm:$0xff] %vm4521, %v5482
        %5562 = vst.msk [vmem:[#allocation4 + $0x2c0] sm:$0xff] %vm4521, %v5484
        %5563 = vst.msk [vmem:[#allocation4 + $0x2d8] sm:$0xff] %vm4521, %v5486
        %5564 = vst.msk [vmem:[#allocation4 + $0x2f0] sm:$0xff] %vm4521, %v5488
        %5565 = vst.msk [vmem:[#allocation4 + $0x308] sm:$0xff] %vm4521, %v5490
        %5566 = vst.msk [vmem:[#allocation4 + $0x320] sm:$0xff] %vm4521, %v5492
        %5567 = vst.msk [vmem:[#allocation4 + $0x338] sm:$0xff] %vm4521, %v5494
        %5568 = vst.msk [vmem:[#allocation4 + $0x350] sm:$0xff] %vm4521, %v5496
        %s5569 = scalar_lea.vmem [#allocation3], 64
        %v5570 = vld [vmem:[%s5569] sm:$0xff]
        %v5571 = vld [vmem:[%s5569 + $0x8] sm:$0xff]
        %v5572 = vld [vmem:[%s5569 + $0x10] sm:$0xff]
        %v5573 = vld [vmem:[%s5569 + $0x20] sm:$0xff]
        %v5574 = vld [vmem:[%s5569 + $0x28] sm:$0xff]
        %v5575 = vld [vmem:[%s5569 + $0x30] sm:$0xff]
        %v5576 = vld [vmem:[%s5569 + $0x40] sm:$0xff]
        %v5577 = vld [vmem:[%s5569 + $0x48] sm:$0xff]
        %v5578 = vld [vmem:[%s5569 + $0x50] sm:$0xff]
        %v5579 = vld [vmem:[%s5569 + $0x60] sm:$0xff]
        %v5580 = vld [vmem:[%s5569 + $0x68] sm:$0xff]
        %v5581 = vld [vmem:[%s5569 + $0x70] sm:$0xff]
        %v5582 = vld [vmem:[%s5569 + $0x80] sm:$0xff]
        %v5583 = vld [vmem:[%s5569 + $0x88] sm:$0xff]
        %v5584 = vld [vmem:[%s5569 + $0x90] sm:$0xff]
        %v5585 = vld [vmem:[%s5569 + $0xa0] sm:$0xff]
        %v5586 = vld [vmem:[%s5569 + $0xa8] sm:$0xff]
        %v5587 = vld [vmem:[%s5569 + $0xb0] sm:$0xff]
        %v5588 = vld [vmem:[%s5569 + $0xc0] sm:$0xff]
        %v5589 = vld [vmem:[%s5569 + $0xc8] sm:$0xff]
        %v5590 = vld [vmem:[%s5569 + $0xd0] sm:$0xff]
        %v5591 = vld [vmem:[%s5569 + $0xe0] sm:$0xff]
        %v5592 = vld [vmem:[%s5569 + $0xe8] sm:$0xff]
        %v5593 = vld [vmem:[%s5569 + $0xf0] sm:$0xff]
        %v5594 = vld [vmem:[%s5569 + $0x100] sm:$0xff]
        %v5595 = vld [vmem:[%s5569 + $0x108] sm:$0xff]
        %v5596 = vld [vmem:[%s5569 + $0x110] sm:$0xff]
        %v5597 = vld [vmem:[%s5569 + $0x120] sm:$0xff]
        %v5598 = vld [vmem:[%s5569 + $0x128] sm:$0xff]
        %v5599 = vld [vmem:[%s5569 + $0x130] sm:$0xff]
        %v5600 = vld [vmem:[%s5569 + $0x140] sm:$0xff]
        %v5601 = vld [vmem:[%s5569 + $0x148] sm:$0xff]
        %v5602 = vld [vmem:[%s5569 + $0x150] sm:$0xff]
        %v5603 = vld [vmem:[%s5569 + $0x160] sm:$0xff]
        %v5604 = vld [vmem:[%s5569 + $0x168] sm:$0xff]
        %v5605 = vld [vmem:[%s5569 + $0x170] sm:$0xff]
        %v5606 = vld [vmem:[%s5569 + $0x180] sm:$0xff]
        %v5607 = vld [vmem:[%s5569 + $0x188] sm:$0xff]
        %v5608 = vld [vmem:[%s5569 + $0x190] sm:$0xff]
        %v5609 = vld [vmem:[%s5569 + $0x1a0] sm:$0xff]
        %v5610 = vld [vmem:[%s5569 + $0x1a8] sm:$0xff]
        %v5611 = vld [vmem:[%s5569 + $0x1b0] sm:$0xff]
        %v5612 = vld [vmem:[%s5569 + $0x1c0] sm:$0xff]
        %v5613 = vld [vmem:[%s5569 + $0x1c8] sm:$0xff]
        %v5614 = vld [vmem:[%s5569 + $0x1d0] sm:$0xff]
        %v5615 = vld [vmem:[%s5569 + $0x1e0] sm:$0xff]
        %v5616 = vld [vmem:[%s5569 + $0x1e8] sm:$0xff]
        %v5617 = vld [vmem:[%s5569 + $0x1f0] sm:$0xff]
        %v5618 = vld [vmem:[%s5569 + $0x200] sm:$0xff]
        %v5619 = vld [vmem:[%s5569 + $0x208] sm:$0xff]
        %v5620 = vld [vmem:[%s5569 + $0x210] sm:$0xff]
        %v5621 = vld [vmem:[%s5569 + $0x220] sm:$0xff]
        %v5622 = vld [vmem:[%s5569 + $0x228] sm:$0xff]
        %v5623 = vld [vmem:[%s5569 + $0x230] sm:$0xff]
        %v5624 = vld [vmem:[%s5569 + $0x240] sm:$0xff]
        %v5625 = vld [vmem:[%s5569 + $0x248] sm:$0xff]
        %v5626 = vld [vmem:[%s5569 + $0x250] sm:$0xff]
        %v5627 = vld [vmem:[%s5569 + $0x260] sm:$0xff]
        %v5628 = vld [vmem:[%s5569 + $0x268] sm:$0xff]
        %v5629 = vld [vmem:[%s5569 + $0x270] sm:$0xff]
        %v5630 = vld [vmem:[%s5569 + $0x280] sm:$0xff]
        %v5631 = vld [vmem:[%s5569 + $0x288] sm:$0xff]
        %v5632 = vld [vmem:[%s5569 + $0x290] sm:$0xff]
        %v5633 = vld [vmem:[%s5569 + $0x2a0] sm:$0xff]
        %v5634 = vld [vmem:[%s5569 + $0x2a8] sm:$0xff]
        %v5635 = vld [vmem:[%s5569 + $0x2b0] sm:$0xff]
        %v5636 = vld [vmem:[%s5569 + $0x2c0] sm:$0xff]
        %v5637 = vld [vmem:[%s5569 + $0x2c8] sm:$0xff]
        %v5638 = vld [vmem:[%s5569 + $0x2d0] sm:$0xff]
        %v5639 = vld [vmem:[%s5569 + $0x2e0] sm:$0xff]
        %v5640 = vld [vmem:[%s5569 + $0x2e8] sm:$0xff]
        %v5641 = vld [vmem:[%s5569 + $0x2f0] sm:$0xff]
        %v5642 = vpack.c.bf16 %v5571, %v5570
        %v5643 = vpack.c.bf16 %v5573, %v5572
        %v5644 = vpack.c.bf16 %v5575, %v5574
        %v5645 = vpack.c.bf16 %v5577, %v5576
        %v5646 = vpack.c.bf16 %v5579, %v5578
        %v5647 = vpack.c.bf16 %v5581, %v5580
        %v5648 = vpack.c.bf16 %v5583, %v5582
        %v5649 = vpack.c.bf16 %v5585, %v5584
        %v5650 = vpack.c.bf16 %v5587, %v5586
        %v5651 = vpack.c.bf16 %v5589, %v5588
        %v5652 = vpack.c.bf16 %v5591, %v5590
        %v5653 = vpack.c.bf16 %v5593, %v5592
        %v5654 = vpack.c.bf16 %v5595, %v5594
        %v5655 = vpack.c.bf16 %v5597, %v5596
        %v5656 = vpack.c.bf16 %v5599, %v5598
        %v5657 = vpack.c.bf16 %v5601, %v5600
        %v5658 = vpack.c.bf16 %v5603, %v5602
        %v5659 = vpack.c.bf16 %v5605, %v5604
        %v5660 = vpack.c.bf16 %v5607, %v5606
        %v5661 = vpack.c.bf16 %v5609, %v5608
        %v5662 = vpack.c.bf16 %v5611, %v5610
        %v5663 = vpack.c.bf16 %v5613, %v5612
        %v5664 = vpack.c.bf16 %v5615, %v5614
        %v5665 = vpack.c.bf16 %v5617, %v5616
        %v5666 = vpack.c.bf16 %v5619, %v5618
        %v5667 = vpack.c.bf16 %v5621, %v5620
        %v5668 = vpack.c.bf16 %v5623, %v5622
        %v5669 = vpack.c.bf16 %v5625, %v5624
        %v5670 = vpack.c.bf16 %v5627, %v5626
        %v5671 = vpack.c.bf16 %v5629, %v5628
        %v5672 = vpack.c.bf16 %v5631, %v5630
        %v5673 = vpack.c.bf16 %v5633, %v5632
        %v5674 = vpack.c.bf16 %v5635, %v5634
        %v5675 = vpack.c.bf16 %v5637, %v5636
        %v5676 = vpack.c.bf16 %v5639, %v5638
        %v5677 = vpack.c.bf16 %v5641, %v5640
        %5714 = vrot.lane.b32.xlu0 %v5642, 64
        %v5715 = vpop.permute.xlu0 %5714
        %5716 = vrot.lane.b32.xlu0 %v5643, 64
        %v5717 = vpop.permute.xlu0 %5716
        %5718 = vrot.lane.b32.xlu0 %v5644, 64
        %v5719 = vpop.permute.xlu0 %5718
        %5720 = vrot.lane.b32.xlu0 %v5645, 64
        %v5721 = vpop.permute.xlu0 %5720
        %5722 = vrot.lane.b32.xlu0 %v5646, 64
        %v5723 = vpop.permute.xlu0 %5722
        %5724 = vrot.lane.b32.xlu0 %v5647, 64
        %v5725 = vpop.permute.xlu0 %5724
        %5726 = vrot.lane.b32.xlu0 %v5648, 64
        %v5727 = vpop.permute.xlu0 %5726
        %5728 = vrot.lane.b32.xlu0 %v5649, 64
        %v5729 = vpop.permute.xlu0 %5728
        %5730 = vrot.lane.b32.xlu0 %v5650, 64
        %v5731 = vpop.permute.xlu0 %5730
        %5732 = vrot.lane.b32.xlu0 %v5651, 64
        %v5733 = vpop.permute.xlu0 %5732
        %5734 = vrot.lane.b32.xlu0 %v5652, 64
        %v5735 = vpop.permute.xlu0 %5734
        %5736 = vrot.lane.b32.xlu0 %v5653, 64
        %v5737 = vpop.permute.xlu0 %5736
        %5738 = vrot.lane.b32.xlu0 %v5654, 64
        %v5739 = vpop.permute.xlu0 %5738
        %5740 = vrot.lane.b32.xlu0 %v5655, 64
        %v5741 = vpop.permute.xlu0 %5740
        %5742 = vrot.lane.b32.xlu0 %v5656, 64
        %v5743 = vpop.permute.xlu0 %5742
        %5744 = vrot.lane.b32.xlu0 %v5657, 64
        %v5745 = vpop.permute.xlu0 %5744
        %5746 = vrot.lane.b32.xlu0 %v5658, 64
        %v5747 = vpop.permute.xlu0 %5746
        %5748 = vrot.lane.b32.xlu0 %v5659, 64
        %v5749 = vpop.permute.xlu0 %5748
        %5750 = vrot.lane.b32.xlu0 %v5660, 64
        %v5751 = vpop.permute.xlu0 %5750
        %5752 = vrot.lane.b32.xlu0 %v5661, 64
        %v5753 = vpop.permute.xlu0 %5752
        %5754 = vrot.lane.b32.xlu0 %v5662, 64
        %v5755 = vpop.permute.xlu0 %5754
        %5756 = vrot.lane.b32.xlu0 %v5663, 64
        %v5757 = vpop.permute.xlu0 %5756
        %5758 = vrot.lane.b32.xlu0 %v5664, 64
        %v5759 = vpop.permute.xlu0 %5758
        %5760 = vrot.lane.b32.xlu0 %v5665, 64
        %v5761 = vpop.permute.xlu0 %5760
        %5762 = vrot.lane.b32.xlu0 %v5666, 64
        %v5763 = vpop.permute.xlu0 %5762
        %5764 = vrot.lane.b32.xlu0 %v5667, 64
        %v5765 = vpop.permute.xlu0 %5764
        %5766 = vrot.lane.b32.xlu0 %v5668, 64
        %v5767 = vpop.permute.xlu0 %5766
        %5768 = vrot.lane.b32.xlu0 %v5669, 64
        %v5769 = vpop.permute.xlu0 %5768
        %5770 = vrot.lane.b32.xlu0 %v5670, 64
        %v5771 = vpop.permute.xlu0 %5770
        %5772 = vrot.lane.b32.xlu0 %v5671, 64
        %v5773 = vpop.permute.xlu0 %5772
        %5774 = vrot.lane.b32.xlu0 %v5672, 64
        %v5775 = vpop.permute.xlu0 %5774
        %5776 = vrot.lane.b32.xlu0 %v5673, 64
        %v5777 = vpop.permute.xlu0 %5776
        %5778 = vrot.lane.b32.xlu0 %v5674, 64
        %v5779 = vpop.permute.xlu0 %5778
        %5780 = vrot.lane.b32.xlu0 %v5675, 64
        %v5781 = vpop.permute.xlu0 %5780
        %5782 = vrot.lane.b32.xlu0 %v5676, 64
        %v5783 = vpop.permute.xlu0 %5782
        %5784 = vrot.lane.b32.xlu0 %v5677, 64
        %v5785 = vpop.permute.xlu0 %5784
        %5822 = vst.msk [vmem:[#allocation4 + $0x8] sm:$0xff] %vm4810, %v5715
        %5823 = vst.msk [vmem:[#allocation4 + $0x20] sm:$0xff] %vm4810, %v5717
        %5824 = vst.msk [vmem:[#allocation4 + $0x38] sm:$0xff] %vm4810, %v5719
        %5825 = vst.msk [vmem:[#allocation4 + $0x50] sm:$0xff] %vm4810, %v5721
        %5826 = vst.msk [vmem:[#allocation4 + $0x68] sm:$0xff] %vm4810, %v5723
        %5827 = vst.msk [vmem:[#allocation4 + $0x80] sm:$0xff] %vm4810, %v5725
        %5828 = vst.msk [vmem:[#allocation4 + $0x98] sm:$0xff] %vm4810, %v5727
        %5829 = vst.msk [vmem:[#allocation4 + $0xb0] sm:$0xff] %vm4810, %v5729
        %5830 = vst.msk [vmem:[#allocation4 + $0xc8] sm:$0xff] %vm4810, %v5731
        %5831 = vst.msk [vmem:[#allocation4 + $0xe0] sm:$0xff] %vm4810, %v5733
        %5832 = vst.msk [vmem:[#allocation4 + $0xf8] sm:$0xff] %vm4810, %v5735
        %5833 = vst.msk [vmem:[#allocation4 + $0x110] sm:$0xff] %vm4810, %v5737
        %5834 = vst.msk [vmem:[#allocation4 + $0x128] sm:$0xff] %vm4810, %v5739
        %5835 = vst.msk [vmem:[#allocation4 + $0x140] sm:$0xff] %vm4810, %v5741
        %5836 = vst.msk [vmem:[#allocation4 + $0x158] sm:$0xff] %vm4810, %v5743
        %5837 = vst.msk [vmem:[#allocation4 + $0x170] sm:$0xff] %vm4810, %v5745
        %5838 = vst.msk [vmem:[#allocation4 + $0x188] sm:$0xff] %vm4810, %v5747
        %5839 = vst.msk [vmem:[#allocation4 + $0x1a0] sm:$0xff] %vm4810, %v5749
        %5840 = vst.msk [vmem:[#allocation4 + $0x1b8] sm:$0xff] %vm4810, %v5751
        %5841 = vst.msk [vmem:[#allocation4 + $0x1d0] sm:$0xff] %vm4810, %v5753
        %5842 = vst.msk [vmem:[#allocation4 + $0x1e8] sm:$0xff] %vm4810, %v5755
        %5843 = vst.msk [vmem:[#allocation4 + $0x200] sm:$0xff] %vm4810, %v5757
        %5844 = vst.msk [vmem:[#allocation4 + $0x218] sm:$0xff] %vm4810, %v5759
        %5845 = vst.msk [vmem:[#allocation4 + $0x230] sm:$0xff] %vm4810, %v5761
        %5846 = vst.msk [vmem:[#allocation4 + $0x248] sm:$0xff] %vm4810, %v5763
        %5847 = vst.msk [vmem:[#allocation4 + $0x260] sm:$0xff] %vm4810, %v5765
        %5848 = vst.msk [vmem:[#allocation4 + $0x278] sm:$0xff] %vm4810, %v5767
        %5849 = vst.msk [vmem:[#allocation4 + $0x290] sm:$0xff] %vm4810, %v5769
        %5850 = vst.msk [vmem:[#allocation4 + $0x2a8] sm:$0xff] %vm4810, %v5771
        %5851 = vst.msk [vmem:[#allocation4 + $0x2c0] sm:$0xff] %vm4810, %v5773
        %5852 = vst.msk [vmem:[#allocation4 + $0x2d8] sm:$0xff] %vm4810, %v5775
        %5853 = vst.msk [vmem:[#allocation4 + $0x2f0] sm:$0xff] %vm4810, %v5777
        %5854 = vst.msk [vmem:[#allocation4 + $0x308] sm:$0xff] %vm4810, %v5779
        %5855 = vst.msk [vmem:[#allocation4 + $0x320] sm:$0xff] %vm4810, %v5781
        %5856 = vst.msk [vmem:[#allocation4 + $0x338] sm:$0xff] %vm4810, %v5783
        %5857 = vst.msk [vmem:[#allocation4 + $0x350] sm:$0xff] %vm4810, %v5785
        %v5858 = vld [vmem:[%s5569 + $0x1] sm:$0xff]
        %v5859 = vld [vmem:[%s5569 + $0x9] sm:$0xff]
        %v5860 = vld [vmem:[%s5569 + $0x11] sm:$0xff]
        %v5861 = vld [vmem:[%s5569 + $0x21] sm:$0xff]
        %v5862 = vld [vmem:[%s5569 + $0x29] sm:$0xff]
        %v5863 = vld [vmem:[%s5569 + $0x31] sm:$0xff]
        %v5864 = vld [vmem:[%s5569 + $0x41] sm:$0xff]
        %v5865 = vld [vmem:[%s5569 + $0x49] sm:$0xff]
        %v5866 = vld [vmem:[%s5569 + $0x51] sm:$0xff]
        %v5867 = vld [vmem:[%s5569 + $0x61] sm:$0xff]
        %v5868 = vld [vmem:[%s5569 + $0x69] sm:$0xff]
        %v5869 = vld [vmem:[%s5569 + $0x71] sm:$0xff]
        %v5870 = vld [vmem:[%s5569 + $0x81] sm:$0xff]
        %v5871 = vld [vmem:[%s5569 + $0x89] sm:$0xff]
        %v5872 = vld [vmem:[%s5569 + $0x91] sm:$0xff]
        %v5873 = vld [vmem:[%s5569 + $0xa1] sm:$0xff]
        %v5874 = vld [vmem:[%s5569 + $0xa9] sm:$0xff]
        %v5875 = vld [vmem:[%s5569 + $0xb1] sm:$0xff]
        %v5876 = vld [vmem:[%s5569 + $0xc1] sm:$0xff]
        %v5877 = vld [vmem:[%s5569 + $0xc9] sm:$0xff]
        %v5878 = vld [vmem:[%s5569 + $0xd1] sm:$0xff]
        %v5879 = vld [vmem:[%s5569 + $0xe1] sm:$0xff]
        %v5880 = vld [vmem:[%s5569 + $0xe9] sm:$0xff]
        %v5881 = vld [vmem:[%s5569 + $0xf1] sm:$0xff]
        %v5882 = vld [vmem:[%s5569 + $0x101] sm:$0xff]
        %v5883 = vld [vmem:[%s5569 + $0x109] sm:$0xff]
        %v5884 = vld [vmem:[%s5569 + $0x111] sm:$0xff]
        %v5885 = vld [vmem:[%s5569 + $0x121] sm:$0xff]
        %v5886 = vld [vmem:[%s5569 + $0x129] sm:$0xff]
        %v5887 = vld [vmem:[%s5569 + $0x131] sm:$0xff]
        %v5888 = vld [vmem:[%s5569 + $0x141] sm:$0xff]
        %v5889 = vld [vmem:[%s5569 + $0x149] sm:$0xff]
        %v5890 = vld [vmem:[%s5569 + $0x151] sm:$0xff]
        %v5891 = vld [vmem:[%s5569 + $0x161] sm:$0xff]
        %v5892 = vld [vmem:[%s5569 + $0x169] sm:$0xff]
        %v5893 = vld [vmem:[%s5569 + $0x171] sm:$0xff]
        %v5894 = vld [vmem:[%s5569 + $0x181] sm:$0xff]
        %v5895 = vld [vmem:[%s5569 + $0x189] sm:$0xff]
        %v5896 = vld [vmem:[%s5569 + $0x191] sm:$0xff]
        %v5897 = vld [vmem:[%s5569 + $0x1a1] sm:$0xff]
        %v5898 = vld [vmem:[%s5569 + $0x1a9] sm:$0xff]
        %v5899 = vld [vmem:[%s5569 + $0x1b1] sm:$0xff]
        %v5900 = vld [vmem:[%s5569 + $0x1c1] sm:$0xff]
        %v5901 = vld [vmem:[%s5569 + $0x1c9] sm:$0xff]
        %v5902 = vld [vmem:[%s5569 + $0x1d1] sm:$0xff]
        %v5903 = vld [vmem:[%s5569 + $0x1e1] sm:$0xff]
        %v5904 = vld [vmem:[%s5569 + $0x1e9] sm:$0xff]
        %v5905 = vld [vmem:[%s5569 + $0x1f1] sm:$0xff]
        %v5906 = vld [vmem:[%s5569 + $0x201] sm:$0xff]
        %v5907 = vld [vmem:[%s5569 + $0x209] sm:$0xff]
        %v5908 = vld [vmem:[%s5569 + $0x211] sm:$0xff]
        %v5909 = vld [vmem:[%s5569 + $0x221] sm:$0xff]
        %v5910 = vld [vmem:[%s5569 + $0x229] sm:$0xff]
        %v5911 = vld [vmem:[%s5569 + $0x231] sm:$0xff]
        %v5912 = vld [vmem:[%s5569 + $0x241] sm:$0xff]
        %v5913 = vld [vmem:[%s5569 + $0x249] sm:$0xff]
        %v5914 = vld [vmem:[%s5569 + $0x251] sm:$0xff]
        %v5915 = vld [vmem:[%s5569 + $0x261] sm:$0xff]
        %v5916 = vld [vmem:[%s5569 + $0x269] sm:$0xff]
        %v5917 = vld [vmem:[%s5569 + $0x271] sm:$0xff]
        %v5918 = vld [vmem:[%s5569 + $0x281] sm:$0xff]
        %v5919 = vld [vmem:[%s5569 + $0x289] sm:$0xff]
        %v5920 = vld [vmem:[%s5569 + $0x291] sm:$0xff]
        %v5921 = vld [vmem:[%s5569 + $0x2a1] sm:$0xff]
        %v5922 = vld [vmem:[%s5569 + $0x2a9] sm:$0xff]
        %v5923 = vld [vmem:[%s5569 + $0x2b1] sm:$0xff]
        %v5924 = vld [vmem:[%s5569 + $0x2c1] sm:$0xff]
        %v5925 = vld [vmem:[%s5569 + $0x2c9] sm:$0xff]
        %v5926 = vld [vmem:[%s5569 + $0x2d1] sm:$0xff]
        %v5927 = vld [vmem:[%s5569 + $0x2e1] sm:$0xff]
        %v5928 = vld [vmem:[%s5569 + $0x2e9] sm:$0xff]
        %v5929 = vld [vmem:[%s5569 + $0x2f1] sm:$0xff]
        %v5930 = vpack.c.bf16 %v5859, %v5858
        %v5931 = vpack.c.bf16 %v5861, %v5860
        %v5932 = vpack.c.bf16 %v5863, %v5862
        %v5933 = vpack.c.bf16 %v5865, %v5864
        %v5934 = vpack.c.bf16 %v5867, %v5866
        %v5935 = vpack.c.bf16 %v5869, %v5868
        %v5936 = vpack.c.bf16 %v5871, %v5870
        %v5937 = vpack.c.bf16 %v5873, %v5872
        %v5938 = vpack.c.bf16 %v5875, %v5874
        %v5939 = vpack.c.bf16 %v5877, %v5876
        %v5940 = vpack.c.bf16 %v5879, %v5878
        %v5941 = vpack.c.bf16 %v5881, %v5880
        %v5942 = vpack.c.bf16 %v5883, %v5882
        %v5943 = vpack.c.bf16 %v5885, %v5884
        %v5944 = vpack.c.bf16 %v5887, %v5886
        %v5945 = vpack.c.bf16 %v5889, %v5888
        %v5946 = vpack.c.bf16 %v5891, %v5890
        %v5947 = vpack.c.bf16 %v5893, %v5892
        %v5948 = vpack.c.bf16 %v5895, %v5894
        %v5949 = vpack.c.bf16 %v5897, %v5896
        %v5950 = vpack.c.bf16 %v5899, %v5898
        %v5951 = vpack.c.bf16 %v5901, %v5900
        %v5952 = vpack.c.bf16 %v5903, %v5902
        %v5953 = vpack.c.bf16 %v5905, %v5904
        %v5954 = vpack.c.bf16 %v5907, %v5906
        %v5955 = vpack.c.bf16 %v5909, %v5908
        %v5956 = vpack.c.bf16 %v5911, %v5910
        %v5957 = vpack.c.bf16 %v5913, %v5912
        %v5958 = vpack.c.bf16 %v5915, %v5914
        %v5959 = vpack.c.bf16 %v5917, %v5916
        %v5960 = vpack.c.bf16 %v5919, %v5918
        %v5961 = vpack.c.bf16 %v5921, %v5920
        %v5962 = vpack.c.bf16 %v5923, %v5922
        %v5963 = vpack.c.bf16 %v5925, %v5924
        %v5964 = vpack.c.bf16 %v5927, %v5926
        %v5965 = vpack.c.bf16 %v5929, %v5928
        %6002 = vrot.lane.b32.xlu0 %v5930, 96
        %v6003 = vpop.permute.xlu0 %6002
        %6004 = vrot.lane.b32.xlu0 %v5931, 96
        %v6005 = vpop.permute.xlu0 %6004
        %6006 = vrot.lane.b32.xlu0 %v5932, 96
        %v6007 = vpop.permute.xlu0 %6006
        %6008 = vrot.lane.b32.xlu0 %v5933, 96
        %v6009 = vpop.permute.xlu0 %6008
        %6010 = vrot.lane.b32.xlu0 %v5934, 96
        %v6011 = vpop.permute.xlu0 %6010
        %6012 = vrot.lane.b32.xlu0 %v5935, 96
        %v6013 = vpop.permute.xlu0 %6012
        %6014 = vrot.lane.b32.xlu0 %v5936, 96
        %v6015 = vpop.permute.xlu0 %6014
        %6016 = vrot.lane.b32.xlu0 %v5937, 96
        %v6017 = vpop.permute.xlu0 %6016
        %6018 = vrot.lane.b32.xlu0 %v5938, 96
        %v6019 = vpop.permute.xlu0 %6018
        %6020 = vrot.lane.b32.xlu0 %v5939, 96
        %v6021 = vpop.permute.xlu0 %6020
        %6022 = vrot.lane.b32.xlu0 %v5940, 96
        %v6023 = vpop.permute.xlu0 %6022
        %6024 = vrot.lane.b32.xlu0 %v5941, 96
        %v6025 = vpop.permute.xlu0 %6024
        %6026 = vrot.lane.b32.xlu0 %v5942, 96
        %v6027 = vpop.permute.xlu0 %6026
        %6028 = vrot.lane.b32.xlu0 %v5943, 96
        %v6029 = vpop.permute.xlu0 %6028
        %6030 = vrot.lane.b32.xlu0 %v5944, 96
        %v6031 = vpop.permute.xlu0 %6030
        %6032 = vrot.lane.b32.xlu0 %v5945, 96
        %v6033 = vpop.permute.xlu0 %6032
        %6034 = vrot.lane.b32.xlu0 %v5946, 96
        %v6035 = vpop.permute.xlu0 %6034
        %6036 = vrot.lane.b32.xlu0 %v5947, 96
        %v6037 = vpop.permute.xlu0 %6036
        %6038 = vrot.lane.b32.xlu0 %v5948, 96
        %v6039 = vpop.permute.xlu0 %6038
        %6040 = vrot.lane.b32.xlu0 %v5949, 96
        %v6041 = vpop.permute.xlu0 %6040
        %6042 = vrot.lane.b32.xlu0 %v5950, 96
        %v6043 = vpop.permute.xlu0 %6042
        %6044 = vrot.lane.b32.xlu0 %v5951, 96
        %v6045 = vpop.permute.xlu0 %6044
        %6046 = vrot.lane.b32.xlu0 %v5952, 96
        %v6047 = vpop.permute.xlu0 %6046
        %6048 = vrot.lane.b32.xlu0 %v5953, 96
        %v6049 = vpop.permute.xlu0 %6048
        %6050 = vrot.lane.b32.xlu0 %v5954, 96
        %v6051 = vpop.permute.xlu0 %6050
        %6052 = vrot.lane.b32.xlu0 %v5955, 96
        %v6053 = vpop.permute.xlu0 %6052
        %6054 = vrot.lane.b32.xlu0 %v5956, 96
        %v6055 = vpop.permute.xlu0 %6054
        %6056 = vrot.lane.b32.xlu0 %v5957, 96
        %v6057 = vpop.permute.xlu0 %6056
        %6058 = vrot.lane.b32.xlu0 %v5958, 96
        %v6059 = vpop.permute.xlu0 %6058
        %6060 = vrot.lane.b32.xlu0 %v5959, 96
        %v6061 = vpop.permute.xlu0 %6060
        %6062 = vrot.lane.b32.xlu0 %v5960, 96
        %v6063 = vpop.permute.xlu0 %6062
        %6064 = vrot.lane.b32.xlu0 %v5961, 96
        %v6065 = vpop.permute.xlu0 %6064
        %6066 = vrot.lane.b32.xlu0 %v5962, 96
        %v6067 = vpop.permute.xlu0 %6066
        %6068 = vrot.lane.b32.xlu0 %v5963, 96
        %v6069 = vpop.permute.xlu0 %6068
        %6070 = vrot.lane.b32.xlu0 %v5964, 96
        %v6071 = vpop.permute.xlu0 %6070
        %6072 = vrot.lane.b32.xlu0 %v5965, 96
        %v6073 = vpop.permute.xlu0 %6072
        %6110 = vst.msk [vmem:[#allocation4 + $0x8] sm:$0xff] %vm5100, %v6003
        %6111 = vst.msk [vmem:[#allocation4 + $0x20] sm:$0xff] %vm5100, %v6005
        %6112 = vst.msk [vmem:[#allocation4 + $0x38] sm:$0xff] %vm5100, %v6007
        %6113 = vst.msk [vmem:[#allocation4 + $0x50] sm:$0xff] %vm5100, %v6009
        %6114 = vst.msk [vmem:[#allocation4 + $0x68] sm:$0xff] %vm5100, %v6011
        %6115 = vst.msk [vmem:[#allocation4 + $0x80] sm:$0xff] %vm5100, %v6013
        %6116 = vst.msk [vmem:[#allocation4 + $0x98] sm:$0xff] %vm5100, %v6015
        %6117 = vst.msk [vmem:[#allocation4 + $0xb0] sm:$0xff] %vm5100, %v6017
        %6118 = vst.msk [vmem:[#allocation4 + $0xc8] sm:$0xff] %vm5100, %v6019
        %6119 = vst.msk [vmem:[#allocation4 + $0xe0] sm:$0xff] %vm5100, %v6021
        %6120 = vst.msk [vmem:[#allocation4 + $0xf8] sm:$0xff] %vm5100, %v6023
        %6121 = vst.msk [vmem:[#allocation4 + $0x110] sm:$0xff] %vm5100, %v6025
        %6122 = vst.msk [vmem:[#allocation4 + $0x128] sm:$0xff] %vm5100, %v6027
        %6123 = vst.msk [vmem:[#allocation4 + $0x140] sm:$0xff] %vm5100, %v6029
        %6124 = vst.msk [vmem:[#allocation4 + $0x158] sm:$0xff] %vm5100, %v6031
        %6125 = vst.msk [vmem:[#allocation4 + $0x170] sm:$0xff] %vm5100, %v6033
        %6126 = vst.msk [vmem:[#allocation4 + $0x188] sm:$0xff] %vm5100, %v6035
        %6127 = vst.msk [vmem:[#allocation4 + $0x1a0] sm:$0xff] %vm5100, %v6037
        %6128 = vst.msk [vmem:[#allocation4 + $0x1b8] sm:$0xff] %vm5100, %v6039
        %6129 = vst.msk [vmem:[#allocation4 + $0x1d0] sm:$0xff] %vm5100, %v6041
        %6130 = vst.msk [vmem:[#allocation4 + $0x1e8] sm:$0xff] %vm5100, %v6043
        %6131 = vst.msk [vmem:[#allocation4 + $0x200] sm:$0xff] %vm5100, %v6045
        %6132 = vst.msk [vmem:[#allocation4 + $0x218] sm:$0xff] %vm5100, %v6047
        %6133 = vst.msk [vmem:[#allocation4 + $0x230] sm:$0xff] %vm5100, %v6049
        %6134 = vst.msk [vmem:[#allocation4 + $0x248] sm:$0xff] %vm5100, %v6051
        %6135 = vst.msk [vmem:[#allocation4 + $0x260] sm:$0xff] %vm5100, %v6053
        %6136 = vst.msk [vmem:[#allocation4 + $0x278] sm:$0xff] %vm5100, %v6055
        %6137 = vst.msk [vmem:[#allocation4 + $0x290] sm:$0xff] %vm5100, %v6057
        %6138 = vst.msk [vmem:[#allocation4 + $0x2a8] sm:$0xff] %vm5100, %v6059
        %6139 = vst.msk [vmem:[#allocation4 + $0x2c0] sm:$0xff] %vm5100, %v6061
        %6140 = vst.msk [vmem:[#allocation4 + $0x2d8] sm:$0xff] %vm5100, %v6063
        %6141 = vst.msk [vmem:[#allocation4 + $0x2f0] sm:$0xff] %vm5100, %v6065
        %6142 = vst.msk [vmem:[#allocation4 + $0x308] sm:$0xff] %vm5100, %v6067
        %6143 = vst.msk [vmem:[#allocation4 + $0x320] sm:$0xff] %vm5100, %v6069
        %6144 = vst.msk [vmem:[#allocation4 + $0x338] sm:$0xff] %vm5100, %v6071
        %6145 = vst.msk [vmem:[#allocation4 + $0x350] sm:$0xff] %vm5100, %v6073
        %v6146 = vld [vmem:[%s5569 + $0x2] sm:$0xff]
        %v6147 = vld [vmem:[%s5569 + $0xa] sm:$0xff]
        %v6148 = vld [vmem:[%s5569 + $0x12] sm:$0xff]
        %v6149 = vld [vmem:[%s5569 + $0x22] sm:$0xff]
        %v6150 = vld [vmem:[%s5569 + $0x2a] sm:$0xff]
        %v6151 = vld [vmem:[%s5569 + $0x32] sm:$0xff]
        %v6152 = vld [vmem:[%s5569 + $0x42] sm:$0xff]
        %v6153 = vld [vmem:[%s5569 + $0x4a] sm:$0xff]
        %v6154 = vld [vmem:[%s5569 + $0x52] sm:$0xff]
        %v6155 = vld [vmem:[%s5569 + $0x62] sm:$0xff]
        %v6156 = vld [vmem:[%s5569 + $0x6a] sm:$0xff]
        %v6157 = vld [vmem:[%s5569 + $0x72] sm:$0xff]
        %v6158 = vld [vmem:[%s5569 + $0x82] sm:$0xff]
        %v6159 = vld [vmem:[%s5569 + $0x8a] sm:$0xff]
        %v6160 = vld [vmem:[%s5569 + $0x92] sm:$0xff]
        %v6161 = vld [vmem:[%s5569 + $0xa2] sm:$0xff]
        %v6162 = vld [vmem:[%s5569 + $0xaa] sm:$0xff]
        %v6163 = vld [vmem:[%s5569 + $0xb2] sm:$0xff]
        %v6164 = vld [vmem:[%s5569 + $0xc2] sm:$0xff]
        %v6165 = vld [vmem:[%s5569 + $0xca] sm:$0xff]
        %v6166 = vld [vmem:[%s5569 + $0xd2] sm:$0xff]
        %v6167 = vld [vmem:[%s5569 + $0xe2] sm:$0xff]
        %v6168 = vld [vmem:[%s5569 + $0xea] sm:$0xff]
        %v6169 = vld [vmem:[%s5569 + $0xf2] sm:$0xff]
        %v6170 = vld [vmem:[%s5569 + $0x102] sm:$0xff]
        %v6171 = vld [vmem:[%s5569 + $0x10a] sm:$0xff]
        %v6172 = vld [vmem:[%s5569 + $0x112] sm:$0xff]
        %v6173 = vld [vmem:[%s5569 + $0x122] sm:$0xff]
        %v6174 = vld [vmem:[%s5569 + $0x12a] sm:$0xff]
        %v6175 = vld [vmem:[%s5569 + $0x132] sm:$0xff]
        %v6176 = vld [vmem:[%s5569 + $0x142] sm:$0xff]
        %v6177 = vld [vmem:[%s5569 + $0x14a] sm:$0xff]
        %v6178 = vld [vmem:[%s5569 + $0x152] sm:$0xff]
        %v6179 = vld [vmem:[%s5569 + $0x162] sm:$0xff]
        %v6180 = vld [vmem:[%s5569 + $0x16a] sm:$0xff]
        %v6181 = vld [vmem:[%s5569 + $0x172] sm:$0xff]
        %v6182 = vld [vmem:[%s5569 + $0x182] sm:$0xff]
        %v6183 = vld [vmem:[%s5569 + $0x18a] sm:$0xff]
        %v6184 = vld [vmem:[%s5569 + $0x192] sm:$0xff]
        %v6185 = vld [vmem:[%s5569 + $0x1a2] sm:$0xff]
        %v6186 = vld [vmem:[%s5569 + $0x1aa] sm:$0xff]
        %v6187 = vld [vmem:[%s5569 + $0x1b2] sm:$0xff]
        %v6188 = vld [vmem:[%s5569 + $0x1c2] sm:$0xff]
        %v6189 = vld [vmem:[%s5569 + $0x1ca] sm:$0xff]
        %v6190 = vld [vmem:[%s5569 + $0x1d2] sm:$0xff]
        %v6191 = vld [vmem:[%s5569 + $0x1e2] sm:$0xff]
        %v6192 = vld [vmem:[%s5569 + $0x1ea] sm:$0xff]
        %v6193 = vld [vmem:[%s5569 + $0x1f2] sm:$0xff]
        %v6194 = vld [vmem:[%s5569 + $0x202] sm:$0xff]
        %v6195 = vld [vmem:[%s5569 + $0x20a] sm:$0xff]
        %v6196 = vld [vmem:[%s5569 + $0x212] sm:$0xff]
        %v6197 = vld [vmem:[%s5569 + $0x222] sm:$0xff]
        %v6198 = vld [vmem:[%s5569 + $0x22a] sm:$0xff]
        %v6199 = vld [vmem:[%s5569 + $0x232] sm:$0xff]
        %v6200 = vld [vmem:[%s5569 + $0x242] sm:$0xff]
        %v6201 = vld [vmem:[%s5569 + $0x24a] sm:$0xff]
        %v6202 = vld [vmem:[%s5569 + $0x252] sm:$0xff]
        %v6203 = vld [vmem:[%s5569 + $0x262] sm:$0xff]
        %v6204 = vld [vmem:[%s5569 + $0x26a] sm:$0xff]
        %v6205 = vld [vmem:[%s5569 + $0x272] sm:$0xff]
        %v6206 = vld [vmem:[%s5569 + $0x282] sm:$0xff]
        %v6207 = vld [vmem:[%s5569 + $0x28a] sm:$0xff]
        %v6208 = vld [vmem:[%s5569 + $0x292] sm:$0xff]
        %v6209 = vld [vmem:[%s5569 + $0x2a2] sm:$0xff]
        %v6210 = vld [vmem:[%s5569 + $0x2aa] sm:$0xff]
        %v6211 = vld [vmem:[%s5569 + $0x2b2] sm:$0xff]
        %v6212 = vld [vmem:[%s5569 + $0x2c2] sm:$0xff]
        %v6213 = vld [vmem:[%s5569 + $0x2ca] sm:$0xff]
        %v6214 = vld [vmem:[%s5569 + $0x2d2] sm:$0xff]
        %v6215 = vld [vmem:[%s5569 + $0x2e2] sm:$0xff]
        %v6216 = vld [vmem:[%s5569 + $0x2ea] sm:$0xff]
        %v6217 = vld [vmem:[%s5569 + $0x2f2] sm:$0xff]
        %v6218 = vpack.c.bf16 %v6147, %v6146
        %v6219 = vpack.c.bf16 %v6149, %v6148
        %v6220 = vpack.c.bf16 %v6151, %v6150
        %v6221 = vpack.c.bf16 %v6153, %v6152
        %v6222 = vpack.c.bf16 %v6155, %v6154
        %v6223 = vpack.c.bf16 %v6157, %v6156
        %v6224 = vpack.c.bf16 %v6159, %v6158
        %v6225 = vpack.c.bf16 %v6161, %v6160
        %v6226 = vpack.c.bf16 %v6163, %v6162
        %v6227 = vpack.c.bf16 %v6165, %v6164
        %v6228 = vpack.c.bf16 %v6167, %v6166
        %v6229 = vpack.c.bf16 %v6169, %v6168
        %v6230 = vpack.c.bf16 %v6171, %v6170
        %v6231 = vpack.c.bf16 %v6173, %v6172
        %v6232 = vpack.c.bf16 %v6175, %v6174
        %v6233 = vpack.c.bf16 %v6177, %v6176
        %v6234 = vpack.c.bf16 %v6179, %v6178
        %v6235 = vpack.c.bf16 %v6181, %v6180
        %v6236 = vpack.c.bf16 %v6183, %v6182
        %v6237 = vpack.c.bf16 %v6185, %v6184
        %v6238 = vpack.c.bf16 %v6187, %v6186
        %v6239 = vpack.c.bf16 %v6189, %v6188
        %v6240 = vpack.c.bf16 %v6191, %v6190
        %v6241 = vpack.c.bf16 %v6193, %v6192
        %v6242 = vpack.c.bf16 %v6195, %v6194
        %v6243 = vpack.c.bf16 %v6197, %v6196
        %v6244 = vpack.c.bf16 %v6199, %v6198
        %v6245 = vpack.c.bf16 %v6201, %v6200
        %v6246 = vpack.c.bf16 %v6203, %v6202
        %v6247 = vpack.c.bf16 %v6205, %v6204
        %v6248 = vpack.c.bf16 %v6207, %v6206
        %v6249 = vpack.c.bf16 %v6209, %v6208
        %v6250 = vpack.c.bf16 %v6211, %v6210
        %v6251 = vpack.c.bf16 %v6213, %v6212
        %v6252 = vpack.c.bf16 %v6215, %v6214
        %v6253 = vpack.c.bf16 %v6217, %v6216
        %6254 = vst.msk [vmem:[#allocation4 + $0x10] sm:$0xff] %vm938, %v6218
        %6255 = vst.msk [vmem:[#allocation4 + $0x28] sm:$0xff] %vm938, %v6219
        %6256 = vst.msk [vmem:[#allocation4 + $0x40] sm:$0xff] %vm938, %v6220
        %6257 = vst.msk [vmem:[#allocation4 + $0x58] sm:$0xff] %vm938, %v6221
        %6258 = vst.msk [vmem:[#allocation4 + $0x70] sm:$0xff] %vm938, %v6222
        %6259 = vst.msk [vmem:[#allocation4 + $0x88] sm:$0xff] %vm938, %v6223
        %6260 = vst.msk [vmem:[#allocation4 + $0xa0] sm:$0xff] %vm938, %v6224
        %6261 = vst.msk [vmem:[#allocation4 + $0xb8] sm:$0xff] %vm938, %v6225
        %6262 = vst.msk [vmem:[#allocation4 + $0xd0] sm:$0xff] %vm938, %v6226
        %6263 = vst.msk [vmem:[#allocation4 + $0xe8] sm:$0xff] %vm938, %v6227
        %6264 = vst.msk [vmem:[#allocation4 + $0x100] sm:$0xff] %vm938, %v6228
        %6265 = vst.msk [vmem:[#allocation4 + $0x118] sm:$0xff] %vm938, %v6229
        %6266 = vst.msk [vmem:[#allocation4 + $0x130] sm:$0xff] %vm938, %v6230
        %6267 = vst.msk [vmem:[#allocation4 + $0x148] sm:$0xff] %vm938, %v6231
        %6268 = vst.msk [vmem:[#allocation4 + $0x160] sm:$0xff] %vm938, %v6232
        %6269 = vst.msk [vmem:[#allocation4 + $0x178] sm:$0xff] %vm938, %v6233
        %6270 = vst.msk [vmem:[#allocation4 + $0x190] sm:$0xff] %vm938, %v6234
        %6271 = vst.msk [vmem:[#allocation4 + $0x1a8] sm:$0xff] %vm938, %v6235
        %6272 = vst.msk [vmem:[#allocation4 + $0x1c0] sm:$0xff] %vm938, %v6236
        %6273 = vst.msk [vmem:[#allocation4 + $0x1d8] sm:$0xff] %vm938, %v6237
        %6274 = vst.msk [vmem:[#allocation4 + $0x1f0] sm:$0xff] %vm938, %v6238
        %6275 = vst.msk [vmem:[#allocation4 + $0x208] sm:$0xff] %vm938, %v6239
        %6276 = vst.msk [vmem:[#allocation4 + $0x220] sm:$0xff] %vm938, %v6240
        %6277 = vst.msk [vmem:[#allocation4 + $0x238] sm:$0xff] %vm938, %v6241
        %6278 = vst.msk [vmem:[#allocation4 + $0x250] sm:$0xff] %vm938, %v6242
        %6279 = vst.msk [vmem:[#allocation4 + $0x268] sm:$0xff] %vm938, %v6243
        %6280 = vst.msk [vmem:[#allocation4 + $0x280] sm:$0xff] %vm938, %v6244
        %6281 = vst.msk [vmem:[#allocation4 + $0x298] sm:$0xff] %vm938, %v6245
        %6282 = vst.msk [vmem:[#allocation4 + $0x2b0] sm:$0xff] %vm938, %v6246
        %6283 = vst.msk [vmem:[#allocation4 + $0x2c8] sm:$0xff] %vm938, %v6247
        %6284 = vst.msk [vmem:[#allocation4 + $0x2e0] sm:$0xff] %vm938, %v6248
        %6285 = vst.msk [vmem:[#allocation4 + $0x2f8] sm:$0xff] %vm938, %v6249
        %6286 = vst.msk [vmem:[#allocation4 + $0x310] sm:$0xff] %vm938, %v6250
        %6287 = vst.msk [vmem:[#allocation4 + $0x328] sm:$0xff] %vm938, %v6251
        %6288 = vst.msk [vmem:[#allocation4 + $0x340] sm:$0xff] %vm938, %v6252
        %6289 = vst.msk [vmem:[#allocation4 + $0x358] sm:$0xff] %vm938, %v6253
        %v6290 = vld [vmem:[#allocation4] sm:$0xff]
        %v6291 = vld [vmem:[#allocation4 + $0x8] sm:$0xff]
        %v6292 = vld [vmem:[#allocation4 + $0x10] sm:$0xff]
        %v6293 = vld [vmem:[#allocation4 + $0x18] sm:$0xff]
        %v6294 = vld [vmem:[#allocation4 + $0x20] sm:$0xff]
        %v6295 = vld [vmem:[#allocation4 + $0x28] sm:$0xff]
        %v6296 = vld [vmem:[#allocation4 + $0x30] sm:$0xff]
        %v6297 = vld [vmem:[#allocation4 + $0x38] sm:$0xff]
        %v6298 = vld [vmem:[#allocation4 + $0x40] sm:$0xff]
        %v6299 = vld [vmem:[#allocation4 + $0x48] sm:$0xff]
        %v6300 = vld [vmem:[#allocation4 + $0x50] sm:$0xff]
        %v6301 = vld [vmem:[#allocation4 + $0x58] sm:$0xff]
        %v6302 = vld [vmem:[#allocation4 + $0x60] sm:$0xff]
        %v6303 = vld [vmem:[#allocation4 + $0x68] sm:$0xff]
        %v6304 = vld [vmem:[#allocation4 + $0x70] sm:$0xff]
        %v6305 = vld [vmem:[#allocation4 + $0x78] sm:$0xff]
        %v6306 = vld [vmem:[#allocation4 + $0x80] sm:$0xff]
        %v6307 = vld [vmem:[#allocation4 + $0x88] sm:$0xff]
        %v6308 = vld [vmem:[#allocation4 + $0x90] sm:$0xff]
        %v6309 = vld [vmem:[#allocation4 + $0x98] sm:$0xff]
        %v6310 = vld [vmem:[#allocation4 + $0xa0] sm:$0xff]
        %v6311 = vld [vmem:[#allocation4 + $0xa8] sm:$0xff]
        %v6312 = vld [vmem:[#allocation4 + $0xb0] sm:$0xff]
        %v6313 = vld [vmem:[#allocation4 + $0xb8] sm:$0xff]
        %v6314 = vld [vmem:[#allocation4 + $0xc0] sm:$0xff]
        %v6315 = vld [vmem:[#allocation4 + $0xc8] sm:$0xff]
        %v6316 = vld [vmem:[#allocation4 + $0xd0] sm:$0xff]
        %v6317 = vld [vmem:[#allocation4 + $0xd8] sm:$0xff]
        %v6318 = vld [vmem:[#allocation4 + $0xe0] sm:$0xff]
        %v6319 = vld [vmem:[#allocation4 + $0xe8] sm:$0xff]
        %v6320 = vld [vmem:[#allocation4 + $0xf0] sm:$0xff]
        %v6321 = vld [vmem:[#allocation4 + $0xf8] sm:$0xff]
        %v6322 = vld [vmem:[#allocation4 + $0x100] sm:$0xff]
        %v6323 = vld [vmem:[#allocation4 + $0x108] sm:$0xff]
        %v6324 = vld [vmem:[#allocation4 + $0x110] sm:$0xff]
        %v6325 = vld [vmem:[#allocation4 + $0x118] sm:$0xff]
        %v6326 = vld [vmem:[#allocation4 + $0x120] sm:$0xff]
        %v6327 = vld [vmem:[#allocation4 + $0x128] sm:$0xff]
        %v6328 = vld [vmem:[#allocation4 + $0x130] sm:$0xff]
        %v6329 = vld [vmem:[#allocation4 + $0x138] sm:$0xff]
        %v6330 = vld [vmem:[#allocation4 + $0x140] sm:$0xff]
        %v6331 = vld [vmem:[#allocation4 + $0x148] sm:$0xff]
        %v6332 = vld [vmem:[#allocation4 + $0x150] sm:$0xff]
        %v6333 = vld [vmem:[#allocation4 + $0x158] sm:$0xff]
        %v6334 = vld [vmem:[#allocation4 + $0x160] sm:$0xff]
        %v6335 = vld [vmem:[#allocation4 + $0x168] sm:$0xff]
        %v6336 = vld [vmem:[#allocation4 + $0x170] sm:$0xff]
        %v6337 = vld [vmem:[#allocation4 + $0x178] sm:$0xff]
        %v6338 = vld [vmem:[#allocation4 + $0x180] sm:$0xff]
        %v6339 = vld [vmem:[#allocation4 + $0x188] sm:$0xff]
        %v6340 = vld [vmem:[#allocation4 + $0x190] sm:$0xff]
        %v6341 = vld [vmem:[#allocation4 + $0x198] sm:$0xff]
        %v6342 = vld [vmem:[#allocation4 + $0x1a0] sm:$0xff]
        %v6343 = vld [vmem:[#allocation4 + $0x1a8] sm:$0xff]
        %v6344 = vld [vmem:[#allocation4 + $0x1b0] sm:$0xff]
        %v6345 = vld [vmem:[#allocation4 + $0x1b8] sm:$0xff]
        %v6346 = vld [vmem:[#allocation4 + $0x1c0] sm:$0xff]
        %v6347 = vld [vmem:[#allocation4 + $0x1c8] sm:$0xff]
        %v6348 = vld [vmem:[#allocation4 + $0x1d0] sm:$0xff]
        %v6349 = vld [vmem:[#allocation4 + $0x1d8] sm:$0xff]
        %v6350 = vld [vmem:[#allocation4 + $0x1e0] sm:$0xff]
        %v6351 = vld [vmem:[#allocation4 + $0x1e8] sm:$0xff]
        %v6352 = vld [vmem:[#allocation4 + $0x1f0] sm:$0xff]
        %v6353 = vld [vmem:[#allocation4 + $0x1f8] sm:$0xff]
        %v6354 = vld [vmem:[#allocation4 + $0x200] sm:$0xff]
        %v6355 = vld [vmem:[#allocation4 + $0x208] sm:$0xff]
        %v6356 = vld [vmem:[#allocation4 + $0x210] sm:$0xff]
        %v6357 = vld [vmem:[#allocation4 + $0x218] sm:$0xff]
        %v6358 = vld [vmem:[#allocation4 + $0x220] sm:$0xff]
        %v6359 = vld [vmem:[#allocation4 + $0x228] sm:$0xff]
        %v6360 = vld [vmem:[#allocation4 + $0x230] sm:$0xff]
        %v6361 = vld [vmem:[#allocation4 + $0x238] sm:$0xff]
        %v6362 = vld [vmem:[#allocation4 + $0x240] sm:$0xff]
        %v6363 = vld [vmem:[#allocation4 + $0x248] sm:$0xff]
        %v6364 = vld [vmem:[#allocation4 + $0x250] sm:$0xff]
        %v6365 = vld [vmem:[#allocation4 + $0x258] sm:$0xff]
        %v6366 = vld [vmem:[#allocation4 + $0x260] sm:$0xff]
        %v6367 = vld [vmem:[#allocation4 + $0x268] sm:$0xff]
        %v6368 = vld [vmem:[#allocation4 + $0x270] sm:$0xff]
        %v6369 = vld [vmem:[#allocation4 + $0x278] sm:$0xff]
        %v6370 = vld [vmem:[#allocation4 + $0x280] sm:$0xff]
        %v6371 = vld [vmem:[#allocation4 + $0x288] sm:$0xff]
        %v6372 = vld [vmem:[#allocation4 + $0x290] sm:$0xff]
        %v6373 = vld [vmem:[#allocation4 + $0x298] sm:$0xff]
        %v6374 = vld [vmem:[#allocation4 + $0x2a0] sm:$0xff]
        %v6375 = vld [vmem:[#allocation4 + $0x2a8] sm:$0xff]
        %v6376 = vld [vmem:[#allocation4 + $0x2b0] sm:$0xff]
        %v6377 = vld [vmem:[#allocation4 + $0x2b8] sm:$0xff]
        %v6378 = vld [vmem:[#allocation4 + $0x2c0] sm:$0xff]
        %v6379 = vld [vmem:[#allocation4 + $0x2c8] sm:$0xff]
        %v6380 = vld [vmem:[#allocation4 + $0x2d0] sm:$0xff]
        %v6381 = vld [vmem:[#allocation4 + $0x2d8] sm:$0xff]
        %v6382 = vld [vmem:[#allocation4 + $0x2e0] sm:$0xff]
        %v6383 = vld [vmem:[#allocation4 + $0x2e8] sm:$0xff]
        %v6384 = vld [vmem:[#allocation4 + $0x2f0] sm:$0xff]
        %v6385 = vld [vmem:[#allocation4 + $0x2f8] sm:$0xff]
        %v6386 = vld [vmem:[#allocation4 + $0x300] sm:$0xff]
        %v6387 = vld [vmem:[#allocation4 + $0x308] sm:$0xff]
        %v6388 = vld [vmem:[#allocation4 + $0x310] sm:$0xff]
        %v6389 = vld [vmem:[#allocation4 + $0x318] sm:$0xff]
        %v6390 = vld [vmem:[#allocation4 + $0x320] sm:$0xff]
        %v6391 = vld [vmem:[#allocation4 + $0x328] sm:$0xff]
        %v6392 = vld [vmem:[#allocation4 + $0x330] sm:$0xff]
        %v6393 = vld [vmem:[#allocation4 + $0x338] sm:$0xff]
        %v6394 = vld [vmem:[#allocation4 + $0x340] sm:$0xff]
        %v6395 = vld [vmem:[#allocation4 + $0x348] sm:$0xff]
        %v6396 = vld [vmem:[#allocation4 + $0x350] sm:$0xff]
        %v6397 = vld [vmem:[#allocation4 + $0x358] sm:$0xff]
        %v6398 = vld [vmem:[%s3] sm:$0xf]
        %v6399 = vld [vmem:[%s3 + $0x4] sm:$0xf]
        %v6400 = vld [vmem:[%s3 + $0x8] sm:$0xf]
        %v6401 = vld [vmem:[%s3 + $0xc] sm:$0xf]
        %v6402 = vld [vmem:[%s3 + $0x10] sm:$0xf]
        %v6403 = vld [vmem:[%s3 + $0x14] sm:$0xf]
        %v6404 = vld [vmem:[%s3 + $0x18] sm:$0xf]
        %v6405 = vld [vmem:[%s3 + $0x1c] sm:$0xf]
        %v6406 = vld [vmem:[%s3 + $0x20] sm:$0xf]
        %v6407 = vld [vmem:[%s3 + $0x24] sm:$0xf]
        %v6408 = vld [vmem:[%s3 + $0x28] sm:$0xf]
        %v6409 = vld [vmem:[%s3 + $0x2c] sm:$0xf]
        %v6410 = vld [vmem:[%s3 + $0x30] sm:$0xf]
        %v6411 = vld [vmem:[%s3 + $0x34] sm:$0xf]
        %v6412 = vld [vmem:[%s3 + $0x38] sm:$0xf]
        %v6413 = vld [vmem:[%s3 + $0x3c] sm:$0xf]
        %v6414 = vld [vmem:[%s3 + $0x40] sm:$0xf]
        %v6415 = vld [vmem:[%s3 + $0x44] sm:$0xf]
        %v6416 = vld [vmem:[%s3 + $0x48] sm:$0xf]
        %v6417 = vld [vmem:[%s3 + $0x4c] sm:$0xf]
        %v6418 = vld [vmem:[%s3 + $0x50] sm:$0xf]
        %v6419 = vld [vmem:[%s3 + $0x54] sm:$0xf]
        %v6420 = vld [vmem:[%s3 + $0x58] sm:$0xf]
        %v6421 = vld [vmem:[%s3 + $0x5c] sm:$0xf]
        %v6422 = vld [vmem:[%s3 + $0x60] sm:$0xf]
        %v6423 = vld [vmem:[%s3 + $0x64] sm:$0xf]
        %v6424 = vld [vmem:[%s3 + $0x68] sm:$0xf]
        %v6425 = vld [vmem:[%s3 + $0x6c] sm:$0xf]
        %v6426 = vld [vmem:[%s3 + $0x70] sm:$0xf]
        %v6427 = vld [vmem:[%s3 + $0x74] sm:$0xf]
        %v6428 = vld [vmem:[%s3 + $0x78] sm:$0xf]
        %v6429 = vld [vmem:[%s3 + $0x7c] sm:$0xf]
        %v6430 = vld [vmem:[%s3 + $0x80] sm:$0xf]
        %v6431 = vld [vmem:[%s3 + $0x84] sm:$0xf]
        %v6432 = vld [vmem:[%s3 + $0x88] sm:$0xf]
        %v6433 = vld [vmem:[%s3 + $0x8c] sm:$0xf]
        %v6434 = vld [vmem:[#allocation10] sm:$0x1]
        %v6436 = vlaneseq
        %v6437 = vshrl.u32 %v6436, 7
        %v6438 = vsub.s32 0, %v6437
        %v6439 = vrot.slane %v6434, %v6438
        %v6477 = vunpack.c.l.b16 %v6398
        %v6478 = vunpack.c.l.b16 %v6399
        %v6479 = vunpack.c.l.b16 %v6400
        %v6480 = vunpack.c.l.b16 %v6401
        %v6481 = vunpack.c.l.b16 %v6402
        %v6482 = vunpack.c.l.b16 %v6403
        %v6483 = vunpack.c.l.b16 %v6404
        %v6484 = vunpack.c.l.b16 %v6405
        %v6485 = vunpack.c.l.b16 %v6406
        %v6486 = vunpack.c.l.b16 %v6407
        %v6487 = vunpack.c.l.b16 %v6408
        %v6488 = vunpack.c.l.b16 %v6409
        %v6489 = vunpack.c.l.b16 %v6410
        %v6490 = vunpack.c.l.b16 %v6411
        %v6491 = vunpack.c.l.b16 %v6412
        %v6492 = vunpack.c.l.b16 %v6413
        %v6493 = vunpack.c.l.b16 %v6414
        %v6494 = vunpack.c.l.b16 %v6415
        %v6495 = vunpack.c.l.b16 %v6416
        %v6496 = vunpack.c.l.b16 %v6417
        %v6497 = vunpack.c.l.b16 %v6418
        %v6498 = vunpack.c.l.b16 %v6419
        %v6499 = vunpack.c.l.b16 %v6420
        %v6500 = vunpack.c.l.b16 %v6421
        %v6501 = vunpack.c.l.b16 %v6422
        %v6502 = vunpack.c.l.b16 %v6423
        %v6503 = vunpack.c.l.b16 %v6424
        %v6504 = vunpack.c.l.b16 %v6425
        %v6505 = vunpack.c.l.b16 %v6426
        %v6506 = vunpack.c.l.b16 %v6427
        %v6507 = vunpack.c.l.b16 %v6428
        %v6508 = vunpack.c.l.b16 %v6429
        %v6509 = vunpack.c.l.b16 %v6430
        %v6510 = vunpack.c.l.b16 %v6431
        %v6511 = vunpack.c.l.b16 %v6432
        %v6512 = vunpack.c.l.b16 %v6433
        %v6513 = vpack.c.b16 %v6478, %v6477
        %v6514 = vpack.c.b16 %v6480, %v6479
        %v6515 = vpack.c.b16 %v6482, %v6481
        %v6516 = vpack.c.b16 %v6484, %v6483
        %v6517 = vpack.c.b16 %v6486, %v6485
        %v6518 = vpack.c.b16 %v6488, %v6487
        %v6519 = vpack.c.b16 %v6490, %v6489
        %v6520 = vpack.c.b16 %v6492, %v6491
        %v6521 = vpack.c.b16 %v6494, %v6493
        %v6522 = vpack.c.b16 %v6496, %v6495
        %v6523 = vpack.c.b16 %v6498, %v6497
        %v6524 = vpack.c.b16 %v6500, %v6499
        %v6525 = vpack.c.b16 %v6502, %v6501
        %v6526 = vpack.c.b16 %v6504, %v6503
        %v6527 = vpack.c.b16 %v6506, %v6505
        %v6528 = vpack.c.b16 %v6508, %v6507
        %v6529 = vpack.c.b16 %v6510, %v6509
        %v6530 = vpack.c.b16 %v6512, %v6511
        %v6550 = vsel %vm938, %v6292, 0
        %v6553 = vsel %vm938, %v6295, 0
        %v6556 = vsel %vm938, %v6298, 0
        %v6559 = vsel %vm938, %v6301, 0
        %v6562 = vsel %vm938, %v6304, 0
        %v6565 = vsel %vm938, %v6307, 0
        %v6568 = vsel %vm938, %v6310, 0
        %v6571 = vsel %vm938, %v6313, 0
        %v6574 = vsel %vm938, %v6316, 0
        %v6577 = vsel %vm938, %v6319, 0
        %v6580 = vsel %vm938, %v6322, 0
        %v6583 = vsel %vm938, %v6325, 0
        %v6586 = vsel %vm938, %v6328, 0
        %v6589 = vsel %vm938, %v6331, 0
        %v6592 = vsel %vm938, %v6334, 0
        %v6595 = vsel %vm938, %v6337, 0
        %v6598 = vsel %vm938, %v6340, 0
        %v6601 = vsel %vm938, %v6343, 0
        %v6604 = vsel %vm938, %v6346, 0
        %v6607 = vsel %vm938, %v6349, 0
        %v6610 = vsel %vm938, %v6352, 0
        %v6613 = vsel %vm938, %v6355, 0
        %v6616 = vsel %vm938, %v6358, 0
        %v6619 = vsel %vm938, %v6361, 0
        %v6622 = vsel %vm938, %v6364, 0
        %v6625 = vsel %vm938, %v6367, 0
        %v6628 = vsel %vm938, %v6370, 0
        %v6631 = vsel %vm938, %v6373, 0
        %v6634 = vsel %vm938, %v6376, 0
        %v6637 = vsel %vm938, %v6379, 0
        %v6640 = vsel %vm938, %v6382, 0
        %v6643 = vsel %vm938, %v6385, 0
        %v6646 = vsel %vm938, %v6388, 0
        %v6649 = vsel %vm938, %v6391, 0
        %v6652 = vsel %vm938, %v6394, 0
        %v6655 = vsel %vm938, %v6397, 0
        %6657 = vmatprep.subr.bf16.mxu0 0
        %6658 = vmatpush1.bf16.msra.mxu0 %v6513
        %6659 = vmatprep.subr.bf16.mxu0 0
        %6660 = vmatpush1.bf16.msra.mxu0 %v6514
        %6661 = vmatprep.subr.bf16.mxu0 0
        %6662 = vmatpush1.bf16.msra.mxu0 %v6515
        %6663 = vmatprep.subr.bf16.mxu0 0
        %6664 = vmatpush1.bf16.msra.mxu0 %v6516
        %6665 = vmatprep.subr.bf16.mxu0 0
        %6666 = vmatpush1.bf16.msra.mxu0 %v6517
        %6667 = vmatprep.subr.bf16.mxu0 0
        %6668 = vmatpush1.bf16.msra.mxu0 %v6518
        %6669 = vmatprep.subr.bf16.mxu0 0
        %6670 = vmatpush1.bf16.msra.mxu0 %v6519
        %6671 = vmatprep.subr.bf16.mxu0 0
        %6672 = vmatpush1.bf16.msra.mxu0 %v6520
        %6673 = vmatprep.subr.bf16.mxu0 0
        %6674 = vmatpush1.bf16.msra.mxu0 %v6521
        %6675 = vmatprep.subr.bf16.mxu0 0
        %6676 = vmatpush1.bf16.msra.mxu0 %v6522
        %6677 = vmatprep.subr.bf16.mxu0 0
        %6678 = vmatpush1.bf16.msra.mxu0 %v6523
        %6679 = vmatprep.subr.bf16.mxu0 0
        %6680 = vmatpush1.bf16.msra.mxu0 %v6524
        %6681 = vmatprep.subr.bf16.mxu0 0
        %6682 = vmatpush1.bf16.msra.mxu0 %v6525
        %6683 = vmatprep.subr.bf16.mxu0 0
        %6684 = vmatpush1.bf16.msra.mxu0 %v6526
        %6685 = vmatprep.subr.bf16.mxu0 0
        %6686 = vmatpush1.bf16.msra.mxu0 %v6527
        %6687 = vmatprep.subr.bf16.mxu0 0
        %6688 = vmatpush1.bf16.msra.mxu0 %v6528
        %6689 = vmatprep.mubr.bf16.mxu0 %v6291
        %6690 = vmatmul.mubr.bf16.gmra.mrb[0].mxu0 %v6290
        %v6691 = vpop.f32.mrb[0].mxu0
        %v6692 = vadd.f32 %v6439, %v6691
        %v6693 = vpop.f32.mrb[0].mxu0
        %v6694 = vpop.f32.mrb[0].mxu0
        %v6695 = vadd.f32 %v6439, %v6694
        %v6696 = vpop.f32.mrb[0].mxu0
        %6697 = vmatprep.mubr.bf16.mxu0 %v6294
        %6698 = vmatmul.mubr.bf16.gmra.mrb[0].mxu0 %v6293
        %v6699 = vpop.f32.mrb[0].mxu0
        %v6700 = vadd.f32 %v6439, %v6699
        %v6701 = vpop.f32.mrb[0].mxu0
        %v6702 = vpop.f32.mrb[0].mxu0
        %v6703 = vadd.f32 %v6439, %v6702
        %v6704 = vpop.f32.mrb[0].mxu0
        %6705 = vmatprep.mubr.bf16.mxu0 %v6297
        %6706 = vmatmul.mubr.bf16.gmra.mrb[0].mxu0 %v6296
        %v6707 = vpop.f32.mrb[0].mxu0
        %v6708 = vadd.f32 %v6439, %v6707
        %v6709 = vpop.f32.mrb[0].mxu0
        %v6710 = vpop.f32.mrb[0].mxu0
        %v6711 = vadd.f32 %v6439, %v6710
        %v6712 = vpop.f32.mrb[0].mxu0
        %6713 = vmatprep.mubr.bf16.mxu0 %v6300
        %6714 = vmatmul.mubr.bf16.gmra.mrb[0].mxu0 %v6299
        %v6715 = vpop.f32.mrb[0].mxu0
        %v6716 = vadd.f32 %v6439, %v6715
        %v6717 = vpop.f32.mrb[0].mxu0
        %v6718 = vpop.f32.mrb[0].mxu0
        %v6719 = vadd.f32 %v6439, %v6718
        %v6720 = vpop.f32.mrb[0].mxu0
        %6721 = vmatprep.mubr.bf16.mxu0 %v6303
        %6722 = vmatmul.mubr.bf16.gmra.mrb[0].mxu0 %v6302
        %v6723 = vpop.f32.mrb[0].mxu0
        %v6724 = vadd.f32 %v6439, %v6723
        %v6725 = vpop.f32.mrb[0].mxu0
        %v6726 = vpop.f32.mrb[0].mxu0
        %v6727 = vadd.f32 %v6439, %v6726
        %v6728 = vpop.f32.mrb[0].mxu0
        %6729 = vmatprep.mubr.bf16.mxu0 %v6306
        %6730 = vmatmul.mubr.bf16.gmra.mrb[0].mxu0 %v6305
        %v6731 = vpop.f32.mrb[0].mxu0
        %v6732 = vadd.f32 %v6439, %v6731
        %v6733 = vpop.f32.mrb[0].mxu0
        %v6734 = vpop.f32.mrb[0].mxu0
        %v6735 = vadd.f32 %v6439, %v6734
        %v6736 = vpop.f32.mrb[0].mxu0
        %6737 = vmatprep.mubr.bf16.mxu0 %v6309
        %6738 = vmatmul.mubr.bf16.gmra.mrb[0].mxu0 %v6308
        %v6739 = vpop.f32.mrb[0].mxu0
        %v6740 = vadd.f32 %v6439, %v6739
        %v6741 = vpop.f32.mrb[0].mxu0
        %v6742 = vpop.f32.mrb[0].mxu0
        %v6743 = vadd.f32 %v6439, %v6742
        %v6744 = vpop.f32.mrb[0].mxu0
        %6745 = vmatprep.mubr.bf16.mxu0 %v6312
        %6746 = vmatmul.mubr.bf16.gmra.mrb[0].mxu0 %v6311
        %v6747 = vpop.f32.mrb[0].mxu0
        %v6748 = vadd.f32 %v6439, %v6747
        %v6749 = vpop.f32.mrb[0].mxu0
        %v6750 = vpop.f32.mrb[0].mxu0
        %v6751 = vadd.f32 %v6439, %v6750
        %v6752 = vpop.f32.mrb[0].mxu0
        %6753 = vmatprep.mubr.bf16.mxu0 %v6315
        %6754 = vmatmul.mubr.bf16.gmra.mrb[0].mxu0 %v6314
        %v6755 = vpop.f32.mrb[0].mxu0
        %v6756 = vadd.f32 %v6439, %v6755
        %v6757 = vpop.f32.mrb[0].mxu0
        %v6758 = vpop.f32.mrb[0].mxu0
        %v6759 = vadd.f32 %v6439, %v6758
        %v6760 = vpop.f32.mrb[0].mxu0
        %6761 = vmatprep.mubr.bf16.mxu0 %v6318
        %6762 = vmatmul.mubr.bf16.gmra.mrb[0].mxu0 %v6317
        %v6763 = vpop.f32.mrb[0].mxu0
        %v6764 = vadd.f32 %v6439, %v6763
        %v6765 = vpop.f32.mrb[0].mxu0
        %v6766 = vpop.f32.mrb[0].mxu0
        %v6767 = vadd.f32 %v6439, %v6766
        %v6768 = vpop.f32.mrb[0].mxu0
        %6769 = vmatprep.mubr.bf16.mxu0 %v6321
        %6770 = vmatmul.mubr.bf16.gmra.mrb[0].mxu0 %v6320
        %v6771 = vpop.f32.mrb[0].mxu0
        %v6772 = vadd.f32 %v6439, %v6771
        %v6773 = vpop.f32.mrb[0].mxu0
        %v6774 = vpop.f32.mrb[0].mxu0
        %v6775 = vadd.f32 %v6439, %v6774
        %v6776 = vpop.f32.mrb[0].mxu0
        %6777 = vmatprep.mubr.bf16.mxu0 %v6324
        %6778 = vmatmul.mubr.bf16.gmra.mrb[0].mxu0 %v6323
        %v6779 = vpop.f32.mrb[0].mxu0
        %v6780 = vadd.f32 %v6439, %v6779
        %v6781 = vpop.f32.mrb[0].mxu0
        %v6782 = vpop.f32.mrb[0].mxu0
        %v6783 = vadd.f32 %v6439, %v6782
        %v6784 = vpop.f32.mrb[0].mxu0
        %6785 = vmatprep.mubr.bf16.mxu0 %v6327
        %6786 = vmatmul.mubr.bf16.gmra.mrb[0].mxu0 %v6326
        %v6787 = vpop.f32.mrb[0].mxu0
        %v6788 = vadd.f32 %v6439, %v6787
        %v6789 = vpop.f32.mrb[0].mxu0
        %v6790 = vpop.f32.mrb[0].mxu0
        %v6791 = vadd.f32 %v6439, %v6790
        %v6792 = vpop.f32.mrb[0].mxu0
        %6793 = vmatprep.mubr.bf16.mxu0 %v6330
        %6794 = vmatmul.mubr.bf16.gmra.mrb[0].mxu0 %v6329
        %v6795 = vpop.f32.mrb[0].mxu0
        %v6796 = vadd.f32 %v6439, %v6795
        %v6797 = vpop.f32.mrb[0].mxu0
        %v6798 = vpop.f32.mrb[0].mxu0
        %v6799 = vadd.f32 %v6439, %v6798
        %v6800 = vpop.f32.mrb[0].mxu0
        %6801 = vmatprep.mubr.bf16.mxu0 %v6333
        %6802 = vmatmul.mubr.bf16.gmra.mrb[0].mxu0 %v6332
        %v6803 = vpop.f32.mrb[0].mxu0
        %v6804 = vadd.f32 %v6439, %v6803
        %v6805 = vpop.f32.mrb[0].mxu0
        %v6806 = vpop.f32.mrb[0].mxu0
        %v6807 = vadd.f32 %v6439, %v6806
        %v6808 = vpop.f32.mrb[0].mxu0
        %6809 = vmatprep.mubr.bf16.mxu0 %v6336
        %6810 = vmatmul.mubr.bf16.gmra.mrb[0].mxu0 %v6335
        %v6811 = vpop.f32.mrb[0].mxu0
        %v6812 = vadd.f32 %v6439, %v6811
        %v6813 = vpop.f32.mrb[0].mxu0
        %v6814 = vpop.f32.mrb[0].mxu0
        %v6815 = vadd.f32 %v6439, %v6814
        %v6816 = vpop.f32.mrb[0].mxu0
        %6817 = vmatprep.mubr.bf16.mxu0 %v6339
        %6818 = vmatmul.mubr.bf16.gmra.mrb[0].mxu0 %v6338
        %v6819 = vpop.f32.mrb[0].mxu0
        %v6820 = vadd.f32 %v6439, %v6819
        %v6821 = vpop.f32.mrb[0].mxu0
        %v6822 = vpop.f32.mrb[0].mxu0
        %v6823 = vadd.f32 %v6439, %v6822
        %v6824 = vpop.f32.mrb[0].mxu0
        %6825 = vmatprep.mubr.bf16.mxu0 %v6342
        %6826 = vmatmul.mubr.bf16.gmra.mrb[0].mxu0 %v6341
        %v6827 = vpop.f32.mrb[0].mxu0
        %v6828 = vadd.f32 %v6439, %v6827
        %v6829 = vpop.f32.mrb[0].mxu0
        %v6830 = vpop.f32.mrb[0].mxu0
        %v6831 = vadd.f32 %v6439, %v6830
        %v6832 = vpop.f32.mrb[0].mxu0
        %6833 = vmatprep.mubr.bf16.mxu0 %v6345
        %6834 = vmatmul.mubr.bf16.gmra.mrb[0].mxu0 %v6344
        %v6835 = vpop.f32.mrb[0].mxu0
        %v6836 = vadd.f32 %v6439, %v6835
        %v6837 = vpop.f32.mrb[0].mxu0
        %v6838 = vpop.f32.mrb[0].mxu0
        %v6839 = vadd.f32 %v6439, %v6838
        %v6840 = vpop.f32.mrb[0].mxu0
        %6841 = vmatprep.mubr.bf16.mxu0 %v6348
        %6842 = vmatmul.mubr.bf16.gmra.mrb[0].mxu0 %v6347
        %v6843 = vpop.f32.mrb[0].mxu0
        %v6844 = vadd.f32 %v6439, %v6843
        %v6845 = vpop.f32.mrb[0].mxu0
        %v6846 = vpop.f32.mrb[0].mxu0
        %v6847 = vadd.f32 %v6439, %v6846
        %v6848 = vpop.f32.mrb[0].mxu0
        %6849 = vmatprep.mubr.bf16.mxu0 %v6351
        %6850 = vmatmul.mubr.bf16.gmra.mrb[0].mxu0 %v6350
        %v6851 = vpop.f32.mrb[0].mxu0
        %v6852 = vadd.f32 %v6439, %v6851
        %v6853 = vpop.f32.mrb[0].mxu0
        %v6854 = vpop.f32.mrb[0].mxu0
        %v6855 = vadd.f32 %v6439, %v6854
        %v6856 = vpop.f32.mrb[0].mxu0
        %6857 = vmatprep.mubr.bf16.mxu0 %v6354
        %6858 = vmatmul.mubr.bf16.gmra.mrb[0].mxu0 %v6353
        %v6859 = vpop.f32.mrb[0].mxu0
        %v6860 = vadd.f32 %v6439, %v6859
        %v6861 = vpop.f32.mrb[0].mxu0
        %v6862 = vpop.f32.mrb[0].mxu0
        %v6863 = vadd.f32 %v6439, %v6862
        %v6864 = vpop.f32.mrb[0].mxu0
        %6865 = vmatprep.mubr.bf16.mxu0 %v6357
        %6866 = vmatmul.mubr.bf16.gmra.mrb[0].mxu0 %v6356
        %v6867 = vpop.f32.mrb[0].mxu0
        %v6868 = vadd.f32 %v6439, %v6867
        %v6869 = vpop.f32.mrb[0].mxu0
        %v6870 = vpop.f32.mrb[0].mxu0
        %v6871 = vadd.f32 %v6439, %v6870
        %v6872 = vpop.f32.mrb[0].mxu0
        %6873 = vmatprep.mubr.bf16.mxu0 %v6360
        %6874 = vmatmul.mubr.bf16.gmra.mrb[0].mxu0 %v6359
        %v6875 = vpop.f32.mrb[0].mxu0
        %v6876 = vadd.f32 %v6439, %v6875
        %v6877 = vpop.f32.mrb[0].mxu0
        %v6878 = vpop.f32.mrb[0].mxu0
        %v6879 = vadd.f32 %v6439, %v6878
        %v6880 = vpop.f32.mrb[0].mxu0
        %6881 = vmatprep.mubr.bf16.mxu0 %v6363
        %6882 = vmatmul.mubr.bf16.gmra.mrb[0].mxu0 %v6362
        %v6883 = vpop.f32.mrb[0].mxu0
        %v6884 = vadd.f32 %v6439, %v6883
        %v6885 = vpop.f32.mrb[0].mxu0
        %v6886 = vpop.f32.mrb[0].mxu0
        %v6887 = vadd.f32 %v6439, %v6886
        %v6888 = vpop.f32.mrb[0].mxu0
        %6889 = vmatprep.mubr.bf16.mxu0 %v6366
        %6890 = vmatmul.mubr.bf16.gmra.mrb[0].mxu0 %v6365
        %v6891 = vpop.f32.mrb[0].mxu0
        %v6892 = vadd.f32 %v6439, %v6891
        %v6893 = vpop.f32.mrb[0].mxu0
        %v6894 = vpop.f32.mrb[0].mxu0
        %v6895 = vadd.f32 %v6439, %v6894
        %v6896 = vpop.f32.mrb[0].mxu0
        %6897 = vmatprep.mubr.bf16.mxu0 %v6369
        %6898 = vmatmul.mubr.bf16.gmra.mrb[0].mxu0 %v6368
        %v6899 = vpop.f32.mrb[0].mxu0
        %v6900 = vadd.f32 %v6439, %v6899
        %v6901 = vpop.f32.mrb[0].mxu0
        %v6902 = vpop.f32.mrb[0].mxu0
        %v6903 = vadd.f32 %v6439, %v6902
        %v6904 = vpop.f32.mrb[0].mxu0
        %6905 = vmatprep.mubr.bf16.mxu0 %v6372
        %6906 = vmatmul.mubr.bf16.gmra.mrb[0].mxu0 %v6371
        %v6907 = vpop.f32.mrb[0].mxu0
        %v6908 = vadd.f32 %v6439, %v6907
        %v6909 = vpop.f32.mrb[0].mxu0
        %v6910 = vpop.f32.mrb[0].mxu0
        %v6911 = vadd.f32 %v6439, %v6910
        %v6912 = vpop.f32.mrb[0].mxu0
        %6913 = vmatprep.mubr.bf16.mxu0 %v6375
        %6914 = vmatmul.mubr.bf16.gmra.mrb[0].mxu0 %v6374
        %v6915 = vpop.f32.mrb[0].mxu0
        %v6916 = vadd.f32 %v6439, %v6915
        %v6917 = vpop.f32.mrb[0].mxu0
        %v6918 = vpop.f32.mrb[0].mxu0
        %v6919 = vadd.f32 %v6439, %v6918
        %v6920 = vpop.f32.mrb[0].mxu0
        %6921 = vmatprep.mubr.bf16.mxu0 %v6378
        %6922 = vmatmul.mubr.bf16.gmra.mrb[0].mxu0 %v6377
        %v6923 = vpop.f32.mrb[0].mxu0
        %v6924 = vadd.f32 %v6439, %v6923
        %v6925 = vpop.f32.mrb[0].mxu0
        %v6926 = vpop.f32.mrb[0].mxu0
        %v6927 = vadd.f32 %v6439, %v6926
        %v6928 = vpop.f32.mrb[0].mxu0
        %6929 = vmatprep.mubr.bf16.mxu0 %v6381
        %6930 = vmatmul.mubr.bf16.gmra.mrb[0].mxu0 %v6380
        %v6931 = vpop.f32.mrb[0].mxu0
        %v6932 = vadd.f32 %v6439, %v6931
        %v6933 = vpop.f32.mrb[0].mxu0
        %v6934 = vpop.f32.mrb[0].mxu0
        %v6935 = vadd.f32 %v6439, %v6934
        %v6936 = vpop.f32.mrb[0].mxu0
        %6937 = vmatprep.mubr.bf16.mxu0 %v6384
        %6938 = vmatmul.mubr.bf16.gmra.mrb[0].mxu0 %v6383
        %v6939 = vpop.f32.mrb[0].mxu0
        %v6940 = vadd.f32 %v6439, %v6939
        %v6941 = vpop.f32.mrb[0].mxu0
        %v6942 = vpop.f32.mrb[0].mxu0
        %v6943 = vadd.f32 %v6439, %v6942
        %v6944 = vpop.f32.mrb[0].mxu0
        %6945 = vmatprep.mubr.bf16.mxu0 %v6387
        %6946 = vmatmul.mubr.bf16.gmra.mrb[0].mxu0 %v6386
        %v6947 = vpop.f32.mrb[0].mxu0
        %v6948 = vadd.f32 %v6439, %v6947
        %v6949 = vpop.f32.mrb[0].mxu0
        %v6950 = vpop.f32.mrb[0].mxu0
        %v6951 = vadd.f32 %v6439, %v6950
        %v6952 = vpop.f32.mrb[0].mxu0
        %6953 = vmatprep.mubr.bf16.mxu0 %v6390
        %6954 = vmatmul.mubr.bf16.gmra.mrb[0].mxu0 %v6389
        %v6955 = vpop.f32.mrb[0].mxu0
        %v6956 = vadd.f32 %v6439, %v6955
        %v6957 = vpop.f32.mrb[0].mxu0
        %v6958 = vpop.f32.mrb[0].mxu0
        %v6959 = vadd.f32 %v6439, %v6958
        %v6960 = vpop.f32.mrb[0].mxu0
        %6961 = vmatprep.mubr.bf16.mxu0 %v6393
        %6962 = vmatmul.mubr.bf16.gmra.mrb[0].mxu0 %v6392
        %v6963 = vpop.f32.mrb[0].mxu0
        %v6964 = vadd.f32 %v6439, %v6963
        %v6965 = vpop.f32.mrb[0].mxu0
        %v6966 = vpop.f32.mrb[0].mxu0
        %v6967 = vadd.f32 %v6439, %v6966
        %v6968 = vpop.f32.mrb[0].mxu0
        %6969 = vmatprep.mubr.bf16.mxu0 %v6396
        %6970 = vmatmul.mubr.bf16.gmra.mrb[0].mxu0 %v6395
        %v6971 = vpop.f32.mrb[0].mxu0
        %v6972 = vadd.f32 %v6439, %v6971
        %v6973 = vpop.f32.mrb[0].mxu0
        %v6974 = vpop.f32.mrb[0].mxu0
        %v6975 = vadd.f32 %v6439, %v6974
        %v6976 = vpop.f32.mrb[0].mxu0
        %6977 = vdwg.mxu0
        %6978 = vmatprep.subr.bf16.mxu0 0
        %6979 = vmatpush1.bf16.msra.mxu0 %v6529
        %6980 = vmatprep.subr.bf16.mxu0 0
        %6981 = vmatpush1.bf16.msra.mxu0 %v6530
        %6982 = vmatprep.subr.bf16.mxu0 0
        %6983 = vmatpush1.bf16.msra.mxu0 0
        %6984 = vmatprep.subr.bf16.mxu0 0
        %6985 = vmatpush1.bf16.msra.mxu0 0
        %6986 = vmatprep.subr.bf16.mxu0 0
        %6987 = vmatpush1.bf16.msra.mxu0 0
        %6988 = vmatprep.subr.bf16.mxu0 0
        %6989 = vmatpush1.bf16.msra.mxu0 0
        %6990 = vmatprep.subr.bf16.mxu0 0
        %6991 = vmatpush1.bf16.msra.mxu0 0
        %6992 = vmatprep.subr.bf16.mxu0 0
        %6993 = vmatpush1.bf16.msra.mxu0 0
        %6994 = vmatprep.subr.bf16.mxu0 0
        %6995 = vmatpush1.bf16.msra.mxu0 0
        %6996 = vmatprep.subr.bf16.mxu0 0
        %6997 = vmatpush1.bf16.msra.mxu0 0
        %6998 = vmatprep.subr.bf16.mxu0 0
        %6999 = vmatpush1.bf16.msra.mxu0 0
        %7000 = vmatprep.subr.bf16.mxu0 0
        %7001 = vmatpush1.bf16.msra.mxu0 0
        %7002 = vmatprep.subr.bf16.mxu0 0
        %7003 = vmatpush1.bf16.msra.mxu0 0
        %7004 = vmatprep.subr.bf16.mxu0 0
        %7005 = vmatpush1.bf16.msra.mxu0 0
        %7006 = vmatprep.subr.bf16.mxu0 0
        %7007 = vmatpush1.bf16.msra.mxu0 0
        %7008 = vmatprep.subr.bf16.mxu0 0
        %7009 = vmatpush1.bf16.msra.mxu0 0
        %7010 = vmatprep.mubr.bf16.mxu0 0
        %7011 = vmatmul.mubr.bf16.gmra.mrb[0].mxu0 %v6550
        %v7012 = vpop.f32.mrb[0].mxu0
        %v7013 = vadd.f32 %v6692, %v7012
        %v7014 = vpop.f32.mrb[0].mxu0
        %v7015 = vpop.f32.mrb[0].mxu0
        %v7016 = vadd.f32 %v6695, %v7015
        %v7017 = vpop.f32.mrb[0].mxu0
        %7018 = vmatprep.mubr.bf16.mxu0 0
        %7019 = vmatmul.mubr.bf16.gmra.mrb[0].mxu0 %v6553
        %v7020 = vpop.f32.mrb[0].mxu0
        %v7021 = vadd.f32 %v6700, %v7020
        %v7022 = vpop.f32.mrb[0].mxu0
        %v7023 = vpop.f32.mrb[0].mxu0
        %v7024 = vadd.f32 %v6703, %v7023
        %v7025 = vpop.f32.mrb[0].mxu0
        %7026 = vmatprep.mubr.bf16.mxu0 0
        %7027 = vmatmul.mubr.bf16.gmra.mrb[0].mxu0 %v6556
        %v7028 = vpop.f32.mrb[0].mxu0
        %v7029 = vadd.f32 %v6708, %v7028
        %v7030 = vpop.f32.mrb[0].mxu0
        %v7031 = vpop.f32.mrb[0].mxu0
        %v7032 = vadd.f32 %v6711, %v7031
        %v7033 = vpop.f32.mrb[0].mxu0
        %7034 = vmatprep.mubr.bf16.mxu0 0
        %7035 = vmatmul.mubr.bf16.gmra.mrb[0].mxu0 %v6559
        %v7036 = vpop.f32.mrb[0].mxu0
        %v7037 = vadd.f32 %v6716, %v7036
        %v7038 = vpop.f32.mrb[0].mxu0
        %v7039 = vpop.f32.mrb[0].mxu0
        %v7040 = vadd.f32 %v6719, %v7039
        %v7041 = vpop.f32.mrb[0].mxu0
        %7042 = vmatprep.mubr.bf16.mxu0 0
        %7043 = vmatmul.mubr.bf16.gmra.mrb[0].mxu0 %v6562
        %v7044 = vpop.f32.mrb[0].mxu0
        %v7045 = vadd.f32 %v6724, %v7044
        %v7046 = vpop.f32.mrb[0].mxu0
        %v7047 = vpop.f32.mrb[0].mxu0
        %v7048 = vadd.f32 %v6727, %v7047
        %v7049 = vpop.f32.mrb[0].mxu0
        %7050 = vmatprep.mubr.bf16.mxu0 0
        %7051 = vmatmul.mubr.bf16.gmra.mrb[0].mxu0 %v6565
        %v7052 = vpop.f32.mrb[0].mxu0
        %v7053 = vadd.f32 %v6732, %v7052
        %v7054 = vpop.f32.mrb[0].mxu0
        %v7055 = vpop.f32.mrb[0].mxu0
        %v7056 = vadd.f32 %v6735, %v7055
        %v7057 = vpop.f32.mrb[0].mxu0
        %7058 = vmatprep.mubr.bf16.mxu0 0
        %7059 = vmatmul.mubr.bf16.gmra.mrb[0].mxu0 %v6568
        %v7060 = vpop.f32.mrb[0].mxu0
        %v7061 = vadd.f32 %v6740, %v7060
        %v7062 = vpop.f32.mrb[0].mxu0
        %v7063 = vpop.f32.mrb[0].mxu0
        %v7064 = vadd.f32 %v6743, %v7063
        %v7065 = vpop.f32.mrb[0].mxu0
        %7066 = vmatprep.mubr.bf16.mxu0 0
        %7067 = vmatmul.mubr.bf16.gmra.mrb[0].mxu0 %v6571
        %v7068 = vpop.f32.mrb[0].mxu0
        %v7069 = vadd.f32 %v6748, %v7068
        %v7070 = vpop.f32.mrb[0].mxu0
        %v7071 = vpop.f32.mrb[0].mxu0
        %v7072 = vadd.f32 %v6751, %v7071
        %v7073 = vpop.f32.mrb[0].mxu0
        %7074 = vmatprep.mubr.bf16.mxu0 0
        %7075 = vmatmul.mubr.bf16.gmra.mrb[0].mxu0 %v6574
        %v7076 = vpop.f32.mrb[0].mxu0
        %v7077 = vadd.f32 %v6756, %v7076
        %v7078 = vpop.f32.mrb[0].mxu0
        %v7079 = vpop.f32.mrb[0].mxu0
        %v7080 = vadd.f32 %v6759, %v7079
        %v7081 = vpop.f32.mrb[0].mxu0
        %7082 = vmatprep.mubr.bf16.mxu0 0
        %7083 = vmatmul.mubr.bf16.gmra.mrb[0].mxu0 %v6577
        %v7084 = vpop.f32.mrb[0].mxu0
        %v7085 = vadd.f32 %v6764, %v7084
        %v7086 = vpop.f32.mrb[0].mxu0
        %v7087 = vpop.f32.mrb[0].mxu0
        %v7088 = vadd.f32 %v6767, %v7087
        %v7089 = vpop.f32.mrb[0].mxu0
        %7090 = vmatprep.mubr.bf16.mxu0 0
        %7091 = vmatmul.mubr.bf16.gmra.mrb[0].mxu0 %v6580
        %v7092 = vpop.f32.mrb[0].mxu0
        %v7093 = vadd.f32 %v6772, %v7092
        %v7094 = vpop.f32.mrb[0].mxu0
        %v7095 = vpop.f32.mrb[0].mxu0
        %v7096 = vadd.f32 %v6775, %v7095
        %v7097 = vpop.f32.mrb[0].mxu0
        %7098 = vmatprep.mubr.bf16.mxu0 0
        %7099 = vmatmul.mubr.bf16.gmra.mrb[0].mxu0 %v6583
        %v7100 = vpop.f32.mrb[0].mxu0
        %v7101 = vadd.f32 %v6780, %v7100
        %v7102 = vpop.f32.mrb[0].mxu0
        %v7103 = vpop.f32.mrb[0].mxu0
        %v7104 = vadd.f32 %v6783, %v7103
        %v7105 = vpop.f32.mrb[0].mxu0
        %7106 = vmatprep.mubr.bf16.mxu0 0
        %7107 = vmatmul.mubr.bf16.gmra.mrb[0].mxu0 %v6586
        %v7108 = vpop.f32.mrb[0].mxu0
        %v7109 = vadd.f32 %v6788, %v7108
        %v7110 = vpop.f32.mrb[0].mxu0
        %v7111 = vpop.f32.mrb[0].mxu0
        %v7112 = vadd.f32 %v6791, %v7111
        %v7113 = vpop.f32.mrb[0].mxu0
        %7114 = vmatprep.mubr.bf16.mxu0 0
        %7115 = vmatmul.mubr.bf16.gmra.mrb[0].mxu0 %v6589
        %v7116 = vpop.f32.mrb[0].mxu0
        %v7117 = vadd.f32 %v6796, %v7116
        %v7118 = vpop.f32.mrb[0].mxu0
        %v7119 = vpop.f32.mrb[0].mxu0
        %v7120 = vadd.f32 %v6799, %v7119
        %v7121 = vpop.f32.mrb[0].mxu0
        %7122 = vmatprep.mubr.bf16.mxu0 0
        %7123 = vmatmul.mubr.bf16.gmra.mrb[0].mxu0 %v6592
        %v7124 = vpop.f32.mrb[0].mxu0
        %v7125 = vadd.f32 %v6804, %v7124
        %v7126 = vpop.f32.mrb[0].mxu0
        %v7127 = vpop.f32.mrb[0].mxu0
        %v7128 = vadd.f32 %v6807, %v7127
        %v7129 = vpop.f32.mrb[0].mxu0
        %7130 = vmatprep.mubr.bf16.mxu0 0
        %7131 = vmatmul.mubr.bf16.gmra.mrb[0].mxu0 %v6595
        %v7132 = vpop.f32.mrb[0].mxu0
        %v7133 = vadd.f32 %v6812, %v7132
        %v7134 = vpop.f32.mrb[0].mxu0
        %v7135 = vpop.f32.mrb[0].mxu0
        %v7136 = vadd.f32 %v6815, %v7135
        %v7137 = vpop.f32.mrb[0].mxu0
        %7138 = vmatprep.mubr.bf16.mxu0 0
        %7139 = vmatmul.mubr.bf16.gmra.mrb[0].mxu0 %v6598
        %v7140 = vpop.f32.mrb[0].mxu0
        %v7141 = vadd.f32 %v6820, %v7140
        %v7142 = vpop.f32.mrb[0].mxu0
        %v7143 = vpop.f32.mrb[0].mxu0
        %v7144 = vadd.f32 %v6823, %v7143
        %v7145 = vpop.f32.mrb[0].mxu0
        %7146 = vmatprep.mubr.bf16.mxu0 0
        %7147 = vmatmul.mubr.bf16.gmra.mrb[0].mxu0 %v6601
        %v7148 = vpop.f32.mrb[0].mxu0
        %v7149 = vadd.f32 %v6828, %v7148
        %v7150 = vpop.f32.mrb[0].mxu0
        %v7151 = vpop.f32.mrb[0].mxu0
        %v7152 = vadd.f32 %v6831, %v7151
        %v7153 = vpop.f32.mrb[0].mxu0
        %7154 = vmatprep.mubr.bf16.mxu0 0
        %7155 = vmatmul.mubr.bf16.gmra.mrb[0].mxu0 %v6604
        %v7156 = vpop.f32.mrb[0].mxu0
        %v7157 = vadd.f32 %v6836, %v7156
        %v7158 = vpop.f32.mrb[0].mxu0
        %v7159 = vpop.f32.mrb[0].mxu0
        %v7160 = vadd.f32 %v6839, %v7159
        %v7161 = vpop.f32.mrb[0].mxu0
        %7162 = vmatprep.mubr.bf16.mxu0 0
        %7163 = vmatmul.mubr.bf16.gmra.mrb[0].mxu0 %v6607
        %v7164 = vpop.f32.mrb[0].mxu0
        %v7165 = vadd.f32 %v6844, %v7164
        %v7166 = vpop.f32.mrb[0].mxu0
        %v7167 = vpop.f32.mrb[0].mxu0
        %v7168 = vadd.f32 %v6847, %v7167
        %v7169 = vpop.f32.mrb[0].mxu0
        %7170 = vmatprep.mubr.bf16.mxu0 0
        %7171 = vmatmul.mubr.bf16.gmra.mrb[0].mxu0 %v6610
        %v7172 = vpop.f32.mrb[0].mxu0
        %v7173 = vadd.f32 %v6852, %v7172
        %v7174 = vpop.f32.mrb[0].mxu0
        %v7175 = vpop.f32.mrb[0].mxu0
        %v7176 = vadd.f32 %v6855, %v7175
        %v7177 = vpop.f32.mrb[0].mxu0
        %7178 = vmatprep.mubr.bf16.mxu0 0
        %7179 = vmatmul.mubr.bf16.gmra.mrb[0].mxu0 %v6613
        %v7180 = vpop.f32.mrb[0].mxu0
        %v7181 = vadd.f32 %v6860, %v7180
        %v7182 = vpop.f32.mrb[0].mxu0
        %v7183 = vpop.f32.mrb[0].mxu0
        %v7184 = vadd.f32 %v6863, %v7183
        %v7185 = vpop.f32.mrb[0].mxu0
        %7186 = vmatprep.mubr.bf16.mxu0 0
        %7187 = vmatmul.mubr.bf16.gmra.mrb[0].mxu0 %v6616
        %v7188 = vpop.f32.mrb[0].mxu0
        %v7189 = vadd.f32 %v6868, %v7188
        %v7190 = vpop.f32.mrb[0].mxu0
        %v7191 = vpop.f32.mrb[0].mxu0
        %v7192 = vadd.f32 %v6871, %v7191
        %v7193 = vpop.f32.mrb[0].mxu0
        %7194 = vmatprep.mubr.bf16.mxu0 0
        %7195 = vmatmul.mubr.bf16.gmra.mrb[0].mxu0 %v6619
        %v7196 = vpop.f32.mrb[0].mxu0
        %v7197 = vadd.f32 %v6876, %v7196
        %v7198 = vpop.f32.mrb[0].mxu0
        %v7199 = vpop.f32.mrb[0].mxu0
        %v7200 = vadd.f32 %v6879, %v7199
        %v7201 = vpop.f32.mrb[0].mxu0
        %7202 = vmatprep.mubr.bf16.mxu0 0
        %7203 = vmatmul.mubr.bf16.gmra.mrb[0].mxu0 %v6622
        %v7204 = vpop.f32.mrb[0].mxu0
        %v7205 = vadd.f32 %v6884, %v7204
        %v7206 = vpop.f32.mrb[0].mxu0
        %v7207 = vpop.f32.mrb[0].mxu0
        %v7208 = vadd.f32 %v6887, %v7207
        %v7209 = vpop.f32.mrb[0].mxu0
        %7210 = vmatprep.mubr.bf16.mxu0 0
        %7211 = vmatmul.mubr.bf16.gmra.mrb[0].mxu0 %v6625
        %v7212 = vpop.f32.mrb[0].mxu0
        %v7213 = vadd.f32 %v6892, %v7212
        %v7214 = vpop.f32.mrb[0].mxu0
        %v7215 = vpop.f32.mrb[0].mxu0
        %v7216 = vadd.f32 %v6895, %v7215
        %v7217 = vpop.f32.mrb[0].mxu0
        %7218 = vmatprep.mubr.bf16.mxu0 0
        %7219 = vmatmul.mubr.bf16.gmra.mrb[0].mxu0 %v6628
        %v7220 = vpop.f32.mrb[0].mxu0
        %v7221 = vadd.f32 %v6900, %v7220
        %v7222 = vpop.f32.mrb[0].mxu0
        %v7223 = vpop.f32.mrb[0].mxu0
        %v7224 = vadd.f32 %v6903, %v7223
        %v7225 = vpop.f32.mrb[0].mxu0
        %7226 = vmatprep.mubr.bf16.mxu0 0
        %7227 = vmatmul.mubr.bf16.gmra.mrb[0].mxu0 %v6631
        %v7228 = vpop.f32.mrb[0].mxu0
        %v7229 = vadd.f32 %v6908, %v7228
        %v7230 = vpop.f32.mrb[0].mxu0
        %v7231 = vpop.f32.mrb[0].mxu0
        %v7232 = vadd.f32 %v6911, %v7231
        %v7233 = vpop.f32.mrb[0].mxu0
        %7234 = vmatprep.mubr.bf16.mxu0 0
        %7235 = vmatmul.mubr.bf16.gmra.mrb[0].mxu0 %v6634
        %v7236 = vpop.f32.mrb[0].mxu0
        %v7237 = vadd.f32 %v6916, %v7236
        %v7238 = vpop.f32.mrb[0].mxu0
        %v7239 = vpop.f32.mrb[0].mxu0
        %v7240 = vadd.f32 %v6919, %v7239
        %v7241 = vpop.f32.mrb[0].mxu0
        %7242 = vmatprep.mubr.bf16.mxu0 0
        %7243 = vmatmul.mubr.bf16.gmra.mrb[0].mxu0 %v6637
        %v7244 = vpop.f32.mrb[0].mxu0
        %v7245 = vadd.f32 %v6924, %v7244
        %v7246 = vpop.f32.mrb[0].mxu0
        %v7247 = vpop.f32.mrb[0].mxu0
        %v7248 = vadd.f32 %v6927, %v7247
        %v7249 = vpop.f32.mrb[0].mxu0
        %7250 = vmatprep.mubr.bf16.mxu0 0
        %7251 = vmatmul.mubr.bf16.gmra.mrb[0].mxu0 %v6640
        %v7252 = vpop.f32.mrb[0].mxu0
        %v7253 = vadd.f32 %v6932, %v7252
        %v7254 = vpop.f32.mrb[0].mxu0
        %v7255 = vpop.f32.mrb[0].mxu0
        %v7256 = vadd.f32 %v6935, %v7255
        %v7257 = vpop.f32.mrb[0].mxu0
        %7258 = vmatprep.mubr.bf16.mxu0 0
        %7259 = vmatmul.mubr.bf16.gmra.mrb[0].mxu0 %v6643
        %v7260 = vpop.f32.mrb[0].mxu0
        %v7261 = vadd.f32 %v6940, %v7260
        %v7262 = vpop.f32.mrb[0].mxu0
        %v7263 = vpop.f32.mrb[0].mxu0
        %v7264 = vadd.f32 %v6943, %v7263
        %v7265 = vpop.f32.mrb[0].mxu0
        %7266 = vmatprep.mubr.bf16.mxu0 0
        %7267 = vmatmul.mubr.bf16.gmra.mrb[0].mxu0 %v6646
        %v7268 = vpop.f32.mrb[0].mxu0
        %v7269 = vadd.f32 %v6948, %v7268
        %v7270 = vpop.f32.mrb[0].mxu0
        %v7271 = vpop.f32.mrb[0].mxu0
        %v7272 = vadd.f32 %v6951, %v7271
        %v7273 = vpop.f32.mrb[0].mxu0
        %7274 = vmatprep.mubr.bf16.mxu0 0
        %7275 = vmatmul.mubr.bf16.gmra.mrb[0].mxu0 %v6649
        %v7276 = vpop.f32.mrb[0].mxu0
        %v7277 = vadd.f32 %v6956, %v7276
        %v7278 = vpop.f32.mrb[0].mxu0
        %v7279 = vpop.f32.mrb[0].mxu0
        %v7280 = vadd.f32 %v6959, %v7279
        %v7281 = vpop.f32.mrb[0].mxu0
        %7282 = vmatprep.mubr.bf16.mxu0 0
        %7283 = vmatmul.mubr.bf16.gmra.mrb[0].mxu0 %v6652
        %v7284 = vpop.f32.mrb[0].mxu0
        %v7285 = vadd.f32 %v6964, %v7284
        %v7286 = vpop.f32.mrb[0].mxu0
        %v7287 = vpop.f32.mrb[0].mxu0
        %v7288 = vadd.f32 %v6967, %v7287
        %v7289 = vpop.f32.mrb[0].mxu0
        %7290 = vmatprep.mubr.bf16.mxu0 0
        %7291 = vmatmul.mubr.bf16.gmra.mrb[0].mxu0 %v6655
        %v7292 = vpop.f32.mrb[0].mxu0
        %v7293 = vadd.f32 %v6972, %v7292
        %v7294 = vpop.f32.mrb[0].mxu0
        %v7295 = vpop.f32.mrb[0].mxu0
        %v7296 = vadd.f32 %v6975, %v7295
        %v7297 = vpop.f32.mrb[0].mxu0
        %7298 = vdwg.mxu0
        %v7299 = vmax.f32 %v7013, 0.0
        %v7300 = vmax.f32 %v7016, 0.0
        %v7301 = vmax.f32 %v7021, 0.0
        %v7302 = vmax.f32 %v7024, 0.0
        %v7303 = vmax.f32 %v7029, 0.0
        %v7304 = vmax.f32 %v7032, 0.0
        %v7305 = vmax.f32 %v7037, 0.0
        %v7306 = vmax.f32 %v7040, 0.0
        %v7307 = vmax.f32 %v7045, 0.0
        %v7308 = vmax.f32 %v7048, 0.0
        %v7309 = vmax.f32 %v7053, 0.0
        %v7310 = vmax.f32 %v7056, 0.0
        %v7311 = vmax.f32 %v7061, 0.0
        %v7312 = vmax.f32 %v7064, 0.0
        %v7313 = vmax.f32 %v7069, 0.0
        %v7314 = vmax.f32 %v7072, 0.0
        %v7315 = vmax.f32 %v7077, 0.0
        %v7316 = vmax.f32 %v7080, 0.0
        %v7317 = vmax.f32 %v7085, 0.0
        %v7318 = vmax.f32 %v7088, 0.0
        %v7319 = vmax.f32 %v7093, 0.0
        %v7320 = vmax.f32 %v7096, 0.0
        %v7321 = vmax.f32 %v7101, 0.0
        %v7322 = vmax.f32 %v7104, 0.0
        %v7323 = vmax.f32 %v7109, 0.0
        %v7324 = vmax.f32 %v7112, 0.0
        %v7325 = vmax.f32 %v7117, 0.0
        %v7326 = vmax.f32 %v7120, 0.0
        %v7327 = vmax.f32 %v7125, 0.0
        %v7328 = vmax.f32 %v7128, 0.0
        %v7329 = vmax.f32 %v7133, 0.0
        %v7330 = vmax.f32 %v7136, 0.0
        %v7331 = vmax.f32 %v7141, 0.0
        %v7332 = vmax.f32 %v7144, 0.0
        %v7333 = vmax.f32 %v7149, 0.0
        %v7334 = vmax.f32 %v7152, 0.0
        %v7335 = vmax.f32 %v7157, 0.0
        %v7336 = vmax.f32 %v7160, 0.0
        %v7337 = vmax.f32 %v7165, 0.0
        %v7338 = vmax.f32 %v7168, 0.0
        %v7339 = vmax.f32 %v7173, 0.0
        %v7340 = vmax.f32 %v7176, 0.0
        %v7341 = vmax.f32 %v7181, 0.0
        %v7342 = vmax.f32 %v7184, 0.0
        %v7343 = vmax.f32 %v7189, 0.0
        %v7344 = vmax.f32 %v7192, 0.0
        %v7345 = vmax.f32 %v7197, 0.0
        %v7346 = vmax.f32 %v7200, 0.0
        %v7347 = vmax.f32 %v7205, 0.0
        %v7348 = vmax.f32 %v7208, 0.0
        %v7349 = vmax.f32 %v7213, 0.0
        %v7350 = vmax.f32 %v7216, 0.0
        %v7351 = vmax.f32 %v7221, 0.0
        %v7352 = vmax.f32 %v7224, 0.0
        %v7353 = vmax.f32 %v7229, 0.0
        %v7354 = vmax.f32 %v7232, 0.0
        %v7355 = vmax.f32 %v7237, 0.0
        %v7356 = vmax.f32 %v7240, 0.0
        %v7357 = vmax.f32 %v7245, 0.0
        %v7358 = vmax.f32 %v7248, 0.0
        %v7359 = vmax.f32 %v7253, 0.0
        %v7360 = vmax.f32 %v7256, 0.0
        %v7361 = vmax.f32 %v7261, 0.0
        %v7362 = vmax.f32 %v7264, 0.0
        %v7363 = vmax.f32 %v7269, 0.0
        %v7364 = vmax.f32 %v7272, 0.0
        %v7365 = vmax.f32 %v7277, 0.0
        %v7366 = vmax.f32 %v7280, 0.0
        %v7367 = vmax.f32 %v7285, 0.0
        %v7368 = vmax.f32 %v7288, 0.0
        %v7369 = vmax.f32 %v7293, 0.0
        %v7370 = vmax.f32 %v7296, 0.0
        %v7371 = vmax.f32 %v7299, %v7302
        %v7372 = vmax.f32 %v7300, %v7303
        %v7373 = vmax.f32 %v7301, %v7304
        %v7374 = vmax.f32 %v7305, %v7308
        %v7375 = vmax.f32 %v7306, %v7309
        %v7376 = vmax.f32 %v7307, %v7310
        %v7377 = vmax.f32 %v7311, %v7314
        %v7378 = vmax.f32 %v7312, %v7315
        %v7379 = vmax.f32 %v7313, %v7316
        %v7380 = vmax.f32 %v7317, %v7320
        %v7381 = vmax.f32 %v7318, %v7321
        %v7382 = vmax.f32 %v7319, %v7322
        %v7383 = vmax.f32 %v7323, %v7326
        %v7384 = vmax.f32 %v7324, %v7327
        %v7385 = vmax.f32 %v7325, %v7328
        %v7386 = vmax.f32 %v7329, %v7332
        %v7387 = vmax.f32 %v7330, %v7333
        %v7388 = vmax.f32 %v7331, %v7334
        %v7389 = vmax.f32 %v7335, %v7338
        %v7390 = vmax.f32 %v7336, %v7339
        %v7391 = vmax.f32 %v7337, %v7340
        %v7392 = vmax.f32 %v7341, %v7344
        %v7393 = vmax.f32 %v7342, %v7345
        %v7394 = vmax.f32 %v7343, %v7346
        %v7395 = vmax.f32 %v7347, %v7350
        %v7396 = vmax.f32 %v7348, %v7351
        %v7397 = vmax.f32 %v7349, %v7352
        %v7398 = vmax.f32 %v7353, %v7356
        %v7399 = vmax.f32 %v7354, %v7357
        %v7400 = vmax.f32 %v7355, %v7358
        %v7401 = vmax.f32 %v7359, %v7362
        %v7402 = vmax.f32 %v7360, %v7363
        %v7403 = vmax.f32 %v7361, %v7364
        %v7404 = vmax.f32 %v7365, %v7368
        %v7405 = vmax.f32 %v7366, %v7369
        %v7406 = vmax.f32 %v7367, %v7370
        %vm7407 = vcmask 523264
        %7408 = vst.msk [vmem:[#allocation5] sm:$0xff] %vm7407, %v7371
        %7409 = vst.msk [vmem:[#allocation5 + $0x8] sm:$0xff] %vm7407, %v7372
        %7410 = vst.msk [vmem:[#allocation5 + $0x10] sm:$0xff] %vm7407, %v7373
        %7411 = vst.msk [vmem:[#allocation5 + $0x18] sm:$0xff] %vm7407, %v7374
        %7412 = vst.msk [vmem:[#allocation5 + $0x20] sm:$0xff] %vm7407, %v7375
        %7413 = vst.msk [vmem:[#allocation5 + $0x28] sm:$0xff] %vm7407, %v7376
        %7414 = vst.msk [vmem:[#allocation5 + $0x30] sm:$0xff] %vm7407, %v7377
        %7415 = vst.msk [vmem:[#allocation5 + $0x38] sm:$0xff] %vm7407, %v7378
        %7416 = vst.msk [vmem:[#allocation5 + $0x40] sm:$0xff] %vm7407, %v7379
        %7417 = vst.msk [vmem:[#allocation5 + $0x48] sm:$0xff] %vm7407, %v7380
        %7418 = vst.msk [vmem:[#allocation5 + $0x50] sm:$0xff] %vm7407, %v7381
        %7419 = vst.msk [vmem:[#allocation5 + $0x58] sm:$0xff] %vm7407, %v7382
        %7420 = vst.msk [vmem:[#allocation5 + $0x60] sm:$0xff] %vm7407, %v7383
        %7421 = vst.msk [vmem:[#allocation5 + $0x68] sm:$0xff] %vm7407, %v7384
        %7422 = vst.msk [vmem:[#allocation5 + $0x70] sm:$0xff] %vm7407, %v7385
        %7423 = vst.msk [vmem:[#allocation5 + $0x78] sm:$0xff] %vm7407, %v7386
        %7424 = vst.msk [vmem:[#allocation5 + $0x80] sm:$0xff] %vm7407, %v7387
        %7425 = vst.msk [vmem:[#allocation5 + $0x88] sm:$0xff] %vm7407, %v7388
        %7426 = vst.msk [vmem:[#allocation5 + $0x90] sm:$0xff] %vm7407, %v7389
        %7427 = vst.msk [vmem:[#allocation5 + $0x98] sm:$0xff] %vm7407, %v7390
        %7428 = vst.msk [vmem:[#allocation5 + $0xa0] sm:$0xff] %vm7407, %v7391
        %7429 = vst.msk [vmem:[#allocation5 + $0xa8] sm:$0xff] %vm7407, %v7392
        %7430 = vst.msk [vmem:[#allocation5 + $0xb0] sm:$0xff] %vm7407, %v7393
        %7431 = vst.msk [vmem:[#allocation5 + $0xb8] sm:$0xff] %vm7407, %v7394
        %7432 = vst.msk [vmem:[#allocation5 + $0xc0] sm:$0xff] %vm7407, %v7395
        %7433 = vst.msk [vmem:[#allocation5 + $0xc8] sm:$0xff] %vm7407, %v7396
        %7434 = vst.msk [vmem:[#allocation5 + $0xd0] sm:$0xff] %vm7407, %v7397
        %7435 = vst.msk [vmem:[#allocation5 + $0xd8] sm:$0xff] %vm7407, %v7398
        %7436 = vst.msk [vmem:[#allocation5 + $0xe0] sm:$0xff] %vm7407, %v7399
        %7437 = vst.msk [vmem:[#allocation5 + $0xe8] sm:$0xff] %vm7407, %v7400
        %7438 = vst.msk [vmem:[#allocation5 + $0xf0] sm:$0xff] %vm7407, %v7401
        %7439 = vst.msk [vmem:[#allocation5 + $0xf8] sm:$0xff] %vm7407, %v7402
        %7440 = vst.msk [vmem:[#allocation5 + $0x100] sm:$0xff] %vm7407, %v7403
        %7441 = vst.msk [vmem:[#allocation5 + $0x108] sm:$0xff] %vm7407, %v7404
        %7442 = vst.msk [vmem:[#allocation5 + $0x110] sm:$0xff] %vm7407, %v7405
        %7443 = vst.msk [vmem:[#allocation5 + $0x118] sm:$0xff] %vm7407, %v7406
        %v7444 = vld [vmem:[#allocation5] ss:$4 sm:$0x3f]
        %s7445 = scalar_lea.vmem [#allocation5], 24
        %v7446 = vld [vmem:[%s7445] ss:$4 sm:$0x3f]
        %s7447 = scalar_lea.vmem [#allocation5], 48
        %v7448 = vld [vmem:[%s7447] ss:$4 sm:$0x3f]
        %s7449 = scalar_lea.vmem [#allocation5], 72
        %v7450 = vld [vmem:[%s7449] ss:$4 sm:$0x3f]
        %s7451 = scalar_lea.vmem [#allocation5], 96
        %v7452 = vld [vmem:[%s7451] ss:$4 sm:$0x3f]
        %s7453 = scalar_lea.vmem [#allocation5], 120
        %v7454 = vld [vmem:[%s7453] ss:$4 sm:$0x3f]
        %s7455 = scalar_lea.vmem [#allocation5], 144
        %v7456 = vld [vmem:[%s7455] ss:$4 sm:$0x3f]
        %s7457 = scalar_lea.vmem [#allocation5], 168
        %v7458 = vld [vmem:[%s7457] ss:$4 sm:$0x3f]
        %s7459 = scalar_lea.vmem [#allocation5], 192
        %v7460 = vld [vmem:[%s7459] ss:$4 sm:$0x3f]
        %s7461 = scalar_lea.vmem [#allocation5], 216
        %v7462 = vld [vmem:[%s7461] ss:$4 sm:$0x3f]
        %s7463 = scalar_lea.vmem [#allocation5], 240
        %v7464 = vld [vmem:[%s7463] ss:$4 sm:$0x3f]
        %s7465 = scalar_lea.vmem [#allocation5], 264
        %v7466 = vld [vmem:[%s7465] ss:$4 sm:$0x3f]
        %s7467 = scalar_lea.vmem [#allocation5], 1
        %v7468 = vld [vmem:[%s7467] ss:$4 sm:$0x3f]
        %s7469 = scalar_lea.vmem [#allocation5], 25
        %v7470 = vld [vmem:[%s7469] ss:$4 sm:$0x3f]
        %s7471 = scalar_lea.vmem [#allocation5], 49
        %v7472 = vld [vmem:[%s7471] ss:$4 sm:$0x3f]
        %s7473 = scalar_lea.vmem [#allocation5], 73
        %v7474 = vld [vmem:[%s7473] ss:$4 sm:$0x3f]
        %s7475 = scalar_lea.vmem [#allocation5], 97
        %v7476 = vld [vmem:[%s7475] ss:$4 sm:$0x3f]
        %s7477 = scalar_lea.vmem [#allocation5], 121
        %v7478 = vld [vmem:[%s7477] ss:$4 sm:$0x3f]
        %s7479 = scalar_lea.vmem [#allocation5], 145
        %v7480 = vld [vmem:[%s7479] ss:$4 sm:$0x3f]
        %s7481 = scalar_lea.vmem [#allocation5], 169
        %v7482 = vld [vmem:[%s7481] ss:$4 sm:$0x3f]
        %s7483 = scalar_lea.vmem [#allocation5], 193
        %v7484 = vld [vmem:[%s7483] ss:$4 sm:$0x3f]
        %s7485 = scalar_lea.vmem [#allocation5], 217
        %v7486 = vld [vmem:[%s7485] ss:$4 sm:$0x3f]
        %s7487 = scalar_lea.vmem [#allocation5], 241
        %v7488 = vld [vmem:[%s7487] ss:$4 sm:$0x3f]
        %s7489 = scalar_lea.vmem [#allocation5], 265
        %v7490 = vld [vmem:[%s7489] ss:$4 sm:$0x3f]
        %s7491 = scalar_lea.vmem [#allocation5], 2
        %v7492 = vld [vmem:[%s7491] ss:$4 sm:$0x3f]
        %s7493 = scalar_lea.vmem [#allocation5], 26
        %v7494 = vld [vmem:[%s7493] ss:$4 sm:$0x3f]
        %s7495 = scalar_lea.vmem [#allocation5], 50
        %v7496 = vld [vmem:[%s7495] ss:$4 sm:$0x3f]
        %s7497 = scalar_lea.vmem [#allocation5], 74
        %v7498 = vld [vmem:[%s7497] ss:$4 sm:$0x3f]
        %s7499 = scalar_lea.vmem [#allocation5], 98
        %v7500 = vld [vmem:[%s7499] ss:$4 sm:$0x3f]
        %s7501 = scalar_lea.vmem [#allocation5], 122
        %v7502 = vld [vmem:[%s7501] ss:$4 sm:$0x3f]
        %s7503 = scalar_lea.vmem [#allocation5], 146
        %v7504 = vld [vmem:[%s7503] ss:$4 sm:$0x3f]
        %s7505 = scalar_lea.vmem [#allocation5], 170
        %v7506 = vld [vmem:[%s7505] ss:$4 sm:$0x3f]
        %s7507 = scalar_lea.vmem [#allocation5], 194
        %v7508 = vld [vmem:[%s7507] ss:$4 sm:$0x3f]
        %s7509 = scalar_lea.vmem [#allocation5], 218
        %v7510 = vld [vmem:[%s7509] ss:$4 sm:$0x3f]
        %s7511 = scalar_lea.vmem [#allocation5], 242
        %v7512 = vld [vmem:[%s7511] ss:$4 sm:$0x3f]
        %s7513 = scalar_lea.vmem [#allocation5], 266
        %v7514 = vld [vmem:[%s7513] ss:$4 sm:$0x3f]
        %s7515 = scalar_lea.vmem [#allocation5], 3
        %v7516 = vld [vmem:[%s7515] ss:$4 sm:$0x3f]
        %s7517 = scalar_lea.vmem [#allocation5], 27
        %v7518 = vld [vmem:[%s7517] ss:$4 sm:$0x3f]
        %s7519 = scalar_lea.vmem [#allocation5], 51
        %v7520 = vld [vmem:[%s7519] ss:$4 sm:$0x3f]
        %s7521 = scalar_lea.vmem [#allocation5], 75
        %v7522 = vld [vmem:[%s7521] ss:$4 sm:$0x3f]
        %s7523 = scalar_lea.vmem [#allocation5], 99
        %v7524 = vld [vmem:[%s7523] ss:$4 sm:$0x3f]
        %s7525 = scalar_lea.vmem [#allocation5], 123
        %v7526 = vld [vmem:[%s7525] ss:$4 sm:$0x3f]
        %s7527 = scalar_lea.vmem [#allocation5], 147
        %v7528 = vld [vmem:[%s7527] ss:$4 sm:$0x3f]
        %s7529 = scalar_lea.vmem [#allocation5], 171
        %v7530 = vld [vmem:[%s7529] ss:$4 sm:$0x3f]
        %s7531 = scalar_lea.vmem [#allocation5], 195
        %v7532 = vld [vmem:[%s7531] ss:$4 sm:$0x3f]
        %s7533 = scalar_lea.vmem [#allocation5], 219
        %v7534 = vld [vmem:[%s7533] ss:$4 sm:$0x3f]
        %s7535 = scalar_lea.vmem [#allocation5], 243
        %v7536 = vld [vmem:[%s7535] ss:$4 sm:$0x3f]
        %s7537 = scalar_lea.vmem [#allocation5], 267
        %v7538 = vld [vmem:[%s7537] ss:$4 sm:$0x3f]
        %v7539 = vmax.f32 %v7444, %v7468
        %v7540 = vmax.f32 %v7446, %v7470
        %v7541 = vmax.f32 %v7448, %v7472
        %v7542 = vmax.f32 %v7450, %v7474
        %v7543 = vmax.f32 %v7452, %v7476
        %v7544 = vmax.f32 %v7454, %v7478
        %v7545 = vmax.f32 %v7456, %v7480
        %v7546 = vmax.f32 %v7458, %v7482
        %v7547 = vmax.f32 %v7460, %v7484
        %v7548 = vmax.f32 %v7462, %v7486
        %v7549 = vmax.f32 %v7464, %v7488
        %v7550 = vmax.f32 %v7466, %v7490
        %v7551 = vmax.f32 %v7492, %v7516
        %v7552 = vmax.f32 %v7494, %v7518
        %v7553 = vmax.f32 %v7496, %v7520
        %v7554 = vmax.f32 %v7498, %v7522
        %v7555 = vmax.f32 %v7500, %v7524
        %v7556 = vmax.f32 %v7502, %v7526
        %v7557 = vmax.f32 %v7504, %v7528
        %v7558 = vmax.f32 %v7506, %v7530
        %v7559 = vmax.f32 %v7508, %v7532
        %v7560 = vmax.f32 %v7510, %v7534
        %v7561 = vmax.f32 %v7512, %v7536
        %v7562 = vmax.f32 %v7514, %v7538
        %7575 = vrot.lane.b32.xlu0 %v7551, 64
        %v7576 = vpop.permute.xlu0 %7575
        %7577 = vrot.lane.b32.xlu0 %v7552, 64
        %v7578 = vpop.permute.xlu0 %7577
        %7579 = vrot.lane.b32.xlu0 %v7553, 64
        %v7580 = vpop.permute.xlu0 %7579
        %7581 = vrot.lane.b32.xlu0 %v7554, 64
        %v7582 = vpop.permute.xlu0 %7581
        %7583 = vrot.lane.b32.xlu0 %v7555, 64
        %v7584 = vpop.permute.xlu0 %7583
        %7585 = vrot.lane.b32.xlu0 %v7556, 64
        %v7586 = vpop.permute.xlu0 %7585
        %7587 = vrot.lane.b32.xlu0 %v7557, 64
        %v7588 = vpop.permute.xlu0 %7587
        %7589 = vrot.lane.b32.xlu0 %v7558, 64
        %v7590 = vpop.permute.xlu0 %7589
        %7591 = vrot.lane.b32.xlu0 %v7559, 64
        %v7592 = vpop.permute.xlu0 %7591
        %7593 = vrot.lane.b32.xlu0 %v7560, 64
        %v7594 = vpop.permute.xlu0 %7593
        %7595 = vrot.lane.b32.xlu0 %v7561, 64
        %v7596 = vpop.permute.xlu0 %7595
        %7597 = vrot.lane.b32.xlu0 %v7562, 64
        %v7598 = vpop.permute.xlu0 %7597
        %v7611 = vsel %vm7407, %v7539, %v7576
        %v7612 = vsel %vm7407, %v7540, %v7578
        %v7613 = vsel %vm7407, %v7541, %v7580
        %v7614 = vsel %vm7407, %v7542, %v7582
        %v7615 = vsel %vm7407, %v7543, %v7584
        %v7616 = vsel %vm7407, %v7544, %v7586
        %v7617 = vsel %vm7407, %v7545, %v7588
        %v7618 = vsel %vm7407, %v7546, %v7590
        %v7619 = vsel %vm7407, %v7547, %v7592
        %v7620 = vsel %vm7407, %v7548, %v7594
        %v7621 = vsel %vm7407, %v7549, %v7596
        %v7622 = vsel %vm7407, %v7550, %v7598
        %v7623 = vpack.c.bf16 %v7611, %v7611
        %v7624 = vpack.c.bf16 %v7612, %v7612
        %v7625 = vpack.c.bf16 %v7613, %v7613
        %v7626 = vpack.c.bf16 %v7614, %v7614
        %v7627 = vpack.c.bf16 %v7615, %v7615
        %v7628 = vpack.c.bf16 %v7616, %v7616
        %v7629 = vpack.c.bf16 %v7617, %v7617
        %v7630 = vpack.c.bf16 %v7618, %v7618
        %v7631 = vpack.c.bf16 %v7619, %v7619
        %v7632 = vpack.c.bf16 %v7620, %v7620
        %v7633 = vpack.c.bf16 %v7621, %v7621
        %v7634 = vpack.c.bf16 %v7622, %v7622
        %7635 = vst [vmem:[%s264] sm:$0x7] %v7623
        %7636 = vst [vmem:[%s264 + $0x4] sm:$0x7] %v7624
        %7637 = vst [vmem:[%s264 + $0x8] sm:$0x7] %v7625
        %7638 = vst [vmem:[%s264 + $0xc] sm:$0x7] %v7626
        %7639 = vst [vmem:[%s264 + $0x10] sm:$0x7] %v7627
        %7640 = vst [vmem:[%s264 + $0x14] sm:$0x7] %v7628
        %7641 = vst [vmem:[%s264 + $0x18] sm:$0x7] %v7629
        %7642 = vst [vmem:[%s264 + $0x1c] sm:$0x7] %v7630
        %7643 = vst [vmem:[%s264 + $0x20] sm:$0x7] %v7631
        %7644 = vst [vmem:[%s264 + $0x24] sm:$0x7] %v7632
        %7645 = vst [vmem:[%s264 + $0x28] sm:$0x7] %v7633
        %7646 = vst [vmem:[%s264 + $0x2c] sm:$0x7] %v7634
        %p7647 = scmp.lt.s32.totalorder %s18, 1
        %s7648 = scalar_select %p7647, %s18, 1
        %s7649 = smul.addr %s7648, 12
        %s7650 = smul.addr %s7649, 4
        %s7651 = scalar_lea.vmem %s5, %s7650
        // Predicated region
        $region53: #{net_forward.2} parent=39 // pred_check
          %p7652 = pneg %p146
        $region54: #{net_forward.2} parent=39 // pred_check_branch
          %7654 = sbr.rel (%p7652) target = $region56
        $region55: #{net_forward.2} parent=39 // pred_region
          _
        $region56: #{net_forward.2} parent=39 // pred_fallthru
          _
      $region40: #{net_forward.2} parent=5 // pred_fallthru
        _
      %p7655 = scmp.le.s32.totalorder 2, %s13
      // Predicated region
      $region57: #{net_forward.2} parent=5 // pred_check
        %p7656 = pneg %p7655
      $region58: #{net_forward.2} parent=5 // pred_check_branch
        %7658 = sbr.rel (%p7656) target = $region60
      $region59: #{net_forward.2} parent=5 // pred_region
        %s7659 = ssub.s32 %s13, 2
        // Predicated region
        $region61: #{net_forward.2} parent=59 // pred_check
          %p7660 = pneg %p152
        $region62: #{net_forward.2} parent=59 // pred_check_branch
          %7662 = sbr.rel (%p7660) target = $region64
        $region63: #{net_forward.2} parent=59 // pred_region
          %p7663 = scmp.lt.s32.totalorder %s19, 1
          %s7664 = scalar_select %p7663, %s19, 1
          %s7665 = smul.addr %s7664, 12
          %s7666 = smul.addr %s7665, 4
          %s7667 = scalar_lea.vmem %s5, %s7666
        $region64: #{net_forward.2} parent=59 // pred_fallthru
          _
      $region60: #{net_forward.2} parent=5 // pred_fallthru
        _
    $region6: #{net_forward.2} parent=1 // loop_footer
      %s17 = sadd.s32 1, %s13
    $region7: #{net_forward.2} parent=1 // loop_footer_branch
      %12 = sbr.rel target = $region3
    $region8: #{net_forward.2} parent=1 // loop_exit
      _
    %7668 = vsyncpa [#allocation7], 1
    %s7669 = scalar_lea.sflag [#allocation7], 1
    %7670 = vsyncpa %s7669, 1
    %7671 = vsyncpa [#allocation9], 1

</llo_original>
